<compile_context>
chip_gen: v7x
topology: tpu7x:2x2x1
jax: 0.10.0
libtpu: 0.0.40
codegen_flags: <defaults>
</compile_context>

<pallas_src>
import functools

import jax
import jax.numpy as jnp
from jax import lax
from jax.experimental import pallas as pl
from jax.experimental.pallas import tpu as pltpu

LANE = 128


def _zero_halo(pad_ref, H, W, Cp):
    """Zero only the 1-pixel halo ring of a (1, H+2, W+2, Cp) scratch."""
    row = jnp.zeros((1, 1, W + 2, Cp), pad_ref.dtype)
    col = jnp.zeros((1, H + 2, 1, Cp), pad_ref.dtype)
    pad_ref[:, 0:1, :, :] = row
    pad_ref[:, H + 1:H + 2, :, :] = row
    pad_ref[:, :, 0:1, :] = col
    pad_ref[:, :, W + 1:W + 2, :] = col


def _conv3x3_im2col(pad_ref, w_ref, H, W, Cp):
    """3x3 conv as a single MXU matmul: (H*W, 9*Cp) bf16 @ (9*Cp, Cp) bf16 -> f32."""
    cols = jnp.concatenate(
        [pad_ref[:, dy:dy + H, dx:dx + W, :]
         for dy in range(3) for dx in range(3)],
        axis=-1)                                   # (1, H, W, 9*Cp) bf16
    lhs = cols.reshape(H * W, 9 * Cp)
    return jnp.dot(lhs, w_ref[...], preferred_element_type=jnp.float32)


def basic_block_kernel(x_ref, w1_ref, s1_ref, b1_ref, w2_ref, s2_ref, b2_ref,
                       out_ref, xpad_ref, midpad_ref, *, H, W, no_relu):
    """Fused conv3x3 -> BN -> ReLU -> conv3x3 -> BN -> (+res) -> ReLU for one batch tile."""
    Cp = out_ref.shape[-1]
    HW = H * W

    # Zero only the halo ring; interiors are fully overwritten below.
    _zero_halo(xpad_ref, H, W, Cp)
    _zero_halo(midpad_ref, H, W, Cp)

    x = x_ref[...]                                           # (1, H, W, Cp) f32
    xpad_ref[:, 1:H + 1, 1:W + 1, :] = x.astype(xpad_ref.dtype)

    # ---- conv1 -> bn1 -> relu (bf16 matmul operands, f32 accumulation/epilogue)
    acc1 = _conv3x3_im2col(xpad_ref, w1_ref, H, W, Cp)        # (HW, Cp) f32
    y1 = jnp.maximum(acc1 * s1_ref[...] + b1_ref[...], 0.0)
    midpad_ref[:, 1:H + 1, 1:W + 1, :] = (
        y1.reshape(1, H, W, Cp).astype(midpad_ref.dtype))

    # ---- conv2 -> bn2 -> + residual -> (relu)
    acc2 = _conv3x3_im2col(midpad_ref, w2_ref, H, W, Cp)      # (HW, Cp) f32
    out = acc2 * s2_ref[...] + b2_ref[...] + x.reshape(HW, Cp)
    if not no_relu:
        out = jnp.maximum(out, 0.0)
    out_ref[...] = out.reshape(1, H, W, Cp).astype(out_ref.dtype)


def basic_block_forward(x_nchw, params, *, no_relu=False, eps=1e-5):
    """Wrapper: NCHW in / NCHW out, matching the PyTorch module semantics."""
    B, C, H, W = x_nchw.shape
    Cp = max(LANE, ((C + LANE - 1) // LANE) * LANE)    # lane-dense channel count

    # NHWC, channels zero-padded to Cp (lane dim multiple of 128).
    x = jnp.transpose(x_nchw, (0, 2, 3, 1)).astype(jnp.float32)
    x = jnp.pad(x, ((0, 0), (0, 0), (0, 0), (0, Cp - C)))

    def prep_w(w):
        # (Cout, Cin, 3, 3) -> tap-major im2col weight matrix (9*Cp, Cp), bf16.
        w = jnp.transpose(w, (2, 3, 1, 0))                         # (3,3,Cin,Cout)
        w = jnp.pad(w, ((0, 0), (0, 0), (0, Cp - C), (0, Cp - C)))
        return w.reshape(9 * Cp, Cp).astype(jnp.bfloat16)

    def prep_bn(gamma, beta, mean, var):
        s = gamma / jnp.sqrt(var + eps)
        b = beta - mean * s
        s = jnp.pad(s, (0, Cp - C)).reshape(1, Cp).astype(jnp.float32)
        b = jnp.pad(b, (0, Cp - C)).reshape(1, Cp).astype(jnp.float32)
        return s, b

    w1 = prep_w(params['w1'])
    w2 = prep_w(params['w2'])
    s1, b1 = prep_bn(params['gamma1'], params['beta1'],
                     params['mean1'], params['var1'])
    s2, b2 = prep_bn(params['gamma2'], params['beta2'],
                     params['mean2'], params['var2'])

    kernel = functools.partial(basic_block_kernel, H=H, W=W, no_relu=no_relu)
    resident = lambda b: (0, 0)      # weights / BN params stay in VMEM across the grid

    out = pl.pallas_call(
        kernel,
        out_shape=jax.ShapeDtypeStruct((B, H, W, Cp), jnp.float32),
        grid=(B,),
        in_specs=[
            pl.BlockSpec((1, H, W, Cp), lambda b: (b, 0, 0, 0)),   # x (conv1 in + residual)
            pl.BlockSpec((9 * Cp, Cp), resident),                  # w1 (im2col)
            pl.BlockSpec((1, Cp), resident),                       # bn1 scale
            pl.BlockSpec((1, Cp), resident),                       # bn1 bias
            pl.BlockSpec((9 * Cp, Cp), resident),                  # w2 (im2col)
            pl.BlockSpec((1, Cp), resident),                       # bn2 scale
            pl.BlockSpec((1, Cp), resident),                       # bn2 bias
        ],
        out_specs=pl.BlockSpec((1, H, W, Cp), lambda b: (b, 0, 0, 0)),
        scratch_shapes=[
            pltpu.VMEM((1, H + 2, W + 2, Cp), jnp.bfloat16),       # padded x
            pltpu.VMEM((1, H + 2, W + 2, Cp), jnp.bfloat16),       # padded relu(bn1)
        ],
        compiler_params=pltpu.CompilerParams(
            dimension_semantics=("parallel",),       # megacore-shard batch on v7x
            vmem_limit_bytes=32 * 1024 * 1024,       # fits every generation's budget
        ),
    )(x, w1, s1, b1, w2, s2, b2)

    out = out[..., :C]                               # drop channel padding
    return jnp.transpose(out, (0, 3, 1, 2))          # back to NCHW


def basic_block_reference(x_nchw, params, *, no_relu=False, eps=1e-5):
    """Pure-JAX f32 reference (lax conv) mirroring the PyTorch forward."""
    def conv3x3(x, w):
        return lax.conv_general_dilated(
            x, w, window_strides=(1, 1), padding=((1, 1), (1, 1)),
            dimension_numbers=('NCHW', 'OIHW', 'NCHW'))

    def bn(x, gamma, beta, mean, var):
        s = gamma / jnp.sqrt(var + eps)
        b = beta - mean * s
        return x * s[None, :, None, None] + b[None, :, None, None]

    residual = x_nchw
    out = conv3x3(x_nchw, params['w1'])
    out = jnp.maximum(bn(out, params['gamma1'], params['beta1'],
                         params['mean1'], params['var1']), 0.0)
    out = conv3x3(out, params['w2'])
    out = bn(out, params['gamma2'], params['beta2'],
             params['mean2'], params['var2'])
    out = out + residual
    return out if no_relu else jnp.maximum(out, 0.0)


def make_params(key, inplanes, planes):
    ks = jax.random.split(key, 8)
    fan_in = inplanes * 3 * 3
    std = (2.0 / fan_in) ** 0.5
    return {
        'w1': std * jax.random.normal(ks[0], (planes, inplanes, 3, 3), jnp.float32),
        'w2': std * jax.random.normal(ks[1], (planes, planes, 3, 3), jnp.float32),
        'gamma1': 1.0 + 0.1 * jax.random.normal(ks[2], (planes,), jnp.float32),
        'beta1': 0.1 * jax.random.normal(ks[3], (planes,), jnp.float32),
        'mean1': 0.1 * jax.random.normal(ks[4], (planes,), jnp.float32),
        'var1': jnp.abs(jax.random.normal(ks[5], (planes,), jnp.float32)) + 0.5,
        'gamma2': 1.0 + 0.1 * jax.random.normal(ks[6], (planes,), jnp.float32),
        'beta2': 0.1 * jax.random.normal(ks[7], (planes,), jnp.float32),
        'mean2': jnp.zeros((planes,), jnp.float32),
        'var2': jnp.ones((planes,), jnp.float32),
    }


if __name__ == "__main__":
    key = jax.random.PRNGKey(0)
    kx, kp = jax.random.split(key)

    B, C, HH, WW = 2, 4, 16, 16      # inplanes == planes, stride=1, no downsample
    x = jax.random.normal(kx, (B, C, HH, WW), jnp.float32)
    params = make_params(kp, C, C)

    out = jax.block_until_ready(basic_block_forward(x, params, no_relu=False))

    ref = basic_block_reference(x, params, no_relu=False)
    assert out.shape == ref.shape
    # bf16 MXU operands (f32 accumulation + f32 BN/residual epilogue) vs the
    # pure-f32 reference: tolerance sized for bf16 input/weight rounding.
    max_err = float(jnp.max(jnp.abs(out - ref)))
    assert jnp.allclose(out, ref, atol=1e-1, rtol=2e-2), \
        f"mismatch vs reference, max abs err = {max_err}"

    print("KERNEL_OK")
</pallas_src>

<mosaic_0001>
module attributes {stable_mosaic.version = 11 : i64} {
  func.func @basic_block_kernel(%arg0: i32, %arg1: memref<1x16x16x128xf32, #tpu.memory_space<vmem>>, %arg2: memref<1152x128xbf16, #tpu.memory_space<vmem>>, %arg3: memref<1x128xf32, #tpu.memory_space<vmem>>, %arg4: memref<1x128xf32, #tpu.memory_space<vmem>>, %arg5: memref<1152x128xbf16, #tpu.memory_space<vmem>>, %arg6: memref<1x128xf32, #tpu.memory_space<vmem>>, %arg7: memref<1x128xf32, #tpu.memory_space<vmem>>, %arg8: memref<1x16x16x128xf32, #tpu.memory_space<vmem>>, %arg9: memref<1x18x18x128xbf16, #tpu.memory_space<vmem>>, %arg10: memref<1x18x18x128xbf16, #tpu.memory_space<vmem>>) attributes {dimension_semantics = [#tpu.dimension_semantics<parallel>], iteration_bounds = array<i64: 2>, scalar_prefetch = 0 : i64, scratch_operands = 2 : i64, tpu.core_type = #tpu.core_type<tc>, window_params = [{transform_indices = @transform_0, window_bounds = array<i64: 1, 16, 16, 128>}, {pipeline_mode = #tpu.pipeline_mode<synchronous>, transform_indices = @transform_1, window_bounds = array<i64: 1152, 128>}, {pipeline_mode = #tpu.pipeline_mode<synchronous>, transform_indices = @transform_2, window_bounds = array<i64: 1, 128>}, {pipeline_mode = #tpu.pipeline_mode<synchronous>, transform_indices = @transform_3, window_bounds = array<i64: 1, 128>}, {pipeline_mode = #tpu.pipeline_mode<synchronous>, transform_indices = @transform_4, window_bounds = array<i64: 1152, 128>}, {pipeline_mode = #tpu.pipeline_mode<synchronous>, transform_indices = @transform_5, window_bounds = array<i64: 1, 128>}, {pipeline_mode = #tpu.pipeline_mode<synchronous>, transform_indices = @transform_6, window_bounds = array<i64: 1, 128>}, {transform_indices = @transform_7, window_bounds = array<i64: 1, 16, 16, 128>}]} {
    %cst = arith.constant 0.000000e+00 : bf16
    %0 = vector.broadcast %cst : bf16 to vector<1x1x18x128xbf16>
    %cst_0 = arith.constant 0.000000e+00 : bf16
    %1 = vector.broadcast %cst_0 : bf16 to vector<1x18x1x128xbf16>
    %c0 = arith.constant 0 : index
    %c0_1 = arith.constant 0 : index
    %c0_2 = arith.constant 0 : index
    %c0_3 = arith.constant 0 : index
    %2 = vector.load %arg9[%c0, %c0_1, %c0_2, %c0_3] : memref<1x18x18x128xbf16, #tpu.memory_space<vmem>>, vector<1x1x18x128xbf16>
    tpu.vector_store %arg9[%c0, %c0_1, %c0_2, %c0_3], %0 {strides = array<i32>} : memref<1x18x18x128xbf16, #tpu.memory_space<vmem>>, vector<1x1x18x128xbf16>,
    %c0_4 = arith.constant 0 : index
    %c17 = arith.constant 17 : index
    %c0_5 = arith.constant 0 : index
    %c0_6 = arith.constant 0 : index
    %3 = vector.load %arg9[%c0_4, %c17, %c0_5, %c0_6] : memref<1x18x18x128xbf16, #tpu.memory_space<vmem>>, vector<1x1x18x128xbf16>
    tpu.vector_store %arg9[%c0_4, %c17, %c0_5, %c0_6], %0 {strides = array<i32>} : memref<1x18x18x128xbf16, #tpu.memory_space<vmem>>, vector<1x1x18x128xbf16>,
    %c0_7 = arith.constant 0 : index
    %c0_8 = arith.constant 0 : index
    %c0_9 = arith.constant 0 : index
    %c0_10 = arith.constant 0 : index
    %4 = vector.load %arg9[%c0_7, %c0_8, %c0_9, %c0_10] : memref<1x18x18x128xbf16, #tpu.memory_space<vmem>>, vector<1x18x1x128xbf16>
    tpu.vector_store %arg9[%c0_7, %c0_8, %c0_9, %c0_10], %1 {strides = array<i32>} : memref<1x18x18x128xbf16, #tpu.memory_space<vmem>>, vector<1x18x1x128xbf16>,
    %c0_11 = arith.constant 0 : index
    %c0_12 = arith.constant 0 : index
    %c17_13 = arith.constant 17 : index
    %c0_14 = arith.constant 0 : index
    %5 = vector.load %arg9[%c0_11, %c0_12, %c17_13, %c0_14] : memref<1x18x18x128xbf16, #tpu.memory_space<vmem>>, vector<1x18x1x128xbf16>
    tpu.vector_store %arg9[%c0_11, %c0_12, %c17_13, %c0_14], %1 {strides = array<i32>} : memref<1x18x18x128xbf16, #tpu.memory_space<vmem>>, vector<1x18x1x128xbf16>,
    %cst_15 = arith.constant 0.000000e+00 : bf16
    %6 = vector.broadcast %cst_15 : bf16 to vector<1x1x18x128xbf16>
    %cst_16 = arith.constant 0.000000e+00 : bf16
    %7 = vector.broadcast %cst_16 : bf16 to vector<1x18x1x128xbf16>
    %c0_17 = arith.constant 0 : index
    %c0_18 = arith.constant 0 : index
    %c0_19 = arith.constant 0 : index
    %c0_20 = arith.constant 0 : index
    %8 = vector.load %arg10[%c0_17, %c0_18, %c0_19, %c0_20] : memref<1x18x18x128xbf16, #tpu.memory_space<vmem>>, vector<1x1x18x128xbf16>
    tpu.vector_store %arg10[%c0_17, %c0_18, %c0_19, %c0_20], %6 {strides = array<i32>} : memref<1x18x18x128xbf16, #tpu.memory_space<vmem>>, vector<1x1x18x128xbf16>,
    %c0_21 = arith.constant 0 : index
    %c17_22 = arith.constant 17 : index
    %c0_23 = arith.constant 0 : index
    %c0_24 = arith.constant 0 : index
    %9 = vector.load %arg10[%c0_21, %c17_22, %c0_23, %c0_24] : memref<1x18x18x128xbf16, #tpu.memory_space<vmem>>, vector<1x1x18x128xbf16>
    tpu.vector_store %arg10[%c0_21, %c17_22, %c0_23, %c0_24], %6 {strides = array<i32>} : memref<1x18x18x128xbf16, #tpu.memory_space<vmem>>, vector<1x1x18x128xbf16>,
    %c0_25 = arith.constant 0 : index
    %c0_26 = arith.constant 0 : index
    %c0_27 = arith.constant 0 : index
    %c0_28 = arith.constant 0 : index
    %10 = vector.load %arg10[%c0_25, %c0_26, %c0_27, %c0_28] : memref<1x18x18x128xbf16, #tpu.memory_space<vmem>>, vector<1x18x1x128xbf16>
    tpu.vector_store %arg10[%c0_25, %c0_26, %c0_27, %c0_28], %7 {strides = array<i32>} : memref<1x18x18x128xbf16, #tpu.memory_space<vmem>>, vector<1x18x1x128xbf16>,
    %c0_29 = arith.constant 0 : index
    %c0_30 = arith.constant 0 : index
    %c17_31 = arith.constant 17 : index
    %c0_32 = arith.constant 0 : index
    %11 = vector.load %arg10[%c0_29, %c0_30, %c17_31, %c0_32] : memref<1x18x18x128xbf16, #tpu.memory_space<vmem>>, vector<1x18x1x128xbf16>
    tpu.vector_store %arg10[%c0_29, %c0_30, %c17_31, %c0_32], %7 {strides = array<i32>} : memref<1x18x18x128xbf16, #tpu.memory_space<vmem>>, vector<1x18x1x128xbf16>,
    %c0_33 = arith.constant 0 : index
    %c0_34 = arith.constant 0 : index
    %c0_35 = arith.constant 0 : index
    %c0_36 = arith.constant 0 : index
    %12 = vector.load %arg1[%c0_33, %c0_34, %c0_35, %c0_36] : memref<1x16x16x128xf32, #tpu.memory_space<vmem>>, vector<1x16x16x128xf32>
    %13 = arith.truncf %12 : vector<1x16x16x128xf32> to vector<1x16x16x128xbf16>
    %c0_37 = arith.constant 0 : index
    %c1 = arith.constant 1 : index
    %c1_38 = arith.constant 1 : index
    %c0_39 = arith.constant 0 : index
    %14 = vector.load %arg9[%c0_37, %c1, %c1_38, %c0_39] : memref<1x18x18x128xbf16, #tpu.memory_space<vmem>>, vector<1x16x16x128xbf16>
    tpu.vector_store %arg9[%c0_37, %c1, %c1_38, %c0_39], %13 {strides = array<i32>} : memref<1x18x18x128xbf16, #tpu.memory_space<vmem>>, vector<1x16x16x128xbf16>,
    %c0_40 = arith.constant 0 : index
    %c0_41 = arith.constant 0 : index
    %c0_42 = arith.constant 0 : index
    %c0_43 = arith.constant 0 : index
    %15 = vector.load %arg9[%c0_40, %c0_41, %c0_42, %c0_43] : memref<1x18x18x128xbf16, #tpu.memory_space<vmem>>, vector<1x16x16x128xbf16>
    %c0_44 = arith.constant 0 : index
    %c0_45 = arith.constant 0 : index
    %c1_46 = arith.constant 1 : index
    %c0_47 = arith.constant 0 : index
    %16 = vector.load %arg9[%c0_44, %c0_45, %c1_46, %c0_47] : memref<1x18x18x128xbf16, #tpu.memory_space<vmem>>, vector<1x16x16x128xbf16>
    %c0_48 = arith.constant 0 : index
    %c0_49 = arith.constant 0 : index
    %c2 = arith.constant 2 : index
    %c0_50 = arith.constant 0 : index
    %17 = vector.load %arg9[%c0_48, %c0_49, %c2, %c0_50] : memref<1x18x18x128xbf16, #tpu.memory_space<vmem>>, vector<1x16x16x128xbf16>
    %c0_51 = arith.constant 0 : index
    %c1_52 = arith.constant 1 : index
    %c0_53 = arith.constant 0 : index
    %c0_54 = arith.constant 0 : index
    %18 = vector.load %arg9[%c0_51, %c1_52, %c0_53, %c0_54] : memref<1x18x18x128xbf16, #tpu.memory_space<vmem>>, vector<1x16x16x128xbf16>
    %c0_55 = arith.constant 0 : index
    %c1_56 = arith.constant 1 : index
    %c1_57 = arith.constant 1 : index
    %c0_58 = arith.constant 0 : index
    %19 = vector.load %arg9[%c0_55, %c1_56, %c1_57, %c0_58] : memref<1x18x18x128xbf16, #tpu.memory_space<vmem>>, vector<1x16x16x128xbf16>
    %c0_59 = arith.constant 0 : index
    %c1_60 = arith.constant 1 : index
    %c2_61 = arith.constant 2 : index
    %c0_62 = arith.constant 0 : index
    %20 = vector.load %arg9[%c0_59, %c1_60, %c2_61, %c0_62] : memref<1x18x18x128xbf16, #tpu.memory_space<vmem>>, vector<1x16x16x128xbf16>
    %c0_63 = arith.constant 0 : index
    %c2_64 = arith.constant 2 : index
    %c0_65 = arith.constant 0 : index
    %c0_66 = arith.constant 0 : index
    %21 = vector.load %arg9[%c0_63, %c2_64, %c0_65, %c0_66] : memref<1x18x18x128xbf16, #tpu.memory_space<vmem>>, vector<1x16x16x128xbf16>
    %c0_67 = arith.constant 0 : index
    %c2_68 = arith.constant 2 : index
    %c1_69 = arith.constant 1 : index
    %c0_70 = arith.constant 0 : index
    %22 = vector.load %arg9[%c0_67, %c2_68, %c1_69, %c0_70] : memref<1x18x18x128xbf16, #tpu.memory_space<vmem>>, vector<1x16x16x128xbf16>
    %c0_71 = arith.constant 0 : index
    %c2_72 = arith.constant 2 : index
    %c2_73 = arith.constant 2 : index
    %c0_74 = arith.constant 0 : index
    %23 = vector.load %arg9[%c0_71, %c2_72, %c2_73, %c0_74] : memref<1x18x18x128xbf16, #tpu.memory_space<vmem>>, vector<1x16x16x128xbf16>
    %24 = tpu.concatenate %15, %16, %17, %18, %19, %20, %21, %22, %23 in 3 : vector<1x16x16x128xbf16>, vector<1x16x16x128xbf16>, vector<1x16x16x128xbf16>, vector<1x16x16x128xbf16>, vector<1x16x16x128xbf16>, vector<1x16x16x128xbf16>, vector<1x16x16x128xbf16>, vector<1x16x16x128xbf16>, vector<1x16x16x128xbf16> -> vector<1x16x16x1152xbf16>
    %25 = vector.shape_cast %24 : vector<1x16x16x1152xbf16> to vector<256x1152xbf16>
    %c0_75 = arith.constant 0 : index
    %c0_76 = arith.constant 0 : index
    %26 = vector.load %arg2[%c0_75, %c0_76] : memref<1152x128xbf16, #tpu.memory_space<vmem>>, vector<1152x128xbf16>
    %cst_77 = arith.constant dense<0.000000e+00> : vector<256x128xf32>
    %27 = tpu.matmul %25, %26, %cst_77 {dimension_numbers = #tpu.dot_dimension_numbers<[1], [0], [0], [1], [0, 0, 1, 1], [], []>} : vector<256x1152xbf16>, vector<1152x128xbf16>, vector<256x128xf32> -> vector<256x128xf32>
    %c0_78 = arith.constant 0 : index
    %c0_79 = arith.constant 0 : index
    %28 = vector.load %arg3[%c0_78, %c0_79] : memref<1x128xf32, #tpu.memory_space<vmem>>, vector<1x128xf32>
    %29 = vector.broadcast %28 : vector<1x128xf32> to vector<256x128xf32>
    %30 = arith.mulf %27, %29 : vector<256x128xf32>
    %c0_80 = arith.constant 0 : index
    %c0_81 = arith.constant 0 : index
    %31 = vector.load %arg4[%c0_80, %c0_81] : memref<1x128xf32, #tpu.memory_space<vmem>>, vector<1x128xf32>
    %32 = vector.broadcast %31 : vector<1x128xf32> to vector<256x128xf32>
    %33 = arith.addf %30, %32 : vector<256x128xf32>
    %cst_82 = arith.constant 0.000000e+00 : f32
    %34 = vector.broadcast %cst_82 : f32 to vector<256x128xf32>
    %35 = arith.maximumf %33, %34 : vector<256x128xf32>
    %36 = vector.shape_cast %35 : vector<256x128xf32> to vector<1x16x16x128xf32>
    %37 = arith.truncf %36 : vector<1x16x16x128xf32> to vector<1x16x16x128xbf16>
    %c0_83 = arith.constant 0 : index
    %c1_84 = arith.constant 1 : index
    %c1_85 = arith.constant 1 : index
    %c0_86 = arith.constant 0 : index
    %38 = vector.load %arg10[%c0_83, %c1_84, %c1_85, %c0_86] : memref<1x18x18x128xbf16, #tpu.memory_space<vmem>>, vector<1x16x16x128xbf16>
    tpu.vector_store %arg10[%c0_83, %c1_84, %c1_85, %c0_86], %37 {strides = array<i32>} : memref<1x18x18x128xbf16, #tpu.memory_space<vmem>>, vector<1x16x16x128xbf16>,
    %c0_87 = arith.constant 0 : index
    %c0_88 = arith.constant 0 : index
    %c0_89 = arith.constant 0 : index
    %c0_90 = arith.constant 0 : index
    %39 = vector.load %arg10[%c0_87, %c0_88, %c0_89, %c0_90] : memref<1x18x18x128xbf16, #tpu.memory_space<vmem>>, vector<1x16x16x128xbf16>
    %c0_91 = arith.constant 0 : index
    %c0_92 = arith.constant 0 : index
    %c1_93 = arith.constant 1 : index
    %c0_94 = arith.constant 0 : index
    %40 = vector.load %arg10[%c0_91, %c0_92, %c1_93, %c0_94] : memref<1x18x18x128xbf16, #tpu.memory_space<vmem>>, vector<1x16x16x128xbf16>
    %c0_95 = arith.constant 0 : index
    %c0_96 = arith.constant 0 : index
    %c2_97 = arith.constant 2 : index
    %c0_98 = arith.constant 0 : index
    %41 = vector.load %arg10[%c0_95, %c0_96, %c2_97, %c0_98] : memref<1x18x18x128xbf16, #tpu.memory_space<vmem>>, vector<1x16x16x128xbf16>
    %c0_99 = arith.constant 0 : index
    %c1_100 = arith.constant 1 : index
    %c0_101 = arith.constant 0 : index
    %c0_102 = arith.constant 0 : index
    %42 = vector.load %arg10[%c0_99, %c1_100, %c0_101, %c0_102] : memref<1x18x18x128xbf16, #tpu.memory_space<vmem>>, vector<1x16x16x128xbf16>
    %c0_103 = arith.constant 0 : index
    %c1_104 = arith.constant 1 : index
    %c1_105 = arith.constant 1 : index
    %c0_106 = arith.constant 0 : index
    %43 = vector.load %arg10[%c0_103, %c1_104, %c1_105, %c0_106] : memref<1x18x18x128xbf16, #tpu.memory_space<vmem>>, vector<1x16x16x128xbf16>
    %c0_107 = arith.constant 0 : index
    %c1_108 = arith.constant 1 : index
    %c2_109 = arith.constant 2 : index
    %c0_110 = arith.constant 0 : index
    %44 = vector.load %arg10[%c0_107, %c1_108, %c2_109, %c0_110] : memref<1x18x18x128xbf16, #tpu.memory_space<vmem>>, vector<1x16x16x128xbf16>
    %c0_111 = arith.constant 0 : index
    %c2_112 = arith.constant 2 : index
    %c0_113 = arith.constant 0 : index
    %c0_114 = arith.constant 0 : index
    %45 = vector.load %arg10[%c0_111, %c2_112, %c0_113, %c0_114] : memref<1x18x18x128xbf16, #tpu.memory_space<vmem>>, vector<1x16x16x128xbf16>
    %c0_115 = arith.constant 0 : index
    %c2_116 = arith.constant 2 : index
    %c1_117 = arith.constant 1 : index
    %c0_118 = arith.constant 0 : index
    %46 = vector.load %arg10[%c0_115, %c2_116, %c1_117, %c0_118] : memref<1x18x18x128xbf16, #tpu.memory_space<vmem>>, vector<1x16x16x128xbf16>
    %c0_119 = arith.constant 0 : index
    %c2_120 = arith.constant 2 : index
    %c2_121 = arith.constant 2 : index
    %c0_122 = arith.constant 0 : index
    %47 = vector.load %arg10[%c0_119, %c2_120, %c2_121, %c0_122] : memref<1x18x18x128xbf16, #tpu.memory_space<vmem>>, vector<1x16x16x128xbf16>
    %48 = tpu.concatenate %39, %40, %41, %42, %43, %44, %45, %46, %47 in 3 : vector<1x16x16x128xbf16>, vector<1x16x16x128xbf16>, vector<1x16x16x128xbf16>, vector<1x16x16x128xbf16>, vector<1x16x16x128xbf16>, vector<1x16x16x128xbf16>, vector<1x16x16x128xbf16>, vector<1x16x16x128xbf16>, vector<1x16x16x128xbf16> -> vector<1x16x16x1152xbf16>
    %49 = vector.shape_cast %48 : vector<1x16x16x1152xbf16> to vector<256x1152xbf16>
    %c0_123 = arith.constant 0 : index
    %c0_124 = arith.constant 0 : index
    %50 = vector.load %arg5[%c0_123, %c0_124] : memref<1152x128xbf16, #tpu.memory_space<vmem>>, vector<1152x128xbf16>
    %cst_125 = arith.constant dense<0.000000e+00> : vector<256x128xf32>
    %51 = tpu.matmul %49, %50, %cst_125 {dimension_numbers = #tpu.dot_dimension_numbers<[1], [0], [0], [1], [0, 0, 1, 1], [], []>} : vector<256x1152xbf16>, vector<1152x128xbf16>, vector<256x128xf32> -> vector<256x128xf32>
    %c0_126 = arith.constant 0 : index
    %c0_127 = arith.constant 0 : index
    %52 = vector.load %arg6[%c0_126, %c0_127] : memref<1x128xf32, #tpu.memory_space<vmem>>, vector<1x128xf32>
    %53 = vector.broadcast %52 : vector<1x128xf32> to vector<256x128xf32>
    %54 = arith.mulf %51, %53 : vector<256x128xf32>
    %c0_128 = arith.constant 0 : index
    %c0_129 = arith.constant 0 : index
    %55 = vector.load %arg7[%c0_128, %c0_129] : memref<1x128xf32, #tpu.memory_space<vmem>>, vector<1x128xf32>
    %56 = vector.broadcast %55 : vector<1x128xf32> to vector<256x128xf32>
    %57 = arith.addf %54, %56 : vector<256x128xf32>
    %58 = vector.shape_cast %12 : vector<1x16x16x128xf32> to vector<256x128xf32>
    %59 = arith.addf %57, %58 : vector<256x128xf32>
    %cst_130 = arith.constant 0.000000e+00 : f32
    %60 = vector.broadcast %cst_130 : f32 to vector<256x128xf32>
    %61 = arith.maximumf %59, %60 : vector<256x128xf32>
    %62 = vector.shape_cast %61 : vector<256x128xf32> to vector<1x16x16x128xf32>
    %c0_131 = arith.constant 0 : index
    %c0_132 = arith.constant 0 : index
    %c0_133 = arith.constant 0 : index
    %c0_134 = arith.constant 0 : index
    %63 = vector.load %arg8[%c0_131, %c0_132, %c0_133, %c0_134] : memref<1x16x16x128xf32, #tpu.memory_space<vmem>>, vector<1x16x16x128xf32>
    tpu.vector_store %arg8[%c0_131, %c0_132, %c0_133, %c0_134], %62 {strides = array<i32>} : memref<1x16x16x128xf32, #tpu.memory_space<vmem>>, vector<1x16x16x128xf32>,
    return
  }
  func.func @transform_0(%arg0: i32) -> (i32, i32, i32, i32) {
    %c0_i32 = arith.constant 0 : i32
    %c0_i32_0 = arith.constant 0 : i32
    %c0_i32_1 = arith.constant 0 : i32
    %c0_i32_2 = arith.constant 0 : i32
    return %arg0, %c0_i32, %c0_i32_0, %c0_i32_1 : i32, i32, i32, i32
  }
  func.func @transform_1(%arg0: i32) -> (i32, i32) {
    %c0_i32 = arith.constant 0 : i32
    %c0_i32_0 = arith.constant 0 : i32
    %c0_i32_1 = arith.constant 0 : i32
    return %c0_i32, %c0_i32_0 : i32, i32
  }
  func.func @transform_2(%arg0: i32) -> (i32, i32) {
    %c0_i32 = arith.constant 0 : i32
    %c0_i32_0 = arith.constant 0 : i32
    %c0_i32_1 = arith.constant 0 : i32
    return %c0_i32, %c0_i32_0 : i32, i32
  }
  func.func @transform_3(%arg0: i32) -> (i32, i32) {
    %c0_i32 = arith.constant 0 : i32
    %c0_i32_0 = arith.constant 0 : i32
    %c0_i32_1 = arith.constant 0 : i32
    return %c0_i32, %c0_i32_0 : i32, i32
  }
  func.func @transform_4(%arg0: i32) -> (i32, i32) {
    %c0_i32 = arith.constant 0 : i32
    %c0_i32_0 = arith.constant 0 : i32
    %c0_i32_1 = arith.constant 0 : i32
    return %c0_i32, %c0_i32_0 : i32, i32
  }
  func.func @transform_5(%arg0: i32) -> (i32, i32) {
    %c0_i32 = arith.constant 0 : i32
    %c0_i32_0 = arith.constant 0 : i32
    %c0_i32_1 = arith.constant 0 : i32
    return %c0_i32, %c0_i32_0 : i32, i32
  }
  func.func @transform_6(%arg0: i32) -> (i32, i32) {
    %c0_i32 = arith.constant 0 : i32
    %c0_i32_0 = arith.constant 0 : i32
    %c0_i32_1 = arith.constant 0 : i32
    return %c0_i32, %c0_i32_0 : i32, i32
  }
  func.func @transform_7(%arg0: i32) -> (i32, i32, i32, i32) {
    %c0_i32 = arith.constant 0 : i32
    %c0_i32_0 = arith.constant 0 : i32
    %c0_i32_1 = arith.constant 0 : i32
    %c0_i32_2 = arith.constant 0 : i32
    return %arg0, %c0_i32, %c0_i32_0, %c0_i32_1 : i32, i32, i32, i32
  }
}

</mosaic_0001>

<llo_original>
// kernel: tpu_custom_call.1
$region0: #{tpu_custom_call.1}
  #allocation0 [shape = 'u32[]', space=smem, size = 0x4, offset = 0x4, fixed_abs, tag = 'smem constant byte address 0x4 - core index']
  #allocation1 [shape = 'u32[144,128]{1,0:T(1,128)}', space=vmem, size = 0x12000, scoped, tag = 'internal scratch']
  #allocation2 [shape = 'bf16[1,18,18,128]{3,2,1,0:T(8,128)(2,1)}', space=vmem, size = 0x1b000, scoped, tag = 'scratch operand']
  #allocation3 [shape = 'bf16[1,18,18,128]{3,2,1,0:T(8,128)(2,1)}', space=vmem, size = 0x1b000, scoped, tag = 'scratch operand']
  %s0 = inlined_call_operand.hbm [shape: f32[2,16,16,128], index: 0, kind: input, shape index: {}]
  %s1 = inlined_call_operand.hbm [shape: bf16[1152,128], index: 1, kind: input, shape index: {}]
  %s2 = inlined_call_operand.vmem [shape: f32[1,128], index: 2, kind: input, shape index: {}]
  %s3 = inlined_call_operand.vmem [shape: f32[1,128], index: 3, kind: input, shape index: {}]
  %s4 = inlined_call_operand.hbm [shape: bf16[1152,128], index: 4, kind: input, shape index: {}]
  %s5 = inlined_call_operand.vmem [shape: f32[1,128], index: 5, kind: input, shape index: {}]
  %s6 = inlined_call_operand.vmem [shape: f32[1,128], index: 6, kind: input, shape index: {}]
  %s7 = inlined_call_operand.hbm [shape: f32[2,16,16,128], index: 7, kind: output, shape index: {}]
  %s8 = sld [smem:[#allocation0]]
  $region73: #{tpu_custom_call.1} parent=0
    _
  %s10 = ssub.s32 1, %s8
  %s11 = scalar_select 0, %s10, %s8
  $region1: #{tpu_custom_call.1} parent=0
    #allocation4 [shape = 'u8[262144]{0}', space=vmem, size = 0x40000, scoped, tag = 'input window, operand 0']
    #allocation5 [shape = 's32[2]{0}', space=sflag, size = 0x8, scoped, tag = 'scoped memory for tpu_custom_call.1']
    #allocation6 [shape = 's32[2]{0}', space=sflag, size = 0x8, scoped, tag = 'scoped memory for tpu_custom_call.1']
    #allocation7 [shape = 'u8[294912]{0}', space=vmem, size = 0x48000, scoped, tag = 'input window, operand 1, single buffered']
    #allocation8 [shape = 's32[1]{0}', space=sflag, size = 0x4, scoped, tag = 'scoped memory for tpu_custom_call.1']
    #allocation9 [shape = 'u8[294912]{0}', space=vmem, size = 0x48000, scoped, tag = 'input window, operand 4, single buffered']
    #allocation10 [shape = 'u8[262144]{0}', space=vmem, size = 0x40000, scoped, tag = 'output window, operand 0']
    %12 = vsyncpa [#allocation5], 0
    %s13 = scalar_lea.sflag [#allocation5], 1
    %14 = vsyncpa %s13, 0
    %15 = vsyncpa [#allocation8], 0
    %16 = vsyncpa [#allocation6], 0
    %s17 = scalar_lea.sflag [#allocation6], 1
    %18 = vsyncpa %s17, 0
    loop: start=0, step=1, limit=4
    $region2: #{tpu_custom_call.1} parent=1 // loop_pre_header
      _
    $region3: #{tpu_custom_call.1} parent=1 // loop_header
      %s20 = sphi 0, %s24
      %p21 = scmp.ge.s32.totalorder %s20, 4
      %s30 = sphi 0, %s32
      %s33 = sphi 0, %s30
      %s34 = sphi 0, %s33
      %s50 = sphi 0, %s34
      %s54 = sphi 0, %s54
      %s56 = sphi 0, %s54
      %s57 = sphi 0, %s56
      %s71 = sphi 0, %s57
      %s75 = sphi 0, %s75
      %s77 = sphi 0, %s75
      %s78 = sphi 0, %s77
      %s92 = sphi 0, %s78
      %s96 = sphi 0, %s96
      %s98 = sphi 0, %s96
      %s99 = sphi 0, %s98
      %s113 = sphi 0, %s99
      %s117 = sphi 0, %s117
      %s119 = sphi 0, %s117
      %s120 = sphi 0, %s119
      %s134 = sphi 0, %s120
      %s138 = sphi 0, %s138
      %s140 = sphi 0, %s138
      %s141 = sphi 0, %s140
      %s155 = sphi 0, %s141
      %s159 = sphi 0, %s159
      %s161 = sphi 0, %s159
      %s162 = sphi 0, %s161
      %s176 = sphi 0, %s162
      %s182 = sphi 0, %s184
      %s185 = sphi 0, %s182
      %s186 = sphi 0, %s185
      %s202 = sphi 0, %s186
    $region4: #{tpu_custom_call.1} parent=1 // loop_header_branch
      %23 = sbr.rel (%p21) target = $region8
    $region5: #{tpu_custom_call.1} parent=1 // loop_body
      %s25 = ssub.s32 %s20, 1
      %s26 = ssub.s32 %s20, 2
      %s27 = sadd.s32 %s20, 1
      %s28 = ssub.s32 %s20, %s27
      %p29 = scmp.eq.s32.totalorder %s28, 0
      %s31 = sadd.s32 %s30, 1
      %s32 = scalar_select %p29, %s30, %s31
      %p35 = pneg %p29
      %p36 = scmp.eq.s32.totalorder %s20, 1
      %p37 = por %p35, %p36
      %p38 = scmp.ne.s32.totalorder %s30, %s33
      %p39 = scmp.eq.s32.totalorder %s20, 0
      %p40 = por %p38, %p39
      %p41 = scmp.ne.s32.totalorder %s30, %s33
      %p42 = scmp.eq.s32.totalorder %s25, 1
      %p43 = por %p41, %p42
      %p44 = scmp.ne.s32.totalorder %s33, %s34
      %p45 = scmp.eq.s32.totalorder %s25, 0
      %p46 = por %p44, %p45
      %p47 = scmp.ne.s32.totalorder %s33, %s34
      %p48 = scmp.eq.s32.totalorder %s26, 1
      %p49 = por %p47, %p48
      %p51 = scmp.ne.s32.totalorder %s34, %s50
      %p52 = scmp.eq.s32.totalorder %s26, 0
      %p53 = por %p51, %p52
      %s55 = sadd.s32 %s54, 1
      %p58 = scmp.eq.s32.totalorder %s20, 1
      %p59 = scmp.ne.s32.totalorder %s54, %s56
      %p60 = scmp.eq.s32.totalorder %s20, 0
      %p61 = por %p59, %p60
      %p62 = scmp.ne.s32.totalorder %s54, %s56
      %p63 = scmp.eq.s32.totalorder %s25, 1
      %p64 = por %p62, %p63
      %p65 = scmp.ne.s32.totalorder %s56, %s57
      %p66 = scmp.eq.s32.totalorder %s25, 0
      %p67 = por %p65, %p66
      %p68 = scmp.ne.s32.totalorder %s56, %s57
      %p69 = scmp.eq.s32.totalorder %s26, 1
      %p70 = por %p68, %p69
      %p72 = scmp.ne.s32.totalorder %s57, %s71
      %p73 = scmp.eq.s32.totalorder %s26, 0
      %p74 = por %p72, %p73
      %s76 = sadd.s32 %s75, 1
      %p79 = scmp.eq.s32.totalorder %s20, 1
      %p80 = scmp.ne.s32.totalorder %s75, %s77
      %p81 = scmp.eq.s32.totalorder %s20, 0
      %p82 = por %p80, %p81
      %p83 = scmp.ne.s32.totalorder %s75, %s77
      %p84 = scmp.eq.s32.totalorder %s25, 1
      %p85 = por %p83, %p84
      %p86 = scmp.ne.s32.totalorder %s77, %s78
      %p87 = scmp.eq.s32.totalorder %s25, 0
      %p88 = por %p86, %p87
      %p89 = scmp.ne.s32.totalorder %s77, %s78
      %p90 = scmp.eq.s32.totalorder %s26, 1
      %p91 = por %p89, %p90
      %p93 = scmp.ne.s32.totalorder %s78, %s92
      %p94 = scmp.eq.s32.totalorder %s26, 0
      %p95 = por %p93, %p94
      %s97 = sadd.s32 %s96, 1
      %p100 = scmp.eq.s32.totalorder %s20, 1
      %p101 = scmp.ne.s32.totalorder %s96, %s98
      %p102 = scmp.eq.s32.totalorder %s20, 0
      %p103 = por %p101, %p102
      %p104 = scmp.ne.s32.totalorder %s96, %s98
      %p105 = scmp.eq.s32.totalorder %s25, 1
      %p106 = por %p104, %p105
      %p107 = scmp.ne.s32.totalorder %s98, %s99
      %p108 = scmp.eq.s32.totalorder %s25, 0
      %p109 = por %p107, %p108
      %p110 = scmp.ne.s32.totalorder %s98, %s99
      %p111 = scmp.eq.s32.totalorder %s26, 1
      %p112 = por %p110, %p111
      %p114 = scmp.ne.s32.totalorder %s99, %s113
      %p115 = scmp.eq.s32.totalorder %s26, 0
      %p116 = por %p114, %p115
      %s118 = sadd.s32 %s117, 1
      %p121 = scmp.eq.s32.totalorder %s20, 1
      %p122 = scmp.ne.s32.totalorder %s117, %s119
      %p123 = scmp.eq.s32.totalorder %s20, 0
      %p124 = por %p122, %p123
      %p125 = scmp.ne.s32.totalorder %s117, %s119
      %p126 = scmp.eq.s32.totalorder %s25, 1
      %p127 = por %p125, %p126
      %p128 = scmp.ne.s32.totalorder %s119, %s120
      %p129 = scmp.eq.s32.totalorder %s25, 0
      %p130 = por %p128, %p129
      %p131 = scmp.ne.s32.totalorder %s119, %s120
      %p132 = scmp.eq.s32.totalorder %s26, 1
      %p133 = por %p131, %p132
      %p135 = scmp.ne.s32.totalorder %s120, %s134
      %p136 = scmp.eq.s32.totalorder %s26, 0
      %p137 = por %p135, %p136
      %s139 = sadd.s32 %s138, 1
      %p142 = scmp.eq.s32.totalorder %s20, 1
      %p143 = scmp.ne.s32.totalorder %s138, %s140
      %p144 = scmp.eq.s32.totalorder %s20, 0
      %p145 = por %p143, %p144
      %p146 = scmp.ne.s32.totalorder %s138, %s140
      %p147 = scmp.eq.s32.totalorder %s25, 1
      %p148 = por %p146, %p147
      %p149 = scmp.ne.s32.totalorder %s140, %s141
      %p150 = scmp.eq.s32.totalorder %s25, 0
      %p151 = por %p149, %p150
      %p152 = scmp.ne.s32.totalorder %s140, %s141
      %p153 = scmp.eq.s32.totalorder %s26, 1
      %p154 = por %p152, %p153
      %p156 = scmp.ne.s32.totalorder %s141, %s155
      %p157 = scmp.eq.s32.totalorder %s26, 0
      %p158 = por %p156, %p157
      %s160 = sadd.s32 %s159, 1
      %p163 = scmp.eq.s32.totalorder %s20, 1
      %p164 = scmp.ne.s32.totalorder %s159, %s161
      %p165 = scmp.eq.s32.totalorder %s20, 0
      %p166 = por %p164, %p165
      %p167 = scmp.ne.s32.totalorder %s159, %s161
      %p168 = scmp.eq.s32.totalorder %s25, 1
      %p169 = por %p167, %p168
      %p170 = scmp.ne.s32.totalorder %s161, %s162
      %p171 = scmp.eq.s32.totalorder %s25, 0
      %p172 = por %p170, %p171
      %p173 = scmp.ne.s32.totalorder %s161, %s162
      %p174 = scmp.eq.s32.totalorder %s26, 1
      %p175 = por %p173, %p174
      %p177 = scmp.ne.s32.totalorder %s162, %s176
      %p178 = scmp.eq.s32.totalorder %s26, 0
      %p179 = por %p177, %p178
      %s180 = ssub.s32 %s20, %s27
      %p181 = scmp.eq.s32.totalorder %s180, 0
      %s183 = sadd.s32 %s182, 1
      %s184 = scalar_select %p181, %s182, %s183
      %p187 = pneg %p181
      %p188 = scmp.eq.s32.totalorder %s20, 1
      %p189 = por %p187, %p188
      %p190 = scmp.ne.s32.totalorder %s182, %s185
      %p191 = scmp.eq.s32.totalorder %s20, 0
      %p192 = por %p190, %p191
      %p193 = scmp.ne.s32.totalorder %s182, %s185
      %p194 = scmp.eq.s32.totalorder %s25, 1
      %p195 = por %p193, %p194
      %p196 = scmp.ne.s32.totalorder %s185, %s186
      %p197 = scmp.eq.s32.totalorder %s25, 0
      %p198 = por %p196, %p197
      %p199 = scmp.ne.s32.totalorder %s185, %s186
      %p200 = scmp.eq.s32.totalorder %s26, 1
      %p201 = por %p199, %p200
      %p203 = scmp.ne.s32.totalorder %s186, %s202
      %p204 = scmp.eq.s32.totalorder %s26, 0
      %p205 = por %p203, %p204
      %p206 = scmp.le.s32.totalorder 1, %s20
      %p207 = scmp.lt.s32.totalorder %s20, 3
      %p208 = pnand %p206, %p207
      %p209 = pneg %p208
      // Predicated region
      $region9: #{tpu_custom_call.1} parent=5 // pred_check
        _
      $region10: #{tpu_custom_call.1} parent=5 // pred_check_branch
        %211 = sbr.rel (%p208) target = $region12
      $region11: #{tpu_custom_call.1} parent=5 // pred_region
        %s212 = ssub.s32 %s20, 1
        // Predicated region
        $region13: #{tpu_custom_call.1} parent=11 // pred_check
          %p213 = pneg %p67
        $region14: #{tpu_custom_call.1} parent=11 // pred_check_branch
          %215 = sbr.rel (%p213) target = $region16
        $region15: #{tpu_custom_call.1} parent=11 // pred_region
          %s217 = ssub.s32 9216, 9216
          %218 = vsyncadd [#allocation8], %s217
          %s219 = sshll.u32 [#allocation7], 4
          %s220 = int_to_ptr.vmem [resolvable:$true] %s219
          %225 = dma.hbm_to_vmem [thread:$0]  %s1, 9216, %s220, [#allocation8], 64, 64, 4
        $region16: #{tpu_custom_call.1} parent=11 // pred_fallthru
          _
        // Predicated region
        $region17: #{tpu_custom_call.1} parent=11 // pred_check
          %p226 = pneg %p88
        $region18: #{tpu_custom_call.1} parent=11 // pred_check_branch
          %228 = sbr.rel (%p226) target = $region20
        $region19: #{tpu_custom_call.1} parent=11 // pred_region
          _
        $region20: #{tpu_custom_call.1} parent=11 // pred_fallthru
          _
        // Predicated region
        $region21: #{tpu_custom_call.1} parent=11 // pred_check
          %p229 = pneg %p109
        $region22: #{tpu_custom_call.1} parent=11 // pred_check_branch
          %231 = sbr.rel (%p229) target = $region24
        $region23: #{tpu_custom_call.1} parent=11 // pred_region
          _
        $region24: #{tpu_custom_call.1} parent=11 // pred_fallthru
          _
        // Predicated region
        $region25: #{tpu_custom_call.1} parent=11 // pred_check
          %p232 = pneg %p130
        $region26: #{tpu_custom_call.1} parent=11 // pred_check_branch
          %234 = sbr.rel (%p232) target = $region28
        $region27: #{tpu_custom_call.1} parent=11 // pred_region
          %s236 = ssub.s32 9216, 9216
          %237 = vsyncadd [#allocation8], %s236
          %s238 = sshll.u32 [#allocation9], 4
          %s239 = int_to_ptr.vmem [resolvable:$true] %s238
          %244 = dma.hbm_to_vmem [thread:$0]  %s4, 9216, %s239, [#allocation8], 64, 64, 4
        $region28: #{tpu_custom_call.1} parent=11 // pred_fallthru
          _
        // Predicated region
        $region29: #{tpu_custom_call.1} parent=11 // pred_check
          %p245 = pneg %p151
        $region30: #{tpu_custom_call.1} parent=11 // pred_check_branch
          %247 = sbr.rel (%p245) target = $region32
        $region31: #{tpu_custom_call.1} parent=11 // pred_region
          _
        $region32: #{tpu_custom_call.1} parent=11 // pred_fallthru
          _
        // Predicated region
        $region33: #{tpu_custom_call.1} parent=11 // pred_check
          %p248 = pneg %p172
        $region34: #{tpu_custom_call.1} parent=11 // pred_check_branch
          %250 = sbr.rel (%p248) target = $region36
        $region35: #{tpu_custom_call.1} parent=11 // pred_region
          _
        $region36: #{tpu_custom_call.1} parent=11 // pred_fallthru
          _
      $region12: #{tpu_custom_call.1} parent=5 // pred_fallthru
        _
      %p251 = scmp.lt.s32.totalorder %s20, 2
      // Predicated region
      $region37: #{tpu_custom_call.1} parent=5 // pred_check
        %p252 = pneg %p251
      $region38: #{tpu_custom_call.1} parent=5 // pred_check_branch
        %254 = sbr.rel (%p252) target = $region40
      $region39: #{tpu_custom_call.1} parent=5 // pred_region
        // Predicated region
        $region41: #{tpu_custom_call.1} parent=39 // pred_check
          %p255 = pneg %p40
        $region42: #{tpu_custom_call.1} parent=39 // pred_check_branch
          %257 = sbr.rel (%p255) target = $region44
        $region43: #{tpu_custom_call.1} parent=39 // pred_region
          %s258 = sand.u32 %s30, 1
          %s259 = scalar_lea.sflag [#allocation5], %s258
          %s260 = sand.u32 %s30, 1
          %s261 = smul.addr %s260, 256
          %s262 = scalar_lea.vmem [#allocation4], %s261
          %s264 = ssub.s32 4096, 4096
          %265 = vsyncadd %s259, %s264
          %s266 = smul.addr %s20, 32
          %s267 = smul.addr %s266, 128
          %s268 = scalar_lea.hbm %s0, %s267
          %s269 = sshll.u32 %s262, 4
          %s270 = int_to_ptr.vmem [resolvable:$true] %s269
          %275 = dma.hbm_to_vmem [thread:$0]  %s268, 4096, %s270, %s259, 128, 128, 8
        $region44: #{tpu_custom_call.1} parent=39 // pred_fallthru
          _
      $region40: #{tpu_custom_call.1} parent=5 // pred_fallthru
        _
      %p276 = scmp.le.s32.totalorder 1, %s20
      %p277 = scmp.lt.s32.totalorder %s20, 3
      %p278 = pnand %p276, %p277
      %p279 = pneg %p278
      // Predicated region
      $region45: #{tpu_custom_call.1} parent=5 // pred_check
        _
      $region46: #{tpu_custom_call.1} parent=5 // pred_check_branch
        %281 = sbr.rel (%p278) target = $region48
      $region47: #{tpu_custom_call.1} parent=5 // pred_region
        %s282 = ssub.s32 %s20, 1
        %s283 = sand.u32 %s33, 1
        %s284 = scalar_lea.sflag [#allocation5], %s283
        %s285 = sand.u32 %s33, 1
        %s286 = smul.addr %s285, 256
        %s287 = scalar_lea.vmem [#allocation4], %s286
        // Predicated region
        $region49: #{tpu_custom_call.1} parent=47 // pred_check
          %p288 = pneg %p46
        $region50: #{tpu_custom_call.1} parent=47 // pred_check_branch
          %290 = sbr.rel (%p288) target = $region52
        $region51: #{tpu_custom_call.1} parent=47 // pred_region
          %291 = dma.done %s284, 4096
        $region52: #{tpu_custom_call.1} parent=47 // pred_fallthru
          _
        // Predicated region
        $region53: #{tpu_custom_call.1} parent=47 // pred_check
          %p292 = pneg %p67
        $region54: #{tpu_custom_call.1} parent=47 // pred_check_branch
          %294 = sbr.rel (%p292) target = $region56
        $region55: #{tpu_custom_call.1} parent=47 // pred_region
          %295 = dma.done [#allocation8], 9216
        $region56: #{tpu_custom_call.1} parent=47 // pred_fallthru
          _
        // Predicated region
        $region57: #{tpu_custom_call.1} parent=47 // pred_check
          %p296 = pneg %p130
        $region58: #{tpu_custom_call.1} parent=47 // pred_check_branch
          %298 = sbr.rel (%p296) target = $region60
        $region59: #{tpu_custom_call.1} parent=47 // pred_region
          %299 = dma.done [#allocation8], 9216
        $region60: #{tpu_custom_call.1} parent=47 // pred_fallthru
          _
        %s300 = sand.u32 %s33, 1
        %s301 = scalar_lea.sflag [#allocation5], %s300
        %s302 = sand.u32 %s33, 1
        %s303 = smul.addr %s302, 256
        %s304 = scalar_lea.vmem [#allocation4], %s303
        %p305 = pneg %p46
        %p306 = pneg %p43
        %p307 = pneg %p67
        %p308 = pneg %p64
        %p309 = pneg %p88
        %p310 = pneg %p85
        %p311 = pneg %p109
        %p312 = pneg %p106
        %p313 = pneg %p130
        %p314 = pneg %p127
        %p315 = pneg %p151
        %p316 = pneg %p148
        %p317 = pneg %p172
        %p318 = pneg %p169
        %p319 = pneg %p198
        %p320 = pneg %p195
        %s321 = sand.u32 %s185, 1
        %s322 = scalar_lea.sflag [#allocation6], %s321
        %s323 = sand.u32 %s185, 1
        %s324 = smul.addr %s323, 256
        %s325 = scalar_lea.vmem [#allocation10], %s324
        %327 = vst [vmem:[#allocation2] sm:$0xf] 0
        %328 = vst [vmem:[#allocation2 + $0x4] sm:$0xf] 0
        %329 = vst [vmem:[#allocation2 + $0x8] sm:$0x1] 0
        %s330 = scalar_lea.vmem [#allocation2], 204
        %331 = vst [vmem:[%s330] sm:$0xf] 0
        %332 = vst [vmem:[%s330 + $0x4] sm:$0xf] 0
        %333 = vst [vmem:[%s330 + $0x8] sm:$0x1] 0
        %vm334 = vcmask 1040384
        %vm335 = vsmask.f32 256
        %vm336 = vmand %vm334, %vm335
        %v337 = vld [vmem:[#allocation2] sm:$0x1]
        %v338 = vsel %vm336, 0, %v337
        %339 = vst [vmem:[#allocation2] sm:$0x1] %v338
        %v340 = vld [vmem:[#allocation2 + $0xc] sm:$0x1]
        %v341 = vsel %vm336, 0, %v340
        %342 = vst [vmem:[#allocation2 + $0xc] sm:$0x1] %v341
        %v343 = vld [vmem:[#allocation2 + $0x18] sm:$0x1]
        %v344 = vsel %vm336, 0, %v343
        %345 = vst [vmem:[#allocation2 + $0x18] sm:$0x1] %v344
        %v346 = vld [vmem:[#allocation2 + $0x24] sm:$0x1]
        %v347 = vsel %vm336, 0, %v346
        %348 = vst [vmem:[#allocation2 + $0x24] sm:$0x1] %v347
        %v349 = vld [vmem:[#allocation2 + $0x30] sm:$0x1]
        %v350 = vsel %vm336, 0, %v349
        %351 = vst [vmem:[#allocation2 + $0x30] sm:$0x1] %v350
        %v352 = vld [vmem:[#allocation2 + $0x3c] sm:$0x1]
        %v353 = vsel %vm336, 0, %v352
        %354 = vst [vmem:[#allocation2 + $0x3c] sm:$0x1] %v353
        %v355 = vld [vmem:[#allocation2 + $0x48] sm:$0x1]
        %v356 = vsel %vm336, 0, %v355
        %357 = vst [vmem:[#allocation2 + $0x48] sm:$0x1] %v356
        %v358 = vld [vmem:[#allocation2 + $0x54] sm:$0x1]
        %v359 = vsel %vm336, 0, %v358
        %360 = vst [vmem:[#allocation2 + $0x54] sm:$0x1] %v359
        %v361 = vld [vmem:[#allocation2 + $0x60] sm:$0x1]
        %v362 = vsel %vm336, 0, %v361
        %363 = vst [vmem:[#allocation2 + $0x60] sm:$0x1] %v362
        %v364 = vld [vmem:[#allocation2 + $0x6c] sm:$0x1]
        %v365 = vsel %vm336, 0, %v364
        %366 = vst [vmem:[#allocation2 + $0x6c] sm:$0x1] %v365
        %v367 = vld [vmem:[#allocation2 + $0x78] sm:$0x1]
        %v368 = vsel %vm336, 0, %v367
        %369 = vst [vmem:[#allocation2 + $0x78] sm:$0x1] %v368
        %v370 = vld [vmem:[#allocation2 + $0x84] sm:$0x1]
        %v371 = vsel %vm336, 0, %v370
        %372 = vst [vmem:[#allocation2 + $0x84] sm:$0x1] %v371
        %v373 = vld [vmem:[#allocation2 + $0x90] sm:$0x1]
        %v374 = vsel %vm336, 0, %v373
        %375 = vst [vmem:[#allocation2 + $0x90] sm:$0x1] %v374
        %v376 = vld [vmem:[#allocation2 + $0x9c] sm:$0x1]
        %v377 = vsel %vm336, 0, %v376
        %378 = vst [vmem:[#allocation2 + $0x9c] sm:$0x1] %v377
        %v379 = vld [vmem:[#allocation2 + $0xa8] sm:$0x1]
        %v380 = vsel %vm336, 0, %v379
        %381 = vst [vmem:[#allocation2 + $0xa8] sm:$0x1] %v380
        %v382 = vld [vmem:[#allocation2 + $0xb4] sm:$0x1]
        %v383 = vsel %vm336, 0, %v382
        %384 = vst [vmem:[#allocation2 + $0xb4] sm:$0x1] %v383
        %v385 = vld [vmem:[#allocation2 + $0xc0] sm:$0x1]
        %v386 = vsel %vm336, 0, %v385
        %387 = vst [vmem:[#allocation2 + $0xc0] sm:$0x1] %v386
        %v388 = vld [vmem:[#allocation2 + $0xcc] sm:$0x1]
        %v389 = vsel %vm336, 0, %v388
        %390 = vst [vmem:[#allocation2 + $0xcc] sm:$0x1] %v389
        %vm391 = vsmask.f32 7938
        %vm392 = vmand %vm334, %vm391
        %v393 = vld [vmem:[#allocation2 + $0x8] sm:$0x1]
        %v394 = vsel %vm392, 0, %v393
        %395 = vst [vmem:[#allocation2 + $0x8] sm:$0x1] %v394
        %v396 = vld [vmem:[#allocation2 + $0x14] sm:$0x1]
        %v397 = vsel %vm392, 0, %v396
        %398 = vst [vmem:[#allocation2 + $0x14] sm:$0x1] %v397
        %v399 = vld [vmem:[#allocation2 + $0x20] sm:$0x1]
        %v400 = vsel %vm392, 0, %v399
        %401 = vst [vmem:[#allocation2 + $0x20] sm:$0x1] %v400
        %v402 = vld [vmem:[#allocation2 + $0x2c] sm:$0x1]
        %v403 = vsel %vm392, 0, %v402
        %404 = vst [vmem:[#allocation2 + $0x2c] sm:$0x1] %v403
        %v405 = vld [vmem:[#allocation2 + $0x38] sm:$0x1]
        %v406 = vsel %vm392, 0, %v405
        %407 = vst [vmem:[#allocation2 + $0x38] sm:$0x1] %v406
        %v408 = vld [vmem:[#allocation2 + $0x44] sm:$0x1]
        %v409 = vsel %vm392, 0, %v408
        %410 = vst [vmem:[#allocation2 + $0x44] sm:$0x1] %v409
        %v411 = vld [vmem:[#allocation2 + $0x50] sm:$0x1]
        %v412 = vsel %vm392, 0, %v411
        %413 = vst [vmem:[#allocation2 + $0x50] sm:$0x1] %v412
        %v414 = vld [vmem:[#allocation2 + $0x5c] sm:$0x1]
        %v415 = vsel %vm392, 0, %v414
        %416 = vst [vmem:[#allocation2 + $0x5c] sm:$0x1] %v415
        %v417 = vld [vmem:[#allocation2 + $0x68] sm:$0x1]
        %v418 = vsel %vm392, 0, %v417
        %419 = vst [vmem:[#allocation2 + $0x68] sm:$0x1] %v418
        %v420 = vld [vmem:[#allocation2 + $0x74] sm:$0x1]
        %v421 = vsel %vm392, 0, %v420
        %422 = vst [vmem:[#allocation2 + $0x74] sm:$0x1] %v421
        %v423 = vld [vmem:[#allocation2 + $0x80] sm:$0x1]
        %v424 = vsel %vm392, 0, %v423
        %425 = vst [vmem:[#allocation2 + $0x80] sm:$0x1] %v424
        %v426 = vld [vmem:[#allocation2 + $0x8c] sm:$0x1]
        %v427 = vsel %vm392, 0, %v426
        %428 = vst [vmem:[#allocation2 + $0x8c] sm:$0x1] %v427
        %v429 = vld [vmem:[#allocation2 + $0x98] sm:$0x1]
        %v430 = vsel %vm392, 0, %v429
        %431 = vst [vmem:[#allocation2 + $0x98] sm:$0x1] %v430
        %v432 = vld [vmem:[#allocation2 + $0xa4] sm:$0x1]
        %v433 = vsel %vm392, 0, %v432
        %434 = vst [vmem:[#allocation2 + $0xa4] sm:$0x1] %v433
        %v435 = vld [vmem:[#allocation2 + $0xb0] sm:$0x1]
        %v436 = vsel %vm392, 0, %v435
        %437 = vst [vmem:[#allocation2 + $0xb0] sm:$0x1] %v436
        %v438 = vld [vmem:[#allocation2 + $0xbc] sm:$0x1]
        %v439 = vsel %vm392, 0, %v438
        %440 = vst [vmem:[#allocation2 + $0xbc] sm:$0x1] %v439
        %v441 = vld [vmem:[#allocation2 + $0xc8] sm:$0x1]
        %v442 = vsel %vm392, 0, %v441
        %443 = vst [vmem:[#allocation2 + $0xc8] sm:$0x1] %v442
        %v444 = vld [vmem:[#allocation2 + $0xd4] sm:$0x1]
        %v445 = vsel %vm392, 0, %v444
        %446 = vst [vmem:[#allocation2 + $0xd4] sm:$0x1] %v445
        %447 = vst [vmem:[#allocation3] sm:$0xf] 0
        %448 = vst [vmem:[#allocation3 + $0x4] sm:$0xf] 0
        %449 = vst [vmem:[#allocation3 + $0x8] sm:$0x1] 0
        %s450 = scalar_lea.vmem [#allocation3], 204
        %451 = vst [vmem:[%s450] sm:$0xf] 0
        %452 = vst [vmem:[%s450 + $0x4] sm:$0xf] 0
        %453 = vst [vmem:[%s450 + $0x8] sm:$0x1] 0
        %v454 = vld [vmem:[#allocation3] sm:$0x1]
        %v455 = vsel %vm336, 0, %v454
        %456 = vst [vmem:[#allocation3] sm:$0x1] %v455
        %v457 = vld [vmem:[#allocation3 + $0xc] sm:$0x1]
        %v458 = vsel %vm336, 0, %v457
        %459 = vst [vmem:[#allocation3 + $0xc] sm:$0x1] %v458
        %v460 = vld [vmem:[#allocation3 + $0x18] sm:$0x1]
        %v461 = vsel %vm336, 0, %v460
        %462 = vst [vmem:[#allocation3 + $0x18] sm:$0x1] %v461
        %v463 = vld [vmem:[#allocation3 + $0x24] sm:$0x1]
        %v464 = vsel %vm336, 0, %v463
        %465 = vst [vmem:[#allocation3 + $0x24] sm:$0x1] %v464
        %v466 = vld [vmem:[#allocation3 + $0x30] sm:$0x1]
        %v467 = vsel %vm336, 0, %v466
        %468 = vst [vmem:[#allocation3 + $0x30] sm:$0x1] %v467
        %v469 = vld [vmem:[#allocation3 + $0x3c] sm:$0x1]
        %v470 = vsel %vm336, 0, %v469
        %471 = vst [vmem:[#allocation3 + $0x3c] sm:$0x1] %v470
        %v472 = vld [vmem:[#allocation3 + $0x48] sm:$0x1]
        %v473 = vsel %vm336, 0, %v472
        %474 = vst [vmem:[#allocation3 + $0x48] sm:$0x1] %v473
        %v475 = vld [vmem:[#allocation3 + $0x54] sm:$0x1]
        %v476 = vsel %vm336, 0, %v475
        %477 = vst [vmem:[#allocation3 + $0x54] sm:$0x1] %v476
        %v478 = vld [vmem:[#allocation3 + $0x60] sm:$0x1]
        %v479 = vsel %vm336, 0, %v478
        %480 = vst [vmem:[#allocation3 + $0x60] sm:$0x1] %v479
        %v481 = vld [vmem:[#allocation3 + $0x6c] sm:$0x1]
        %v482 = vsel %vm336, 0, %v481
        %483 = vst [vmem:[#allocation3 + $0x6c] sm:$0x1] %v482
        %v484 = vld [vmem:[#allocation3 + $0x78] sm:$0x1]
        %v485 = vsel %vm336, 0, %v484
        %486 = vst [vmem:[#allocation3 + $0x78] sm:$0x1] %v485
        %v487 = vld [vmem:[#allocation3 + $0x84] sm:$0x1]
        %v488 = vsel %vm336, 0, %v487
        %489 = vst [vmem:[#allocation3 + $0x84] sm:$0x1] %v488
        %v490 = vld [vmem:[#allocation3 + $0x90] sm:$0x1]
        %v491 = vsel %vm336, 0, %v490
        %492 = vst [vmem:[#allocation3 + $0x90] sm:$0x1] %v491
        %v493 = vld [vmem:[#allocation3 + $0x9c] sm:$0x1]
        %v494 = vsel %vm336, 0, %v493
        %495 = vst [vmem:[#allocation3 + $0x9c] sm:$0x1] %v494
        %v496 = vld [vmem:[#allocation3 + $0xa8] sm:$0x1]
        %v497 = vsel %vm336, 0, %v496
        %498 = vst [vmem:[#allocation3 + $0xa8] sm:$0x1] %v497
        %v499 = vld [vmem:[#allocation3 + $0xb4] sm:$0x1]
        %v500 = vsel %vm336, 0, %v499
        %501 = vst [vmem:[#allocation3 + $0xb4] sm:$0x1] %v500
        %v502 = vld [vmem:[#allocation3 + $0xc0] sm:$0x1]
        %v503 = vsel %vm336, 0, %v502
        %504 = vst [vmem:[#allocation3 + $0xc0] sm:$0x1] %v503
        %v505 = vld [vmem:[#allocation3 + $0xcc] sm:$0x1]
        %v506 = vsel %vm336, 0, %v505
        %507 = vst [vmem:[#allocation3 + $0xcc] sm:$0x1] %v506
        %v508 = vld [vmem:[#allocation3 + $0x8] sm:$0x1]
        %v509 = vsel %vm392, 0, %v508
        %510 = vst [vmem:[#allocation3 + $0x8] sm:$0x1] %v509
        %v511 = vld [vmem:[#allocation3 + $0x14] sm:$0x1]
        %v512 = vsel %vm392, 0, %v511
        %513 = vst [vmem:[#allocation3 + $0x14] sm:$0x1] %v512
        %v514 = vld [vmem:[#allocation3 + $0x20] sm:$0x1]
        %v515 = vsel %vm392, 0, %v514
        %516 = vst [vmem:[#allocation3 + $0x20] sm:$0x1] %v515
        %v517 = vld [vmem:[#allocation3 + $0x2c] sm:$0x1]
        %v518 = vsel %vm392, 0, %v517
        %519 = vst [vmem:[#allocation3 + $0x2c] sm:$0x1] %v518
        %v520 = vld [vmem:[#allocation3 + $0x38] sm:$0x1]
        %v521 = vsel %vm392, 0, %v520
        %522 = vst [vmem:[#allocation3 + $0x38] sm:$0x1] %v521
        %v523 = vld [vmem:[#allocation3 + $0x44] sm:$0x1]
        %v524 = vsel %vm392, 0, %v523
        %525 = vst [vmem:[#allocation3 + $0x44] sm:$0x1] %v524
        %v526 = vld [vmem:[#allocation3 + $0x50] sm:$0x1]
        %v527 = vsel %vm392, 0, %v526
        %528 = vst [vmem:[#allocation3 + $0x50] sm:$0x1] %v527
        %v529 = vld [vmem:[#allocation3 + $0x5c] sm:$0x1]
        %v530 = vsel %vm392, 0, %v529
        %531 = vst [vmem:[#allocation3 + $0x5c] sm:$0x1] %v530
        %v532 = vld [vmem:[#allocation3 + $0x68] sm:$0x1]
        %v533 = vsel %vm392, 0, %v532
        %534 = vst [vmem:[#allocation3 + $0x68] sm:$0x1] %v533
        %v535 = vld [vmem:[#allocation3 + $0x74] sm:$0x1]
        %v536 = vsel %vm392, 0, %v535
        %537 = vst [vmem:[#allocation3 + $0x74] sm:$0x1] %v536
        %v538 = vld [vmem:[#allocation3 + $0x80] sm:$0x1]
        %v539 = vsel %vm392, 0, %v538
        %540 = vst [vmem:[#allocation3 + $0x80] sm:$0x1] %v539
        %v541 = vld [vmem:[#allocation3 + $0x8c] sm:$0x1]
        %v542 = vsel %vm392, 0, %v541
        %543 = vst [vmem:[#allocation3 + $0x8c] sm:$0x1] %v542
        %v544 = vld [vmem:[#allocation3 + $0x98] sm:$0x1]
        %v545 = vsel %vm392, 0, %v544
        %546 = vst [vmem:[#allocation3 + $0x98] sm:$0x1] %v545
        %v547 = vld [vmem:[#allocation3 + $0xa4] sm:$0x1]
        %v548 = vsel %vm392, 0, %v547
        %549 = vst [vmem:[#allocation3 + $0xa4] sm:$0x1] %v548
        %v550 = vld [vmem:[#allocation3 + $0xb0] sm:$0x1]
        %v551 = vsel %vm392, 0, %v550
        %552 = vst [vmem:[#allocation3 + $0xb0] sm:$0x1] %v551
        %v553 = vld [vmem:[#allocation3 + $0xbc] sm:$0x1]
        %v554 = vsel %vm392, 0, %v553
        %555 = vst [vmem:[#allocation3 + $0xbc] sm:$0x1] %v554
        %v556 = vld [vmem:[#allocation3 + $0xc8] sm:$0x1]
        %v557 = vsel %vm392, 0, %v556
        %558 = vst [vmem:[#allocation3 + $0xc8] sm:$0x1] %v557
        %v559 = vld [vmem:[#allocation3 + $0xd4] sm:$0x1]
        %v560 = vsel %vm392, 0, %v559
        %561 = vst [vmem:[#allocation3 + $0xd4] sm:$0x1] %v560
        %v562 = vld [vmem:[%s287] sm:$0xff]
        %v563 = vld [vmem:[%s287 + $0x8] sm:$0xff]
        %v564 = vld [vmem:[%s287 + $0x10] sm:$0xff]
        %v565 = vld [vmem:[%s287 + $0x18] sm:$0xff]
        %v566 = vld [vmem:[%s287 + $0x20] sm:$0xff]
        %v567 = vld [vmem:[%s287 + $0x28] sm:$0xff]
        %v568 = vld [vmem:[%s287 + $0x30] sm:$0xff]
        %v569 = vld [vmem:[%s287 + $0x38] sm:$0xff]
        %v570 = vld [vmem:[%s287 + $0x40] sm:$0xff]
        %v571 = vld [vmem:[%s287 + $0x48] sm:$0xff]
        %v572 = vld [vmem:[%s287 + $0x50] sm:$0xff]
        %v573 = vld [vmem:[%s287 + $0x58] sm:$0xff]
        %v574 = vld [vmem:[%s287 + $0x60] sm:$0xff]
        %v575 = vld [vmem:[%s287 + $0x68] sm:$0xff]
        %v576 = vld [vmem:[%s287 + $0x70] sm:$0xff]
        %v577 = vld [vmem:[%s287 + $0x78] sm:$0xff]
        %v578 = vld [vmem:[%s287 + $0x80] sm:$0xff]
        %v579 = vld [vmem:[%s287 + $0x88] sm:$0xff]
        %v580 = vld [vmem:[%s287 + $0x90] sm:$0xff]
        %v581 = vld [vmem:[%s287 + $0x98] sm:$0xff]
        %v582 = vld [vmem:[%s287 + $0xa0] sm:$0xff]
        %v583 = vld [vmem:[%s287 + $0xa8] sm:$0xff]
        %v584 = vld [vmem:[%s287 + $0xb0] sm:$0xff]
        %v585 = vld [vmem:[%s287 + $0xb8] sm:$0xff]
        %v586 = vld [vmem:[%s287 + $0xc0] sm:$0xff]
        %v587 = vld [vmem:[%s287 + $0xc8] sm:$0xff]
        %v588 = vld [vmem:[%s287 + $0xd0] sm:$0xff]
        %v589 = vld [vmem:[%s287 + $0xd8] sm:$0xff]
        %v590 = vld [vmem:[%s287 + $0xe0] sm:$0xff]
        %v591 = vld [vmem:[%s287 + $0xe8] sm:$0xff]
        %v592 = vld [vmem:[%s287 + $0xf0] sm:$0xff]
        %v593 = vld [vmem:[%s287 + $0xf8] sm:$0xff]
        %v594 = vpack.c.bf16 %v563, %v562
        %v595 = vpack.c.bf16 %v565, %v564
        %v596 = vpack.c.bf16 %v567, %v566
        %v597 = vpack.c.bf16 %v569, %v568
        %v598 = vpack.c.bf16 %v571, %v570
        %v599 = vpack.c.bf16 %v573, %v572
        %v600 = vpack.c.bf16 %v575, %v574
        %v601 = vpack.c.bf16 %v577, %v576
        %v602 = vpack.c.bf16 %v579, %v578
        %v603 = vpack.c.bf16 %v581, %v580
        %v604 = vpack.c.bf16 %v583, %v582
        %v605 = vpack.c.bf16 %v585, %v584
        %v606 = vpack.c.bf16 %v587, %v586
        %v607 = vpack.c.bf16 %v589, %v588
        %v608 = vpack.c.bf16 %v591, %v590
        %v609 = vpack.c.bf16 %v593, %v592
        %v626 = vunpack.c.l.b16 %v594
        %v627 = vunpack.c.h.b16 %v594
        %v628 = vunpack.c.l.b16 %v595
        %v629 = vunpack.c.h.b16 %v595
        %v630 = vunpack.c.l.b16 %v596
        %v631 = vunpack.c.h.b16 %v596
        %v632 = vunpack.c.l.b16 %v597
        %v633 = vunpack.c.h.b16 %v597
        %v634 = vunpack.c.l.b16 %v598
        %v635 = vunpack.c.h.b16 %v598
        %v636 = vunpack.c.l.b16 %v599
        %v637 = vunpack.c.h.b16 %v599
        %v638 = vunpack.c.l.b16 %v600
        %v639 = vunpack.c.h.b16 %v600
        %v640 = vunpack.c.l.b16 %v601
        %v641 = vunpack.c.h.b16 %v601
        %v642 = vunpack.c.l.b16 %v602
        %v643 = vunpack.c.h.b16 %v602
        %v644 = vunpack.c.l.b16 %v603
        %v645 = vunpack.c.h.b16 %v603
        %v646 = vunpack.c.l.b16 %v604
        %v647 = vunpack.c.h.b16 %v604
        %v648 = vunpack.c.l.b16 %v605
        %v649 = vunpack.c.h.b16 %v605
        %v650 = vunpack.c.l.b16 %v606
        %v651 = vunpack.c.h.b16 %v606
        %v652 = vunpack.c.l.b16 %v607
        %v653 = vunpack.c.h.b16 %v607
        %v654 = vunpack.c.l.b16 %v608
        %v655 = vunpack.c.h.b16 %v608
        %v656 = vunpack.c.l.b16 %v609
        %v657 = vunpack.c.h.b16 %v609
        %v658 = vpack.c.b16 %v626, %v626
        %v659 = vpack.c.b16 %v627, %v627
        %v660 = vpack.c.b16 %v628, %v628
        %v661 = vpack.c.b16 %v629, %v629
        %v662 = vpack.c.b16 %v630, %v630
        %v663 = vpack.c.b16 %v631, %v631
        %v664 = vpack.c.b16 %v632, %v632
        %v665 = vpack.c.b16 %v633, %v633
        %v666 = vpack.c.b16 %v634, %v634
        %v667 = vpack.c.b16 %v635, %v635
        %v668 = vpack.c.b16 %v636, %v636
        %v669 = vpack.c.b16 %v637, %v637
        %v670 = vpack.c.b16 %v638, %v638
        %v671 = vpack.c.b16 %v639, %v639
        %v672 = vpack.c.b16 %v640, %v640
        %v673 = vpack.c.b16 %v641, %v641
        %v674 = vpack.c.b16 %v642, %v642
        %v675 = vpack.c.b16 %v643, %v643
        %v676 = vpack.c.b16 %v644, %v644
        %v677 = vpack.c.b16 %v645, %v645
        %v678 = vpack.c.b16 %v646, %v646
        %v679 = vpack.c.b16 %v647, %v647
        %v680 = vpack.c.b16 %v648, %v648
        %v681 = vpack.c.b16 %v649, %v649
        %v682 = vpack.c.b16 %v650, %v650
        %v683 = vpack.c.b16 %v651, %v651
        %v684 = vpack.c.b16 %v652, %v652
        %v685 = vpack.c.b16 %v653, %v653
        %v686 = vpack.c.b16 %v654, %v654
        %v687 = vpack.c.b16 %v655, %v655
        %v688 = vpack.c.b16 %v656, %v656
        %v689 = vpack.c.b16 %v657, %v657
        %vm690 = vsmask.f32 4368
        %vm691 = vmor %vm335, %vm690
        %v693 = vshrl.u32 %v658, 16
        %v695 = vrot.slane %v693, 7
        %v696 = vshll.u32 %v658, 16
        %v698 = vor.u32 %v695, %v696
        %v699 = vrot.slane %v695, 4
        %v701 = vshrl.u32 %v659, 16
        %v703 = vrot.slane %v701, 7
        %v704 = vshll.u32 %v659, 16
        %v706 = vor.u32 %v703, %v704
        %v707 = vsel %vm691, %v699, %v706
        %v708 = vrot.slane %v703, 4
        %v710 = vshrl.u32 %v660, 16
        %v712 = vrot.slane %v710, 7
        %v713 = vshll.u32 %v660, 16
        %v715 = vor.u32 %v712, %v713
        %v716 = vrot.slane %v712, 4
        %v718 = vshrl.u32 %v661, 16
        %v720 = vrot.slane %v718, 7
        %v721 = vshll.u32 %v661, 16
        %v723 = vor.u32 %v720, %v721
        %v724 = vsel %vm691, %v716, %v723
        %v725 = vrot.slane %v720, 4
        %v727 = vshrl.u32 %v662, 16
        %v729 = vrot.slane %v727, 7
        %v730 = vshll.u32 %v662, 16
        %v732 = vor.u32 %v729, %v730
        %v733 = vrot.slane %v729, 4
        %v735 = vshrl.u32 %v663, 16
        %v737 = vrot.slane %v735, 7
        %v738 = vshll.u32 %v663, 16
        %v740 = vor.u32 %v737, %v738
        %v741 = vsel %vm691, %v733, %v740
        %v742 = vrot.slane %v737, 4
        %v744 = vshrl.u32 %v664, 16
        %v746 = vrot.slane %v744, 7
        %v747 = vshll.u32 %v664, 16
        %v749 = vor.u32 %v746, %v747
        %v750 = vrot.slane %v746, 4
        %v752 = vshrl.u32 %v665, 16
        %v754 = vrot.slane %v752, 7
        %v755 = vshll.u32 %v665, 16
        %v757 = vor.u32 %v754, %v755
        %v758 = vsel %vm691, %v750, %v757
        %v759 = vrot.slane %v754, 4
        %v761 = vshrl.u32 %v666, 16
        %v763 = vrot.slane %v761, 7
        %v764 = vshll.u32 %v666, 16
        %v766 = vor.u32 %v763, %v764
        %v767 = vrot.slane %v763, 4
        %v769 = vshrl.u32 %v667, 16
        %v771 = vrot.slane %v769, 7
        %v772 = vshll.u32 %v667, 16
        %v774 = vor.u32 %v771, %v772
        %v775 = vsel %vm691, %v767, %v774
        %v776 = vrot.slane %v771, 4
        %v778 = vshrl.u32 %v668, 16
        %v780 = vrot.slane %v778, 7
        %v781 = vshll.u32 %v668, 16
        %v783 = vor.u32 %v780, %v781
        %v784 = vrot.slane %v780, 4
        %v786 = vshrl.u32 %v669, 16
        %v788 = vrot.slane %v786, 7
        %v789 = vshll.u32 %v669, 16
        %v791 = vor.u32 %v788, %v789
        %v792 = vsel %vm691, %v784, %v791
        %v793 = vrot.slane %v788, 4
        %v795 = vshrl.u32 %v670, 16
        %v797 = vrot.slane %v795, 7
        %v798 = vshll.u32 %v670, 16
        %v800 = vor.u32 %v797, %v798
        %v801 = vrot.slane %v797, 4
        %v803 = vshrl.u32 %v671, 16
        %v805 = vrot.slane %v803, 7
        %v806 = vshll.u32 %v671, 16
        %v808 = vor.u32 %v805, %v806
        %v809 = vsel %vm691, %v801, %v808
        %v810 = vrot.slane %v805, 4
        %v812 = vshrl.u32 %v672, 16
        %v814 = vrot.slane %v812, 7
        %v815 = vshll.u32 %v672, 16
        %v817 = vor.u32 %v814, %v815
        %v818 = vrot.slane %v814, 4
        %v820 = vshrl.u32 %v673, 16
        %v822 = vrot.slane %v820, 7
        %v823 = vshll.u32 %v673, 16
        %v825 = vor.u32 %v822, %v823
        %v826 = vsel %vm691, %v818, %v825
        %v827 = vrot.slane %v822, 4
        %v829 = vshrl.u32 %v674, 16
        %v831 = vrot.slane %v829, 7
        %v832 = vshll.u32 %v674, 16
        %v834 = vor.u32 %v831, %v832
        %v835 = vrot.slane %v831, 4
        %v837 = vshrl.u32 %v675, 16
        %v839 = vrot.slane %v837, 7
        %v840 = vshll.u32 %v675, 16
        %v842 = vor.u32 %v839, %v840
        %v843 = vsel %vm691, %v835, %v842
        %v844 = vrot.slane %v839, 4
        %v846 = vshrl.u32 %v676, 16
        %v848 = vrot.slane %v846, 7
        %v849 = vshll.u32 %v676, 16
        %v851 = vor.u32 %v848, %v849
        %v852 = vrot.slane %v848, 4
        %v854 = vshrl.u32 %v677, 16
        %v856 = vrot.slane %v854, 7
        %v857 = vshll.u32 %v677, 16
        %v859 = vor.u32 %v856, %v857
        %v860 = vsel %vm691, %v852, %v859
        %v861 = vrot.slane %v856, 4
        %v863 = vshrl.u32 %v678, 16
        %v865 = vrot.slane %v863, 7
        %v866 = vshll.u32 %v678, 16
        %v868 = vor.u32 %v865, %v866
        %v869 = vrot.slane %v865, 4
        %v871 = vshrl.u32 %v679, 16
        %v873 = vrot.slane %v871, 7
        %v874 = vshll.u32 %v679, 16
        %v876 = vor.u32 %v873, %v874
        %v877 = vsel %vm691, %v869, %v876
        %v878 = vrot.slane %v873, 4
        %v880 = vshrl.u32 %v680, 16
        %v882 = vrot.slane %v880, 7
        %v883 = vshll.u32 %v680, 16
        %v885 = vor.u32 %v882, %v883
        %v886 = vrot.slane %v882, 4
        %v888 = vshrl.u32 %v681, 16
        %v890 = vrot.slane %v888, 7
        %v891 = vshll.u32 %v681, 16
        %v893 = vor.u32 %v890, %v891
        %v894 = vsel %vm691, %v886, %v893
        %v895 = vrot.slane %v890, 4
        %v897 = vshrl.u32 %v682, 16
        %v899 = vrot.slane %v897, 7
        %v900 = vshll.u32 %v682, 16
        %v902 = vor.u32 %v899, %v900
        %v903 = vrot.slane %v899, 4
        %v905 = vshrl.u32 %v683, 16
        %v907 = vrot.slane %v905, 7
        %v908 = vshll.u32 %v683, 16
        %v910 = vor.u32 %v907, %v908
        %v911 = vsel %vm691, %v903, %v910
        %v912 = vrot.slane %v907, 4
        %v914 = vshrl.u32 %v684, 16
        %v916 = vrot.slane %v914, 7
        %v917 = vshll.u32 %v684, 16
        %v919 = vor.u32 %v916, %v917
        %v920 = vrot.slane %v916, 4
        %v922 = vshrl.u32 %v685, 16
        %v924 = vrot.slane %v922, 7
        %v925 = vshll.u32 %v685, 16
        %v927 = vor.u32 %v924, %v925
        %v928 = vsel %vm691, %v920, %v927
        %v929 = vrot.slane %v924, 4
        %v931 = vshrl.u32 %v686, 16
        %v933 = vrot.slane %v931, 7
        %v934 = vshll.u32 %v686, 16
        %v936 = vor.u32 %v933, %v934
        %v937 = vrot.slane %v933, 4
        %v939 = vshrl.u32 %v687, 16
        %v941 = vrot.slane %v939, 7
        %v942 = vshll.u32 %v687, 16
        %v944 = vor.u32 %v941, %v942
        %v945 = vsel %vm691, %v937, %v944
        %v946 = vrot.slane %v941, 4
        %v948 = vshrl.u32 %v688, 16
        %v950 = vrot.slane %v948, 7
        %v951 = vshll.u32 %v688, 16
        %v953 = vor.u32 %v950, %v951
        %v954 = vrot.slane %v950, 4
        %v956 = vshrl.u32 %v689, 16
        %v958 = vrot.slane %v956, 7
        %v959 = vshll.u32 %v689, 16
        %v961 = vor.u32 %v958, %v959
        %v962 = vsel %vm691, %v954, %v961
        %v963 = vrot.slane %v958, 4
        %s1012 = scalar_lea.vmem [#allocation2], 12
        %vm1013 = vcmask 1043456
        %vm1014 = vmand %vm1013, %vm391
        %v1015 = vld [vmem:[%s1012] sm:$0xf]
        %v1016 = vsel %vm1014, %v698, %v1015
        %1017 = vst [vmem:[%s1012] sm:$0xf] %v1016
        %1018 = vst [vmem:[%s1012 + $0x4] sm:$0xf] %v707
        %v1019 = vld [vmem:[%s1012 + $0x8] sm:$0x1]
        %v1020 = vsel %vm336, %v708, %v1019
        %1021 = vst [vmem:[%s1012 + $0x8] sm:$0x1] %v1020
        %v1022 = vld [vmem:[%s1012 + $0xc] sm:$0xf]
        %v1023 = vsel %vm1014, %v715, %v1022
        %1024 = vst [vmem:[%s1012 + $0xc] sm:$0xf] %v1023
        %1025 = vst [vmem:[%s1012 + $0x10] sm:$0xf] %v724
        %v1026 = vld [vmem:[%s1012 + $0x14] sm:$0x1]
        %v1027 = vsel %vm336, %v725, %v1026
        %1028 = vst [vmem:[%s1012 + $0x14] sm:$0x1] %v1027
        %v1029 = vld [vmem:[%s1012 + $0x18] sm:$0xf]
        %v1030 = vsel %vm1014, %v732, %v1029
        %1031 = vst [vmem:[%s1012 + $0x18] sm:$0xf] %v1030
        %1032 = vst [vmem:[%s1012 + $0x1c] sm:$0xf] %v741
        %v1033 = vld [vmem:[%s1012 + $0x20] sm:$0x1]
        %v1034 = vsel %vm336, %v742, %v1033
        %1035 = vst [vmem:[%s1012 + $0x20] sm:$0x1] %v1034
        %v1036 = vld [vmem:[%s1012 + $0x24] sm:$0xf]
        %v1037 = vsel %vm1014, %v749, %v1036
        %1038 = vst [vmem:[%s1012 + $0x24] sm:$0xf] %v1037
        %1039 = vst [vmem:[%s1012 + $0x28] sm:$0xf] %v758
        %v1040 = vld [vmem:[%s1012 + $0x2c] sm:$0x1]
        %v1041 = vsel %vm336, %v759, %v1040
        %1042 = vst [vmem:[%s1012 + $0x2c] sm:$0x1] %v1041
        %v1043 = vld [vmem:[%s1012 + $0x30] sm:$0xf]
        %v1044 = vsel %vm1014, %v766, %v1043
        %1045 = vst [vmem:[%s1012 + $0x30] sm:$0xf] %v1044
        %1046 = vst [vmem:[%s1012 + $0x34] sm:$0xf] %v775
        %v1047 = vld [vmem:[%s1012 + $0x38] sm:$0x1]
        %v1048 = vsel %vm336, %v776, %v1047
        %1049 = vst [vmem:[%s1012 + $0x38] sm:$0x1] %v1048
        %v1050 = vld [vmem:[%s1012 + $0x3c] sm:$0xf]
        %v1051 = vsel %vm1014, %v783, %v1050
        %1052 = vst [vmem:[%s1012 + $0x3c] sm:$0xf] %v1051
        %1053 = vst [vmem:[%s1012 + $0x40] sm:$0xf] %v792
        %v1054 = vld [vmem:[%s1012 + $0x44] sm:$0x1]
        %v1055 = vsel %vm336, %v793, %v1054
        %1056 = vst [vmem:[%s1012 + $0x44] sm:$0x1] %v1055
        %v1057 = vld [vmem:[%s1012 + $0x48] sm:$0xf]
        %v1058 = vsel %vm1014, %v800, %v1057
        %1059 = vst [vmem:[%s1012 + $0x48] sm:$0xf] %v1058
        %1060 = vst [vmem:[%s1012 + $0x4c] sm:$0xf] %v809
        %v1061 = vld [vmem:[%s1012 + $0x50] sm:$0x1]
        %v1062 = vsel %vm336, %v810, %v1061
        %1063 = vst [vmem:[%s1012 + $0x50] sm:$0x1] %v1062
        %v1064 = vld [vmem:[%s1012 + $0x54] sm:$0xf]
        %v1065 = vsel %vm1014, %v817, %v1064
        %1066 = vst [vmem:[%s1012 + $0x54] sm:$0xf] %v1065
        %1067 = vst [vmem:[%s1012 + $0x58] sm:$0xf] %v826
        %v1068 = vld [vmem:[%s1012 + $0x5c] sm:$0x1]
        %v1069 = vsel %vm336, %v827, %v1068
        %1070 = vst [vmem:[%s1012 + $0x5c] sm:$0x1] %v1069
        %v1071 = vld [vmem:[%s1012 + $0x60] sm:$0xf]
        %v1072 = vsel %vm1014, %v834, %v1071
        %1073 = vst [vmem:[%s1012 + $0x60] sm:$0xf] %v1072
        %1074 = vst [vmem:[%s1012 + $0x64] sm:$0xf] %v843
        %v1075 = vld [vmem:[%s1012 + $0x68] sm:$0x1]
        %v1076 = vsel %vm336, %v844, %v1075
        %1077 = vst [vmem:[%s1012 + $0x68] sm:$0x1] %v1076
        %v1078 = vld [vmem:[%s1012 + $0x6c] sm:$0xf]
        %v1079 = vsel %vm1014, %v851, %v1078
        %1080 = vst [vmem:[%s1012 + $0x6c] sm:$0xf] %v1079
        %1081 = vst [vmem:[%s1012 + $0x70] sm:$0xf] %v860
        %v1082 = vld [vmem:[%s1012 + $0x74] sm:$0x1]
        %v1083 = vsel %vm336, %v861, %v1082
        %1084 = vst [vmem:[%s1012 + $0x74] sm:$0x1] %v1083
        %v1085 = vld [vmem:[%s1012 + $0x78] sm:$0xf]
        %v1086 = vsel %vm1014, %v868, %v1085
        %1087 = vst [vmem:[%s1012 + $0x78] sm:$0xf] %v1086
        %1088 = vst [vmem:[%s1012 + $0x7c] sm:$0xf] %v877
        %v1089 = vld [vmem:[%s1012 + $0x80] sm:$0x1]
        %v1090 = vsel %vm336, %v878, %v1089
        %1091 = vst [vmem:[%s1012 + $0x80] sm:$0x1] %v1090
        %v1092 = vld [vmem:[%s1012 + $0x84] sm:$0xf]
        %v1093 = vsel %vm1014, %v885, %v1092
        %1094 = vst [vmem:[%s1012 + $0x84] sm:$0xf] %v1093
        %1095 = vst [vmem:[%s1012 + $0x88] sm:$0xf] %v894
        %v1096 = vld [vmem:[%s1012 + $0x8c] sm:$0x1]
        %v1097 = vsel %vm336, %v895, %v1096
        %1098 = vst [vmem:[%s1012 + $0x8c] sm:$0x1] %v1097
        %v1099 = vld [vmem:[%s1012 + $0x90] sm:$0xf]
        %v1100 = vsel %vm1014, %v902, %v1099
        %1101 = vst [vmem:[%s1012 + $0x90] sm:$0xf] %v1100
        %1102 = vst [vmem:[%s1012 + $0x94] sm:$0xf] %v911
        %v1103 = vld [vmem:[%s1012 + $0x98] sm:$0x1]
        %v1104 = vsel %vm336, %v912, %v1103
        %1105 = vst [vmem:[%s1012 + $0x98] sm:$0x1] %v1104
        %v1106 = vld [vmem:[%s1012 + $0x9c] sm:$0xf]
        %v1107 = vsel %vm1014, %v919, %v1106
        %1108 = vst [vmem:[%s1012 + $0x9c] sm:$0xf] %v1107
        %1109 = vst [vmem:[%s1012 + $0xa0] sm:$0xf] %v928
        %v1110 = vld [vmem:[%s1012 + $0xa4] sm:$0x1]
        %v1111 = vsel %vm336, %v929, %v1110
        %1112 = vst [vmem:[%s1012 + $0xa4] sm:$0x1] %v1111
        %v1113 = vld [vmem:[%s1012 + $0xa8] sm:$0xf]
        %v1114 = vsel %vm1014, %v936, %v1113
        %1115 = vst [vmem:[%s1012 + $0xa8] sm:$0xf] %v1114
        %1116 = vst [vmem:[%s1012 + $0xac] sm:$0xf] %v945
        %v1117 = vld [vmem:[%s1012 + $0xb0] sm:$0x1]
        %v1118 = vsel %vm336, %v946, %v1117
        %1119 = vst [vmem:[%s1012 + $0xb0] sm:$0x1] %v1118
        %v1120 = vld [vmem:[%s1012 + $0xb4] sm:$0xf]
        %v1121 = vsel %vm1014, %v953, %v1120
        %1122 = vst [vmem:[%s1012 + $0xb4] sm:$0xf] %v1121
        %1123 = vst [vmem:[%s1012 + $0xb8] sm:$0xf] %v962
        %v1124 = vld [vmem:[%s1012 + $0xbc] sm:$0x1]
        %v1125 = vsel %vm336, %v963, %v1124
        %1126 = vst [vmem:[%s1012 + $0xbc] sm:$0x1] %v1125
        %v1127 = vld [vmem:[#allocation2] sm:$0xf]
        %v1128 = vld [vmem:[#allocation2 + $0x4] sm:$0xf]
        %v1129 = vld [vmem:[#allocation2 + $0xc] sm:$0xf]
        %v1130 = vld [vmem:[#allocation2 + $0x10] sm:$0xf]
        %v1131 = vld [vmem:[#allocation2 + $0x18] sm:$0xf]
        %v1132 = vld [vmem:[#allocation2 + $0x1c] sm:$0xf]
        %v1133 = vld [vmem:[#allocation2 + $0x24] sm:$0xf]
        %v1134 = vld [vmem:[#allocation2 + $0x28] sm:$0xf]
        %v1135 = vld [vmem:[#allocation2 + $0x30] sm:$0xf]
        %v1136 = vld [vmem:[#allocation2 + $0x34] sm:$0xf]
        %v1137 = vld [vmem:[#allocation2 + $0x3c] sm:$0xf]
        %v1138 = vld [vmem:[#allocation2 + $0x40] sm:$0xf]
        %v1139 = vld [vmem:[#allocation2 + $0x48] sm:$0xf]
        %v1140 = vld [vmem:[#allocation2 + $0x4c] sm:$0xf]
        %v1141 = vld [vmem:[#allocation2 + $0x54] sm:$0xf]
        %v1142 = vld [vmem:[#allocation2 + $0x58] sm:$0xf]
        %v1143 = vld [vmem:[#allocation2 + $0x60] sm:$0xf]
        %v1144 = vld [vmem:[#allocation2 + $0x64] sm:$0xf]
        %v1145 = vld [vmem:[#allocation2 + $0x6c] sm:$0xf]
        %v1146 = vld [vmem:[#allocation2 + $0x70] sm:$0xf]
        %v1147 = vld [vmem:[#allocation2 + $0x78] sm:$0xf]
        %v1148 = vld [vmem:[#allocation2 + $0x7c] sm:$0xf]
        %v1149 = vld [vmem:[#allocation2 + $0x84] sm:$0xf]
        %v1150 = vld [vmem:[#allocation2 + $0x88] sm:$0xf]
        %v1151 = vld [vmem:[#allocation2 + $0x90] sm:$0xf]
        %v1152 = vld [vmem:[#allocation2 + $0x94] sm:$0xf]
        %v1153 = vld [vmem:[#allocation2 + $0x9c] sm:$0xf]
        %v1154 = vld [vmem:[#allocation2 + $0xa0] sm:$0xf]
        %v1155 = vld [vmem:[#allocation2 + $0xa8] sm:$0xf]
        %v1156 = vld [vmem:[#allocation2 + $0xac] sm:$0xf]
        %v1157 = vld [vmem:[#allocation2 + $0xb4] sm:$0xf]
        %v1158 = vld [vmem:[#allocation2 + $0xb8] sm:$0xf]
        %v1159 = vld [vmem:[#allocation2 + $0x8] sm:$0x1]
        %v1160 = vld [vmem:[#allocation2 + $0x14] sm:$0x1]
        %v1161 = vld [vmem:[#allocation2 + $0x20] sm:$0x1]
        %v1162 = vld [vmem:[#allocation2 + $0x2c] sm:$0x1]
        %v1163 = vld [vmem:[#allocation2 + $0x38] sm:$0x1]
        %v1164 = vld [vmem:[#allocation2 + $0x44] sm:$0x1]
        %v1165 = vld [vmem:[#allocation2 + $0x50] sm:$0x1]
        %v1166 = vld [vmem:[#allocation2 + $0x5c] sm:$0x1]
        %v1167 = vld [vmem:[#allocation2 + $0x68] sm:$0x1]
        %v1168 = vld [vmem:[#allocation2 + $0x74] sm:$0x1]
        %v1169 = vld [vmem:[#allocation2 + $0x80] sm:$0x1]
        %v1170 = vld [vmem:[#allocation2 + $0x8c] sm:$0x1]
        %v1171 = vld [vmem:[#allocation2 + $0x98] sm:$0x1]
        %v1172 = vld [vmem:[#allocation2 + $0xa4] sm:$0x1]
        %v1173 = vld [vmem:[#allocation2 + $0xb0] sm:$0x1]
        %v1174 = vld [vmem:[#allocation2 + $0xbc] sm:$0x1]
        %v1175 = vld [vmem:[#allocation2] sm:$0xe]
        %v1176 = vld [vmem:[#allocation2 + $0xc] sm:$0xe]
        %v1177 = vld [vmem:[#allocation2 + $0x18] sm:$0xe]
        %v1178 = vld [vmem:[#allocation2 + $0x24] sm:$0xe]
        %v1179 = vld [vmem:[#allocation2 + $0x30] sm:$0xe]
        %v1180 = vld [vmem:[#allocation2 + $0x3c] sm:$0xe]
        %v1181 = vld [vmem:[#allocation2 + $0x48] sm:$0xe]
        %v1182 = vld [vmem:[#allocation2 + $0x54] sm:$0xe]
        %v1183 = vld [vmem:[#allocation2 + $0x60] sm:$0xe]
        %v1184 = vld [vmem:[#allocation2 + $0x6c] sm:$0xe]
        %v1185 = vld [vmem:[#allocation2 + $0x78] sm:$0xe]
        %v1186 = vld [vmem:[#allocation2 + $0x84] sm:$0xe]
        %v1187 = vld [vmem:[#allocation2 + $0x90] sm:$0xe]
        %v1188 = vld [vmem:[#allocation2 + $0x9c] sm:$0xe]
        %v1189 = vld [vmem:[#allocation2 + $0xa8] sm:$0xe]
        %v1190 = vld [vmem:[#allocation2 + $0xb4] sm:$0xe]
        %v1191 = vld [vmem:[%s1012] sm:$0xf]
        %v1192 = vld [vmem:[%s1012 + $0x4] sm:$0xf]
        %v1193 = vld [vmem:[%s1012 + $0xc] sm:$0xf]
        %v1194 = vld [vmem:[%s1012 + $0x10] sm:$0xf]
        %v1195 = vld [vmem:[%s1012 + $0x18] sm:$0xf]
        %v1196 = vld [vmem:[%s1012 + $0x1c] sm:$0xf]
        %v1197 = vld [vmem:[%s1012 + $0x24] sm:$0xf]
        %v1198 = vld [vmem:[%s1012 + $0x28] sm:$0xf]
        %v1199 = vld [vmem:[%s1012 + $0x30] sm:$0xf]
        %v1200 = vld [vmem:[%s1012 + $0x34] sm:$0xf]
        %v1201 = vld [vmem:[%s1012 + $0x3c] sm:$0xf]
        %v1202 = vld [vmem:[%s1012 + $0x40] sm:$0xf]
        %v1203 = vld [vmem:[%s1012 + $0x48] sm:$0xf]
        %v1204 = vld [vmem:[%s1012 + $0x4c] sm:$0xf]
        %v1205 = vld [vmem:[%s1012 + $0x54] sm:$0xf]
        %v1206 = vld [vmem:[%s1012 + $0x58] sm:$0xf]
        %v1207 = vld [vmem:[%s1012 + $0x60] sm:$0xf]
        %v1208 = vld [vmem:[%s1012 + $0x64] sm:$0xf]
        %v1209 = vld [vmem:[%s1012 + $0x6c] sm:$0xf]
        %v1210 = vld [vmem:[%s1012 + $0x70] sm:$0xf]
        %v1211 = vld [vmem:[%s1012 + $0x78] sm:$0xf]
        %v1212 = vld [vmem:[%s1012 + $0x7c] sm:$0xf]
        %v1213 = vld [vmem:[%s1012 + $0x84] sm:$0xf]
        %v1214 = vld [vmem:[%s1012 + $0x88] sm:$0xf]
        %v1215 = vld [vmem:[%s1012 + $0x90] sm:$0xf]
        %v1216 = vld [vmem:[%s1012 + $0x94] sm:$0xf]
        %v1217 = vld [vmem:[%s1012 + $0x9c] sm:$0xf]
        %v1218 = vld [vmem:[%s1012 + $0xa0] sm:$0xf]
        %v1219 = vld [vmem:[%s1012 + $0xa8] sm:$0xf]
        %v1220 = vld [vmem:[%s1012 + $0xac] sm:$0xf]
        %v1221 = vld [vmem:[%s1012 + $0xb4] sm:$0xf]
        %v1222 = vld [vmem:[%s1012 + $0xb8] sm:$0xf]
        %v1223 = vld [vmem:[%s1012 + $0x8] sm:$0x1]
        %v1224 = vld [vmem:[%s1012 + $0x14] sm:$0x1]
        %v1225 = vld [vmem:[%s1012 + $0x20] sm:$0x1]
        %v1226 = vld [vmem:[%s1012 + $0x2c] sm:$0x1]
        %v1227 = vld [vmem:[%s1012 + $0x38] sm:$0x1]
        %v1228 = vld [vmem:[%s1012 + $0x44] sm:$0x1]
        %v1229 = vld [vmem:[%s1012 + $0x50] sm:$0x1]
        %v1230 = vld [vmem:[%s1012 + $0x5c] sm:$0x1]
        %v1231 = vld [vmem:[%s1012 + $0x68] sm:$0x1]
        %v1232 = vld [vmem:[%s1012 + $0x74] sm:$0x1]
        %v1233 = vld [vmem:[%s1012 + $0x80] sm:$0x1]
        %v1234 = vld [vmem:[%s1012 + $0x8c] sm:$0x1]
        %v1235 = vld [vmem:[%s1012 + $0x98] sm:$0x1]
        %v1236 = vld [vmem:[%s1012 + $0xa4] sm:$0x1]
        %v1237 = vld [vmem:[%s1012 + $0xb0] sm:$0x1]
        %v1238 = vld [vmem:[%s1012 + $0xbc] sm:$0x1]
        %v1239 = vld [vmem:[%s1012] sm:$0xe]
        %v1240 = vld [vmem:[%s1012 + $0xc] sm:$0xe]
        %v1241 = vld [vmem:[%s1012 + $0x18] sm:$0xe]
        %v1242 = vld [vmem:[%s1012 + $0x24] sm:$0xe]
        %v1243 = vld [vmem:[%s1012 + $0x30] sm:$0xe]
        %v1244 = vld [vmem:[%s1012 + $0x3c] sm:$0xe]
        %v1245 = vld [vmem:[%s1012 + $0x48] sm:$0xe]
        %v1246 = vld [vmem:[%s1012 + $0x54] sm:$0xe]
        %v1247 = vld [vmem:[%s1012 + $0x60] sm:$0xe]
        %v1248 = vld [vmem:[%s1012 + $0x6c] sm:$0xe]
        %v1249 = vld [vmem:[%s1012 + $0x78] sm:$0xe]
        %v1250 = vld [vmem:[%s1012 + $0x84] sm:$0xe]
        %v1251 = vld [vmem:[%s1012 + $0x90] sm:$0xe]
        %v1252 = vld [vmem:[%s1012 + $0x9c] sm:$0xe]
        %v1253 = vld [vmem:[%s1012 + $0xa8] sm:$0xe]
        %v1254 = vld [vmem:[%s1012 + $0xb4] sm:$0xe]
        %s1255 = scalar_lea.vmem [#allocation2], 24
        %v1256 = vld [vmem:[%s1255] sm:$0xf]
        %v1257 = vld [vmem:[%s1255 + $0x4] sm:$0xf]
        %v1258 = vld [vmem:[%s1255 + $0xc] sm:$0xf]
        %v1259 = vld [vmem:[%s1255 + $0x10] sm:$0xf]
        %v1260 = vld [vmem:[%s1255 + $0x18] sm:$0xf]
        %v1261 = vld [vmem:[%s1255 + $0x1c] sm:$0xf]
        %v1262 = vld [vmem:[%s1255 + $0x24] sm:$0xf]
        %v1263 = vld [vmem:[%s1255 + $0x28] sm:$0xf]
        %v1264 = vld [vmem:[%s1255 + $0x30] sm:$0xf]
        %v1265 = vld [vmem:[%s1255 + $0x34] sm:$0xf]
        %v1266 = vld [vmem:[%s1255 + $0x3c] sm:$0xf]
        %v1267 = vld [vmem:[%s1255 + $0x40] sm:$0xf]
        %v1268 = vld [vmem:[%s1255 + $0x48] sm:$0xf]
        %v1269 = vld [vmem:[%s1255 + $0x4c] sm:$0xf]
        %v1270 = vld [vmem:[%s1255 + $0x54] sm:$0xf]
        %v1271 = vld [vmem:[%s1255 + $0x58] sm:$0xf]
        %v1272 = vld [vmem:[%s1255 + $0x60] sm:$0xf]
        %v1273 = vld [vmem:[%s1255 + $0x64] sm:$0xf]
        %v1274 = vld [vmem:[%s1255 + $0x6c] sm:$0xf]
        %v1275 = vld [vmem:[%s1255 + $0x70] sm:$0xf]
        %v1276 = vld [vmem:[%s1255 + $0x78] sm:$0xf]
        %v1277 = vld [vmem:[%s1255 + $0x7c] sm:$0xf]
        %v1278 = vld [vmem:[%s1255 + $0x84] sm:$0xf]
        %v1279 = vld [vmem:[%s1255 + $0x88] sm:$0xf]
        %v1280 = vld [vmem:[%s1255 + $0x90] sm:$0xf]
        %v1281 = vld [vmem:[%s1255 + $0x94] sm:$0xf]
        %v1282 = vld [vmem:[%s1255 + $0x9c] sm:$0xf]
        %v1283 = vld [vmem:[%s1255 + $0xa0] sm:$0xf]
        %v1284 = vld [vmem:[%s1255 + $0xa8] sm:$0xf]
        %v1285 = vld [vmem:[%s1255 + $0xac] sm:$0xf]
        %v1286 = vld [vmem:[%s1255 + $0xb4] sm:$0xf]
        %v1287 = vld [vmem:[%s1255 + $0xb8] sm:$0xf]
        %v1288 = vld [vmem:[%s1255 + $0x8] sm:$0x1]
        %v1289 = vld [vmem:[%s1255 + $0x14] sm:$0x1]
        %v1290 = vld [vmem:[%s1255 + $0x20] sm:$0x1]
        %v1291 = vld [vmem:[%s1255 + $0x2c] sm:$0x1]
        %v1292 = vld [vmem:[%s1255 + $0x38] sm:$0x1]
        %v1293 = vld [vmem:[%s1255 + $0x44] sm:$0x1]
        %v1294 = vld [vmem:[%s1255 + $0x50] sm:$0x1]
        %v1295 = vld [vmem:[%s1255 + $0x5c] sm:$0x1]
        %v1296 = vld [vmem:[%s1255 + $0x68] sm:$0x1]
        %v1297 = vld [vmem:[%s1255 + $0x74] sm:$0x1]
        %v1298 = vld [vmem:[%s1255 + $0x80] sm:$0x1]
        %v1299 = vld [vmem:[%s1255 + $0x8c] sm:$0x1]
        %v1300 = vld [vmem:[%s1255 + $0x98] sm:$0x1]
        %v1301 = vld [vmem:[%s1255 + $0xa4] sm:$0x1]
        %v1302 = vld [vmem:[%s1255 + $0xb0] sm:$0x1]
        %v1303 = vld [vmem:[%s1255 + $0xbc] sm:$0x1]
        %v1304 = vld [vmem:[%s1255] sm:$0xe]
        %v1305 = vld [vmem:[%s1255 + $0xc] sm:$0xe]
        %v1306 = vld [vmem:[%s1255 + $0x18] sm:$0xe]
        %v1307 = vld [vmem:[%s1255 + $0x24] sm:$0xe]
        %v1308 = vld [vmem:[%s1255 + $0x30] sm:$0xe]
        %v1309 = vld [vmem:[%s1255 + $0x3c] sm:$0xe]
        %v1310 = vld [vmem:[%s1255 + $0x48] sm:$0xe]
        %v1311 = vld [vmem:[%s1255 + $0x54] sm:$0xe]
        %v1312 = vld [vmem:[%s1255 + $0x60] sm:$0xe]
        %v1313 = vld [vmem:[%s1255 + $0x6c] sm:$0xe]
        %v1314 = vld [vmem:[%s1255 + $0x78] sm:$0xe]
        %v1315 = vld [vmem:[%s1255 + $0x84] sm:$0xe]
        %v1316 = vld [vmem:[%s1255 + $0x90] sm:$0xe]
        %v1317 = vld [vmem:[%s1255 + $0x9c] sm:$0xe]
        %v1318 = vld [vmem:[%s1255 + $0xa8] sm:$0xe]
        %v1319 = vld [vmem:[%s1255 + $0xb4] sm:$0xe]
        %v1352 = vunpack.c.l.b16 %v1127
        %v1353 = vunpack.c.l.b16 %v1128
        %v1354 = vunpack.c.l.b16 %v1129
        %v1355 = vunpack.c.l.b16 %v1130
        %v1356 = vunpack.c.l.b16 %v1131
        %v1357 = vunpack.c.l.b16 %v1132
        %v1358 = vunpack.c.l.b16 %v1133
        %v1359 = vunpack.c.l.b16 %v1134
        %v1360 = vunpack.c.l.b16 %v1135
        %v1361 = vunpack.c.l.b16 %v1136
        %v1362 = vunpack.c.l.b16 %v1137
        %v1363 = vunpack.c.l.b16 %v1138
        %v1364 = vunpack.c.l.b16 %v1139
        %v1365 = vunpack.c.l.b16 %v1140
        %v1366 = vunpack.c.l.b16 %v1141
        %v1367 = vunpack.c.l.b16 %v1142
        %v1368 = vunpack.c.l.b16 %v1143
        %v1369 = vunpack.c.l.b16 %v1144
        %v1370 = vunpack.c.l.b16 %v1145
        %v1371 = vunpack.c.l.b16 %v1146
        %v1372 = vunpack.c.l.b16 %v1147
        %v1373 = vunpack.c.l.b16 %v1148
        %v1374 = vunpack.c.l.b16 %v1149
        %v1375 = vunpack.c.l.b16 %v1150
        %v1376 = vunpack.c.l.b16 %v1151
        %v1377 = vunpack.c.l.b16 %v1152
        %v1378 = vunpack.c.l.b16 %v1153
        %v1379 = vunpack.c.l.b16 %v1154
        %v1380 = vunpack.c.l.b16 %v1155
        %v1381 = vunpack.c.l.b16 %v1156
        %v1382 = vunpack.c.l.b16 %v1157
        %v1383 = vunpack.c.l.b16 %v1158
        %v1384 = vpack.c.b16 %v1353, %v1352
        %v1385 = vpack.c.b16 %v1355, %v1354
        %v1386 = vpack.c.b16 %v1357, %v1356
        %v1387 = vpack.c.b16 %v1359, %v1358
        %v1388 = vpack.c.b16 %v1361, %v1360
        %v1389 = vpack.c.b16 %v1363, %v1362
        %v1390 = vpack.c.b16 %v1365, %v1364
        %v1391 = vpack.c.b16 %v1367, %v1366
        %v1392 = vpack.c.b16 %v1369, %v1368
        %v1393 = vpack.c.b16 %v1371, %v1370
        %v1394 = vpack.c.b16 %v1373, %v1372
        %v1395 = vpack.c.b16 %v1375, %v1374
        %v1396 = vpack.c.b16 %v1377, %v1376
        %v1397 = vpack.c.b16 %v1379, %v1378
        %v1398 = vpack.c.b16 %v1381, %v1380
        %v1399 = vpack.c.b16 %v1383, %v1382
        %v1432 = vunpack.c.l.b16 %v1159
        %v1433 = vunpack.c.l.b16 %v1160
        %v1434 = vunpack.c.l.b16 %v1161
        %v1435 = vunpack.c.l.b16 %v1162
        %v1436 = vunpack.c.l.b16 %v1163
        %v1437 = vunpack.c.l.b16 %v1164
        %v1438 = vunpack.c.l.b16 %v1165
        %v1439 = vunpack.c.l.b16 %v1166
        %v1440 = vunpack.c.l.b16 %v1167
        %v1441 = vunpack.c.l.b16 %v1168
        %v1442 = vunpack.c.l.b16 %v1169
        %v1443 = vunpack.c.l.b16 %v1170
        %v1444 = vunpack.c.l.b16 %v1171
        %v1445 = vunpack.c.l.b16 %v1172
        %v1446 = vunpack.c.l.b16 %v1173
        %v1447 = vunpack.c.l.b16 %v1174
        %v1448 = vpack.c.b16 %v1432, %v1432
        %v1449 = vpack.c.b16 %v1433, %v1433
        %v1450 = vpack.c.b16 %v1434, %v1434
        %v1451 = vpack.c.b16 %v1435, %v1435
        %v1452 = vpack.c.b16 %v1436, %v1436
        %v1453 = vpack.c.b16 %v1437, %v1437
        %v1454 = vpack.c.b16 %v1438, %v1438
        %v1455 = vpack.c.b16 %v1439, %v1439
        %v1456 = vpack.c.b16 %v1440, %v1440
        %v1457 = vpack.c.b16 %v1441, %v1441
        %v1458 = vpack.c.b16 %v1442, %v1442
        %v1459 = vpack.c.b16 %v1443, %v1443
        %v1460 = vpack.c.b16 %v1444, %v1444
        %v1461 = vpack.c.b16 %v1445, %v1445
        %v1462 = vpack.c.b16 %v1446, %v1446
        %v1463 = vpack.c.b16 %v1447, %v1447
        %vm1464 = vsmask.f32 7424
        %v1466 = vshrl.u32 %v1384, 16
        %v1468 = vshll.u32 %v1384, 16
        %v1470 = vrot.slane %v1468, 1
        %v1471 = vor.u32 %v1466, %v1470
        %v1473 = vshll.u32 %v1448, 16
        %v1475 = vrot.slane %v1473, 1
        %v1476 = vsel %vm1464, %v1471, %v1475
        %v1478 = vshrl.u32 %v1385, 16
        %v1480 = vshll.u32 %v1385, 16
        %v1482 = vrot.slane %v1480, 1
        %v1483 = vor.u32 %v1478, %v1482
        %v1485 = vshll.u32 %v1449, 16
        %v1487 = vrot.slane %v1485, 1
        %v1488 = vsel %vm1464, %v1483, %v1487
        %v1490 = vshrl.u32 %v1386, 16
        %v1492 = vshll.u32 %v1386, 16
        %v1494 = vrot.slane %v1492, 1
        %v1495 = vor.u32 %v1490, %v1494
        %v1497 = vshll.u32 %v1450, 16
        %v1499 = vrot.slane %v1497, 1
        %v1500 = vsel %vm1464, %v1495, %v1499
        %v1502 = vshrl.u32 %v1387, 16
        %v1504 = vshll.u32 %v1387, 16
        %v1506 = vrot.slane %v1504, 1
        %v1507 = vor.u32 %v1502, %v1506
        %v1509 = vshll.u32 %v1451, 16
        %v1511 = vrot.slane %v1509, 1
        %v1512 = vsel %vm1464, %v1507, %v1511
        %v1514 = vshrl.u32 %v1388, 16
        %v1516 = vshll.u32 %v1388, 16
        %v1518 = vrot.slane %v1516, 1
        %v1519 = vor.u32 %v1514, %v1518
        %v1521 = vshll.u32 %v1452, 16
        %v1523 = vrot.slane %v1521, 1
        %v1524 = vsel %vm1464, %v1519, %v1523
        %v1526 = vshrl.u32 %v1389, 16
        %v1528 = vshll.u32 %v1389, 16
        %v1530 = vrot.slane %v1528, 1
        %v1531 = vor.u32 %v1526, %v1530
        %v1533 = vshll.u32 %v1453, 16
        %v1535 = vrot.slane %v1533, 1
        %v1536 = vsel %vm1464, %v1531, %v1535
        %v1538 = vshrl.u32 %v1390, 16
        %v1540 = vshll.u32 %v1390, 16
        %v1542 = vrot.slane %v1540, 1
        %v1543 = vor.u32 %v1538, %v1542
        %v1545 = vshll.u32 %v1454, 16
        %v1547 = vrot.slane %v1545, 1
        %v1548 = vsel %vm1464, %v1543, %v1547
        %v1550 = vshrl.u32 %v1391, 16
        %v1552 = vshll.u32 %v1391, 16
        %v1554 = vrot.slane %v1552, 1
        %v1555 = vor.u32 %v1550, %v1554
        %v1557 = vshll.u32 %v1455, 16
        %v1559 = vrot.slane %v1557, 1
        %v1560 = vsel %vm1464, %v1555, %v1559
        %v1562 = vshrl.u32 %v1392, 16
        %v1564 = vshll.u32 %v1392, 16
        %v1566 = vrot.slane %v1564, 1
        %v1567 = vor.u32 %v1562, %v1566
        %v1569 = vshll.u32 %v1456, 16
        %v1571 = vrot.slane %v1569, 1
        %v1572 = vsel %vm1464, %v1567, %v1571
        %v1574 = vshrl.u32 %v1393, 16
        %v1576 = vshll.u32 %v1393, 16
        %v1578 = vrot.slane %v1576, 1
        %v1579 = vor.u32 %v1574, %v1578
        %v1581 = vshll.u32 %v1457, 16
        %v1583 = vrot.slane %v1581, 1
        %v1584 = vsel %vm1464, %v1579, %v1583
        %v1586 = vshrl.u32 %v1394, 16
        %v1588 = vshll.u32 %v1394, 16
        %v1590 = vrot.slane %v1588, 1
        %v1591 = vor.u32 %v1586, %v1590
        %v1593 = vshll.u32 %v1458, 16
        %v1595 = vrot.slane %v1593, 1
        %v1596 = vsel %vm1464, %v1591, %v1595
        %v1598 = vshrl.u32 %v1395, 16
        %v1600 = vshll.u32 %v1395, 16
        %v1602 = vrot.slane %v1600, 1
        %v1603 = vor.u32 %v1598, %v1602
        %v1605 = vshll.u32 %v1459, 16
        %v1607 = vrot.slane %v1605, 1
        %v1608 = vsel %vm1464, %v1603, %v1607
        %v1610 = vshrl.u32 %v1396, 16
        %v1612 = vshll.u32 %v1396, 16
        %v1614 = vrot.slane %v1612, 1
        %v1615 = vor.u32 %v1610, %v1614
        %v1617 = vshll.u32 %v1460, 16
        %v1619 = vrot.slane %v1617, 1
        %v1620 = vsel %vm1464, %v1615, %v1619
        %v1622 = vshrl.u32 %v1397, 16
        %v1624 = vshll.u32 %v1397, 16
        %v1626 = vrot.slane %v1624, 1
        %v1627 = vor.u32 %v1622, %v1626
        %v1629 = vshll.u32 %v1461, 16
        %v1631 = vrot.slane %v1629, 1
        %v1632 = vsel %vm1464, %v1627, %v1631
        %v1634 = vshrl.u32 %v1398, 16
        %v1636 = vshll.u32 %v1398, 16
        %v1638 = vrot.slane %v1636, 1
        %v1639 = vor.u32 %v1634, %v1638
        %v1641 = vshll.u32 %v1462, 16
        %v1643 = vrot.slane %v1641, 1
        %v1644 = vsel %vm1464, %v1639, %v1643
        %v1646 = vshrl.u32 %v1399, 16
        %v1648 = vshll.u32 %v1399, 16
        %v1650 = vrot.slane %v1648, 1
        %v1651 = vor.u32 %v1646, %v1650
        %v1653 = vshll.u32 %v1463, 16
        %v1655 = vrot.slane %v1653, 1
        %v1656 = vsel %vm1464, %v1651, %v1655
        %v1689 = vunpack.c.l.b16 %v1175
        %v1690 = vunpack.c.l.b16 %v1176
        %v1691 = vunpack.c.l.b16 %v1177
        %v1692 = vunpack.c.l.b16 %v1178
        %v1693 = vunpack.c.l.b16 %v1179
        %v1694 = vunpack.c.l.b16 %v1180
        %v1695 = vunpack.c.l.b16 %v1181
        %v1696 = vunpack.c.l.b16 %v1182
        %v1697 = vunpack.c.l.b16 %v1183
        %v1698 = vunpack.c.l.b16 %v1184
        %v1699 = vunpack.c.l.b16 %v1185
        %v1700 = vunpack.c.l.b16 %v1186
        %v1701 = vunpack.c.l.b16 %v1187
        %v1702 = vunpack.c.l.b16 %v1188
        %v1703 = vunpack.c.l.b16 %v1189
        %v1704 = vunpack.c.l.b16 %v1190
        %v1705 = vpack.c.b16 %v1353, %v1689
        %v1706 = vpack.c.b16 %v1355, %v1690
        %v1707 = vpack.c.b16 %v1357, %v1691
        %v1708 = vpack.c.b16 %v1359, %v1692
        %v1709 = vpack.c.b16 %v1361, %v1693
        %v1710 = vpack.c.b16 %v1363, %v1694
        %v1711 = vpack.c.b16 %v1365, %v1695
        %v1712 = vpack.c.b16 %v1367, %v1696
        %v1713 = vpack.c.b16 %v1369, %v1697
        %v1714 = vpack.c.b16 %v1371, %v1698
        %v1715 = vpack.c.b16 %v1373, %v1699
        %v1716 = vpack.c.b16 %v1375, %v1700
        %v1717 = vpack.c.b16 %v1377, %v1701
        %v1718 = vpack.c.b16 %v1379, %v1702
        %v1719 = vpack.c.b16 %v1381, %v1703
        %v1720 = vpack.c.b16 %v1383, %v1704
        %vm1721 = vcmask 1046528
        %v1722 = vrot.slane %v1705, 1
        %v1723 = vrot.slane %v1448, 1
        %v1724 = vsel %vm1721, %v1722, %v1723
        %v1725 = vrot.slane %v1706, 1
        %v1726 = vrot.slane %v1449, 1
        %v1727 = vsel %vm1721, %v1725, %v1726
        %v1728 = vrot.slane %v1707, 1
        %v1729 = vrot.slane %v1450, 1
        %v1730 = vsel %vm1721, %v1728, %v1729
        %v1731 = vrot.slane %v1708, 1
        %v1732 = vrot.slane %v1451, 1
        %v1733 = vsel %vm1721, %v1731, %v1732
        %v1734 = vrot.slane %v1709, 1
        %v1735 = vrot.slane %v1452, 1
        %v1736 = vsel %vm1721, %v1734, %v1735
        %v1737 = vrot.slane %v1710, 1
        %v1738 = vrot.slane %v1453, 1
        %v1739 = vsel %vm1721, %v1737, %v1738
        %v1740 = vrot.slane %v1711, 1
        %v1741 = vrot.slane %v1454, 1
        %v1742 = vsel %vm1721, %v1740, %v1741
        %v1743 = vrot.slane %v1712, 1
        %v1744 = vrot.slane %v1455, 1
        %v1745 = vsel %vm1721, %v1743, %v1744
        %v1746 = vrot.slane %v1713, 1
        %v1747 = vrot.slane %v1456, 1
        %v1748 = vsel %vm1721, %v1746, %v1747
        %v1749 = vrot.slane %v1714, 1
        %v1750 = vrot.slane %v1457, 1
        %v1751 = vsel %vm1721, %v1749, %v1750
        %v1752 = vrot.slane %v1715, 1
        %v1753 = vrot.slane %v1458, 1
        %v1754 = vsel %vm1721, %v1752, %v1753
        %v1755 = vrot.slane %v1716, 1
        %v1756 = vrot.slane %v1459, 1
        %v1757 = vsel %vm1721, %v1755, %v1756
        %v1758 = vrot.slane %v1717, 1
        %v1759 = vrot.slane %v1460, 1
        %v1760 = vsel %vm1721, %v1758, %v1759
        %v1761 = vrot.slane %v1718, 1
        %v1762 = vrot.slane %v1461, 1
        %v1763 = vsel %vm1721, %v1761, %v1762
        %v1764 = vrot.slane %v1719, 1
        %v1765 = vrot.slane %v1462, 1
        %v1766 = vsel %vm1721, %v1764, %v1765
        %v1767 = vrot.slane %v1720, 1
        %v1768 = vrot.slane %v1463, 1
        %v1769 = vsel %vm1721, %v1767, %v1768
        %v1818 = vunpack.c.l.b16 %v1191
        %v1819 = vunpack.c.l.b16 %v1192
        %v1820 = vunpack.c.l.b16 %v1193
        %v1821 = vunpack.c.l.b16 %v1194
        %v1822 = vunpack.c.l.b16 %v1195
        %v1823 = vunpack.c.l.b16 %v1196
        %v1824 = vunpack.c.l.b16 %v1197
        %v1825 = vunpack.c.l.b16 %v1198
        %v1826 = vunpack.c.l.b16 %v1199
        %v1827 = vunpack.c.l.b16 %v1200
        %v1828 = vunpack.c.l.b16 %v1201
        %v1829 = vunpack.c.l.b16 %v1202
        %v1830 = vunpack.c.l.b16 %v1203
        %v1831 = vunpack.c.l.b16 %v1204
        %v1832 = vunpack.c.l.b16 %v1205
        %v1833 = vunpack.c.l.b16 %v1206
        %v1834 = vunpack.c.l.b16 %v1207
        %v1835 = vunpack.c.l.b16 %v1208
        %v1836 = vunpack.c.l.b16 %v1209
        %v1837 = vunpack.c.l.b16 %v1210
        %v1838 = vunpack.c.l.b16 %v1211
        %v1839 = vunpack.c.l.b16 %v1212
        %v1840 = vunpack.c.l.b16 %v1213
        %v1841 = vunpack.c.l.b16 %v1214
        %v1842 = vunpack.c.l.b16 %v1215
        %v1843 = vunpack.c.l.b16 %v1216
        %v1844 = vunpack.c.l.b16 %v1217
        %v1845 = vunpack.c.l.b16 %v1218
        %v1846 = vunpack.c.l.b16 %v1219
        %v1847 = vunpack.c.l.b16 %v1220
        %v1848 = vunpack.c.l.b16 %v1221
        %v1849 = vunpack.c.l.b16 %v1222
        %v1850 = vpack.c.b16 %v1819, %v1818
        %v1851 = vpack.c.b16 %v1821, %v1820
        %v1852 = vpack.c.b16 %v1823, %v1822
        %v1853 = vpack.c.b16 %v1825, %v1824
        %v1854 = vpack.c.b16 %v1827, %v1826
        %v1855 = vpack.c.b16 %v1829, %v1828
        %v1856 = vpack.c.b16 %v1831, %v1830
        %v1857 = vpack.c.b16 %v1833, %v1832
        %v1858 = vpack.c.b16 %v1835, %v1834
        %v1859 = vpack.c.b16 %v1837, %v1836
        %v1860 = vpack.c.b16 %v1839, %v1838
        %v1861 = vpack.c.b16 %v1841, %v1840
        %v1862 = vpack.c.b16 %v1843, %v1842
        %v1863 = vpack.c.b16 %v1845, %v1844
        %v1864 = vpack.c.b16 %v1847, %v1846
        %v1865 = vpack.c.b16 %v1849, %v1848
        %v1898 = vunpack.c.l.b16 %v1223
        %v1899 = vunpack.c.l.b16 %v1224
        %v1900 = vunpack.c.l.b16 %v1225
        %v1901 = vunpack.c.l.b16 %v1226
        %v1902 = vunpack.c.l.b16 %v1227
        %v1903 = vunpack.c.l.b16 %v1228
        %v1904 = vunpack.c.l.b16 %v1229
        %v1905 = vunpack.c.l.b16 %v1230
        %v1906 = vunpack.c.l.b16 %v1231
        %v1907 = vunpack.c.l.b16 %v1232
        %v1908 = vunpack.c.l.b16 %v1233
        %v1909 = vunpack.c.l.b16 %v1234
        %v1910 = vunpack.c.l.b16 %v1235
        %v1911 = vunpack.c.l.b16 %v1236
        %v1912 = vunpack.c.l.b16 %v1237
        %v1913 = vunpack.c.l.b16 %v1238
        %v1914 = vpack.c.b16 %v1898, %v1898
        %v1915 = vpack.c.b16 %v1899, %v1899
        %v1916 = vpack.c.b16 %v1900, %v1900
        %v1917 = vpack.c.b16 %v1901, %v1901
        %v1918 = vpack.c.b16 %v1902, %v1902
        %v1919 = vpack.c.b16 %v1903, %v1903
        %v1920 = vpack.c.b16 %v1904, %v1904
        %v1921 = vpack.c.b16 %v1905, %v1905
        %v1922 = vpack.c.b16 %v1906, %v1906
        %v1923 = vpack.c.b16 %v1907, %v1907
        %v1924 = vpack.c.b16 %v1908, %v1908
        %v1925 = vpack.c.b16 %v1909, %v1909
        %v1926 = vpack.c.b16 %v1910, %v1910
        %v1927 = vpack.c.b16 %v1911, %v1911
        %v1928 = vpack.c.b16 %v1912, %v1912
        %v1929 = vpack.c.b16 %v1913, %v1913
        %v1931 = vshrl.u32 %v1850, 16
        %v1933 = vshll.u32 %v1850, 16
        %v1935 = vrot.slane %v1933, 1
        %v1936 = vor.u32 %v1931, %v1935
        %v1938 = vshll.u32 %v1914, 16
        %v1940 = vrot.slane %v1938, 1
        %v1941 = vsel %vm1464, %v1936, %v1940
        %v1943 = vshrl.u32 %v1851, 16
        %v1945 = vshll.u32 %v1851, 16
        %v1947 = vrot.slane %v1945, 1
        %v1948 = vor.u32 %v1943, %v1947
        %v1950 = vshll.u32 %v1915, 16
        %v1952 = vrot.slane %v1950, 1
        %v1953 = vsel %vm1464, %v1948, %v1952
        %v1955 = vshrl.u32 %v1852, 16
        %v1957 = vshll.u32 %v1852, 16
        %v1959 = vrot.slane %v1957, 1
        %v1960 = vor.u32 %v1955, %v1959
        %v1962 = vshll.u32 %v1916, 16
        %v1964 = vrot.slane %v1962, 1
        %v1965 = vsel %vm1464, %v1960, %v1964
        %v1967 = vshrl.u32 %v1853, 16
        %v1969 = vshll.u32 %v1853, 16
        %v1971 = vrot.slane %v1969, 1
        %v1972 = vor.u32 %v1967, %v1971
        %v1974 = vshll.u32 %v1917, 16
        %v1976 = vrot.slane %v1974, 1
        %v1977 = vsel %vm1464, %v1972, %v1976
        %v1979 = vshrl.u32 %v1854, 16
        %v1981 = vshll.u32 %v1854, 16
        %v1983 = vrot.slane %v1981, 1
        %v1984 = vor.u32 %v1979, %v1983
        %v1986 = vshll.u32 %v1918, 16
        %v1988 = vrot.slane %v1986, 1
        %v1989 = vsel %vm1464, %v1984, %v1988
        %v1991 = vshrl.u32 %v1855, 16
        %v1993 = vshll.u32 %v1855, 16
        %v1995 = vrot.slane %v1993, 1
        %v1996 = vor.u32 %v1991, %v1995
        %v1998 = vshll.u32 %v1919, 16
        %v2000 = vrot.slane %v1998, 1
        %v2001 = vsel %vm1464, %v1996, %v2000
        %v2003 = vshrl.u32 %v1856, 16
        %v2005 = vshll.u32 %v1856, 16
        %v2007 = vrot.slane %v2005, 1
        %v2008 = vor.u32 %v2003, %v2007
        %v2010 = vshll.u32 %v1920, 16
        %v2012 = vrot.slane %v2010, 1
        %v2013 = vsel %vm1464, %v2008, %v2012
        %v2015 = vshrl.u32 %v1857, 16
        %v2017 = vshll.u32 %v1857, 16
        %v2019 = vrot.slane %v2017, 1
        %v2020 = vor.u32 %v2015, %v2019
        %v2022 = vshll.u32 %v1921, 16
        %v2024 = vrot.slane %v2022, 1
        %v2025 = vsel %vm1464, %v2020, %v2024
        %v2027 = vshrl.u32 %v1858, 16
        %v2029 = vshll.u32 %v1858, 16
        %v2031 = vrot.slane %v2029, 1
        %v2032 = vor.u32 %v2027, %v2031
        %v2034 = vshll.u32 %v1922, 16
        %v2036 = vrot.slane %v2034, 1
        %v2037 = vsel %vm1464, %v2032, %v2036
        %v2039 = vshrl.u32 %v1859, 16
        %v2041 = vshll.u32 %v1859, 16
        %v2043 = vrot.slane %v2041, 1
        %v2044 = vor.u32 %v2039, %v2043
        %v2046 = vshll.u32 %v1923, 16
        %v2048 = vrot.slane %v2046, 1
        %v2049 = vsel %vm1464, %v2044, %v2048
        %v2051 = vshrl.u32 %v1860, 16
        %v2053 = vshll.u32 %v1860, 16
        %v2055 = vrot.slane %v2053, 1
        %v2056 = vor.u32 %v2051, %v2055
        %v2058 = vshll.u32 %v1924, 16
        %v2060 = vrot.slane %v2058, 1
        %v2061 = vsel %vm1464, %v2056, %v2060
        %v2063 = vshrl.u32 %v1861, 16
        %v2065 = vshll.u32 %v1861, 16
        %v2067 = vrot.slane %v2065, 1
        %v2068 = vor.u32 %v2063, %v2067
        %v2070 = vshll.u32 %v1925, 16
        %v2072 = vrot.slane %v2070, 1
        %v2073 = vsel %vm1464, %v2068, %v2072
        %v2075 = vshrl.u32 %v1862, 16
        %v2077 = vshll.u32 %v1862, 16
        %v2079 = vrot.slane %v2077, 1
        %v2080 = vor.u32 %v2075, %v2079
        %v2082 = vshll.u32 %v1926, 16
        %v2084 = vrot.slane %v2082, 1
        %v2085 = vsel %vm1464, %v2080, %v2084
        %v2087 = vshrl.u32 %v1863, 16
        %v2089 = vshll.u32 %v1863, 16
        %v2091 = vrot.slane %v2089, 1
        %v2092 = vor.u32 %v2087, %v2091
        %v2094 = vshll.u32 %v1927, 16
        %v2096 = vrot.slane %v2094, 1
        %v2097 = vsel %vm1464, %v2092, %v2096
        %v2099 = vshrl.u32 %v1864, 16
        %v2101 = vshll.u32 %v1864, 16
        %v2103 = vrot.slane %v2101, 1
        %v2104 = vor.u32 %v2099, %v2103
        %v2106 = vshll.u32 %v1928, 16
        %v2108 = vrot.slane %v2106, 1
        %v2109 = vsel %vm1464, %v2104, %v2108
        %v2111 = vshrl.u32 %v1865, 16
        %v2113 = vshll.u32 %v1865, 16
        %v2115 = vrot.slane %v2113, 1
        %v2116 = vor.u32 %v2111, %v2115
        %v2118 = vshll.u32 %v1929, 16
        %v2120 = vrot.slane %v2118, 1
        %v2121 = vsel %vm1464, %v2116, %v2120
        %v2154 = vunpack.c.l.b16 %v1239
        %v2155 = vunpack.c.l.b16 %v1240
        %v2156 = vunpack.c.l.b16 %v1241
        %v2157 = vunpack.c.l.b16 %v1242
        %v2158 = vunpack.c.l.b16 %v1243
        %v2159 = vunpack.c.l.b16 %v1244
        %v2160 = vunpack.c.l.b16 %v1245
        %v2161 = vunpack.c.l.b16 %v1246
        %v2162 = vunpack.c.l.b16 %v1247
        %v2163 = vunpack.c.l.b16 %v1248
        %v2164 = vunpack.c.l.b16 %v1249
        %v2165 = vunpack.c.l.b16 %v1250
        %v2166 = vunpack.c.l.b16 %v1251
        %v2167 = vunpack.c.l.b16 %v1252
        %v2168 = vunpack.c.l.b16 %v1253
        %v2169 = vunpack.c.l.b16 %v1254
        %v2170 = vpack.c.b16 %v1819, %v2154
        %v2171 = vpack.c.b16 %v1821, %v2155
        %v2172 = vpack.c.b16 %v1823, %v2156
        %v2173 = vpack.c.b16 %v1825, %v2157
        %v2174 = vpack.c.b16 %v1827, %v2158
        %v2175 = vpack.c.b16 %v1829, %v2159
        %v2176 = vpack.c.b16 %v1831, %v2160
        %v2177 = vpack.c.b16 %v1833, %v2161
        %v2178 = vpack.c.b16 %v1835, %v2162
        %v2179 = vpack.c.b16 %v1837, %v2163
        %v2180 = vpack.c.b16 %v1839, %v2164
        %v2181 = vpack.c.b16 %v1841, %v2165
        %v2182 = vpack.c.b16 %v1843, %v2166
        %v2183 = vpack.c.b16 %v1845, %v2167
        %v2184 = vpack.c.b16 %v1847, %v2168
        %v2185 = vpack.c.b16 %v1849, %v2169
        %v2186 = vrot.slane %v2170, 1
        %v2187 = vrot.slane %v1914, 1
        %v2188 = vsel %vm1721, %v2186, %v2187
        %v2189 = vrot.slane %v2171, 1
        %v2190 = vrot.slane %v1915, 1
        %v2191 = vsel %vm1721, %v2189, %v2190
        %v2192 = vrot.slane %v2172, 1
        %v2193 = vrot.slane %v1916, 1
        %v2194 = vsel %vm1721, %v2192, %v2193
        %v2195 = vrot.slane %v2173, 1
        %v2196 = vrot.slane %v1917, 1
        %v2197 = vsel %vm1721, %v2195, %v2196
        %v2198 = vrot.slane %v2174, 1
        %v2199 = vrot.slane %v1918, 1
        %v2200 = vsel %vm1721, %v2198, %v2199
        %v2201 = vrot.slane %v2175, 1
        %v2202 = vrot.slane %v1919, 1
        %v2203 = vsel %vm1721, %v2201, %v2202
        %v2204 = vrot.slane %v2176, 1
        %v2205 = vrot.slane %v1920, 1
        %v2206 = vsel %vm1721, %v2204, %v2205
        %v2207 = vrot.slane %v2177, 1
        %v2208 = vrot.slane %v1921, 1
        %v2209 = vsel %vm1721, %v2207, %v2208
        %v2210 = vrot.slane %v2178, 1
        %v2211 = vrot.slane %v1922, 1
        %v2212 = vsel %vm1721, %v2210, %v2211
        %v2213 = vrot.slane %v2179, 1
        %v2214 = vrot.slane %v1923, 1
        %v2215 = vsel %vm1721, %v2213, %v2214
        %v2216 = vrot.slane %v2180, 1
        %v2217 = vrot.slane %v1924, 1
        %v2218 = vsel %vm1721, %v2216, %v2217
        %v2219 = vrot.slane %v2181, 1
        %v2220 = vrot.slane %v1925, 1
        %v2221 = vsel %vm1721, %v2219, %v2220
        %v2222 = vrot.slane %v2182, 1
        %v2223 = vrot.slane %v1926, 1
        %v2224 = vsel %vm1721, %v2222, %v2223
        %v2225 = vrot.slane %v2183, 1
        %v2226 = vrot.slane %v1927, 1
        %v2227 = vsel %vm1721, %v2225, %v2226
        %v2228 = vrot.slane %v2184, 1
        %v2229 = vrot.slane %v1928, 1
        %v2230 = vsel %vm1721, %v2228, %v2229
        %v2231 = vrot.slane %v2185, 1
        %v2232 = vrot.slane %v1929, 1
        %v2233 = vsel %vm1721, %v2231, %v2232
        %v2282 = vunpack.c.l.b16 %v1256
        %v2283 = vunpack.c.l.b16 %v1257
        %v2284 = vunpack.c.l.b16 %v1258
        %v2285 = vunpack.c.l.b16 %v1259
        %v2286 = vunpack.c.l.b16 %v1260
        %v2287 = vunpack.c.l.b16 %v1261
        %v2288 = vunpack.c.l.b16 %v1262
        %v2289 = vunpack.c.l.b16 %v1263
        %v2290 = vunpack.c.l.b16 %v1264
        %v2291 = vunpack.c.l.b16 %v1265
        %v2292 = vunpack.c.l.b16 %v1266
        %v2293 = vunpack.c.l.b16 %v1267
        %v2294 = vunpack.c.l.b16 %v1268
        %v2295 = vunpack.c.l.b16 %v1269
        %v2296 = vunpack.c.l.b16 %v1270
        %v2297 = vunpack.c.l.b16 %v1271
        %v2298 = vunpack.c.l.b16 %v1272
        %v2299 = vunpack.c.l.b16 %v1273
        %v2300 = vunpack.c.l.b16 %v1274
        %v2301 = vunpack.c.l.b16 %v1275
        %v2302 = vunpack.c.l.b16 %v1276
        %v2303 = vunpack.c.l.b16 %v1277
        %v2304 = vunpack.c.l.b16 %v1278
        %v2305 = vunpack.c.l.b16 %v1279
        %v2306 = vunpack.c.l.b16 %v1280
        %v2307 = vunpack.c.l.b16 %v1281
        %v2308 = vunpack.c.l.b16 %v1282
        %v2309 = vunpack.c.l.b16 %v1283
        %v2310 = vunpack.c.l.b16 %v1284
        %v2311 = vunpack.c.l.b16 %v1285
        %v2312 = vunpack.c.l.b16 %v1286
        %v2313 = vunpack.c.l.b16 %v1287
        %v2314 = vpack.c.b16 %v2283, %v2282
        %v2315 = vpack.c.b16 %v2285, %v2284
        %v2316 = vpack.c.b16 %v2287, %v2286
        %v2317 = vpack.c.b16 %v2289, %v2288
        %v2318 = vpack.c.b16 %v2291, %v2290
        %v2319 = vpack.c.b16 %v2293, %v2292
        %v2320 = vpack.c.b16 %v2295, %v2294
        %v2321 = vpack.c.b16 %v2297, %v2296
        %v2322 = vpack.c.b16 %v2299, %v2298
        %v2323 = vpack.c.b16 %v2301, %v2300
        %v2324 = vpack.c.b16 %v2303, %v2302
        %v2325 = vpack.c.b16 %v2305, %v2304
        %v2326 = vpack.c.b16 %v2307, %v2306
        %v2327 = vpack.c.b16 %v2309, %v2308
        %v2328 = vpack.c.b16 %v2311, %v2310
        %v2329 = vpack.c.b16 %v2313, %v2312
        %v2362 = vunpack.c.l.b16 %v1288
        %v2363 = vunpack.c.l.b16 %v1289
        %v2364 = vunpack.c.l.b16 %v1290
        %v2365 = vunpack.c.l.b16 %v1291
        %v2366 = vunpack.c.l.b16 %v1292
        %v2367 = vunpack.c.l.b16 %v1293
        %v2368 = vunpack.c.l.b16 %v1294
        %v2369 = vunpack.c.l.b16 %v1295
        %v2370 = vunpack.c.l.b16 %v1296
        %v2371 = vunpack.c.l.b16 %v1297
        %v2372 = vunpack.c.l.b16 %v1298
        %v2373 = vunpack.c.l.b16 %v1299
        %v2374 = vunpack.c.l.b16 %v1300
        %v2375 = vunpack.c.l.b16 %v1301
        %v2376 = vunpack.c.l.b16 %v1302
        %v2377 = vunpack.c.l.b16 %v1303
        %v2378 = vpack.c.b16 %v2362, %v2362
        %v2379 = vpack.c.b16 %v2363, %v2363
        %v2380 = vpack.c.b16 %v2364, %v2364
        %v2381 = vpack.c.b16 %v2365, %v2365
        %v2382 = vpack.c.b16 %v2366, %v2366
        %v2383 = vpack.c.b16 %v2367, %v2367
        %v2384 = vpack.c.b16 %v2368, %v2368
        %v2385 = vpack.c.b16 %v2369, %v2369
        %v2386 = vpack.c.b16 %v2370, %v2370
        %v2387 = vpack.c.b16 %v2371, %v2371
        %v2388 = vpack.c.b16 %v2372, %v2372
        %v2389 = vpack.c.b16 %v2373, %v2373
        %v2390 = vpack.c.b16 %v2374, %v2374
        %v2391 = vpack.c.b16 %v2375, %v2375
        %v2392 = vpack.c.b16 %v2376, %v2376
        %v2393 = vpack.c.b16 %v2377, %v2377
        %v2395 = vshrl.u32 %v2314, 16
        %v2397 = vshll.u32 %v2314, 16
        %v2399 = vrot.slane %v2397, 1
        %v2400 = vor.u32 %v2395, %v2399
        %v2402 = vshll.u32 %v2378, 16
        %v2404 = vrot.slane %v2402, 1
        %v2405 = vsel %vm1464, %v2400, %v2404
        %v2407 = vshrl.u32 %v2315, 16
        %v2409 = vshll.u32 %v2315, 16
        %v2411 = vrot.slane %v2409, 1
        %v2412 = vor.u32 %v2407, %v2411
        %v2414 = vshll.u32 %v2379, 16
        %v2416 = vrot.slane %v2414, 1
        %v2417 = vsel %vm1464, %v2412, %v2416
        %v2419 = vshrl.u32 %v2316, 16
        %v2421 = vshll.u32 %v2316, 16
        %v2423 = vrot.slane %v2421, 1
        %v2424 = vor.u32 %v2419, %v2423
        %v2426 = vshll.u32 %v2380, 16
        %v2428 = vrot.slane %v2426, 1
        %v2429 = vsel %vm1464, %v2424, %v2428
        %v2431 = vshrl.u32 %v2317, 16
        %v2433 = vshll.u32 %v2317, 16
        %v2435 = vrot.slane %v2433, 1
        %v2436 = vor.u32 %v2431, %v2435
        %v2438 = vshll.u32 %v2381, 16
        %v2440 = vrot.slane %v2438, 1
        %v2441 = vsel %vm1464, %v2436, %v2440
        %v2443 = vshrl.u32 %v2318, 16
        %v2445 = vshll.u32 %v2318, 16
        %v2447 = vrot.slane %v2445, 1
        %v2448 = vor.u32 %v2443, %v2447
        %v2450 = vshll.u32 %v2382, 16
        %v2452 = vrot.slane %v2450, 1
        %v2453 = vsel %vm1464, %v2448, %v2452
        %v2455 = vshrl.u32 %v2319, 16
        %v2457 = vshll.u32 %v2319, 16
        %v2459 = vrot.slane %v2457, 1
        %v2460 = vor.u32 %v2455, %v2459
        %v2462 = vshll.u32 %v2383, 16
        %v2464 = vrot.slane %v2462, 1
        %v2465 = vsel %vm1464, %v2460, %v2464
        %v2467 = vshrl.u32 %v2320, 16
        %v2469 = vshll.u32 %v2320, 16
        %v2471 = vrot.slane %v2469, 1
        %v2472 = vor.u32 %v2467, %v2471
        %v2474 = vshll.u32 %v2384, 16
        %v2476 = vrot.slane %v2474, 1
        %v2477 = vsel %vm1464, %v2472, %v2476
        %v2479 = vshrl.u32 %v2321, 16
        %v2481 = vshll.u32 %v2321, 16
        %v2483 = vrot.slane %v2481, 1
        %v2484 = vor.u32 %v2479, %v2483
        %v2486 = vshll.u32 %v2385, 16
        %v2488 = vrot.slane %v2486, 1
        %v2489 = vsel %vm1464, %v2484, %v2488
        %v2491 = vshrl.u32 %v2322, 16
        %v2493 = vshll.u32 %v2322, 16
        %v2495 = vrot.slane %v2493, 1
        %v2496 = vor.u32 %v2491, %v2495
        %v2498 = vshll.u32 %v2386, 16
        %v2500 = vrot.slane %v2498, 1
        %v2501 = vsel %vm1464, %v2496, %v2500
        %v2503 = vshrl.u32 %v2323, 16
        %v2505 = vshll.u32 %v2323, 16
        %v2507 = vrot.slane %v2505, 1
        %v2508 = vor.u32 %v2503, %v2507
        %v2510 = vshll.u32 %v2387, 16
        %v2512 = vrot.slane %v2510, 1
        %v2513 = vsel %vm1464, %v2508, %v2512
        %v2515 = vshrl.u32 %v2324, 16
        %v2517 = vshll.u32 %v2324, 16
        %v2519 = vrot.slane %v2517, 1
        %v2520 = vor.u32 %v2515, %v2519
        %v2522 = vshll.u32 %v2388, 16
        %v2524 = vrot.slane %v2522, 1
        %v2525 = vsel %vm1464, %v2520, %v2524
        %v2527 = vshrl.u32 %v2325, 16
        %v2529 = vshll.u32 %v2325, 16
        %v2531 = vrot.slane %v2529, 1
        %v2532 = vor.u32 %v2527, %v2531
        %v2534 = vshll.u32 %v2389, 16
        %v2536 = vrot.slane %v2534, 1
        %v2537 = vsel %vm1464, %v2532, %v2536
        %v2539 = vshrl.u32 %v2326, 16
        %v2541 = vshll.u32 %v2326, 16
        %v2543 = vrot.slane %v2541, 1
        %v2544 = vor.u32 %v2539, %v2543
        %v2546 = vshll.u32 %v2390, 16
        %v2548 = vrot.slane %v2546, 1
        %v2549 = vsel %vm1464, %v2544, %v2548
        %v2551 = vshrl.u32 %v2327, 16
        %v2553 = vshll.u32 %v2327, 16
        %v2555 = vrot.slane %v2553, 1
        %v2556 = vor.u32 %v2551, %v2555
        %v2558 = vshll.u32 %v2391, 16
        %v2560 = vrot.slane %v2558, 1
        %v2561 = vsel %vm1464, %v2556, %v2560
        %v2563 = vshrl.u32 %v2328, 16
        %v2565 = vshll.u32 %v2328, 16
        %v2567 = vrot.slane %v2565, 1
        %v2568 = vor.u32 %v2563, %v2567
        %v2570 = vshll.u32 %v2392, 16
        %v2572 = vrot.slane %v2570, 1
        %v2573 = vsel %vm1464, %v2568, %v2572
        %v2575 = vshrl.u32 %v2329, 16
        %v2577 = vshll.u32 %v2329, 16
        %v2579 = vrot.slane %v2577, 1
        %v2580 = vor.u32 %v2575, %v2579
        %v2582 = vshll.u32 %v2393, 16
        %v2584 = vrot.slane %v2582, 1
        %v2585 = vsel %vm1464, %v2580, %v2584
        %v2618 = vunpack.c.l.b16 %v1304
        %v2619 = vunpack.c.l.b16 %v1305
        %v2620 = vunpack.c.l.b16 %v1306
        %v2621 = vunpack.c.l.b16 %v1307
        %v2622 = vunpack.c.l.b16 %v1308
        %v2623 = vunpack.c.l.b16 %v1309
        %v2624 = vunpack.c.l.b16 %v1310
        %v2625 = vunpack.c.l.b16 %v1311
        %v2626 = vunpack.c.l.b16 %v1312
        %v2627 = vunpack.c.l.b16 %v1313
        %v2628 = vunpack.c.l.b16 %v1314
        %v2629 = vunpack.c.l.b16 %v1315
        %v2630 = vunpack.c.l.b16 %v1316
        %v2631 = vunpack.c.l.b16 %v1317
        %v2632 = vunpack.c.l.b16 %v1318
        %v2633 = vunpack.c.l.b16 %v1319
        %v2634 = vpack.c.b16 %v2283, %v2618
        %v2635 = vpack.c.b16 %v2285, %v2619
        %v2636 = vpack.c.b16 %v2287, %v2620
        %v2637 = vpack.c.b16 %v2289, %v2621
        %v2638 = vpack.c.b16 %v2291, %v2622
        %v2639 = vpack.c.b16 %v2293, %v2623
        %v2640 = vpack.c.b16 %v2295, %v2624
        %v2641 = vpack.c.b16 %v2297, %v2625
        %v2642 = vpack.c.b16 %v2299, %v2626
        %v2643 = vpack.c.b16 %v2301, %v2627
        %v2644 = vpack.c.b16 %v2303, %v2628
        %v2645 = vpack.c.b16 %v2305, %v2629
        %v2646 = vpack.c.b16 %v2307, %v2630
        %v2647 = vpack.c.b16 %v2309, %v2631
        %v2648 = vpack.c.b16 %v2311, %v2632
        %v2649 = vpack.c.b16 %v2313, %v2633
        %v2650 = vrot.slane %v2634, 1
        %v2651 = vrot.slane %v2378, 1
        %v2652 = vsel %vm1721, %v2650, %v2651
        %v2653 = vrot.slane %v2635, 1
        %v2654 = vrot.slane %v2379, 1
        %v2655 = vsel %vm1721, %v2653, %v2654
        %v2656 = vrot.slane %v2636, 1
        %v2657 = vrot.slane %v2380, 1
        %v2658 = vsel %vm1721, %v2656, %v2657
        %v2659 = vrot.slane %v2637, 1
        %v2660 = vrot.slane %v2381, 1
        %v2661 = vsel %vm1721, %v2659, %v2660
        %v2662 = vrot.slane %v2638, 1
        %v2663 = vrot.slane %v2382, 1
        %v2664 = vsel %vm1721, %v2662, %v2663
        %v2665 = vrot.slane %v2639, 1
        %v2666 = vrot.slane %v2383, 1
        %v2667 = vsel %vm1721, %v2665, %v2666
        %v2668 = vrot.slane %v2640, 1
        %v2669 = vrot.slane %v2384, 1
        %v2670 = vsel %vm1721, %v2668, %v2669
        %v2671 = vrot.slane %v2641, 1
        %v2672 = vrot.slane %v2385, 1
        %v2673 = vsel %vm1721, %v2671, %v2672
        %v2674 = vrot.slane %v2642, 1
        %v2675 = vrot.slane %v2386, 1
        %v2676 = vsel %vm1721, %v2674, %v2675
        %v2677 = vrot.slane %v2643, 1
        %v2678 = vrot.slane %v2387, 1
        %v2679 = vsel %vm1721, %v2677, %v2678
        %v2680 = vrot.slane %v2644, 1
        %v2681 = vrot.slane %v2388, 1
        %v2682 = vsel %vm1721, %v2680, %v2681
        %v2683 = vrot.slane %v2645, 1
        %v2684 = vrot.slane %v2389, 1
        %v2685 = vsel %vm1721, %v2683, %v2684
        %v2686 = vrot.slane %v2646, 1
        %v2687 = vrot.slane %v2390, 1
        %v2688 = vsel %vm1721, %v2686, %v2687
        %v2689 = vrot.slane %v2647, 1
        %v2690 = vrot.slane %v2391, 1
        %v2691 = vsel %vm1721, %v2689, %v2690
        %v2692 = vrot.slane %v2648, 1
        %v2693 = vrot.slane %v2392, 1
        %v2694 = vsel %vm1721, %v2692, %v2693
        %v2695 = vrot.slane %v2649, 1
        %v2696 = vrot.slane %v2393, 1
        %v2697 = vsel %vm1721, %v2695, %v2696
        %v2714 = vld [vmem:[#allocation7] sm:$0xf]
        %v2715 = vld [vmem:[#allocation7 + $0x4] sm:$0xf]
        %v2716 = vld [vmem:[#allocation7 + $0x8] sm:$0xf]
        %v2717 = vld [vmem:[#allocation7 + $0xc] sm:$0xf]
        %v2718 = vld [vmem:[#allocation7 + $0x10] sm:$0xf]
        %v2719 = vld [vmem:[#allocation7 + $0x14] sm:$0xf]
        %v2720 = vld [vmem:[#allocation7 + $0x18] sm:$0xf]
        %v2721 = vld [vmem:[#allocation7 + $0x1c] sm:$0xf]
        %v2722 = vld [vmem:[#allocation7 + $0x20] sm:$0xf]
        %v2723 = vld [vmem:[#allocation7 + $0x24] sm:$0xf]
        %v2724 = vld [vmem:[#allocation7 + $0x28] sm:$0xf]
        %v2725 = vld [vmem:[#allocation7 + $0x2c] sm:$0xf]
        %v2726 = vld [vmem:[#allocation7 + $0x30] sm:$0xf]
        %v2727 = vld [vmem:[#allocation7 + $0x34] sm:$0xf]
        %v2728 = vld [vmem:[#allocation7 + $0x38] sm:$0xf]
        %v2729 = vld [vmem:[#allocation7 + $0x3c] sm:$0xf]
        %v2730 = vld [vmem:[#allocation7 + $0x40] sm:$0xf]
        %v2731 = vld [vmem:[#allocation7 + $0x44] sm:$0xf]
        %v2732 = vld [vmem:[#allocation7 + $0x48] sm:$0xf]
        %v2733 = vld [vmem:[#allocation7 + $0x4c] sm:$0xf]
        %v2734 = vld [vmem:[#allocation7 + $0x50] sm:$0xf]
        %v2735 = vld [vmem:[#allocation7 + $0x54] sm:$0xf]
        %v2736 = vld [vmem:[#allocation7 + $0x58] sm:$0xf]
        %v2737 = vld [vmem:[#allocation7 + $0x5c] sm:$0xf]
        %v2738 = vld [vmem:[#allocation7 + $0x60] sm:$0xf]
        %v2739 = vld [vmem:[#allocation7 + $0x64] sm:$0xf]
        %v2740 = vld [vmem:[#allocation7 + $0x68] sm:$0xf]
        %v2741 = vld [vmem:[#allocation7 + $0x6c] sm:$0xf]
        %v2742 = vld [vmem:[#allocation7 + $0x70] sm:$0xf]
        %v2743 = vld [vmem:[#allocation7 + $0x74] sm:$0xf]
        %v2744 = vld [vmem:[#allocation7 + $0x78] sm:$0xf]
        %v2745 = vld [vmem:[#allocation7 + $0x7c] sm:$0xf]
        %v2746 = vld [vmem:[#allocation7 + $0x80] sm:$0xf]
        %v2747 = vld [vmem:[#allocation7 + $0x84] sm:$0xf]
        %v2748 = vld [vmem:[#allocation7 + $0x88] sm:$0xf]
        %v2749 = vld [vmem:[#allocation7 + $0x8c] sm:$0xf]
        %v2750 = vld [vmem:[#allocation7 + $0x90] sm:$0xf]
        %v2751 = vld [vmem:[#allocation7 + $0x94] sm:$0xf]
        %v2752 = vld [vmem:[#allocation7 + $0x98] sm:$0xf]
        %v2753 = vld [vmem:[#allocation7 + $0x9c] sm:$0xf]
        %v2754 = vld [vmem:[#allocation7 + $0xa0] sm:$0xf]
        %v2755 = vld [vmem:[#allocation7 + $0xa4] sm:$0xf]
        %v2756 = vld [vmem:[#allocation7 + $0xa8] sm:$0xf]
        %v2757 = vld [vmem:[#allocation7 + $0xac] sm:$0xf]
        %v2758 = vld [vmem:[#allocation7 + $0xb0] sm:$0xf]
        %v2759 = vld [vmem:[#allocation7 + $0xb4] sm:$0xf]
        %v2760 = vld [vmem:[#allocation7 + $0xb8] sm:$0xf]
        %v2761 = vld [vmem:[#allocation7 + $0xbc] sm:$0xf]
        %v2762 = vld [vmem:[#allocation7 + $0xc0] sm:$0xf]
        %v2763 = vld [vmem:[#allocation7 + $0xc4] sm:$0xf]
        %v2764 = vld [vmem:[#allocation7 + $0xc8] sm:$0xf]
        %v2765 = vld [vmem:[#allocation7 + $0xcc] sm:$0xf]
        %v2766 = vld [vmem:[#allocation7 + $0xd0] sm:$0xf]
        %v2767 = vld [vmem:[#allocation7 + $0xd4] sm:$0xf]
        %v2768 = vld [vmem:[#allocation7 + $0xd8] sm:$0xf]
        %v2769 = vld [vmem:[#allocation7 + $0xdc] sm:$0xf]
        %v2770 = vld [vmem:[#allocation7 + $0xe0] sm:$0xf]
        %v2771 = vld [vmem:[#allocation7 + $0xe4] sm:$0xf]
        %v2772 = vld [vmem:[#allocation7 + $0xe8] sm:$0xf]
        %v2773 = vld [vmem:[#allocation7 + $0xec] sm:$0xf]
        %v2774 = vld [vmem:[#allocation7 + $0xf0] sm:$0xf]
        %v2775 = vld [vmem:[#allocation7 + $0xf4] sm:$0xf]
        %v2776 = vld [vmem:[#allocation7 + $0xf8] sm:$0xf]
        %v2777 = vld [vmem:[#allocation7 + $0xfc] sm:$0xf]
        %v2778 = vld [vmem:[#allocation7 + $0x100] sm:$0xf]
        %v2779 = vld [vmem:[#allocation7 + $0x104] sm:$0xf]
        %v2780 = vld [vmem:[#allocation7 + $0x108] sm:$0xf]
        %v2781 = vld [vmem:[#allocation7 + $0x10c] sm:$0xf]
        %v2782 = vld [vmem:[#allocation7 + $0x110] sm:$0xf]
        %v2783 = vld [vmem:[#allocation7 + $0x114] sm:$0xf]
        %v2784 = vld [vmem:[#allocation7 + $0x118] sm:$0xf]
        %v2785 = vld [vmem:[#allocation7 + $0x11c] sm:$0xf]
        %v2786 = vld [vmem:[#allocation7 + $0x120] sm:$0xf]
        %v2787 = vld [vmem:[#allocation7 + $0x124] sm:$0xf]
        %v2788 = vld [vmem:[#allocation7 + $0x128] sm:$0xf]
        %v2789 = vld [vmem:[#allocation7 + $0x12c] sm:$0xf]
        %v2790 = vld [vmem:[#allocation7 + $0x130] sm:$0xf]
        %v2791 = vld [vmem:[#allocation7 + $0x134] sm:$0xf]
        %v2792 = vld [vmem:[#allocation7 + $0x138] sm:$0xf]
        %v2793 = vld [vmem:[#allocation7 + $0x13c] sm:$0xf]
        %v2794 = vld [vmem:[#allocation7 + $0x140] sm:$0xf]
        %v2795 = vld [vmem:[#allocation7 + $0x144] sm:$0xf]
        %v2796 = vld [vmem:[#allocation7 + $0x148] sm:$0xf]
        %v2797 = vld [vmem:[#allocation7 + $0x14c] sm:$0xf]
        %v2798 = vld [vmem:[#allocation7 + $0x150] sm:$0xf]
        %v2799 = vld [vmem:[#allocation7 + $0x154] sm:$0xf]
        %v2800 = vld [vmem:[#allocation7 + $0x158] sm:$0xf]
        %v2801 = vld [vmem:[#allocation7 + $0x15c] sm:$0xf]
        %v2802 = vld [vmem:[#allocation7 + $0x160] sm:$0xf]
        %v2803 = vld [vmem:[#allocation7 + $0x164] sm:$0xf]
        %v2804 = vld [vmem:[#allocation7 + $0x168] sm:$0xf]
        %v2805 = vld [vmem:[#allocation7 + $0x16c] sm:$0xf]
        %v2806 = vld [vmem:[#allocation7 + $0x170] sm:$0xf]
        %v2807 = vld [vmem:[#allocation7 + $0x174] sm:$0xf]
        %v2808 = vld [vmem:[#allocation7 + $0x178] sm:$0xf]
        %v2809 = vld [vmem:[#allocation7 + $0x17c] sm:$0xf]
        %v2810 = vld [vmem:[#allocation7 + $0x180] sm:$0xf]
        %v2811 = vld [vmem:[#allocation7 + $0x184] sm:$0xf]
        %v2812 = vld [vmem:[#allocation7 + $0x188] sm:$0xf]
        %v2813 = vld [vmem:[#allocation7 + $0x18c] sm:$0xf]
        %v2814 = vld [vmem:[#allocation7 + $0x190] sm:$0xf]
        %v2815 = vld [vmem:[#allocation7 + $0x194] sm:$0xf]
        %v2816 = vld [vmem:[#allocation7 + $0x198] sm:$0xf]
        %v2817 = vld [vmem:[#allocation7 + $0x19c] sm:$0xf]
        %v2818 = vld [vmem:[#allocation7 + $0x1a0] sm:$0xf]
        %v2819 = vld [vmem:[#allocation7 + $0x1a4] sm:$0xf]
        %v2820 = vld [vmem:[#allocation7 + $0x1a8] sm:$0xf]
        %v2821 = vld [vmem:[#allocation7 + $0x1ac] sm:$0xf]
        %v2822 = vld [vmem:[#allocation7 + $0x1b0] sm:$0xf]
        %v2823 = vld [vmem:[#allocation7 + $0x1b4] sm:$0xf]
        %v2824 = vld [vmem:[#allocation7 + $0x1b8] sm:$0xf]
        %v2825 = vld [vmem:[#allocation7 + $0x1bc] sm:$0xf]
        %v2826 = vld [vmem:[#allocation7 + $0x1c0] sm:$0xf]
        %v2827 = vld [vmem:[#allocation7 + $0x1c4] sm:$0xf]
        %v2828 = vld [vmem:[#allocation7 + $0x1c8] sm:$0xf]
        %v2829 = vld [vmem:[#allocation7 + $0x1cc] sm:$0xf]
        %v2830 = vld [vmem:[#allocation7 + $0x1d0] sm:$0xf]
        %v2831 = vld [vmem:[#allocation7 + $0x1d4] sm:$0xf]
        %v2832 = vld [vmem:[#allocation7 + $0x1d8] sm:$0xf]
        %v2833 = vld [vmem:[#allocation7 + $0x1dc] sm:$0xf]
        %v2834 = vld [vmem:[#allocation7 + $0x1e0] sm:$0xf]
        %v2835 = vld [vmem:[#allocation7 + $0x1e4] sm:$0xf]
        %v2836 = vld [vmem:[#allocation7 + $0x1e8] sm:$0xf]
        %v2837 = vld [vmem:[#allocation7 + $0x1ec] sm:$0xf]
        %v2838 = vld [vmem:[#allocation7 + $0x1f0] sm:$0xf]
        %v2839 = vld [vmem:[#allocation7 + $0x1f4] sm:$0xf]
        %v2840 = vld [vmem:[#allocation7 + $0x1f8] sm:$0xf]
        %v2841 = vld [vmem:[#allocation7 + $0x1fc] sm:$0xf]
        %v2842 = vld [vmem:[#allocation7 + $0x200] sm:$0xf]
        %v2843 = vld [vmem:[#allocation7 + $0x204] sm:$0xf]
        %v2844 = vld [vmem:[#allocation7 + $0x208] sm:$0xf]
        %v2845 = vld [vmem:[#allocation7 + $0x20c] sm:$0xf]
        %v2846 = vld [vmem:[#allocation7 + $0x210] sm:$0xf]
        %v2847 = vld [vmem:[#allocation7 + $0x214] sm:$0xf]
        %v2848 = vld [vmem:[#allocation7 + $0x218] sm:$0xf]
        %v2849 = vld [vmem:[#allocation7 + $0x21c] sm:$0xf]
        %v2850 = vld [vmem:[#allocation7 + $0x220] sm:$0xf]
        %v2851 = vld [vmem:[#allocation7 + $0x224] sm:$0xf]
        %v2852 = vld [vmem:[#allocation7 + $0x228] sm:$0xf]
        %v2853 = vld [vmem:[#allocation7 + $0x22c] sm:$0xf]
        %v2854 = vld [vmem:[#allocation7 + $0x230] sm:$0xf]
        %v2855 = vld [vmem:[#allocation7 + $0x234] sm:$0xf]
        %v2856 = vld [vmem:[#allocation7 + $0x238] sm:$0xf]
        %v2857 = vld [vmem:[#allocation7 + $0x23c] sm:$0xf]
        %v3002 = vunpack.c.l.b16 %v2714
        %v3003 = vunpack.c.l.b16 %v2715
        %v3004 = vunpack.c.l.b16 %v2716
        %v3005 = vunpack.c.l.b16 %v2717
        %v3006 = vunpack.c.l.b16 %v2718
        %v3007 = vunpack.c.l.b16 %v2719
        %v3008 = vunpack.c.l.b16 %v2720
        %v3009 = vunpack.c.l.b16 %v2721
        %v3010 = vunpack.c.l.b16 %v2722
        %v3011 = vunpack.c.l.b16 %v2723
        %v3012 = vunpack.c.l.b16 %v2724
        %v3013 = vunpack.c.l.b16 %v2725
        %v3014 = vunpack.c.l.b16 %v2726
        %v3015 = vunpack.c.l.b16 %v2727
        %v3016 = vunpack.c.l.b16 %v2728
        %v3017 = vunpack.c.l.b16 %v2729
        %v3018 = vunpack.c.l.b16 %v2730
        %v3019 = vunpack.c.l.b16 %v2731
        %v3020 = vunpack.c.l.b16 %v2732
        %v3021 = vunpack.c.l.b16 %v2733
        %v3022 = vunpack.c.l.b16 %v2734
        %v3023 = vunpack.c.l.b16 %v2735
        %v3024 = vunpack.c.l.b16 %v2736
        %v3025 = vunpack.c.l.b16 %v2737
        %v3026 = vunpack.c.l.b16 %v2738
        %v3027 = vunpack.c.l.b16 %v2739
        %v3028 = vunpack.c.l.b16 %v2740
        %v3029 = vunpack.c.l.b16 %v2741
        %v3030 = vunpack.c.l.b16 %v2742
        %v3031 = vunpack.c.l.b16 %v2743
        %v3032 = vunpack.c.l.b16 %v2744
        %v3033 = vunpack.c.l.b16 %v2745
        %v3034 = vunpack.c.l.b16 %v2746
        %v3035 = vunpack.c.l.b16 %v2747
        %v3036 = vunpack.c.l.b16 %v2748
        %v3037 = vunpack.c.l.b16 %v2749
        %v3038 = vunpack.c.l.b16 %v2750
        %v3039 = vunpack.c.l.b16 %v2751
        %v3040 = vunpack.c.l.b16 %v2752
        %v3041 = vunpack.c.l.b16 %v2753
        %v3042 = vunpack.c.l.b16 %v2754
        %v3043 = vunpack.c.l.b16 %v2755
        %v3044 = vunpack.c.l.b16 %v2756
        %v3045 = vunpack.c.l.b16 %v2757
        %v3046 = vunpack.c.l.b16 %v2758
        %v3047 = vunpack.c.l.b16 %v2759
        %v3048 = vunpack.c.l.b16 %v2760
        %v3049 = vunpack.c.l.b16 %v2761
        %v3050 = vunpack.c.l.b16 %v2762
        %v3051 = vunpack.c.l.b16 %v2763
        %v3052 = vunpack.c.l.b16 %v2764
        %v3053 = vunpack.c.l.b16 %v2765
        %v3054 = vunpack.c.l.b16 %v2766
        %v3055 = vunpack.c.l.b16 %v2767
        %v3056 = vunpack.c.l.b16 %v2768
        %v3057 = vunpack.c.l.b16 %v2769
        %v3058 = vunpack.c.l.b16 %v2770
        %v3059 = vunpack.c.l.b16 %v2771
        %v3060 = vunpack.c.l.b16 %v2772
        %v3061 = vunpack.c.l.b16 %v2773
        %v3062 = vunpack.c.l.b16 %v2774
        %v3063 = vunpack.c.l.b16 %v2775
        %v3064 = vunpack.c.l.b16 %v2776
        %v3065 = vunpack.c.l.b16 %v2777
        %v3066 = vunpack.c.l.b16 %v2778
        %v3067 = vunpack.c.l.b16 %v2779
        %v3068 = vunpack.c.l.b16 %v2780
        %v3069 = vunpack.c.l.b16 %v2781
        %v3070 = vunpack.c.l.b16 %v2782
        %v3071 = vunpack.c.l.b16 %v2783
        %v3072 = vunpack.c.l.b16 %v2784
        %v3073 = vunpack.c.l.b16 %v2785
        %v3074 = vunpack.c.l.b16 %v2786
        %v3075 = vunpack.c.l.b16 %v2787
        %v3076 = vunpack.c.l.b16 %v2788
        %v3077 = vunpack.c.l.b16 %v2789
        %v3078 = vunpack.c.l.b16 %v2790
        %v3079 = vunpack.c.l.b16 %v2791
        %v3080 = vunpack.c.l.b16 %v2792
        %v3081 = vunpack.c.l.b16 %v2793
        %v3082 = vunpack.c.l.b16 %v2794
        %v3083 = vunpack.c.l.b16 %v2795
        %v3084 = vunpack.c.l.b16 %v2796
        %v3085 = vunpack.c.l.b16 %v2797
        %v3086 = vunpack.c.l.b16 %v2798
        %v3087 = vunpack.c.l.b16 %v2799
        %v3088 = vunpack.c.l.b16 %v2800
        %v3089 = vunpack.c.l.b16 %v2801
        %v3090 = vunpack.c.l.b16 %v2802
        %v3091 = vunpack.c.l.b16 %v2803
        %v3092 = vunpack.c.l.b16 %v2804
        %v3093 = vunpack.c.l.b16 %v2805
        %v3094 = vunpack.c.l.b16 %v2806
        %v3095 = vunpack.c.l.b16 %v2807
        %v3096 = vunpack.c.l.b16 %v2808
        %v3097 = vunpack.c.l.b16 %v2809
        %v3098 = vunpack.c.l.b16 %v2810
        %v3099 = vunpack.c.l.b16 %v2811
        %v3100 = vunpack.c.l.b16 %v2812
        %v3101 = vunpack.c.l.b16 %v2813
        %v3102 = vunpack.c.l.b16 %v2814
        %v3103 = vunpack.c.l.b16 %v2815
        %v3104 = vunpack.c.l.b16 %v2816
        %v3105 = vunpack.c.l.b16 %v2817
        %v3106 = vunpack.c.l.b16 %v2818
        %v3107 = vunpack.c.l.b16 %v2819
        %v3108 = vunpack.c.l.b16 %v2820
        %v3109 = vunpack.c.l.b16 %v2821
        %v3110 = vunpack.c.l.b16 %v2822
        %v3111 = vunpack.c.l.b16 %v2823
        %v3112 = vunpack.c.l.b16 %v2824
        %v3113 = vunpack.c.l.b16 %v2825
        %v3114 = vunpack.c.l.b16 %v2826
        %v3115 = vunpack.c.l.b16 %v2827
        %v3116 = vunpack.c.l.b16 %v2828
        %v3117 = vunpack.c.l.b16 %v2829
        %v3118 = vunpack.c.l.b16 %v2830
        %v3119 = vunpack.c.l.b16 %v2831
        %v3120 = vunpack.c.l.b16 %v2832
        %v3121 = vunpack.c.l.b16 %v2833
        %v3122 = vunpack.c.l.b16 %v2834
        %v3123 = vunpack.c.l.b16 %v2835
        %v3124 = vunpack.c.l.b16 %v2836
        %v3125 = vunpack.c.l.b16 %v2837
        %v3126 = vunpack.c.l.b16 %v2838
        %v3127 = vunpack.c.l.b16 %v2839
        %v3128 = vunpack.c.l.b16 %v2840
        %v3129 = vunpack.c.l.b16 %v2841
        %v3130 = vunpack.c.l.b16 %v2842
        %v3131 = vunpack.c.l.b16 %v2843
        %v3132 = vunpack.c.l.b16 %v2844
        %v3133 = vunpack.c.l.b16 %v2845
        %v3134 = vunpack.c.l.b16 %v2846
        %v3135 = vunpack.c.l.b16 %v2847
        %v3136 = vunpack.c.l.b16 %v2848
        %v3137 = vunpack.c.l.b16 %v2849
        %v3138 = vunpack.c.l.b16 %v2850
        %v3139 = vunpack.c.l.b16 %v2851
        %v3140 = vunpack.c.l.b16 %v2852
        %v3141 = vunpack.c.l.b16 %v2853
        %v3142 = vunpack.c.l.b16 %v2854
        %v3143 = vunpack.c.l.b16 %v2855
        %v3144 = vunpack.c.l.b16 %v2856
        %v3145 = vunpack.c.l.b16 %v2857
        %v3146 = vpack.c.b16 %v3003, %v3002
        %v3147 = vpack.c.b16 %v3005, %v3004
        %v3148 = vpack.c.b16 %v3007, %v3006
        %v3149 = vpack.c.b16 %v3009, %v3008
        %v3150 = vpack.c.b16 %v3011, %v3010
        %v3151 = vpack.c.b16 %v3013, %v3012
        %v3152 = vpack.c.b16 %v3015, %v3014
        %v3153 = vpack.c.b16 %v3017, %v3016
        %v3154 = vpack.c.b16 %v3019, %v3018
        %v3155 = vpack.c.b16 %v3021, %v3020
        %v3156 = vpack.c.b16 %v3023, %v3022
        %v3157 = vpack.c.b16 %v3025, %v3024
        %v3158 = vpack.c.b16 %v3027, %v3026
        %v3159 = vpack.c.b16 %v3029, %v3028
        %v3160 = vpack.c.b16 %v3031, %v3030
        %v3161 = vpack.c.b16 %v3033, %v3032
        %v3162 = vpack.c.b16 %v3035, %v3034
        %v3163 = vpack.c.b16 %v3037, %v3036
        %v3164 = vpack.c.b16 %v3039, %v3038
        %v3165 = vpack.c.b16 %v3041, %v3040
        %v3166 = vpack.c.b16 %v3043, %v3042
        %v3167 = vpack.c.b16 %v3045, %v3044
        %v3168 = vpack.c.b16 %v3047, %v3046
        %v3169 = vpack.c.b16 %v3049, %v3048
        %v3170 = vpack.c.b16 %v3051, %v3050
        %v3171 = vpack.c.b16 %v3053, %v3052
        %v3172 = vpack.c.b16 %v3055, %v3054
        %v3173 = vpack.c.b16 %v3057, %v3056
        %v3174 = vpack.c.b16 %v3059, %v3058
        %v3175 = vpack.c.b16 %v3061, %v3060
        %v3176 = vpack.c.b16 %v3063, %v3062
        %v3177 = vpack.c.b16 %v3065, %v3064
        %v3178 = vpack.c.b16 %v3067, %v3066
        %v3179 = vpack.c.b16 %v3069, %v3068
        %v3180 = vpack.c.b16 %v3071, %v3070
        %v3181 = vpack.c.b16 %v3073, %v3072
        %v3182 = vpack.c.b16 %v3075, %v3074
        %v3183 = vpack.c.b16 %v3077, %v3076
        %v3184 = vpack.c.b16 %v3079, %v3078
        %v3185 = vpack.c.b16 %v3081, %v3080
        %v3186 = vpack.c.b16 %v3083, %v3082
        %v3187 = vpack.c.b16 %v3085, %v3084
        %v3188 = vpack.c.b16 %v3087, %v3086
        %v3189 = vpack.c.b16 %v3089, %v3088
        %v3190 = vpack.c.b16 %v3091, %v3090
        %v3191 = vpack.c.b16 %v3093, %v3092
        %v3192 = vpack.c.b16 %v3095, %v3094
        %v3193 = vpack.c.b16 %v3097, %v3096
        %v3194 = vpack.c.b16 %v3099, %v3098
        %v3195 = vpack.c.b16 %v3101, %v3100
        %v3196 = vpack.c.b16 %v3103, %v3102
        %v3197 = vpack.c.b16 %v3105, %v3104
        %v3198 = vpack.c.b16 %v3107, %v3106
        %v3199 = vpack.c.b16 %v3109, %v3108
        %v3200 = vpack.c.b16 %v3111, %v3110
        %v3201 = vpack.c.b16 %v3113, %v3112
        %v3202 = vpack.c.b16 %v3115, %v3114
        %v3203 = vpack.c.b16 %v3117, %v3116
        %v3204 = vpack.c.b16 %v3119, %v3118
        %v3205 = vpack.c.b16 %v3121, %v3120
        %v3206 = vpack.c.b16 %v3123, %v3122
        %v3207 = vpack.c.b16 %v3125, %v3124
        %v3208 = vpack.c.b16 %v3127, %v3126
        %v3209 = vpack.c.b16 %v3129, %v3128
        %v3210 = vpack.c.b16 %v3131, %v3130
        %v3211 = vpack.c.b16 %v3133, %v3132
        %v3212 = vpack.c.b16 %v3135, %v3134
        %v3213 = vpack.c.b16 %v3137, %v3136
        %v3214 = vpack.c.b16 %v3139, %v3138
        %v3215 = vpack.c.b16 %v3141, %v3140
        %v3216 = vpack.c.b16 %v3143, %v3142
        %v3217 = vpack.c.b16 %v3145, %v3144
        %3290 = vmatprep.subr.bf16.mxu0 0
        %3291 = vmatpush1.bf16.msra.mxu0 %v3146
        %3292 = vmatprep.subr.bf16.mxu0 0
        %3293 = vmatpush1.bf16.msra.mxu0 %v3147
        %3294 = vmatprep.subr.bf16.mxu0 0
        %3295 = vmatpush1.bf16.msra.mxu0 %v3148
        %3296 = vmatprep.subr.bf16.mxu0 0
        %3297 = vmatpush1.bf16.msra.mxu0 %v3149
        %3298 = vmatprep.subr.bf16.mxu0 0
        %3299 = vmatpush1.bf16.msra.mxu0 %v3150
        %3300 = vmatprep.subr.bf16.mxu0 0
        %3301 = vmatpush1.bf16.msra.mxu0 %v3151
        %3302 = vmatprep.subr.bf16.mxu0 0
        %3303 = vmatpush1.bf16.msra.mxu0 %v3152
        %3304 = vmatprep.subr.bf16.mxu0 0
        %3305 = vmatpush1.bf16.msra.mxu0 %v3153
        %3306 = vmatprep.subr.bf16.mxu0 0
        %3307 = vmatpush1.bf16.msra.mxu0 %v3154
        %3308 = vmatprep.subr.bf16.mxu0 0
        %3309 = vmatpush1.bf16.msra.mxu0 %v3155
        %3310 = vmatprep.subr.bf16.mxu0 0
        %3311 = vmatpush1.bf16.msra.mxu0 %v3156
        %3312 = vmatprep.subr.bf16.mxu0 0
        %3313 = vmatpush1.bf16.msra.mxu0 %v3157
        %3314 = vmatprep.subr.bf16.mxu0 0
        %3315 = vmatpush1.bf16.msra.mxu0 %v3158
        %3316 = vmatprep.subr.bf16.mxu0 0
        %3317 = vmatpush1.bf16.msra.mxu0 %v3159
        %3318 = vmatprep.subr.bf16.mxu0 0
        %3319 = vmatpush1.bf16.msra.mxu0 %v3160
        %3320 = vmatprep.subr.bf16.mxu0 0
        %3321 = vmatpush1.bf16.msra.mxu0 %v3161
        %3322 = vmatprep.mubr.bf16.mxu0 %v1476
        %3323 = vmatmul.mubr.bf16.gmra.mrb[0].mxu0 %v1384
        %v3324 = vpop.f32.mrb[0].mxu0
        %v3325 = vadd.f32 0.0, %v3324
        %v3326 = vpop.f32.mrb[0].mxu0
        %v3327 = vpop.f32.mrb[0].mxu0
        %v3328 = vadd.f32 0.0, %v3327
        %v3329 = vpop.f32.mrb[0].mxu0
        %3330 = vmatprep.mubr.bf16.mxu0 %v1488
        %3331 = vmatmul.mubr.bf16.gmra.mrb[0].mxu0 %v1385
        %v3332 = vpop.f32.mrb[0].mxu0
        %v3333 = vadd.f32 0.0, %v3332
        %v3334 = vpop.f32.mrb[0].mxu0
        %v3335 = vpop.f32.mrb[0].mxu0
        %v3336 = vadd.f32 0.0, %v3335
        %v3337 = vpop.f32.mrb[0].mxu0
        %3338 = vmatprep.mubr.bf16.mxu0 %v1500
        %3339 = vmatmul.mubr.bf16.gmra.mrb[0].mxu0 %v1386
        %v3340 = vpop.f32.mrb[0].mxu0
        %v3341 = vadd.f32 0.0, %v3340
        %v3342 = vpop.f32.mrb[0].mxu0
        %v3343 = vpop.f32.mrb[0].mxu0
        %v3344 = vadd.f32 0.0, %v3343
        %v3345 = vpop.f32.mrb[0].mxu0
        %3346 = vmatprep.mubr.bf16.mxu0 %v1512
        %3347 = vmatmul.mubr.bf16.gmra.mrb[0].mxu0 %v1387
        %v3348 = vpop.f32.mrb[0].mxu0
        %v3349 = vadd.f32 0.0, %v3348
        %v3350 = vpop.f32.mrb[0].mxu0
        %v3351 = vpop.f32.mrb[0].mxu0
        %v3352 = vadd.f32 0.0, %v3351
        %v3353 = vpop.f32.mrb[0].mxu0
        %3354 = vmatprep.mubr.bf16.mxu0 %v1524
        %3355 = vmatmul.mubr.bf16.gmra.mrb[0].mxu0 %v1388
        %v3356 = vpop.f32.mrb[0].mxu0
        %v3357 = vadd.f32 0.0, %v3356
        %v3358 = vpop.f32.mrb[0].mxu0
        %v3359 = vpop.f32.mrb[0].mxu0
        %v3360 = vadd.f32 0.0, %v3359
        %v3361 = vpop.f32.mrb[0].mxu0
        %3362 = vmatprep.mubr.bf16.mxu0 %v1536
        %3363 = vmatmul.mubr.bf16.gmra.mrb[0].mxu0 %v1389
        %v3364 = vpop.f32.mrb[0].mxu0
        %v3365 = vadd.f32 0.0, %v3364
        %v3366 = vpop.f32.mrb[0].mxu0
        %v3367 = vpop.f32.mrb[0].mxu0
        %v3368 = vadd.f32 0.0, %v3367
        %v3369 = vpop.f32.mrb[0].mxu0
        %3370 = vmatprep.mubr.bf16.mxu0 %v1548
        %3371 = vmatmul.mubr.bf16.gmra.mrb[0].mxu0 %v1390
        %v3372 = vpop.f32.mrb[0].mxu0
        %v3373 = vadd.f32 0.0, %v3372
        %v3374 = vpop.f32.mrb[0].mxu0
        %v3375 = vpop.f32.mrb[0].mxu0
        %v3376 = vadd.f32 0.0, %v3375
        %v3377 = vpop.f32.mrb[0].mxu0
        %3378 = vmatprep.mubr.bf16.mxu0 %v1560
        %3379 = vmatmul.mubr.bf16.gmra.mrb[0].mxu0 %v1391
        %v3380 = vpop.f32.mrb[0].mxu0
        %v3381 = vadd.f32 0.0, %v3380
        %v3382 = vpop.f32.mrb[0].mxu0
        %v3383 = vpop.f32.mrb[0].mxu0
        %v3384 = vadd.f32 0.0, %v3383
        %v3385 = vpop.f32.mrb[0].mxu0
        %3386 = vmatprep.mubr.bf16.mxu0 %v1572
        %3387 = vmatmul.mubr.bf16.gmra.mrb[0].mxu0 %v1392
        %v3388 = vpop.f32.mrb[0].mxu0
        %v3389 = vadd.f32 0.0, %v3388
        %v3390 = vpop.f32.mrb[0].mxu0
        %v3391 = vpop.f32.mrb[0].mxu0
        %v3392 = vadd.f32 0.0, %v3391
        %v3393 = vpop.f32.mrb[0].mxu0
        %3394 = vmatprep.mubr.bf16.mxu0 %v1584
        %3395 = vmatmul.mubr.bf16.gmra.mrb[0].mxu0 %v1393
        %v3396 = vpop.f32.mrb[0].mxu0
        %v3397 = vadd.f32 0.0, %v3396
        %v3398 = vpop.f32.mrb[0].mxu0
        %v3399 = vpop.f32.mrb[0].mxu0
        %v3400 = vadd.f32 0.0, %v3399
        %v3401 = vpop.f32.mrb[0].mxu0
        %3402 = vmatprep.mubr.bf16.mxu0 %v1596
        %3403 = vmatmul.mubr.bf16.gmra.mrb[0].mxu0 %v1394
        %v3404 = vpop.f32.mrb[0].mxu0
        %v3405 = vadd.f32 0.0, %v3404
        %v3406 = vpop.f32.mrb[0].mxu0
        %v3407 = vpop.f32.mrb[0].mxu0
        %v3408 = vadd.f32 0.0, %v3407
        %v3409 = vpop.f32.mrb[0].mxu0
        %3410 = vmatprep.mubr.bf16.mxu0 %v1608
        %3411 = vmatmul.mubr.bf16.gmra.mrb[0].mxu0 %v1395
        %v3412 = vpop.f32.mrb[0].mxu0
        %v3413 = vadd.f32 0.0, %v3412
        %v3414 = vpop.f32.mrb[0].mxu0
        %v3415 = vpop.f32.mrb[0].mxu0
        %v3416 = vadd.f32 0.0, %v3415
        %v3417 = vpop.f32.mrb[0].mxu0
        %3418 = vmatprep.mubr.bf16.mxu0 %v1620
        %3419 = vmatmul.mubr.bf16.gmra.mrb[0].mxu0 %v1396
        %v3420 = vpop.f32.mrb[0].mxu0
        %v3421 = vadd.f32 0.0, %v3420
        %v3422 = vpop.f32.mrb[0].mxu0
        %v3423 = vpop.f32.mrb[0].mxu0
        %v3424 = vadd.f32 0.0, %v3423
        %v3425 = vpop.f32.mrb[0].mxu0
        %3426 = vmatprep.mubr.bf16.mxu0 %v1632
        %3427 = vmatmul.mubr.bf16.gmra.mrb[0].mxu0 %v1397
        %v3428 = vpop.f32.mrb[0].mxu0
        %v3429 = vadd.f32 0.0, %v3428
        %v3430 = vpop.f32.mrb[0].mxu0
        %v3431 = vpop.f32.mrb[0].mxu0
        %v3432 = vadd.f32 0.0, %v3431
        %v3433 = vpop.f32.mrb[0].mxu0
        %3434 = vmatprep.mubr.bf16.mxu0 %v1644
        %3435 = vmatmul.mubr.bf16.gmra.mrb[0].mxu0 %v1398
        %v3436 = vpop.f32.mrb[0].mxu0
        %v3437 = vadd.f32 0.0, %v3436
        %v3438 = vpop.f32.mrb[0].mxu0
        %v3439 = vpop.f32.mrb[0].mxu0
        %v3440 = vadd.f32 0.0, %v3439
        %v3441 = vpop.f32.mrb[0].mxu0
        %3442 = vmatprep.mubr.bf16.mxu0 %v1656
        %3443 = vmatmul.mubr.bf16.gmra.mrb[0].mxu0 %v1399
        %v3444 = vpop.f32.mrb[0].mxu0
        %v3445 = vadd.f32 0.0, %v3444
        %v3446 = vpop.f32.mrb[0].mxu0
        %v3447 = vpop.f32.mrb[0].mxu0
        %v3448 = vadd.f32 0.0, %v3447
        %v3449 = vpop.f32.mrb[0].mxu0
        %3450 = vdwg.mxu0
        %3451 = vmatprep.subr.bf16.mxu0 0
        %3452 = vmatpush1.bf16.msra.mxu0 %v3162
        %3453 = vmatprep.subr.bf16.mxu0 0
        %3454 = vmatpush1.bf16.msra.mxu0 %v3163
        %3455 = vmatprep.subr.bf16.mxu0 0
        %3456 = vmatpush1.bf16.msra.mxu0 %v3164
        %3457 = vmatprep.subr.bf16.mxu0 0
        %3458 = vmatpush1.bf16.msra.mxu0 %v3165
        %3459 = vmatprep.subr.bf16.mxu0 0
        %3460 = vmatpush1.bf16.msra.mxu0 %v3166
        %3461 = vmatprep.subr.bf16.mxu0 0
        %3462 = vmatpush1.bf16.msra.mxu0 %v3167
        %3463 = vmatprep.subr.bf16.mxu0 0
        %3464 = vmatpush1.bf16.msra.mxu0 %v3168
        %3465 = vmatprep.subr.bf16.mxu0 0
        %3466 = vmatpush1.bf16.msra.mxu0 %v3169
        %3467 = vmatprep.subr.bf16.mxu0 0
        %3468 = vmatpush1.bf16.msra.mxu0 %v3170
        %3469 = vmatprep.subr.bf16.mxu0 0
        %3470 = vmatpush1.bf16.msra.mxu0 %v3171
        %3471 = vmatprep.subr.bf16.mxu0 0
        %3472 = vmatpush1.bf16.msra.mxu0 %v3172
        %3473 = vmatprep.subr.bf16.mxu0 0
        %3474 = vmatpush1.bf16.msra.mxu0 %v3173
        %3475 = vmatprep.subr.bf16.mxu0 0
        %3476 = vmatpush1.bf16.msra.mxu0 %v3174
        %3477 = vmatprep.subr.bf16.mxu0 0
        %3478 = vmatpush1.bf16.msra.mxu0 %v3175
        %3479 = vmatprep.subr.bf16.mxu0 0
        %3480 = vmatpush1.bf16.msra.mxu0 %v3176
        %3481 = vmatprep.subr.bf16.mxu0 0
        %3482 = vmatpush1.bf16.msra.mxu0 %v3177
        %3483 = vmatprep.mubr.bf16.mxu0 %v1850
        %3484 = vmatmul.mubr.bf16.gmra.mrb[0].mxu0 %v1724
        %v3485 = vpop.f32.mrb[0].mxu0
        %v3486 = vadd.f32 %v3325, %v3485
        %v3487 = vpop.f32.mrb[0].mxu0
        %v3488 = vpop.f32.mrb[0].mxu0
        %v3489 = vadd.f32 %v3328, %v3488
        %v3490 = vpop.f32.mrb[0].mxu0
        %3491 = vmatprep.mubr.bf16.mxu0 %v1851
        %3492 = vmatmul.mubr.bf16.gmra.mrb[0].mxu0 %v1727
        %v3493 = vpop.f32.mrb[0].mxu0
        %v3494 = vadd.f32 %v3333, %v3493
        %v3495 = vpop.f32.mrb[0].mxu0
        %v3496 = vpop.f32.mrb[0].mxu0
        %v3497 = vadd.f32 %v3336, %v3496
        %v3498 = vpop.f32.mrb[0].mxu0
        %3499 = vmatprep.mubr.bf16.mxu0 %v1852
        %3500 = vmatmul.mubr.bf16.gmra.mrb[0].mxu0 %v1730
        %v3501 = vpop.f32.mrb[0].mxu0
        %v3502 = vadd.f32 %v3341, %v3501
        %v3503 = vpop.f32.mrb[0].mxu0
        %v3504 = vpop.f32.mrb[0].mxu0
        %v3505 = vadd.f32 %v3344, %v3504
        %v3506 = vpop.f32.mrb[0].mxu0
        %3507 = vmatprep.mubr.bf16.mxu0 %v1853
        %3508 = vmatmul.mubr.bf16.gmra.mrb[0].mxu0 %v1733
        %v3509 = vpop.f32.mrb[0].mxu0
        %v3510 = vadd.f32 %v3349, %v3509
        %v3511 = vpop.f32.mrb[0].mxu0
        %v3512 = vpop.f32.mrb[0].mxu0
        %v3513 = vadd.f32 %v3352, %v3512
        %v3514 = vpop.f32.mrb[0].mxu0
        %3515 = vmatprep.mubr.bf16.mxu0 %v1854
        %3516 = vmatmul.mubr.bf16.gmra.mrb[0].mxu0 %v1736
        %v3517 = vpop.f32.mrb[0].mxu0
        %v3518 = vadd.f32 %v3357, %v3517
        %v3519 = vpop.f32.mrb[0].mxu0
        %v3520 = vpop.f32.mrb[0].mxu0
        %v3521 = vadd.f32 %v3360, %v3520
        %v3522 = vpop.f32.mrb[0].mxu0
        %3523 = vmatprep.mubr.bf16.mxu0 %v1855
        %3524 = vmatmul.mubr.bf16.gmra.mrb[0].mxu0 %v1739
        %v3525 = vpop.f32.mrb[0].mxu0
        %v3526 = vadd.f32 %v3365, %v3525
        %v3527 = vpop.f32.mrb[0].mxu0
        %v3528 = vpop.f32.mrb[0].mxu0
        %v3529 = vadd.f32 %v3368, %v3528
        %v3530 = vpop.f32.mrb[0].mxu0
        %3531 = vmatprep.mubr.bf16.mxu0 %v1856
        %3532 = vmatmul.mubr.bf16.gmra.mrb[0].mxu0 %v1742
        %v3533 = vpop.f32.mrb[0].mxu0
        %v3534 = vadd.f32 %v3373, %v3533
        %v3535 = vpop.f32.mrb[0].mxu0
        %v3536 = vpop.f32.mrb[0].mxu0
        %v3537 = vadd.f32 %v3376, %v3536
        %v3538 = vpop.f32.mrb[0].mxu0
        %3539 = vmatprep.mubr.bf16.mxu0 %v1857
        %3540 = vmatmul.mubr.bf16.gmra.mrb[0].mxu0 %v1745
        %v3541 = vpop.f32.mrb[0].mxu0
        %v3542 = vadd.f32 %v3381, %v3541
        %v3543 = vpop.f32.mrb[0].mxu0
        %v3544 = vpop.f32.mrb[0].mxu0
        %v3545 = vadd.f32 %v3384, %v3544
        %v3546 = vpop.f32.mrb[0].mxu0
        %3547 = vmatprep.mubr.bf16.mxu0 %v1858
        %3548 = vmatmul.mubr.bf16.gmra.mrb[0].mxu0 %v1748
        %v3549 = vpop.f32.mrb[0].mxu0
        %v3550 = vadd.f32 %v3389, %v3549
        %v3551 = vpop.f32.mrb[0].mxu0
        %v3552 = vpop.f32.mrb[0].mxu0
        %v3553 = vadd.f32 %v3392, %v3552
        %v3554 = vpop.f32.mrb[0].mxu0
        %3555 = vmatprep.mubr.bf16.mxu0 %v1859
        %3556 = vmatmul.mubr.bf16.gmra.mrb[0].mxu0 %v1751
        %v3557 = vpop.f32.mrb[0].mxu0
        %v3558 = vadd.f32 %v3397, %v3557
        %v3559 = vpop.f32.mrb[0].mxu0
        %v3560 = vpop.f32.mrb[0].mxu0
        %v3561 = vadd.f32 %v3400, %v3560
        %v3562 = vpop.f32.mrb[0].mxu0
        %3563 = vmatprep.mubr.bf16.mxu0 %v1860
        %3564 = vmatmul.mubr.bf16.gmra.mrb[0].mxu0 %v1754
        %v3565 = vpop.f32.mrb[0].mxu0
        %v3566 = vadd.f32 %v3405, %v3565
        %v3567 = vpop.f32.mrb[0].mxu0
        %v3568 = vpop.f32.mrb[0].mxu0
        %v3569 = vadd.f32 %v3408, %v3568
        %v3570 = vpop.f32.mrb[0].mxu0
        %3571 = vmatprep.mubr.bf16.mxu0 %v1861
        %3572 = vmatmul.mubr.bf16.gmra.mrb[0].mxu0 %v1757
        %v3573 = vpop.f32.mrb[0].mxu0
        %v3574 = vadd.f32 %v3413, %v3573
        %v3575 = vpop.f32.mrb[0].mxu0
        %v3576 = vpop.f32.mrb[0].mxu0
        %v3577 = vadd.f32 %v3416, %v3576
        %v3578 = vpop.f32.mrb[0].mxu0
        %3579 = vmatprep.mubr.bf16.mxu0 %v1862
        %3580 = vmatmul.mubr.bf16.gmra.mrb[0].mxu0 %v1760
        %v3581 = vpop.f32.mrb[0].mxu0
        %v3582 = vadd.f32 %v3421, %v3581
        %v3583 = vpop.f32.mrb[0].mxu0
        %v3584 = vpop.f32.mrb[0].mxu0
        %v3585 = vadd.f32 %v3424, %v3584
        %v3586 = vpop.f32.mrb[0].mxu0
        %3587 = vmatprep.mubr.bf16.mxu0 %v1863
        %3588 = vmatmul.mubr.bf16.gmra.mrb[0].mxu0 %v1763
        %v3589 = vpop.f32.mrb[0].mxu0
        %v3590 = vadd.f32 %v3429, %v3589
        %v3591 = vpop.f32.mrb[0].mxu0
        %v3592 = vpop.f32.mrb[0].mxu0
        %v3593 = vadd.f32 %v3432, %v3592
        %v3594 = vpop.f32.mrb[0].mxu0
        %3595 = vmatprep.mubr.bf16.mxu0 %v1864
        %3596 = vmatmul.mubr.bf16.gmra.mrb[0].mxu0 %v1766
        %v3597 = vpop.f32.mrb[0].mxu0
        %v3598 = vadd.f32 %v3437, %v3597
        %v3599 = vpop.f32.mrb[0].mxu0
        %v3600 = vpop.f32.mrb[0].mxu0
        %v3601 = vadd.f32 %v3440, %v3600
        %v3602 = vpop.f32.mrb[0].mxu0
        %3603 = vmatprep.mubr.bf16.mxu0 %v1865
        %3604 = vmatmul.mubr.bf16.gmra.mrb[0].mxu0 %v1769
        %v3605 = vpop.f32.mrb[0].mxu0
        %v3606 = vadd.f32 %v3445, %v3605
        %v3607 = vpop.f32.mrb[0].mxu0
        %v3608 = vpop.f32.mrb[0].mxu0
        %v3609 = vadd.f32 %v3448, %v3608
        %v3610 = vpop.f32.mrb[0].mxu0
        %3611 = vdwg.mxu0
        %3612 = vmatprep.subr.bf16.mxu0 0
        %3613 = vmatpush1.bf16.msra.mxu0 %v3178
        %3614 = vmatprep.subr.bf16.mxu0 0
        %3615 = vmatpush1.bf16.msra.mxu0 %v3179
        %3616 = vmatprep.subr.bf16.mxu0 0
        %3617 = vmatpush1.bf16.msra.mxu0 %v3180
        %3618 = vmatprep.subr.bf16.mxu0 0
        %3619 = vmatpush1.bf16.msra.mxu0 %v3181
        %3620 = vmatprep.subr.bf16.mxu0 0
        %3621 = vmatpush1.bf16.msra.mxu0 %v3182
        %3622 = vmatprep.subr.bf16.mxu0 0
        %3623 = vmatpush1.bf16.msra.mxu0 %v3183
        %3624 = vmatprep.subr.bf16.mxu0 0
        %3625 = vmatpush1.bf16.msra.mxu0 %v3184
        %3626 = vmatprep.subr.bf16.mxu0 0
        %3627 = vmatpush1.bf16.msra.mxu0 %v3185
        %3628 = vmatprep.subr.bf16.mxu0 0
        %3629 = vmatpush1.bf16.msra.mxu0 %v3186
        %3630 = vmatprep.subr.bf16.mxu0 0
        %3631 = vmatpush1.bf16.msra.mxu0 %v3187
        %3632 = vmatprep.subr.bf16.mxu0 0
        %3633 = vmatpush1.bf16.msra.mxu0 %v3188
        %3634 = vmatprep.subr.bf16.mxu0 0
        %3635 = vmatpush1.bf16.msra.mxu0 %v3189
        %3636 = vmatprep.subr.bf16.mxu0 0
        %3637 = vmatpush1.bf16.msra.mxu0 %v3190
        %3638 = vmatprep.subr.bf16.mxu0 0
        %3639 = vmatpush1.bf16.msra.mxu0 %v3191
        %3640 = vmatprep.subr.bf16.mxu0 0
        %3641 = vmatpush1.bf16.msra.mxu0 %v3192
        %3642 = vmatprep.subr.bf16.mxu0 0
        %3643 = vmatpush1.bf16.msra.mxu0 %v3193
        %3644 = vmatprep.mubr.bf16.mxu0 %v2188
        %3645 = vmatmul.mubr.bf16.gmra.mrb[0].mxu0 %v1941
        %v3646 = vpop.f32.mrb[0].mxu0
        %v3647 = vadd.f32 %v3486, %v3646
        %v3648 = vpop.f32.mrb[0].mxu0
        %v3649 = vpop.f32.mrb[0].mxu0
        %v3650 = vadd.f32 %v3489, %v3649
        %v3651 = vpop.f32.mrb[0].mxu0
        %3652 = vmatprep.mubr.bf16.mxu0 %v2191
        %3653 = vmatmul.mubr.bf16.gmra.mrb[0].mxu0 %v1953
        %v3654 = vpop.f32.mrb[0].mxu0
        %v3655 = vadd.f32 %v3494, %v3654
        %v3656 = vpop.f32.mrb[0].mxu0
        %v3657 = vpop.f32.mrb[0].mxu0
        %v3658 = vadd.f32 %v3497, %v3657
        %v3659 = vpop.f32.mrb[0].mxu0
        %3660 = vmatprep.mubr.bf16.mxu0 %v2194
        %3661 = vmatmul.mubr.bf16.gmra.mrb[0].mxu0 %v1965
        %v3662 = vpop.f32.mrb[0].mxu0
        %v3663 = vadd.f32 %v3502, %v3662
        %v3664 = vpop.f32.mrb[0].mxu0
        %v3665 = vpop.f32.mrb[0].mxu0
        %v3666 = vadd.f32 %v3505, %v3665
        %v3667 = vpop.f32.mrb[0].mxu0
        %3668 = vmatprep.mubr.bf16.mxu0 %v2197
        %3669 = vmatmul.mubr.bf16.gmra.mrb[0].mxu0 %v1977
        %v3670 = vpop.f32.mrb[0].mxu0
        %v3671 = vadd.f32 %v3510, %v3670
        %v3672 = vpop.f32.mrb[0].mxu0
        %v3673 = vpop.f32.mrb[0].mxu0
        %v3674 = vadd.f32 %v3513, %v3673
        %v3675 = vpop.f32.mrb[0].mxu0
        %3676 = vmatprep.mubr.bf16.mxu0 %v2200
        %3677 = vmatmul.mubr.bf16.gmra.mrb[0].mxu0 %v1989
        %v3678 = vpop.f32.mrb[0].mxu0
        %v3679 = vadd.f32 %v3518, %v3678
        %v3680 = vpop.f32.mrb[0].mxu0
        %v3681 = vpop.f32.mrb[0].mxu0
        %v3682 = vadd.f32 %v3521, %v3681
        %v3683 = vpop.f32.mrb[0].mxu0
        %3684 = vmatprep.mubr.bf16.mxu0 %v2203
        %3685 = vmatmul.mubr.bf16.gmra.mrb[0].mxu0 %v2001
        %v3686 = vpop.f32.mrb[0].mxu0
        %v3687 = vadd.f32 %v3526, %v3686
        %v3688 = vpop.f32.mrb[0].mxu0
        %v3689 = vpop.f32.mrb[0].mxu0
        %v3690 = vadd.f32 %v3529, %v3689
        %v3691 = vpop.f32.mrb[0].mxu0
        %3692 = vmatprep.mubr.bf16.mxu0 %v2206
        %3693 = vmatmul.mubr.bf16.gmra.mrb[0].mxu0 %v2013
        %v3694 = vpop.f32.mrb[0].mxu0
        %v3695 = vadd.f32 %v3534, %v3694
        %v3696 = vpop.f32.mrb[0].mxu0
        %v3697 = vpop.f32.mrb[0].mxu0
        %v3698 = vadd.f32 %v3537, %v3697
        %v3699 = vpop.f32.mrb[0].mxu0
        %3700 = vmatprep.mubr.bf16.mxu0 %v2209
        %3701 = vmatmul.mubr.bf16.gmra.mrb[0].mxu0 %v2025
        %v3702 = vpop.f32.mrb[0].mxu0
        %v3703 = vadd.f32 %v3542, %v3702
        %v3704 = vpop.f32.mrb[0].mxu0
        %v3705 = vpop.f32.mrb[0].mxu0
        %v3706 = vadd.f32 %v3545, %v3705
        %v3707 = vpop.f32.mrb[0].mxu0
        %3708 = vmatprep.mubr.bf16.mxu0 %v2212
        %3709 = vmatmul.mubr.bf16.gmra.mrb[0].mxu0 %v2037
        %v3710 = vpop.f32.mrb[0].mxu0
        %v3711 = vadd.f32 %v3550, %v3710
        %v3712 = vpop.f32.mrb[0].mxu0
        %v3713 = vpop.f32.mrb[0].mxu0
        %v3714 = vadd.f32 %v3553, %v3713
        %v3715 = vpop.f32.mrb[0].mxu0
        %3716 = vmatprep.mubr.bf16.mxu0 %v2215
        %3717 = vmatmul.mubr.bf16.gmra.mrb[0].mxu0 %v2049
        %v3718 = vpop.f32.mrb[0].mxu0
        %v3719 = vadd.f32 %v3558, %v3718
        %v3720 = vpop.f32.mrb[0].mxu0
        %v3721 = vpop.f32.mrb[0].mxu0
        %v3722 = vadd.f32 %v3561, %v3721
        %v3723 = vpop.f32.mrb[0].mxu0
        %3724 = vmatprep.mubr.bf16.mxu0 %v2218
        %3725 = vmatmul.mubr.bf16.gmra.mrb[0].mxu0 %v2061
        %v3726 = vpop.f32.mrb[0].mxu0
        %v3727 = vadd.f32 %v3566, %v3726
        %v3728 = vpop.f32.mrb[0].mxu0
        %v3729 = vpop.f32.mrb[0].mxu0
        %v3730 = vadd.f32 %v3569, %v3729
        %v3731 = vpop.f32.mrb[0].mxu0
        %3732 = vmatprep.mubr.bf16.mxu0 %v2221
        %3733 = vmatmul.mubr.bf16.gmra.mrb[0].mxu0 %v2073
        %v3734 = vpop.f32.mrb[0].mxu0
        %v3735 = vadd.f32 %v3574, %v3734
        %v3736 = vpop.f32.mrb[0].mxu0
        %v3737 = vpop.f32.mrb[0].mxu0
        %v3738 = vadd.f32 %v3577, %v3737
        %v3739 = vpop.f32.mrb[0].mxu0
        %3740 = vmatprep.mubr.bf16.mxu0 %v2224
        %3741 = vmatmul.mubr.bf16.gmra.mrb[0].mxu0 %v2085
        %v3742 = vpop.f32.mrb[0].mxu0
        %v3743 = vadd.f32 %v3582, %v3742
        %v3744 = vpop.f32.mrb[0].mxu0
        %v3745 = vpop.f32.mrb[0].mxu0
        %v3746 = vadd.f32 %v3585, %v3745
        %v3747 = vpop.f32.mrb[0].mxu0
        %3748 = vmatprep.mubr.bf16.mxu0 %v2227
        %3749 = vmatmul.mubr.bf16.gmra.mrb[0].mxu0 %v2097
        %v3750 = vpop.f32.mrb[0].mxu0
        %v3751 = vadd.f32 %v3590, %v3750
        %v3752 = vpop.f32.mrb[0].mxu0
        %v3753 = vpop.f32.mrb[0].mxu0
        %v3754 = vadd.f32 %v3593, %v3753
        %v3755 = vpop.f32.mrb[0].mxu0
        %3756 = vmatprep.mubr.bf16.mxu0 %v2230
        %3757 = vmatmul.mubr.bf16.gmra.mrb[0].mxu0 %v2109
        %v3758 = vpop.f32.mrb[0].mxu0
        %v3759 = vadd.f32 %v3598, %v3758
        %v3760 = vpop.f32.mrb[0].mxu0
        %v3761 = vpop.f32.mrb[0].mxu0
        %v3762 = vadd.f32 %v3601, %v3761
        %v3763 = vpop.f32.mrb[0].mxu0
        %3764 = vmatprep.mubr.bf16.mxu0 %v2233
        %3765 = vmatmul.mubr.bf16.gmra.mrb[0].mxu0 %v2121
        %v3766 = vpop.f32.mrb[0].mxu0
        %v3767 = vadd.f32 %v3606, %v3766
        %v3768 = vpop.f32.mrb[0].mxu0
        %v3769 = vpop.f32.mrb[0].mxu0
        %v3770 = vadd.f32 %v3609, %v3769
        %v3771 = vpop.f32.mrb[0].mxu0
        %3772 = vdwg.mxu0
        %3773 = vmatprep.subr.bf16.mxu0 0
        %3774 = vmatpush1.bf16.msra.mxu0 %v3194
        %3775 = vmatprep.subr.bf16.mxu0 0
        %3776 = vmatpush1.bf16.msra.mxu0 %v3195
        %3777 = vmatprep.subr.bf16.mxu0 0
        %3778 = vmatpush1.bf16.msra.mxu0 %v3196
        %3779 = vmatprep.subr.bf16.mxu0 0
        %3780 = vmatpush1.bf16.msra.mxu0 %v3197
        %3781 = vmatprep.subr.bf16.mxu0 0
        %3782 = vmatpush1.bf16.msra.mxu0 %v3198
        %3783 = vmatprep.subr.bf16.mxu0 0
        %3784 = vmatpush1.bf16.msra.mxu0 %v3199
        %3785 = vmatprep.subr.bf16.mxu0 0
        %3786 = vmatpush1.bf16.msra.mxu0 %v3200
        %3787 = vmatprep.subr.bf16.mxu0 0
        %3788 = vmatpush1.bf16.msra.mxu0 %v3201
        %3789 = vmatprep.subr.bf16.mxu0 0
        %3790 = vmatpush1.bf16.msra.mxu0 %v3202
        %3791 = vmatprep.subr.bf16.mxu0 0
        %3792 = vmatpush1.bf16.msra.mxu0 %v3203
        %3793 = vmatprep.subr.bf16.mxu0 0
        %3794 = vmatpush1.bf16.msra.mxu0 %v3204
        %3795 = vmatprep.subr.bf16.mxu0 0
        %3796 = vmatpush1.bf16.msra.mxu0 %v3205
        %3797 = vmatprep.subr.bf16.mxu0 0
        %3798 = vmatpush1.bf16.msra.mxu0 %v3206
        %3799 = vmatprep.subr.bf16.mxu0 0
        %3800 = vmatpush1.bf16.msra.mxu0 %v3207
        %3801 = vmatprep.subr.bf16.mxu0 0
        %3802 = vmatpush1.bf16.msra.mxu0 %v3208
        %3803 = vmatprep.subr.bf16.mxu0 0
        %3804 = vmatpush1.bf16.msra.mxu0 %v3209
        %3805 = vmatprep.mubr.bf16.mxu0 %v2405
        %3806 = vmatmul.mubr.bf16.gmra.mrb[0].mxu0 %v2314
        %v3807 = vpop.f32.mrb[0].mxu0
        %v3808 = vadd.f32 %v3647, %v3807
        %v3809 = vpop.f32.mrb[0].mxu0
        %v3810 = vpop.f32.mrb[0].mxu0
        %v3811 = vadd.f32 %v3650, %v3810
        %v3812 = vpop.f32.mrb[0].mxu0
        %3813 = vmatprep.mubr.bf16.mxu0 %v2417
        %3814 = vmatmul.mubr.bf16.gmra.mrb[0].mxu0 %v2315
        %v3815 = vpop.f32.mrb[0].mxu0
        %v3816 = vadd.f32 %v3655, %v3815
        %v3817 = vpop.f32.mrb[0].mxu0
        %v3818 = vpop.f32.mrb[0].mxu0
        %v3819 = vadd.f32 %v3658, %v3818
        %v3820 = vpop.f32.mrb[0].mxu0
        %3821 = vmatprep.mubr.bf16.mxu0 %v2429
        %3822 = vmatmul.mubr.bf16.gmra.mrb[0].mxu0 %v2316
        %v3823 = vpop.f32.mrb[0].mxu0
        %v3824 = vadd.f32 %v3663, %v3823
        %v3825 = vpop.f32.mrb[0].mxu0
        %v3826 = vpop.f32.mrb[0].mxu0
        %v3827 = vadd.f32 %v3666, %v3826
        %v3828 = vpop.f32.mrb[0].mxu0
        %3829 = vmatprep.mubr.bf16.mxu0 %v2441
        %3830 = vmatmul.mubr.bf16.gmra.mrb[0].mxu0 %v2317
        %v3831 = vpop.f32.mrb[0].mxu0
        %v3832 = vadd.f32 %v3671, %v3831
        %v3833 = vpop.f32.mrb[0].mxu0
        %v3834 = vpop.f32.mrb[0].mxu0
        %v3835 = vadd.f32 %v3674, %v3834
        %v3836 = vpop.f32.mrb[0].mxu0
        %3837 = vmatprep.mubr.bf16.mxu0 %v2453
        %3838 = vmatmul.mubr.bf16.gmra.mrb[0].mxu0 %v2318
        %v3839 = vpop.f32.mrb[0].mxu0
        %v3840 = vadd.f32 %v3679, %v3839
        %v3841 = vpop.f32.mrb[0].mxu0
        %v3842 = vpop.f32.mrb[0].mxu0
        %v3843 = vadd.f32 %v3682, %v3842
        %v3844 = vpop.f32.mrb[0].mxu0
        %3845 = vmatprep.mubr.bf16.mxu0 %v2465
        %3846 = vmatmul.mubr.bf16.gmra.mrb[0].mxu0 %v2319
        %v3847 = vpop.f32.mrb[0].mxu0
        %v3848 = vadd.f32 %v3687, %v3847
        %v3849 = vpop.f32.mrb[0].mxu0
        %v3850 = vpop.f32.mrb[0].mxu0
        %v3851 = vadd.f32 %v3690, %v3850
        %v3852 = vpop.f32.mrb[0].mxu0
        %3853 = vmatprep.mubr.bf16.mxu0 %v2477
        %3854 = vmatmul.mubr.bf16.gmra.mrb[0].mxu0 %v2320
        %v3855 = vpop.f32.mrb[0].mxu0
        %v3856 = vadd.f32 %v3695, %v3855
        %v3857 = vpop.f32.mrb[0].mxu0
        %v3858 = vpop.f32.mrb[0].mxu0
        %v3859 = vadd.f32 %v3698, %v3858
        %v3860 = vpop.f32.mrb[0].mxu0
        %3861 = vmatprep.mubr.bf16.mxu0 %v2489
        %3862 = vmatmul.mubr.bf16.gmra.mrb[0].mxu0 %v2321
        %v3863 = vpop.f32.mrb[0].mxu0
        %v3864 = vadd.f32 %v3703, %v3863
        %v3865 = vpop.f32.mrb[0].mxu0
        %v3866 = vpop.f32.mrb[0].mxu0
        %v3867 = vadd.f32 %v3706, %v3866
        %v3868 = vpop.f32.mrb[0].mxu0
        %3869 = vmatprep.mubr.bf16.mxu0 %v2501
        %3870 = vmatmul.mubr.bf16.gmra.mrb[0].mxu0 %v2322
        %v3871 = vpop.f32.mrb[0].mxu0
        %v3872 = vadd.f32 %v3711, %v3871
        %v3873 = vpop.f32.mrb[0].mxu0
        %v3874 = vpop.f32.mrb[0].mxu0
        %v3875 = vadd.f32 %v3714, %v3874
        %v3876 = vpop.f32.mrb[0].mxu0
        %3877 = vmatprep.mubr.bf16.mxu0 %v2513
        %3878 = vmatmul.mubr.bf16.gmra.mrb[0].mxu0 %v2323
        %v3879 = vpop.f32.mrb[0].mxu0
        %v3880 = vadd.f32 %v3719, %v3879
        %v3881 = vpop.f32.mrb[0].mxu0
        %v3882 = vpop.f32.mrb[0].mxu0
        %v3883 = vadd.f32 %v3722, %v3882
        %v3884 = vpop.f32.mrb[0].mxu0
        %3885 = vmatprep.mubr.bf16.mxu0 %v2525
        %3886 = vmatmul.mubr.bf16.gmra.mrb[0].mxu0 %v2324
        %v3887 = vpop.f32.mrb[0].mxu0
        %v3888 = vadd.f32 %v3727, %v3887
        %v3889 = vpop.f32.mrb[0].mxu0
        %v3890 = vpop.f32.mrb[0].mxu0
        %v3891 = vadd.f32 %v3730, %v3890
        %v3892 = vpop.f32.mrb[0].mxu0
        %3893 = vmatprep.mubr.bf16.mxu0 %v2537
        %3894 = vmatmul.mubr.bf16.gmra.mrb[0].mxu0 %v2325
        %v3895 = vpop.f32.mrb[0].mxu0
        %v3896 = vadd.f32 %v3735, %v3895
        %v3897 = vpop.f32.mrb[0].mxu0
        %v3898 = vpop.f32.mrb[0].mxu0
        %v3899 = vadd.f32 %v3738, %v3898
        %v3900 = vpop.f32.mrb[0].mxu0
        %3901 = vmatprep.mubr.bf16.mxu0 %v2549
        %3902 = vmatmul.mubr.bf16.gmra.mrb[0].mxu0 %v2326
        %v3903 = vpop.f32.mrb[0].mxu0
        %v3904 = vadd.f32 %v3743, %v3903
        %v3905 = vpop.f32.mrb[0].mxu0
        %v3906 = vpop.f32.mrb[0].mxu0
        %v3907 = vadd.f32 %v3746, %v3906
        %v3908 = vpop.f32.mrb[0].mxu0
        %3909 = vmatprep.mubr.bf16.mxu0 %v2561
        %3910 = vmatmul.mubr.bf16.gmra.mrb[0].mxu0 %v2327
        %v3911 = vpop.f32.mrb[0].mxu0
        %v3912 = vadd.f32 %v3751, %v3911
        %v3913 = vpop.f32.mrb[0].mxu0
        %v3914 = vpop.f32.mrb[0].mxu0
        %v3915 = vadd.f32 %v3754, %v3914
        %v3916 = vpop.f32.mrb[0].mxu0
        %3917 = vmatprep.mubr.bf16.mxu0 %v2573
        %3918 = vmatmul.mubr.bf16.gmra.mrb[0].mxu0 %v2328
        %v3919 = vpop.f32.mrb[0].mxu0
        %v3920 = vadd.f32 %v3759, %v3919
        %v3921 = vpop.f32.mrb[0].mxu0
        %v3922 = vpop.f32.mrb[0].mxu0
        %v3923 = vadd.f32 %v3762, %v3922
        %v3924 = vpop.f32.mrb[0].mxu0
        %3925 = vmatprep.mubr.bf16.mxu0 %v2585
        %3926 = vmatmul.mubr.bf16.gmra.mrb[0].mxu0 %v2329
        %v3927 = vpop.f32.mrb[0].mxu0
        %v3928 = vadd.f32 %v3767, %v3927
        %v3929 = vpop.f32.mrb[0].mxu0
        %v3930 = vpop.f32.mrb[0].mxu0
        %v3931 = vadd.f32 %v3770, %v3930
        %v3932 = vpop.f32.mrb[0].mxu0
        %3933 = vdwg.mxu0
        %3934 = vmatprep.subr.bf16.mxu0 0
        %3935 = vmatpush1.bf16.msra.mxu0 %v3210
        %3936 = vmatprep.subr.bf16.mxu0 0
        %3937 = vmatpush1.bf16.msra.mxu0 %v3211
        %3938 = vmatprep.subr.bf16.mxu0 0
        %3939 = vmatpush1.bf16.msra.mxu0 %v3212
        %3940 = vmatprep.subr.bf16.mxu0 0
        %3941 = vmatpush1.bf16.msra.mxu0 %v3213
        %3942 = vmatprep.subr.bf16.mxu0 0
        %3943 = vmatpush1.bf16.msra.mxu0 %v3214
        %3944 = vmatprep.subr.bf16.mxu0 0
        %3945 = vmatpush1.bf16.msra.mxu0 %v3215
        %3946 = vmatprep.subr.bf16.mxu0 0
        %3947 = vmatpush1.bf16.msra.mxu0 %v3216
        %3948 = vmatprep.subr.bf16.mxu0 0
        %3949 = vmatpush1.bf16.msra.mxu0 %v3217
        %3950 = vmatprep.subr.bf16.mxu0 0
        %3951 = vmatpush1.bf16.msra.mxu0 0
        %3952 = vmatprep.subr.bf16.mxu0 0
        %3953 = vmatpush1.bf16.msra.mxu0 0
        %3954 = vmatprep.subr.bf16.mxu0 0
        %3955 = vmatpush1.bf16.msra.mxu0 0
        %3956 = vmatprep.subr.bf16.mxu0 0
        %3957 = vmatpush1.bf16.msra.mxu0 0
        %3958 = vmatprep.subr.bf16.mxu0 0
        %3959 = vmatpush1.bf16.msra.mxu0 0
        %3960 = vmatprep.subr.bf16.mxu0 0
        %3961 = vmatpush1.bf16.msra.mxu0 0
        %3962 = vmatprep.subr.bf16.mxu0 0
        %3963 = vmatpush1.bf16.msra.mxu0 0
        %3964 = vmatprep.subr.bf16.mxu0 0
        %3965 = vmatpush1.bf16.msra.mxu0 0
        %3966 = vmatprep.mubr.bf16.mxu0 0
        %3967 = vmatmul.mubr.bf16.gmra.mrb[0].mxu0 %v2652
        %v3968 = vpop.f32.mrb[0].mxu0
        %v3969 = vadd.f32 %v3808, %v3968
        %v3970 = vpop.f32.mrb[0].mxu0
        %v3971 = vpop.f32.mrb[0].mxu0
        %v3972 = vadd.f32 %v3811, %v3971
        %v3973 = vpop.f32.mrb[0].mxu0
        %3974 = vmatprep.mubr.bf16.mxu0 0
        %3975 = vmatmul.mubr.bf16.gmra.mrb[0].mxu0 %v2655
        %v3976 = vpop.f32.mrb[0].mxu0
        %v3977 = vadd.f32 %v3816, %v3976
        %v3978 = vpop.f32.mrb[0].mxu0
        %v3979 = vpop.f32.mrb[0].mxu0
        %v3980 = vadd.f32 %v3819, %v3979
        %v3981 = vpop.f32.mrb[0].mxu0
        %3982 = vmatprep.mubr.bf16.mxu0 0
        %3983 = vmatmul.mubr.bf16.gmra.mrb[0].mxu0 %v2658
        %v3984 = vpop.f32.mrb[0].mxu0
        %v3985 = vadd.f32 %v3824, %v3984
        %v3986 = vpop.f32.mrb[0].mxu0
        %v3987 = vpop.f32.mrb[0].mxu0
        %v3988 = vadd.f32 %v3827, %v3987
        %v3989 = vpop.f32.mrb[0].mxu0
        %3990 = vmatprep.mubr.bf16.mxu0 0
        %3991 = vmatmul.mubr.bf16.gmra.mrb[0].mxu0 %v2661
        %v3992 = vpop.f32.mrb[0].mxu0
        %v3993 = vadd.f32 %v3832, %v3992
        %v3994 = vpop.f32.mrb[0].mxu0
        %v3995 = vpop.f32.mrb[0].mxu0
        %v3996 = vadd.f32 %v3835, %v3995
        %v3997 = vpop.f32.mrb[0].mxu0
        %3998 = vmatprep.mubr.bf16.mxu0 0
        %3999 = vmatmul.mubr.bf16.gmra.mrb[0].mxu0 %v2664
        %v4000 = vpop.f32.mrb[0].mxu0
        %v4001 = vadd.f32 %v3840, %v4000
        %v4002 = vpop.f32.mrb[0].mxu0
        %v4003 = vpop.f32.mrb[0].mxu0
        %v4004 = vadd.f32 %v3843, %v4003
        %v4005 = vpop.f32.mrb[0].mxu0
        %4006 = vmatprep.mubr.bf16.mxu0 0
        %4007 = vmatmul.mubr.bf16.gmra.mrb[0].mxu0 %v2667
        %v4008 = vpop.f32.mrb[0].mxu0
        %v4009 = vadd.f32 %v3848, %v4008
        %v4010 = vpop.f32.mrb[0].mxu0
        %v4011 = vpop.f32.mrb[0].mxu0
        %v4012 = vadd.f32 %v3851, %v4011
        %v4013 = vpop.f32.mrb[0].mxu0
        %4014 = vmatprep.mubr.bf16.mxu0 0
        %4015 = vmatmul.mubr.bf16.gmra.mrb[0].mxu0 %v2670
        %v4016 = vpop.f32.mrb[0].mxu0
        %v4017 = vadd.f32 %v3856, %v4016
        %v4018 = vpop.f32.mrb[0].mxu0
        %v4019 = vpop.f32.mrb[0].mxu0
        %v4020 = vadd.f32 %v3859, %v4019
        %v4021 = vpop.f32.mrb[0].mxu0
        %4022 = vmatprep.mubr.bf16.mxu0 0
        %4023 = vmatmul.mubr.bf16.gmra.mrb[0].mxu0 %v2673
        %v4024 = vpop.f32.mrb[0].mxu0
        %v4025 = vadd.f32 %v3864, %v4024
        %v4026 = vpop.f32.mrb[0].mxu0
        %v4027 = vpop.f32.mrb[0].mxu0
        %v4028 = vadd.f32 %v3867, %v4027
        %v4029 = vpop.f32.mrb[0].mxu0
        %4030 = vmatprep.mubr.bf16.mxu0 0
        %4031 = vmatmul.mubr.bf16.gmra.mrb[0].mxu0 %v2676
        %v4032 = vpop.f32.mrb[0].mxu0
        %v4033 = vadd.f32 %v3872, %v4032
        %v4034 = vpop.f32.mrb[0].mxu0
        %v4035 = vpop.f32.mrb[0].mxu0
        %v4036 = vadd.f32 %v3875, %v4035
        %v4037 = vpop.f32.mrb[0].mxu0
        %4038 = vmatprep.mubr.bf16.mxu0 0
        %4039 = vmatmul.mubr.bf16.gmra.mrb[0].mxu0 %v2679
        %v4040 = vpop.f32.mrb[0].mxu0
        %v4041 = vadd.f32 %v3880, %v4040
        %v4042 = vpop.f32.mrb[0].mxu0
        %v4043 = vpop.f32.mrb[0].mxu0
        %v4044 = vadd.f32 %v3883, %v4043
        %v4045 = vpop.f32.mrb[0].mxu0
        %4046 = vmatprep.mubr.bf16.mxu0 0
        %4047 = vmatmul.mubr.bf16.gmra.mrb[0].mxu0 %v2682
        %v4048 = vpop.f32.mrb[0].mxu0
        %v4049 = vadd.f32 %v3888, %v4048
        %v4050 = vpop.f32.mrb[0].mxu0
        %v4051 = vpop.f32.mrb[0].mxu0
        %v4052 = vadd.f32 %v3891, %v4051
        %v4053 = vpop.f32.mrb[0].mxu0
        %4054 = vmatprep.mubr.bf16.mxu0 0
        %4055 = vmatmul.mubr.bf16.gmra.mrb[0].mxu0 %v2685
        %v4056 = vpop.f32.mrb[0].mxu0
        %v4057 = vadd.f32 %v3896, %v4056
        %v4058 = vpop.f32.mrb[0].mxu0
        %v4059 = vpop.f32.mrb[0].mxu0
        %v4060 = vadd.f32 %v3899, %v4059
        %v4061 = vpop.f32.mrb[0].mxu0
        %4062 = vmatprep.mubr.bf16.mxu0 0
        %4063 = vmatmul.mubr.bf16.gmra.mrb[0].mxu0 %v2688
        %v4064 = vpop.f32.mrb[0].mxu0
        %v4065 = vadd.f32 %v3904, %v4064
        %v4066 = vpop.f32.mrb[0].mxu0
        %v4067 = vpop.f32.mrb[0].mxu0
        %v4068 = vadd.f32 %v3907, %v4067
        %v4069 = vpop.f32.mrb[0].mxu0
        %4070 = vmatprep.mubr.bf16.mxu0 0
        %4071 = vmatmul.mubr.bf16.gmra.mrb[0].mxu0 %v2691
        %v4072 = vpop.f32.mrb[0].mxu0
        %v4073 = vadd.f32 %v3912, %v4072
        %v4074 = vpop.f32.mrb[0].mxu0
        %v4075 = vpop.f32.mrb[0].mxu0
        %v4076 = vadd.f32 %v3915, %v4075
        %v4077 = vpop.f32.mrb[0].mxu0
        %4078 = vmatprep.mubr.bf16.mxu0 0
        %4079 = vmatmul.mubr.bf16.gmra.mrb[0].mxu0 %v2694
        %v4080 = vpop.f32.mrb[0].mxu0
        %v4081 = vadd.f32 %v3920, %v4080
        %v4082 = vpop.f32.mrb[0].mxu0
        %v4083 = vpop.f32.mrb[0].mxu0
        %v4084 = vadd.f32 %v3923, %v4083
        %v4085 = vpop.f32.mrb[0].mxu0
        %4086 = vmatprep.mubr.bf16.mxu0 0
        %4087 = vmatmul.mubr.bf16.gmra.mrb[0].mxu0 %v2697
        %v4088 = vpop.f32.mrb[0].mxu0
        %v4089 = vadd.f32 %v3928, %v4088
        %v4090 = vpop.f32.mrb[0].mxu0
        %v4091 = vpop.f32.mrb[0].mxu0
        %v4092 = vadd.f32 %v3931, %v4091
        %v4093 = vpop.f32.mrb[0].mxu0
        %4094 = vdwg.mxu0
        %v4095 = vld [vmem:[%s2] sm:$0x1]
        %v4097 = vlaneseq
        %v4098 = vshrl.u32 %v4097, 7
        %v4099 = vsub.s32 0, %v4098
        %v4100 = vrot.slane %v4095, %v4099
        %v4102 = vmul.f32 %v3969, %v4100
        %v4103 = vmul.f32 %v3972, %v4100
        %v4104 = vmul.f32 %v3977, %v4100
        %v4105 = vmul.f32 %v3980, %v4100
        %v4106 = vmul.f32 %v3985, %v4100
        %v4107 = vmul.f32 %v3988, %v4100
        %v4108 = vmul.f32 %v3993, %v4100
        %v4109 = vmul.f32 %v3996, %v4100
        %v4110 = vmul.f32 %v4001, %v4100
        %v4111 = vmul.f32 %v4004, %v4100
        %v4112 = vmul.f32 %v4009, %v4100
        %v4113 = vmul.f32 %v4012, %v4100
        %v4114 = vmul.f32 %v4017, %v4100
        %v4115 = vmul.f32 %v4020, %v4100
        %v4116 = vmul.f32 %v4025, %v4100
        %v4117 = vmul.f32 %v4028, %v4100
        %v4118 = vmul.f32 %v4033, %v4100
        %v4119 = vmul.f32 %v4036, %v4100
        %v4120 = vmul.f32 %v4041, %v4100
        %v4121 = vmul.f32 %v4044, %v4100
        %v4122 = vmul.f32 %v4049, %v4100
        %v4123 = vmul.f32 %v4052, %v4100
        %v4124 = vmul.f32 %v4057, %v4100
        %v4125 = vmul.f32 %v4060, %v4100
        %v4126 = vmul.f32 %v4065, %v4100
        %v4127 = vmul.f32 %v4068, %v4100
        %v4128 = vmul.f32 %v4073, %v4100
        %v4129 = vmul.f32 %v4076, %v4100
        %v4130 = vmul.f32 %v4081, %v4100
        %v4131 = vmul.f32 %v4084, %v4100
        %v4132 = vmul.f32 %v4089, %v4100
        %v4133 = vmul.f32 %v4092, %v4100
        %v4134 = vld [vmem:[%s3] sm:$0x1]
        %v4136 = vlaneseq
        %v4137 = vshrl.u32 %v4136, 7
        %v4138 = vsub.s32 0, %v4137
        %v4139 = vrot.slane %v4134, %v4138
        %v4141 = vadd.f32 %v4102, %v4139
        %v4142 = vadd.f32 %v4103, %v4139
        %v4143 = vadd.f32 %v4104, %v4139
        %v4144 = vadd.f32 %v4105, %v4139
        %v4145 = vadd.f32 %v4106, %v4139
        %v4146 = vadd.f32 %v4107, %v4139
        %v4147 = vadd.f32 %v4108, %v4139
        %v4148 = vadd.f32 %v4109, %v4139
        %v4149 = vadd.f32 %v4110, %v4139
        %v4150 = vadd.f32 %v4111, %v4139
        %v4151 = vadd.f32 %v4112, %v4139
        %v4152 = vadd.f32 %v4113, %v4139
        %v4153 = vadd.f32 %v4114, %v4139
        %v4154 = vadd.f32 %v4115, %v4139
        %v4155 = vadd.f32 %v4116, %v4139
        %v4156 = vadd.f32 %v4117, %v4139
        %v4157 = vadd.f32 %v4118, %v4139
        %v4158 = vadd.f32 %v4119, %v4139
        %v4159 = vadd.f32 %v4120, %v4139
        %v4160 = vadd.f32 %v4121, %v4139
        %v4161 = vadd.f32 %v4122, %v4139
        %v4162 = vadd.f32 %v4123, %v4139
        %v4163 = vadd.f32 %v4124, %v4139
        %v4164 = vadd.f32 %v4125, %v4139
        %v4165 = vadd.f32 %v4126, %v4139
        %v4166 = vadd.f32 %v4127, %v4139
        %v4167 = vadd.f32 %v4128, %v4139
        %v4168 = vadd.f32 %v4129, %v4139
        %v4169 = vadd.f32 %v4130, %v4139
        %v4170 = vadd.f32 %v4131, %v4139
        %v4171 = vadd.f32 %v4132, %v4139
        %v4172 = vadd.f32 %v4133, %v4139
        %v4173 = vmax.f32 %v4141, 0.0
        %v4174 = vmax.f32 %v4142, 0.0
        %v4175 = vmax.f32 %v4143, 0.0
        %v4176 = vmax.f32 %v4144, 0.0
        %v4177 = vmax.f32 %v4145, 0.0
        %v4178 = vmax.f32 %v4146, 0.0
        %v4179 = vmax.f32 %v4147, 0.0
        %v4180 = vmax.f32 %v4148, 0.0
        %v4181 = vmax.f32 %v4149, 0.0
        %v4182 = vmax.f32 %v4150, 0.0
        %v4183 = vmax.f32 %v4151, 0.0
        %v4184 = vmax.f32 %v4152, 0.0
        %v4185 = vmax.f32 %v4153, 0.0
        %v4186 = vmax.f32 %v4154, 0.0
        %v4187 = vmax.f32 %v4155, 0.0
        %v4188 = vmax.f32 %v4156, 0.0
        %v4189 = vmax.f32 %v4157, 0.0
        %v4190 = vmax.f32 %v4158, 0.0
        %v4191 = vmax.f32 %v4159, 0.0
        %v4192 = vmax.f32 %v4160, 0.0
        %v4193 = vmax.f32 %v4161, 0.0
        %v4194 = vmax.f32 %v4162, 0.0
        %v4195 = vmax.f32 %v4163, 0.0
        %v4196 = vmax.f32 %v4164, 0.0
        %v4197 = vmax.f32 %v4165, 0.0
        %v4198 = vmax.f32 %v4166, 0.0
        %v4199 = vmax.f32 %v4167, 0.0
        %v4200 = vmax.f32 %v4168, 0.0
        %v4201 = vmax.f32 %v4169, 0.0
        %v4202 = vmax.f32 %v4170, 0.0
        %v4203 = vmax.f32 %v4171, 0.0
        %v4204 = vmax.f32 %v4172, 0.0
        %v4205 = vpack.c.bf16 %v4174, %v4173
        %v4206 = vpack.c.bf16 %v4176, %v4175
        %v4207 = vpack.c.bf16 %v4178, %v4177
        %v4208 = vpack.c.bf16 %v4180, %v4179
        %v4209 = vpack.c.bf16 %v4182, %v4181
        %v4210 = vpack.c.bf16 %v4184, %v4183
        %v4211 = vpack.c.bf16 %v4186, %v4185
        %v4212 = vpack.c.bf16 %v4188, %v4187
        %v4213 = vpack.c.bf16 %v4190, %v4189
        %v4214 = vpack.c.bf16 %v4192, %v4191
        %v4215 = vpack.c.bf16 %v4194, %v4193
        %v4216 = vpack.c.bf16 %v4196, %v4195
        %v4217 = vpack.c.bf16 %v4198, %v4197
        %v4218 = vpack.c.bf16 %v4200, %v4199
        %v4219 = vpack.c.bf16 %v4202, %v4201
        %v4220 = vpack.c.bf16 %v4204, %v4203
        %v4237 = vunpack.c.l.b16 %v4205
        %v4238 = vunpack.c.h.b16 %v4205
        %v4239 = vunpack.c.l.b16 %v4206
        %v4240 = vunpack.c.h.b16 %v4206
        %v4241 = vunpack.c.l.b16 %v4207
        %v4242 = vunpack.c.h.b16 %v4207
        %v4243 = vunpack.c.l.b16 %v4208
        %v4244 = vunpack.c.h.b16 %v4208
        %v4245 = vunpack.c.l.b16 %v4209
        %v4246 = vunpack.c.h.b16 %v4209
        %v4247 = vunpack.c.l.b16 %v4210
        %v4248 = vunpack.c.h.b16 %v4210
        %v4249 = vunpack.c.l.b16 %v4211
        %v4250 = vunpack.c.h.b16 %v4211
        %v4251 = vunpack.c.l.b16 %v4212
        %v4252 = vunpack.c.h.b16 %v4212
        %v4253 = vunpack.c.l.b16 %v4213
        %v4254 = vunpack.c.h.b16 %v4213
        %v4255 = vunpack.c.l.b16 %v4214
        %v4256 = vunpack.c.h.b16 %v4214
        %v4257 = vunpack.c.l.b16 %v4215
        %v4258 = vunpack.c.h.b16 %v4215
        %v4259 = vunpack.c.l.b16 %v4216
        %v4260 = vunpack.c.h.b16 %v4216
        %v4261 = vunpack.c.l.b16 %v4217
        %v4262 = vunpack.c.h.b16 %v4217
        %v4263 = vunpack.c.l.b16 %v4218
        %v4264 = vunpack.c.h.b16 %v4218
        %v4265 = vunpack.c.l.b16 %v4219
        %v4266 = vunpack.c.h.b16 %v4219
        %v4267 = vunpack.c.l.b16 %v4220
        %v4268 = vunpack.c.h.b16 %v4220
        %v4269 = vpack.c.b16 %v4237, %v4237
        %v4270 = vpack.c.b16 %v4238, %v4238
        %v4271 = vpack.c.b16 %v4239, %v4239
        %v4272 = vpack.c.b16 %v4240, %v4240
        %v4273 = vpack.c.b16 %v4241, %v4241
        %v4274 = vpack.c.b16 %v4242, %v4242
        %v4275 = vpack.c.b16 %v4243, %v4243
        %v4276 = vpack.c.b16 %v4244, %v4244
        %v4277 = vpack.c.b16 %v4245, %v4245
        %v4278 = vpack.c.b16 %v4246, %v4246
        %v4279 = vpack.c.b16 %v4247, %v4247
        %v4280 = vpack.c.b16 %v4248, %v4248
        %v4281 = vpack.c.b16 %v4249, %v4249
        %v4282 = vpack.c.b16 %v4250, %v4250
        %v4283 = vpack.c.b16 %v4251, %v4251
        %v4284 = vpack.c.b16 %v4252, %v4252
        %v4285 = vpack.c.b16 %v4253, %v4253
        %v4286 = vpack.c.b16 %v4254, %v4254
        %v4287 = vpack.c.b16 %v4255, %v4255
        %v4288 = vpack.c.b16 %v4256, %v4256
        %v4289 = vpack.c.b16 %v4257, %v4257
        %v4290 = vpack.c.b16 %v4258, %v4258
        %v4291 = vpack.c.b16 %v4259, %v4259
        %v4292 = vpack.c.b16 %v4260, %v4260
        %v4293 = vpack.c.b16 %v4261, %v4261
        %v4294 = vpack.c.b16 %v4262, %v4262
        %v4295 = vpack.c.b16 %v4263, %v4263
        %v4296 = vpack.c.b16 %v4264, %v4264
        %v4297 = vpack.c.b16 %v4265, %v4265
        %v4298 = vpack.c.b16 %v4266, %v4266
        %v4299 = vpack.c.b16 %v4267, %v4267
        %v4300 = vpack.c.b16 %v4268, %v4268
        %v4302 = vshrl.u32 %v4269, 16
        %v4304 = vrot.slane %v4302, 7
        %v4305 = vshll.u32 %v4269, 16
        %v4307 = vor.u32 %v4304, %v4305
        %v4308 = vrot.slane %v4304, 4
        %v4310 = vshrl.u32 %v4270, 16
        %v4312 = vrot.slane %v4310, 7
        %v4313 = vshll.u32 %v4270, 16
        %v4315 = vor.u32 %v4312, %v4313
        %v4316 = vsel %vm691, %v4308, %v4315
        %v4317 = vrot.slane %v4312, 4
        %v4319 = vshrl.u32 %v4271, 16
        %v4321 = vrot.slane %v4319, 7
        %v4322 = vshll.u32 %v4271, 16
        %v4324 = vor.u32 %v4321, %v4322
        %v4325 = vrot.slane %v4321, 4
        %v4327 = vshrl.u32 %v4272, 16
        %v4329 = vrot.slane %v4327, 7
        %v4330 = vshll.u32 %v4272, 16
        %v4332 = vor.u32 %v4329, %v4330
        %v4333 = vsel %vm691, %v4325, %v4332
        %v4334 = vrot.slane %v4329, 4
        %v4336 = vshrl.u32 %v4273, 16
        %v4338 = vrot.slane %v4336, 7
        %v4339 = vshll.u32 %v4273, 16
        %v4341 = vor.u32 %v4338, %v4339
        %v4342 = vrot.slane %v4338, 4
        %v4344 = vshrl.u32 %v4274, 16
        %v4346 = vrot.slane %v4344, 7
        %v4347 = vshll.u32 %v4274, 16
        %v4349 = vor.u32 %v4346, %v4347
        %v4350 = vsel %vm691, %v4342, %v4349
        %v4351 = vrot.slane %v4346, 4
        %v4353 = vshrl.u32 %v4275, 16
        %v4355 = vrot.slane %v4353, 7
        %v4356 = vshll.u32 %v4275, 16
        %v4358 = vor.u32 %v4355, %v4356
        %v4359 = vrot.slane %v4355, 4
        %v4361 = vshrl.u32 %v4276, 16
        %v4363 = vrot.slane %v4361, 7
        %v4364 = vshll.u32 %v4276, 16
        %v4366 = vor.u32 %v4363, %v4364
        %v4367 = vsel %vm691, %v4359, %v4366
        %v4368 = vrot.slane %v4363, 4
        %v4370 = vshrl.u32 %v4277, 16
        %v4372 = vrot.slane %v4370, 7
        %v4373 = vshll.u32 %v4277, 16
        %v4375 = vor.u32 %v4372, %v4373
        %v4376 = vrot.slane %v4372, 4
        %v4378 = vshrl.u32 %v4278, 16
        %v4380 = vrot.slane %v4378, 7
        %v4381 = vshll.u32 %v4278, 16
        %v4383 = vor.u32 %v4380, %v4381
        %v4384 = vsel %vm691, %v4376, %v4383
        %v4385 = vrot.slane %v4380, 4
        %v4387 = vshrl.u32 %v4279, 16
        %v4389 = vrot.slane %v4387, 7
        %v4390 = vshll.u32 %v4279, 16
        %v4392 = vor.u32 %v4389, %v4390
        %v4393 = vrot.slane %v4389, 4
        %v4395 = vshrl.u32 %v4280, 16
        %v4397 = vrot.slane %v4395, 7
        %v4398 = vshll.u32 %v4280, 16
        %v4400 = vor.u32 %v4397, %v4398
        %v4401 = vsel %vm691, %v4393, %v4400
        %v4402 = vrot.slane %v4397, 4
        %v4404 = vshrl.u32 %v4281, 16
        %v4406 = vrot.slane %v4404, 7
        %v4407 = vshll.u32 %v4281, 16
        %v4409 = vor.u32 %v4406, %v4407
        %v4410 = vrot.slane %v4406, 4
        %v4412 = vshrl.u32 %v4282, 16
        %v4414 = vrot.slane %v4412, 7
        %v4415 = vshll.u32 %v4282, 16
        %v4417 = vor.u32 %v4414, %v4415
        %v4418 = vsel %vm691, %v4410, %v4417
        %v4419 = vrot.slane %v4414, 4
        %v4421 = vshrl.u32 %v4283, 16
        %v4423 = vrot.slane %v4421, 7
        %v4424 = vshll.u32 %v4283, 16
        %v4426 = vor.u32 %v4423, %v4424
        %v4427 = vrot.slane %v4423, 4
        %v4429 = vshrl.u32 %v4284, 16
        %v4431 = vrot.slane %v4429, 7
        %v4432 = vshll.u32 %v4284, 16
        %v4434 = vor.u32 %v4431, %v4432
        %v4435 = vsel %vm691, %v4427, %v4434
        %v4436 = vrot.slane %v4431, 4
        %v4438 = vshrl.u32 %v4285, 16
        %v4440 = vrot.slane %v4438, 7
        %v4441 = vshll.u32 %v4285, 16
        %v4443 = vor.u32 %v4440, %v4441
        %v4444 = vrot.slane %v4440, 4
        %v4446 = vshrl.u32 %v4286, 16
        %v4448 = vrot.slane %v4446, 7
        %v4449 = vshll.u32 %v4286, 16
        %v4451 = vor.u32 %v4448, %v4449
        %v4452 = vsel %vm691, %v4444, %v4451
        %v4453 = vrot.slane %v4448, 4
        %v4455 = vshrl.u32 %v4287, 16
        %v4457 = vrot.slane %v4455, 7
        %v4458 = vshll.u32 %v4287, 16
        %v4460 = vor.u32 %v4457, %v4458
        %v4461 = vrot.slane %v4457, 4
        %v4463 = vshrl.u32 %v4288, 16
        %v4465 = vrot.slane %v4463, 7
        %v4466 = vshll.u32 %v4288, 16
        %v4468 = vor.u32 %v4465, %v4466
        %v4469 = vsel %vm691, %v4461, %v4468
        %v4470 = vrot.slane %v4465, 4
        %v4472 = vshrl.u32 %v4289, 16
        %v4474 = vrot.slane %v4472, 7
        %v4475 = vshll.u32 %v4289, 16
        %v4477 = vor.u32 %v4474, %v4475
        %v4478 = vrot.slane %v4474, 4
        %v4480 = vshrl.u32 %v4290, 16
        %v4482 = vrot.slane %v4480, 7
        %v4483 = vshll.u32 %v4290, 16
        %v4485 = vor.u32 %v4482, %v4483
        %v4486 = vsel %vm691, %v4478, %v4485
        %v4487 = vrot.slane %v4482, 4
        %v4489 = vshrl.u32 %v4291, 16
        %v4491 = vrot.slane %v4489, 7
        %v4492 = vshll.u32 %v4291, 16
        %v4494 = vor.u32 %v4491, %v4492
        %v4495 = vrot.slane %v4491, 4
        %v4497 = vshrl.u32 %v4292, 16
        %v4499 = vrot.slane %v4497, 7
        %v4500 = vshll.u32 %v4292, 16
        %v4502 = vor.u32 %v4499, %v4500
        %v4503 = vsel %vm691, %v4495, %v4502
        %v4504 = vrot.slane %v4499, 4
        %v4506 = vshrl.u32 %v4293, 16
        %v4508 = vrot.slane %v4506, 7
        %v4509 = vshll.u32 %v4293, 16
        %v4511 = vor.u32 %v4508, %v4509
        %v4512 = vrot.slane %v4508, 4
        %v4514 = vshrl.u32 %v4294, 16
        %v4516 = vrot.slane %v4514, 7
        %v4517 = vshll.u32 %v4294, 16
        %v4519 = vor.u32 %v4516, %v4517
        %v4520 = vsel %vm691, %v4512, %v4519
        %v4521 = vrot.slane %v4516, 4
        %v4523 = vshrl.u32 %v4295, 16
        %v4525 = vrot.slane %v4523, 7
        %v4526 = vshll.u32 %v4295, 16
        %v4528 = vor.u32 %v4525, %v4526
        %v4529 = vrot.slane %v4525, 4
        %v4531 = vshrl.u32 %v4296, 16
        %v4533 = vrot.slane %v4531, 7
        %v4534 = vshll.u32 %v4296, 16
        %v4536 = vor.u32 %v4533, %v4534
        %v4537 = vsel %vm691, %v4529, %v4536
        %v4538 = vrot.slane %v4533, 4
        %v4540 = vshrl.u32 %v4297, 16
        %v4542 = vrot.slane %v4540, 7
        %v4543 = vshll.u32 %v4297, 16
        %v4545 = vor.u32 %v4542, %v4543
        %v4546 = vrot.slane %v4542, 4
        %v4548 = vshrl.u32 %v4298, 16
        %v4550 = vrot.slane %v4548, 7
        %v4551 = vshll.u32 %v4298, 16
        %v4553 = vor.u32 %v4550, %v4551
        %v4554 = vsel %vm691, %v4546, %v4553
        %v4555 = vrot.slane %v4550, 4
        %v4557 = vshrl.u32 %v4299, 16
        %v4559 = vrot.slane %v4557, 7
        %v4560 = vshll.u32 %v4299, 16
        %v4562 = vor.u32 %v4559, %v4560
        %v4563 = vrot.slane %v4559, 4
        %v4565 = vshrl.u32 %v4300, 16
        %v4567 = vrot.slane %v4565, 7
        %v4568 = vshll.u32 %v4300, 16
        %v4570 = vor.u32 %v4567, %v4568
        %v4571 = vsel %vm691, %v4563, %v4570
        %v4572 = vrot.slane %v4567, 4
        %s4621 = scalar_lea.vmem [#allocation3], 12
        %v4622 = vld [vmem:[%s4621] sm:$0xf]
        %v4623 = vsel %vm1014, %v4307, %v4622
        %4624 = vst [vmem:[%s4621] sm:$0xf] %v4623
        %4625 = vst [vmem:[%s4621 + $0x4] sm:$0xf] %v4316
        %v4626 = vld [vmem:[%s4621 + $0x8] sm:$0x1]
        %v4627 = vsel %vm336, %v4317, %v4626
        %4628 = vst [vmem:[%s4621 + $0x8] sm:$0x1] %v4627
        %v4629 = vld [vmem:[%s4621 + $0xc] sm:$0xf]
        %v4630 = vsel %vm1014, %v4324, %v4629
        %4631 = vst [vmem:[%s4621 + $0xc] sm:$0xf] %v4630
        %4632 = vst [vmem:[%s4621 + $0x10] sm:$0xf] %v4333
        %v4633 = vld [vmem:[%s4621 + $0x14] sm:$0x1]
        %v4634 = vsel %vm336, %v4334, %v4633
        %4635 = vst [vmem:[%s4621 + $0x14] sm:$0x1] %v4634
        %v4636 = vld [vmem:[%s4621 + $0x18] sm:$0xf]
        %v4637 = vsel %vm1014, %v4341, %v4636
        %4638 = vst [vmem:[%s4621 + $0x18] sm:$0xf] %v4637
        %4639 = vst [vmem:[%s4621 + $0x1c] sm:$0xf] %v4350
        %v4640 = vld [vmem:[%s4621 + $0x20] sm:$0x1]
        %v4641 = vsel %vm336, %v4351, %v4640
        %4642 = vst [vmem:[%s4621 + $0x20] sm:$0x1] %v4641
        %v4643 = vld [vmem:[%s4621 + $0x24] sm:$0xf]
        %v4644 = vsel %vm1014, %v4358, %v4643
        %4645 = vst [vmem:[%s4621 + $0x24] sm:$0xf] %v4644
        %4646 = vst [vmem:[%s4621 + $0x28] sm:$0xf] %v4367
        %v4647 = vld [vmem:[%s4621 + $0x2c] sm:$0x1]
        %v4648 = vsel %vm336, %v4368, %v4647
        %4649 = vst [vmem:[%s4621 + $0x2c] sm:$0x1] %v4648
        %v4650 = vld [vmem:[%s4621 + $0x30] sm:$0xf]
        %v4651 = vsel %vm1014, %v4375, %v4650
        %4652 = vst [vmem:[%s4621 + $0x30] sm:$0xf] %v4651
        %4653 = vst [vmem:[%s4621 + $0x34] sm:$0xf] %v4384
        %v4654 = vld [vmem:[%s4621 + $0x38] sm:$0x1]
        %v4655 = vsel %vm336, %v4385, %v4654
        %4656 = vst [vmem:[%s4621 + $0x38] sm:$0x1] %v4655
        %v4657 = vld [vmem:[%s4621 + $0x3c] sm:$0xf]
        %v4658 = vsel %vm1014, %v4392, %v4657
        %4659 = vst [vmem:[%s4621 + $0x3c] sm:$0xf] %v4658
        %4660 = vst [vmem:[%s4621 + $0x40] sm:$0xf] %v4401
        %v4661 = vld [vmem:[%s4621 + $0x44] sm:$0x1]
        %v4662 = vsel %vm336, %v4402, %v4661
        %4663 = vst [vmem:[%s4621 + $0x44] sm:$0x1] %v4662
        %v4664 = vld [vmem:[%s4621 + $0x48] sm:$0xf]
        %v4665 = vsel %vm1014, %v4409, %v4664
        %4666 = vst [vmem:[%s4621 + $0x48] sm:$0xf] %v4665
        %4667 = vst [vmem:[%s4621 + $0x4c] sm:$0xf] %v4418
        %v4668 = vld [vmem:[%s4621 + $0x50] sm:$0x1]
        %v4669 = vsel %vm336, %v4419, %v4668
        %4670 = vst [vmem:[%s4621 + $0x50] sm:$0x1] %v4669
        %v4671 = vld [vmem:[%s4621 + $0x54] sm:$0xf]
        %v4672 = vsel %vm1014, %v4426, %v4671
        %4673 = vst [vmem:[%s4621 + $0x54] sm:$0xf] %v4672
        %4674 = vst [vmem:[%s4621 + $0x58] sm:$0xf] %v4435
        %v4675 = vld [vmem:[%s4621 + $0x5c] sm:$0x1]
        %v4676 = vsel %vm336, %v4436, %v4675
        %4677 = vst [vmem:[%s4621 + $0x5c] sm:$0x1] %v4676
        %v4678 = vld [vmem:[%s4621 + $0x60] sm:$0xf]
        %v4679 = vsel %vm1014, %v4443, %v4678
        %4680 = vst [vmem:[%s4621 + $0x60] sm:$0xf] %v4679
        %4681 = vst [vmem:[%s4621 + $0x64] sm:$0xf] %v4452
        %v4682 = vld [vmem:[%s4621 + $0x68] sm:$0x1]
        %v4683 = vsel %vm336, %v4453, %v4682
        %4684 = vst [vmem:[%s4621 + $0x68] sm:$0x1] %v4683
        %v4685 = vld [vmem:[%s4621 + $0x6c] sm:$0xf]
        %v4686 = vsel %vm1014, %v4460, %v4685
        %4687 = vst [vmem:[%s4621 + $0x6c] sm:$0xf] %v4686
        %4688 = vst [vmem:[%s4621 + $0x70] sm:$0xf] %v4469
        %v4689 = vld [vmem:[%s4621 + $0x74] sm:$0x1]
        %v4690 = vsel %vm336, %v4470, %v4689
        %4691 = vst [vmem:[%s4621 + $0x74] sm:$0x1] %v4690
        %v4692 = vld [vmem:[%s4621 + $0x78] sm:$0xf]
        %v4693 = vsel %vm1014, %v4477, %v4692
        %4694 = vst [vmem:[%s4621 + $0x78] sm:$0xf] %v4693
        %4695 = vst [vmem:[%s4621 + $0x7c] sm:$0xf] %v4486
        %v4696 = vld [vmem:[%s4621 + $0x80] sm:$0x1]
        %v4697 = vsel %vm336, %v4487, %v4696
        %4698 = vst [vmem:[%s4621 + $0x80] sm:$0x1] %v4697
        %v4699 = vld [vmem:[%s4621 + $0x84] sm:$0xf]
        %v4700 = vsel %vm1014, %v4494, %v4699
        %4701 = vst [vmem:[%s4621 + $0x84] sm:$0xf] %v4700
        %4702 = vst [vmem:[%s4621 + $0x88] sm:$0xf] %v4503
        %v4703 = vld [vmem:[%s4621 + $0x8c] sm:$0x1]
        %v4704 = vsel %vm336, %v4504, %v4703
        %4705 = vst [vmem:[%s4621 + $0x8c] sm:$0x1] %v4704
        %v4706 = vld [vmem:[%s4621 + $0x90] sm:$0xf]
        %v4707 = vsel %vm1014, %v4511, %v4706
        %4708 = vst [vmem:[%s4621 + $0x90] sm:$0xf] %v4707
        %4709 = vst [vmem:[%s4621 + $0x94] sm:$0xf] %v4520
        %v4710 = vld [vmem:[%s4621 + $0x98] sm:$0x1]
        %v4711 = vsel %vm336, %v4521, %v4710
        %4712 = vst [vmem:[%s4621 + $0x98] sm:$0x1] %v4711
        %v4713 = vld [vmem:[%s4621 + $0x9c] sm:$0xf]
        %v4714 = vsel %vm1014, %v4528, %v4713
        %4715 = vst [vmem:[%s4621 + $0x9c] sm:$0xf] %v4714
        %4716 = vst [vmem:[%s4621 + $0xa0] sm:$0xf] %v4537
        %v4717 = vld [vmem:[%s4621 + $0xa4] sm:$0x1]
        %v4718 = vsel %vm336, %v4538, %v4717
        %4719 = vst [vmem:[%s4621 + $0xa4] sm:$0x1] %v4718
        %v4720 = vld [vmem:[%s4621 + $0xa8] sm:$0xf]
        %v4721 = vsel %vm1014, %v4545, %v4720
        %4722 = vst [vmem:[%s4621 + $0xa8] sm:$0xf] %v4721
        %4723 = vst [vmem:[%s4621 + $0xac] sm:$0xf] %v4554
        %v4724 = vld [vmem:[%s4621 + $0xb0] sm:$0x1]
        %v4725 = vsel %vm336, %v4555, %v4724
        %4726 = vst [vmem:[%s4621 + $0xb0] sm:$0x1] %v4725
        %v4727 = vld [vmem:[%s4621 + $0xb4] sm:$0xf]
        %v4728 = vsel %vm1014, %v4562, %v4727
        %4729 = vst [vmem:[%s4621 + $0xb4] sm:$0xf] %v4728
        %4730 = vst [vmem:[%s4621 + $0xb8] sm:$0xf] %v4571
        %v4731 = vld [vmem:[%s4621 + $0xbc] sm:$0x1]
        %v4732 = vsel %vm336, %v4572, %v4731
        %4733 = vst [vmem:[%s4621 + $0xbc] sm:$0x1] %v4732
        %v4734 = vld [vmem:[#allocation3] sm:$0xf]
        %v4735 = vld [vmem:[#allocation3 + $0x4] sm:$0xf]
        %v4736 = vld [vmem:[#allocation3 + $0xc] sm:$0xf]
        %v4737 = vld [vmem:[#allocation3 + $0x10] sm:$0xf]
        %v4738 = vld [vmem:[#allocation3 + $0x18] sm:$0xf]
        %v4739 = vld [vmem:[#allocation3 + $0x1c] sm:$0xf]
        %v4740 = vld [vmem:[#allocation3 + $0x24] sm:$0xf]
        %v4741 = vld [vmem:[#allocation3 + $0x28] sm:$0xf]
        %v4742 = vld [vmem:[#allocation3 + $0x30] sm:$0xf]
        %v4743 = vld [vmem:[#allocation3 + $0x34] sm:$0xf]
        %v4744 = vld [vmem:[#allocation3 + $0x3c] sm:$0xf]
        %v4745 = vld [vmem:[#allocation3 + $0x40] sm:$0xf]
        %v4746 = vld [vmem:[#allocation3 + $0x48] sm:$0xf]
        %v4747 = vld [vmem:[#allocation3 + $0x4c] sm:$0xf]
        %v4748 = vld [vmem:[#allocation3 + $0x54] sm:$0xf]
        %v4749 = vld [vmem:[#allocation3 + $0x58] sm:$0xf]
        %v4750 = vld [vmem:[#allocation3 + $0x60] sm:$0xf]
        %v4751 = vld [vmem:[#allocation3 + $0x64] sm:$0xf]
        %v4752 = vld [vmem:[#allocation3 + $0x6c] sm:$0xf]
        %v4753 = vld [vmem:[#allocation3 + $0x70] sm:$0xf]
        %v4754 = vld [vmem:[#allocation3 + $0x78] sm:$0xf]
        %v4755 = vld [vmem:[#allocation3 + $0x7c] sm:$0xf]
        %v4756 = vld [vmem:[#allocation3 + $0x84] sm:$0xf]
        %v4757 = vld [vmem:[#allocation3 + $0x88] sm:$0xf]
        %v4758 = vld [vmem:[#allocation3 + $0x90] sm:$0xf]
        %v4759 = vld [vmem:[#allocation3 + $0x94] sm:$0xf]
        %v4760 = vld [vmem:[#allocation3 + $0x9c] sm:$0xf]
        %v4761 = vld [vmem:[#allocation3 + $0xa0] sm:$0xf]
        %v4762 = vld [vmem:[#allocation3 + $0xa8] sm:$0xf]
        %v4763 = vld [vmem:[#allocation3 + $0xac] sm:$0xf]
        %v4764 = vld [vmem:[#allocation3 + $0xb4] sm:$0xf]
        %v4765 = vld [vmem:[#allocation3 + $0xb8] sm:$0xf]
        %v4766 = vld [vmem:[#allocation3 + $0x8] sm:$0x1]
        %v4767 = vld [vmem:[#allocation3 + $0x14] sm:$0x1]
        %v4768 = vld [vmem:[#allocation3 + $0x20] sm:$0x1]
        %v4769 = vld [vmem:[#allocation3 + $0x2c] sm:$0x1]
        %v4770 = vld [vmem:[#allocation3 + $0x38] sm:$0x1]
        %v4771 = vld [vmem:[#allocation3 + $0x44] sm:$0x1]
        %v4772 = vld [vmem:[#allocation3 + $0x50] sm:$0x1]
        %v4773 = vld [vmem:[#allocation3 + $0x5c] sm:$0x1]
        %v4774 = vld [vmem:[#allocation3 + $0x68] sm:$0x1]
        %v4775 = vld [vmem:[#allocation3 + $0x74] sm:$0x1]
        %v4776 = vld [vmem:[#allocation3 + $0x80] sm:$0x1]
        %v4777 = vld [vmem:[#allocation3 + $0x8c] sm:$0x1]
        %v4778 = vld [vmem:[#allocation3 + $0x98] sm:$0x1]
        %v4779 = vld [vmem:[#allocation3 + $0xa4] sm:$0x1]
        %v4780 = vld [vmem:[#allocation3 + $0xb0] sm:$0x1]
        %v4781 = vld [vmem:[#allocation3 + $0xbc] sm:$0x1]
        %v4782 = vld [vmem:[#allocation3] sm:$0xe]
        %v4783 = vld [vmem:[#allocation3 + $0xc] sm:$0xe]
        %v4784 = vld [vmem:[#allocation3 + $0x18] sm:$0xe]
        %v4785 = vld [vmem:[#allocation3 + $0x24] sm:$0xe]
        %v4786 = vld [vmem:[#allocation3 + $0x30] sm:$0xe]
        %v4787 = vld [vmem:[#allocation3 + $0x3c] sm:$0xe]
        %v4788 = vld [vmem:[#allocation3 + $0x48] sm:$0xe]
        %v4789 = vld [vmem:[#allocation3 + $0x54] sm:$0xe]
        %v4790 = vld [vmem:[#allocation3 + $0x60] sm:$0xe]
        %v4791 = vld [vmem:[#allocation3 + $0x6c] sm:$0xe]
        %v4792 = vld [vmem:[#allocation3 + $0x78] sm:$0xe]
        %v4793 = vld [vmem:[#allocation3 + $0x84] sm:$0xe]
        %v4794 = vld [vmem:[#allocation3 + $0x90] sm:$0xe]
        %v4795 = vld [vmem:[#allocation3 + $0x9c] sm:$0xe]
        %v4796 = vld [vmem:[#allocation3 + $0xa8] sm:$0xe]
        %v4797 = vld [vmem:[#allocation3 + $0xb4] sm:$0xe]
        %v4798 = vld [vmem:[%s4621] sm:$0xf]
        %v4799 = vld [vmem:[%s4621 + $0x4] sm:$0xf]
        %v4800 = vld [vmem:[%s4621 + $0xc] sm:$0xf]
        %v4801 = vld [vmem:[%s4621 + $0x10] sm:$0xf]
        %v4802 = vld [vmem:[%s4621 + $0x18] sm:$0xf]
        %v4803 = vld [vmem:[%s4621 + $0x1c] sm:$0xf]
        %v4804 = vld [vmem:[%s4621 + $0x24] sm:$0xf]
        %v4805 = vld [vmem:[%s4621 + $0x28] sm:$0xf]
        %v4806 = vld [vmem:[%s4621 + $0x30] sm:$0xf]
        %v4807 = vld [vmem:[%s4621 + $0x34] sm:$0xf]
        %v4808 = vld [vmem:[%s4621 + $0x3c] sm:$0xf]
        %v4809 = vld [vmem:[%s4621 + $0x40] sm:$0xf]
        %v4810 = vld [vmem:[%s4621 + $0x48] sm:$0xf]
        %v4811 = vld [vmem:[%s4621 + $0x4c] sm:$0xf]
        %v4812 = vld [vmem:[%s4621 + $0x54] sm:$0xf]
        %v4813 = vld [vmem:[%s4621 + $0x58] sm:$0xf]
        %v4814 = vld [vmem:[%s4621 + $0x60] sm:$0xf]
        %v4815 = vld [vmem:[%s4621 + $0x64] sm:$0xf]
        %v4816 = vld [vmem:[%s4621 + $0x6c] sm:$0xf]
        %v4817 = vld [vmem:[%s4621 + $0x70] sm:$0xf]
        %v4818 = vld [vmem:[%s4621 + $0x78] sm:$0xf]
        %v4819 = vld [vmem:[%s4621 + $0x7c] sm:$0xf]
        %v4820 = vld [vmem:[%s4621 + $0x84] sm:$0xf]
        %v4821 = vld [vmem:[%s4621 + $0x88] sm:$0xf]
        %v4822 = vld [vmem:[%s4621 + $0x90] sm:$0xf]
        %v4823 = vld [vmem:[%s4621 + $0x94] sm:$0xf]
        %v4824 = vld [vmem:[%s4621 + $0x9c] sm:$0xf]
        %v4825 = vld [vmem:[%s4621 + $0xa0] sm:$0xf]
        %v4826 = vld [vmem:[%s4621 + $0xa8] sm:$0xf]
        %v4827 = vld [vmem:[%s4621 + $0xac] sm:$0xf]
        %v4828 = vld [vmem:[%s4621 + $0xb4] sm:$0xf]
        %v4829 = vld [vmem:[%s4621 + $0xb8] sm:$0xf]
        %v4830 = vld [vmem:[%s4621 + $0x8] sm:$0x1]
        %v4831 = vld [vmem:[%s4621 + $0x14] sm:$0x1]
        %v4832 = vld [vmem:[%s4621 + $0x20] sm:$0x1]
        %v4833 = vld [vmem:[%s4621 + $0x2c] sm:$0x1]
        %v4834 = vld [vmem:[%s4621 + $0x38] sm:$0x1]
        %v4835 = vld [vmem:[%s4621 + $0x44] sm:$0x1]
        %v4836 = vld [vmem:[%s4621 + $0x50] sm:$0x1]
        %v4837 = vld [vmem:[%s4621 + $0x5c] sm:$0x1]
        %v4838 = vld [vmem:[%s4621 + $0x68] sm:$0x1]
        %v4839 = vld [vmem:[%s4621 + $0x74] sm:$0x1]
        %v4840 = vld [vmem:[%s4621 + $0x80] sm:$0x1]
        %v4841 = vld [vmem:[%s4621 + $0x8c] sm:$0x1]
        %v4842 = vld [vmem:[%s4621 + $0x98] sm:$0x1]
        %v4843 = vld [vmem:[%s4621 + $0xa4] sm:$0x1]
        %v4844 = vld [vmem:[%s4621 + $0xb0] sm:$0x1]
        %v4845 = vld [vmem:[%s4621 + $0xbc] sm:$0x1]
        %v4846 = vld [vmem:[%s4621] sm:$0xe]
        %v4847 = vld [vmem:[%s4621 + $0xc] sm:$0xe]
        %v4848 = vld [vmem:[%s4621 + $0x18] sm:$0xe]
        %v4849 = vld [vmem:[%s4621 + $0x24] sm:$0xe]
        %v4850 = vld [vmem:[%s4621 + $0x30] sm:$0xe]
        %v4851 = vld [vmem:[%s4621 + $0x3c] sm:$0xe]
        %v4852 = vld [vmem:[%s4621 + $0x48] sm:$0xe]
        %v4853 = vld [vmem:[%s4621 + $0x54] sm:$0xe]
        %v4854 = vld [vmem:[%s4621 + $0x60] sm:$0xe]
        %v4855 = vld [vmem:[%s4621 + $0x6c] sm:$0xe]
        %v4856 = vld [vmem:[%s4621 + $0x78] sm:$0xe]
        %v4857 = vld [vmem:[%s4621 + $0x84] sm:$0xe]
        %v4858 = vld [vmem:[%s4621 + $0x90] sm:$0xe]
        %v4859 = vld [vmem:[%s4621 + $0x9c] sm:$0xe]
        %v4860 = vld [vmem:[%s4621 + $0xa8] sm:$0xe]
        %v4861 = vld [vmem:[%s4621 + $0xb4] sm:$0xe]
        %s4862 = scalar_lea.vmem [#allocation3], 24
        %v4863 = vld [vmem:[%s4862] sm:$0xf]
        %v4864 = vld [vmem:[%s4862 + $0x4] sm:$0xf]
        %v4865 = vld [vmem:[%s4862 + $0xc] sm:$0xf]
        %v4866 = vld [vmem:[%s4862 + $0x10] sm:$0xf]
        %v4867 = vld [vmem:[%s4862 + $0x18] sm:$0xf]
        %v4868 = vld [vmem:[%s4862 + $0x1c] sm:$0xf]
        %v4869 = vld [vmem:[%s4862 + $0x24] sm:$0xf]
        %v4870 = vld [vmem:[%s4862 + $0x28] sm:$0xf]
        %v4871 = vld [vmem:[%s4862 + $0x30] sm:$0xf]
        %v4872 = vld [vmem:[%s4862 + $0x34] sm:$0xf]
        %v4873 = vld [vmem:[%s4862 + $0x3c] sm:$0xf]
        %v4874 = vld [vmem:[%s4862 + $0x40] sm:$0xf]
        %v4875 = vld [vmem:[%s4862 + $0x48] sm:$0xf]
        %v4876 = vld [vmem:[%s4862 + $0x4c] sm:$0xf]
        %v4877 = vld [vmem:[%s4862 + $0x54] sm:$0xf]
        %v4878 = vld [vmem:[%s4862 + $0x58] sm:$0xf]
        %v4879 = vld [vmem:[%s4862 + $0x60] sm:$0xf]
        %v4880 = vld [vmem:[%s4862 + $0x64] sm:$0xf]
        %v4881 = vld [vmem:[%s4862 + $0x6c] sm:$0xf]
        %v4882 = vld [vmem:[%s4862 + $0x70] sm:$0xf]
        %v4883 = vld [vmem:[%s4862 + $0x78] sm:$0xf]
        %v4884 = vld [vmem:[%s4862 + $0x7c] sm:$0xf]
        %v4885 = vld [vmem:[%s4862 + $0x84] sm:$0xf]
        %v4886 = vld [vmem:[%s4862 + $0x88] sm:$0xf]
        %v4887 = vld [vmem:[%s4862 + $0x90] sm:$0xf]
        %v4888 = vld [vmem:[%s4862 + $0x94] sm:$0xf]
        %v4889 = vld [vmem:[%s4862 + $0x9c] sm:$0xf]
        %v4890 = vld [vmem:[%s4862 + $0xa0] sm:$0xf]
        %v4891 = vld [vmem:[%s4862 + $0xa8] sm:$0xf]
        %v4892 = vld [vmem:[%s4862 + $0xac] sm:$0xf]
        %v4893 = vld [vmem:[%s4862 + $0xb4] sm:$0xf]
        %v4894 = vld [vmem:[%s4862 + $0xb8] sm:$0xf]
        %v4895 = vld [vmem:[%s4862 + $0x8] sm:$0x1]
        %v4896 = vld [vmem:[%s4862 + $0x14] sm:$0x1]
        %v4897 = vld [vmem:[%s4862 + $0x20] sm:$0x1]
        %v4898 = vld [vmem:[%s4862 + $0x2c] sm:$0x1]
        %v4899 = vld [vmem:[%s4862 + $0x38] sm:$0x1]
        %v4900 = vld [vmem:[%s4862 + $0x44] sm:$0x1]
        %v4901 = vld [vmem:[%s4862 + $0x50] sm:$0x1]
        %v4902 = vld [vmem:[%s4862 + $0x5c] sm:$0x1]
        %v4903 = vld [vmem:[%s4862 + $0x68] sm:$0x1]
        %v4904 = vld [vmem:[%s4862 + $0x74] sm:$0x1]
        %v4905 = vld [vmem:[%s4862 + $0x80] sm:$0x1]
        %v4906 = vld [vmem:[%s4862 + $0x8c] sm:$0x1]
        %v4907 = vld [vmem:[%s4862 + $0x98] sm:$0x1]
        %v4908 = vld [vmem:[%s4862 + $0xa4] sm:$0x1]
        %v4909 = vld [vmem:[%s4862 + $0xb0] sm:$0x1]
        %v4910 = vld [vmem:[%s4862 + $0xbc] sm:$0x1]
        %v4911 = vld [vmem:[%s4862] sm:$0xe]
        %v4912 = vld [vmem:[%s4862 + $0xc] sm:$0xe]
        %v4913 = vld [vmem:[%s4862 + $0x18] sm:$0xe]
        %v4914 = vld [vmem:[%s4862 + $0x24] sm:$0xe]
        %v4915 = vld [vmem:[%s4862 + $0x30] sm:$0xe]
        %v4916 = vld [vmem:[%s4862 + $0x3c] sm:$0xe]
        %v4917 = vld [vmem:[%s4862 + $0x48] sm:$0xe]
        %v4918 = vld [vmem:[%s4862 + $0x54] sm:$0xe]
        %v4919 = vld [vmem:[%s4862 + $0x60] sm:$0xe]
        %v4920 = vld [vmem:[%s4862 + $0x6c] sm:$0xe]
        %v4921 = vld [vmem:[%s4862 + $0x78] sm:$0xe]
        %v4922 = vld [vmem:[%s4862 + $0x84] sm:$0xe]
        %v4923 = vld [vmem:[%s4862 + $0x90] sm:$0xe]
        %v4924 = vld [vmem:[%s4862 + $0x9c] sm:$0xe]
        %v4925 = vld [vmem:[%s4862 + $0xa8] sm:$0xe]
        %v4926 = vld [vmem:[%s4862 + $0xb4] sm:$0xe]
        %v4959 = vunpack.c.l.b16 %v4734
        %v4960 = vunpack.c.l.b16 %v4735
        %v4961 = vunpack.c.l.b16 %v4736
        %v4962 = vunpack.c.l.b16 %v4737
        %v4963 = vunpack.c.l.b16 %v4738
        %v4964 = vunpack.c.l.b16 %v4739
        %v4965 = vunpack.c.l.b16 %v4740
        %v4966 = vunpack.c.l.b16 %v4741
        %v4967 = vunpack.c.l.b16 %v4742
        %v4968 = vunpack.c.l.b16 %v4743
        %v4969 = vunpack.c.l.b16 %v4744
        %v4970 = vunpack.c.l.b16 %v4745
        %v4971 = vunpack.c.l.b16 %v4746
        %v4972 = vunpack.c.l.b16 %v4747
        %v4973 = vunpack.c.l.b16 %v4748
        %v4974 = vunpack.c.l.b16 %v4749
        %v4975 = vunpack.c.l.b16 %v4750
        %v4976 = vunpack.c.l.b16 %v4751
        %v4977 = vunpack.c.l.b16 %v4752
        %v4978 = vunpack.c.l.b16 %v4753
        %v4979 = vunpack.c.l.b16 %v4754
        %v4980 = vunpack.c.l.b16 %v4755
        %v4981 = vunpack.c.l.b16 %v4756
        %v4982 = vunpack.c.l.b16 %v4757
        %v4983 = vunpack.c.l.b16 %v4758
        %v4984 = vunpack.c.l.b16 %v4759
        %v4985 = vunpack.c.l.b16 %v4760
        %v4986 = vunpack.c.l.b16 %v4761
        %v4987 = vunpack.c.l.b16 %v4762
        %v4988 = vunpack.c.l.b16 %v4763
        %v4989 = vunpack.c.l.b16 %v4764
        %v4990 = vunpack.c.l.b16 %v4765
        %v4991 = vpack.c.b16 %v4960, %v4959
        %v4992 = vpack.c.b16 %v4962, %v4961
        %v4993 = vpack.c.b16 %v4964, %v4963
        %v4994 = vpack.c.b16 %v4966, %v4965
        %v4995 = vpack.c.b16 %v4968, %v4967
        %v4996 = vpack.c.b16 %v4970, %v4969
        %v4997 = vpack.c.b16 %v4972, %v4971
        %v4998 = vpack.c.b16 %v4974, %v4973
        %v4999 = vpack.c.b16 %v4976, %v4975
        %v5000 = vpack.c.b16 %v4978, %v4977
        %v5001 = vpack.c.b16 %v4980, %v4979
        %v5002 = vpack.c.b16 %v4982, %v4981
        %v5003 = vpack.c.b16 %v4984, %v4983
        %v5004 = vpack.c.b16 %v4986, %v4985
        %v5005 = vpack.c.b16 %v4988, %v4987
        %v5006 = vpack.c.b16 %v4990, %v4989
        %v5039 = vunpack.c.l.b16 %v4766
        %v5040 = vunpack.c.l.b16 %v4767
        %v5041 = vunpack.c.l.b16 %v4768
        %v5042 = vunpack.c.l.b16 %v4769
        %v5043 = vunpack.c.l.b16 %v4770
        %v5044 = vunpack.c.l.b16 %v4771
        %v5045 = vunpack.c.l.b16 %v4772
        %v5046 = vunpack.c.l.b16 %v4773
        %v5047 = vunpack.c.l.b16 %v4774
        %v5048 = vunpack.c.l.b16 %v4775
        %v5049 = vunpack.c.l.b16 %v4776
        %v5050 = vunpack.c.l.b16 %v4777
        %v5051 = vunpack.c.l.b16 %v4778
        %v5052 = vunpack.c.l.b16 %v4779
        %v5053 = vunpack.c.l.b16 %v4780
        %v5054 = vunpack.c.l.b16 %v4781
        %v5055 = vpack.c.b16 %v5039, %v5039
        %v5056 = vpack.c.b16 %v5040, %v5040
        %v5057 = vpack.c.b16 %v5041, %v5041
        %v5058 = vpack.c.b16 %v5042, %v5042
        %v5059 = vpack.c.b16 %v5043, %v5043
        %v5060 = vpack.c.b16 %v5044, %v5044
        %v5061 = vpack.c.b16 %v5045, %v5045
        %v5062 = vpack.c.b16 %v5046, %v5046
        %v5063 = vpack.c.b16 %v5047, %v5047
        %v5064 = vpack.c.b16 %v5048, %v5048
        %v5065 = vpack.c.b16 %v5049, %v5049
        %v5066 = vpack.c.b16 %v5050, %v5050
        %v5067 = vpack.c.b16 %v5051, %v5051
        %v5068 = vpack.c.b16 %v5052, %v5052
        %v5069 = vpack.c.b16 %v5053, %v5053
        %v5070 = vpack.c.b16 %v5054, %v5054
        %v5072 = vshrl.u32 %v4991, 16
        %v5074 = vshll.u32 %v4991, 16
        %v5076 = vrot.slane %v5074, 1
        %v5077 = vor.u32 %v5072, %v5076
        %v5079 = vshll.u32 %v5055, 16
        %v5081 = vrot.slane %v5079, 1
        %v5082 = vsel %vm1464, %v5077, %v5081
        %v5084 = vshrl.u32 %v4992, 16
        %v5086 = vshll.u32 %v4992, 16
        %v5088 = vrot.slane %v5086, 1
        %v5089 = vor.u32 %v5084, %v5088
        %v5091 = vshll.u32 %v5056, 16
        %v5093 = vrot.slane %v5091, 1
        %v5094 = vsel %vm1464, %v5089, %v5093
        %v5096 = vshrl.u32 %v4993, 16
        %v5098 = vshll.u32 %v4993, 16
        %v5100 = vrot.slane %v5098, 1
        %v5101 = vor.u32 %v5096, %v5100
        %v5103 = vshll.u32 %v5057, 16
        %v5105 = vrot.slane %v5103, 1
        %v5106 = vsel %vm1464, %v5101, %v5105
        %v5108 = vshrl.u32 %v4994, 16
        %v5110 = vshll.u32 %v4994, 16
        %v5112 = vrot.slane %v5110, 1
        %v5113 = vor.u32 %v5108, %v5112
        %v5115 = vshll.u32 %v5058, 16
        %v5117 = vrot.slane %v5115, 1
        %v5118 = vsel %vm1464, %v5113, %v5117
        %v5120 = vshrl.u32 %v4995, 16
        %v5122 = vshll.u32 %v4995, 16
        %v5124 = vrot.slane %v5122, 1
        %v5125 = vor.u32 %v5120, %v5124
        %v5127 = vshll.u32 %v5059, 16
        %v5129 = vrot.slane %v5127, 1
        %v5130 = vsel %vm1464, %v5125, %v5129
        %v5132 = vshrl.u32 %v4996, 16
        %v5134 = vshll.u32 %v4996, 16
        %v5136 = vrot.slane %v5134, 1
        %v5137 = vor.u32 %v5132, %v5136
        %v5139 = vshll.u32 %v5060, 16
        %v5141 = vrot.slane %v5139, 1
        %v5142 = vsel %vm1464, %v5137, %v5141
        %v5144 = vshrl.u32 %v4997, 16
        %v5146 = vshll.u32 %v4997, 16
        %v5148 = vrot.slane %v5146, 1
        %v5149 = vor.u32 %v5144, %v5148
        %v5151 = vshll.u32 %v5061, 16
        %v5153 = vrot.slane %v5151, 1
        %v5154 = vsel %vm1464, %v5149, %v5153
        %v5156 = vshrl.u32 %v4998, 16
        %v5158 = vshll.u32 %v4998, 16
        %v5160 = vrot.slane %v5158, 1
        %v5161 = vor.u32 %v5156, %v5160
        %v5163 = vshll.u32 %v5062, 16
        %v5165 = vrot.slane %v5163, 1
        %v5166 = vsel %vm1464, %v5161, %v5165
        %v5168 = vshrl.u32 %v4999, 16
        %v5170 = vshll.u32 %v4999, 16
        %v5172 = vrot.slane %v5170, 1
        %v5173 = vor.u32 %v5168, %v5172
        %v5175 = vshll.u32 %v5063, 16
        %v5177 = vrot.slane %v5175, 1
        %v5178 = vsel %vm1464, %v5173, %v5177
        %v5180 = vshrl.u32 %v5000, 16
        %v5182 = vshll.u32 %v5000, 16
        %v5184 = vrot.slane %v5182, 1
        %v5185 = vor.u32 %v5180, %v5184
        %v5187 = vshll.u32 %v5064, 16
        %v5189 = vrot.slane %v5187, 1
        %v5190 = vsel %vm1464, %v5185, %v5189
        %v5192 = vshrl.u32 %v5001, 16
        %v5194 = vshll.u32 %v5001, 16
        %v5196 = vrot.slane %v5194, 1
        %v5197 = vor.u32 %v5192, %v5196
        %v5199 = vshll.u32 %v5065, 16
        %v5201 = vrot.slane %v5199, 1
        %v5202 = vsel %vm1464, %v5197, %v5201
        %v5204 = vshrl.u32 %v5002, 16
        %v5206 = vshll.u32 %v5002, 16
        %v5208 = vrot.slane %v5206, 1
        %v5209 = vor.u32 %v5204, %v5208
        %v5211 = vshll.u32 %v5066, 16
        %v5213 = vrot.slane %v5211, 1
        %v5214 = vsel %vm1464, %v5209, %v5213
        %v5216 = vshrl.u32 %v5003, 16
        %v5218 = vshll.u32 %v5003, 16
        %v5220 = vrot.slane %v5218, 1
        %v5221 = vor.u32 %v5216, %v5220
        %v5223 = vshll.u32 %v5067, 16
        %v5225 = vrot.slane %v5223, 1
        %v5226 = vsel %vm1464, %v5221, %v5225
        %v5228 = vshrl.u32 %v5004, 16
        %v5230 = vshll.u32 %v5004, 16
        %v5232 = vrot.slane %v5230, 1
        %v5233 = vor.u32 %v5228, %v5232
        %v5235 = vshll.u32 %v5068, 16
        %v5237 = vrot.slane %v5235, 1
        %v5238 = vsel %vm1464, %v5233, %v5237
        %v5240 = vshrl.u32 %v5005, 16
        %v5242 = vshll.u32 %v5005, 16
        %v5244 = vrot.slane %v5242, 1
        %v5245 = vor.u32 %v5240, %v5244
        %v5247 = vshll.u32 %v5069, 16
        %v5249 = vrot.slane %v5247, 1
        %v5250 = vsel %vm1464, %v5245, %v5249
        %v5252 = vshrl.u32 %v5006, 16
        %v5254 = vshll.u32 %v5006, 16
        %v5256 = vrot.slane %v5254, 1
        %v5257 = vor.u32 %v5252, %v5256
        %v5259 = vshll.u32 %v5070, 16
        %v5261 = vrot.slane %v5259, 1
        %v5262 = vsel %vm1464, %v5257, %v5261
        %v5295 = vunpack.c.l.b16 %v4782
        %v5296 = vunpack.c.l.b16 %v4783
        %v5297 = vunpack.c.l.b16 %v4784
        %v5298 = vunpack.c.l.b16 %v4785
        %v5299 = vunpack.c.l.b16 %v4786
        %v5300 = vunpack.c.l.b16 %v4787
        %v5301 = vunpack.c.l.b16 %v4788
        %v5302 = vunpack.c.l.b16 %v4789
        %v5303 = vunpack.c.l.b16 %v4790
        %v5304 = vunpack.c.l.b16 %v4791
        %v5305 = vunpack.c.l.b16 %v4792
        %v5306 = vunpack.c.l.b16 %v4793
        %v5307 = vunpack.c.l.b16 %v4794
        %v5308 = vunpack.c.l.b16 %v4795
        %v5309 = vunpack.c.l.b16 %v4796
        %v5310 = vunpack.c.l.b16 %v4797
        %v5311 = vpack.c.b16 %v4960, %v5295
        %v5312 = vpack.c.b16 %v4962, %v5296
        %v5313 = vpack.c.b16 %v4964, %v5297
        %v5314 = vpack.c.b16 %v4966, %v5298
        %v5315 = vpack.c.b16 %v4968, %v5299
        %v5316 = vpack.c.b16 %v4970, %v5300
        %v5317 = vpack.c.b16 %v4972, %v5301
        %v5318 = vpack.c.b16 %v4974, %v5302
        %v5319 = vpack.c.b16 %v4976, %v5303
        %v5320 = vpack.c.b16 %v4978, %v5304
        %v5321 = vpack.c.b16 %v4980, %v5305
        %v5322 = vpack.c.b16 %v4982, %v5306
        %v5323 = vpack.c.b16 %v4984, %v5307
        %v5324 = vpack.c.b16 %v4986, %v5308
        %v5325 = vpack.c.b16 %v4988, %v5309
        %v5326 = vpack.c.b16 %v4990, %v5310
        %v5327 = vrot.slane %v5311, 1
        %v5328 = vrot.slane %v5055, 1
        %v5329 = vsel %vm1721, %v5327, %v5328
        %v5330 = vrot.slane %v5312, 1
        %v5331 = vrot.slane %v5056, 1
        %v5332 = vsel %vm1721, %v5330, %v5331
        %v5333 = vrot.slane %v5313, 1
        %v5334 = vrot.slane %v5057, 1
        %v5335 = vsel %vm1721, %v5333, %v5334
        %v5336 = vrot.slane %v5314, 1
        %v5337 = vrot.slane %v5058, 1
        %v5338 = vsel %vm1721, %v5336, %v5337
        %v5339 = vrot.slane %v5315, 1
        %v5340 = vrot.slane %v5059, 1
        %v5341 = vsel %vm1721, %v5339, %v5340
        %v5342 = vrot.slane %v5316, 1
        %v5343 = vrot.slane %v5060, 1
        %v5344 = vsel %vm1721, %v5342, %v5343
        %v5345 = vrot.slane %v5317, 1
        %v5346 = vrot.slane %v5061, 1
        %v5347 = vsel %vm1721, %v5345, %v5346
        %v5348 = vrot.slane %v5318, 1
        %v5349 = vrot.slane %v5062, 1
        %v5350 = vsel %vm1721, %v5348, %v5349
        %v5351 = vrot.slane %v5319, 1
        %v5352 = vrot.slane %v5063, 1
        %v5353 = vsel %vm1721, %v5351, %v5352
        %v5354 = vrot.slane %v5320, 1
        %v5355 = vrot.slane %v5064, 1
        %v5356 = vsel %vm1721, %v5354, %v5355
        %v5357 = vrot.slane %v5321, 1
        %v5358 = vrot.slane %v5065, 1
        %v5359 = vsel %vm1721, %v5357, %v5358
        %v5360 = vrot.slane %v5322, 1
        %v5361 = vrot.slane %v5066, 1
        %v5362 = vsel %vm1721, %v5360, %v5361
        %v5363 = vrot.slane %v5323, 1
        %v5364 = vrot.slane %v5067, 1
        %v5365 = vsel %vm1721, %v5363, %v5364
        %v5366 = vrot.slane %v5324, 1
        %v5367 = vrot.slane %v5068, 1
        %v5368 = vsel %vm1721, %v5366, %v5367
        %v5369 = vrot.slane %v5325, 1
        %v5370 = vrot.slane %v5069, 1
        %v5371 = vsel %vm1721, %v5369, %v5370
        %v5372 = vrot.slane %v5326, 1
        %v5373 = vrot.slane %v5070, 1
        %v5374 = vsel %vm1721, %v5372, %v5373
        %v5423 = vunpack.c.l.b16 %v4798
        %v5424 = vunpack.c.l.b16 %v4799
        %v5425 = vunpack.c.l.b16 %v4800
        %v5426 = vunpack.c.l.b16 %v4801
        %v5427 = vunpack.c.l.b16 %v4802
        %v5428 = vunpack.c.l.b16 %v4803
        %v5429 = vunpack.c.l.b16 %v4804
        %v5430 = vunpack.c.l.b16 %v4805
        %v5431 = vunpack.c.l.b16 %v4806
        %v5432 = vunpack.c.l.b16 %v4807
        %v5433 = vunpack.c.l.b16 %v4808
        %v5434 = vunpack.c.l.b16 %v4809
        %v5435 = vunpack.c.l.b16 %v4810
        %v5436 = vunpack.c.l.b16 %v4811
        %v5437 = vunpack.c.l.b16 %v4812
        %v5438 = vunpack.c.l.b16 %v4813
        %v5439 = vunpack.c.l.b16 %v4814
        %v5440 = vunpack.c.l.b16 %v4815
        %v5441 = vunpack.c.l.b16 %v4816
        %v5442 = vunpack.c.l.b16 %v4817
        %v5443 = vunpack.c.l.b16 %v4818
        %v5444 = vunpack.c.l.b16 %v4819
        %v5445 = vunpack.c.l.b16 %v4820
        %v5446 = vunpack.c.l.b16 %v4821
        %v5447 = vunpack.c.l.b16 %v4822
        %v5448 = vunpack.c.l.b16 %v4823
        %v5449 = vunpack.c.l.b16 %v4824
        %v5450 = vunpack.c.l.b16 %v4825
        %v5451 = vunpack.c.l.b16 %v4826
        %v5452 = vunpack.c.l.b16 %v4827
        %v5453 = vunpack.c.l.b16 %v4828
        %v5454 = vunpack.c.l.b16 %v4829
        %v5455 = vpack.c.b16 %v5424, %v5423
        %v5456 = vpack.c.b16 %v5426, %v5425
        %v5457 = vpack.c.b16 %v5428, %v5427
        %v5458 = vpack.c.b16 %v5430, %v5429
        %v5459 = vpack.c.b16 %v5432, %v5431
        %v5460 = vpack.c.b16 %v5434, %v5433
        %v5461 = vpack.c.b16 %v5436, %v5435
        %v5462 = vpack.c.b16 %v5438, %v5437
        %v5463 = vpack.c.b16 %v5440, %v5439
        %v5464 = vpack.c.b16 %v5442, %v5441
        %v5465 = vpack.c.b16 %v5444, %v5443
        %v5466 = vpack.c.b16 %v5446, %v5445
        %v5467 = vpack.c.b16 %v5448, %v5447
        %v5468 = vpack.c.b16 %v5450, %v5449
        %v5469 = vpack.c.b16 %v5452, %v5451
        %v5470 = vpack.c.b16 %v5454, %v5453
        %v5503 = vunpack.c.l.b16 %v4830
        %v5504 = vunpack.c.l.b16 %v4831
        %v5505 = vunpack.c.l.b16 %v4832
        %v5506 = vunpack.c.l.b16 %v4833
        %v5507 = vunpack.c.l.b16 %v4834
        %v5508 = vunpack.c.l.b16 %v4835
        %v5509 = vunpack.c.l.b16 %v4836
        %v5510 = vunpack.c.l.b16 %v4837
        %v5511 = vunpack.c.l.b16 %v4838
        %v5512 = vunpack.c.l.b16 %v4839
        %v5513 = vunpack.c.l.b16 %v4840
        %v5514 = vunpack.c.l.b16 %v4841
        %v5515 = vunpack.c.l.b16 %v4842
        %v5516 = vunpack.c.l.b16 %v4843
        %v5517 = vunpack.c.l.b16 %v4844
        %v5518 = vunpack.c.l.b16 %v4845
        %v5519 = vpack.c.b16 %v5503, %v5503
        %v5520 = vpack.c.b16 %v5504, %v5504
        %v5521 = vpack.c.b16 %v5505, %v5505
        %v5522 = vpack.c.b16 %v5506, %v5506
        %v5523 = vpack.c.b16 %v5507, %v5507
        %v5524 = vpack.c.b16 %v5508, %v5508
        %v5525 = vpack.c.b16 %v5509, %v5509
        %v5526 = vpack.c.b16 %v5510, %v5510
        %v5527 = vpack.c.b16 %v5511, %v5511
        %v5528 = vpack.c.b16 %v5512, %v5512
        %v5529 = vpack.c.b16 %v5513, %v5513
        %v5530 = vpack.c.b16 %v5514, %v5514
        %v5531 = vpack.c.b16 %v5515, %v5515
        %v5532 = vpack.c.b16 %v5516, %v5516
        %v5533 = vpack.c.b16 %v5517, %v5517
        %v5534 = vpack.c.b16 %v5518, %v5518
        %v5536 = vshrl.u32 %v5455, 16
        %v5538 = vshll.u32 %v5455, 16
        %v5540 = vrot.slane %v5538, 1
        %v5541 = vor.u32 %v5536, %v5540
        %v5543 = vshll.u32 %v5519, 16
        %v5545 = vrot.slane %v5543, 1
        %v5546 = vsel %vm1464, %v5541, %v5545
        %v5548 = vshrl.u32 %v5456, 16
        %v5550 = vshll.u32 %v5456, 16
        %v5552 = vrot.slane %v5550, 1
        %v5553 = vor.u32 %v5548, %v5552
        %v5555 = vshll.u32 %v5520, 16
        %v5557 = vrot.slane %v5555, 1
        %v5558 = vsel %vm1464, %v5553, %v5557
        %v5560 = vshrl.u32 %v5457, 16
        %v5562 = vshll.u32 %v5457, 16
        %v5564 = vrot.slane %v5562, 1
        %v5565 = vor.u32 %v5560, %v5564
        %v5567 = vshll.u32 %v5521, 16
        %v5569 = vrot.slane %v5567, 1
        %v5570 = vsel %vm1464, %v5565, %v5569
        %v5572 = vshrl.u32 %v5458, 16
        %v5574 = vshll.u32 %v5458, 16
        %v5576 = vrot.slane %v5574, 1
        %v5577 = vor.u32 %v5572, %v5576
        %v5579 = vshll.u32 %v5522, 16
        %v5581 = vrot.slane %v5579, 1
        %v5582 = vsel %vm1464, %v5577, %v5581
        %v5584 = vshrl.u32 %v5459, 16
        %v5586 = vshll.u32 %v5459, 16
        %v5588 = vrot.slane %v5586, 1
        %v5589 = vor.u32 %v5584, %v5588
        %v5591 = vshll.u32 %v5523, 16
        %v5593 = vrot.slane %v5591, 1
        %v5594 = vsel %vm1464, %v5589, %v5593
        %v5596 = vshrl.u32 %v5460, 16
        %v5598 = vshll.u32 %v5460, 16
        %v5600 = vrot.slane %v5598, 1
        %v5601 = vor.u32 %v5596, %v5600
        %v5603 = vshll.u32 %v5524, 16
        %v5605 = vrot.slane %v5603, 1
        %v5606 = vsel %vm1464, %v5601, %v5605
        %v5608 = vshrl.u32 %v5461, 16
        %v5610 = vshll.u32 %v5461, 16
        %v5612 = vrot.slane %v5610, 1
        %v5613 = vor.u32 %v5608, %v5612
        %v5615 = vshll.u32 %v5525, 16
        %v5617 = vrot.slane %v5615, 1
        %v5618 = vsel %vm1464, %v5613, %v5617
        %v5620 = vshrl.u32 %v5462, 16
        %v5622 = vshll.u32 %v5462, 16
        %v5624 = vrot.slane %v5622, 1
        %v5625 = vor.u32 %v5620, %v5624
        %v5627 = vshll.u32 %v5526, 16
        %v5629 = vrot.slane %v5627, 1
        %v5630 = vsel %vm1464, %v5625, %v5629
        %v5632 = vshrl.u32 %v5463, 16
        %v5634 = vshll.u32 %v5463, 16
        %v5636 = vrot.slane %v5634, 1
        %v5637 = vor.u32 %v5632, %v5636
        %v5639 = vshll.u32 %v5527, 16
        %v5641 = vrot.slane %v5639, 1
        %v5642 = vsel %vm1464, %v5637, %v5641
        %v5644 = vshrl.u32 %v5464, 16
        %v5646 = vshll.u32 %v5464, 16
        %v5648 = vrot.slane %v5646, 1
        %v5649 = vor.u32 %v5644, %v5648
        %v5651 = vshll.u32 %v5528, 16
        %v5653 = vrot.slane %v5651, 1
        %v5654 = vsel %vm1464, %v5649, %v5653
        %v5656 = vshrl.u32 %v5465, 16
        %v5658 = vshll.u32 %v5465, 16
        %v5660 = vrot.slane %v5658, 1
        %v5661 = vor.u32 %v5656, %v5660
        %v5663 = vshll.u32 %v5529, 16
        %v5665 = vrot.slane %v5663, 1
        %v5666 = vsel %vm1464, %v5661, %v5665
        %v5668 = vshrl.u32 %v5466, 16
        %v5670 = vshll.u32 %v5466, 16
        %v5672 = vrot.slane %v5670, 1
        %v5673 = vor.u32 %v5668, %v5672
        %v5675 = vshll.u32 %v5530, 16
        %v5677 = vrot.slane %v5675, 1
        %v5678 = vsel %vm1464, %v5673, %v5677
        %v5680 = vshrl.u32 %v5467, 16
        %v5682 = vshll.u32 %v5467, 16
        %v5684 = vrot.slane %v5682, 1
        %v5685 = vor.u32 %v5680, %v5684
        %v5687 = vshll.u32 %v5531, 16
        %v5689 = vrot.slane %v5687, 1
        %v5690 = vsel %vm1464, %v5685, %v5689
        %v5692 = vshrl.u32 %v5468, 16
        %v5694 = vshll.u32 %v5468, 16
        %v5696 = vrot.slane %v5694, 1
        %v5697 = vor.u32 %v5692, %v5696
        %v5699 = vshll.u32 %v5532, 16
        %v5701 = vrot.slane %v5699, 1
        %v5702 = vsel %vm1464, %v5697, %v5701
        %v5704 = vshrl.u32 %v5469, 16
        %v5706 = vshll.u32 %v5469, 16
        %v5708 = vrot.slane %v5706, 1
        %v5709 = vor.u32 %v5704, %v5708
        %v5711 = vshll.u32 %v5533, 16
        %v5713 = vrot.slane %v5711, 1
        %v5714 = vsel %vm1464, %v5709, %v5713
        %v5716 = vshrl.u32 %v5470, 16
        %v5718 = vshll.u32 %v5470, 16
        %v5720 = vrot.slane %v5718, 1
        %v5721 = vor.u32 %v5716, %v5720
        %v5723 = vshll.u32 %v5534, 16
        %v5725 = vrot.slane %v5723, 1
        %v5726 = vsel %vm1464, %v5721, %v5725
        %v5759 = vunpack.c.l.b16 %v4846
        %v5760 = vunpack.c.l.b16 %v4847
        %v5761 = vunpack.c.l.b16 %v4848
        %v5762 = vunpack.c.l.b16 %v4849
        %v5763 = vunpack.c.l.b16 %v4850
        %v5764 = vunpack.c.l.b16 %v4851
        %v5765 = vunpack.c.l.b16 %v4852
        %v5766 = vunpack.c.l.b16 %v4853
        %v5767 = vunpack.c.l.b16 %v4854
        %v5768 = vunpack.c.l.b16 %v4855
        %v5769 = vunpack.c.l.b16 %v4856
        %v5770 = vunpack.c.l.b16 %v4857
        %v5771 = vunpack.c.l.b16 %v4858
        %v5772 = vunpack.c.l.b16 %v4859
        %v5773 = vunpack.c.l.b16 %v4860
        %v5774 = vunpack.c.l.b16 %v4861
        %v5775 = vpack.c.b16 %v5424, %v5759
        %v5776 = vpack.c.b16 %v5426, %v5760
        %v5777 = vpack.c.b16 %v5428, %v5761
        %v5778 = vpack.c.b16 %v5430, %v5762
        %v5779 = vpack.c.b16 %v5432, %v5763
        %v5780 = vpack.c.b16 %v5434, %v5764
        %v5781 = vpack.c.b16 %v5436, %v5765
        %v5782 = vpack.c.b16 %v5438, %v5766
        %v5783 = vpack.c.b16 %v5440, %v5767
        %v5784 = vpack.c.b16 %v5442, %v5768
        %v5785 = vpack.c.b16 %v5444, %v5769
        %v5786 = vpack.c.b16 %v5446, %v5770
        %v5787 = vpack.c.b16 %v5448, %v5771
        %v5788 = vpack.c.b16 %v5450, %v5772
        %v5789 = vpack.c.b16 %v5452, %v5773
        %v5790 = vpack.c.b16 %v5454, %v5774
        %v5791 = vrot.slane %v5775, 1
        %v5792 = vrot.slane %v5519, 1
        %v5793 = vsel %vm1721, %v5791, %v5792
        %v5794 = vrot.slane %v5776, 1
        %v5795 = vrot.slane %v5520, 1
        %v5796 = vsel %vm1721, %v5794, %v5795
        %v5797 = vrot.slane %v5777, 1
        %v5798 = vrot.slane %v5521, 1
        %v5799 = vsel %vm1721, %v5797, %v5798
        %v5800 = vrot.slane %v5778, 1
        %v5801 = vrot.slane %v5522, 1
        %v5802 = vsel %vm1721, %v5800, %v5801
        %v5803 = vrot.slane %v5779, 1
        %v5804 = vrot.slane %v5523, 1
        %v5805 = vsel %vm1721, %v5803, %v5804
        %v5806 = vrot.slane %v5780, 1
        %v5807 = vrot.slane %v5524, 1
        %v5808 = vsel %vm1721, %v5806, %v5807
        %v5809 = vrot.slane %v5781, 1
        %v5810 = vrot.slane %v5525, 1
        %v5811 = vsel %vm1721, %v5809, %v5810
        %v5812 = vrot.slane %v5782, 1
        %v5813 = vrot.slane %v5526, 1
        %v5814 = vsel %vm1721, %v5812, %v5813
        %v5815 = vrot.slane %v5783, 1
        %v5816 = vrot.slane %v5527, 1
        %v5817 = vsel %vm1721, %v5815, %v5816
        %v5818 = vrot.slane %v5784, 1
        %v5819 = vrot.slane %v5528, 1
        %v5820 = vsel %vm1721, %v5818, %v5819
        %v5821 = vrot.slane %v5785, 1
        %v5822 = vrot.slane %v5529, 1
        %v5823 = vsel %vm1721, %v5821, %v5822
        %v5824 = vrot.slane %v5786, 1
        %v5825 = vrot.slane %v5530, 1
        %v5826 = vsel %vm1721, %v5824, %v5825
        %v5827 = vrot.slane %v5787, 1
        %v5828 = vrot.slane %v5531, 1
        %v5829 = vsel %vm1721, %v5827, %v5828
        %v5830 = vrot.slane %v5788, 1
        %v5831 = vrot.slane %v5532, 1
        %v5832 = vsel %vm1721, %v5830, %v5831
        %v5833 = vrot.slane %v5789, 1
        %v5834 = vrot.slane %v5533, 1
        %v5835 = vsel %vm1721, %v5833, %v5834
        %v5836 = vrot.slane %v5790, 1
        %v5837 = vrot.slane %v5534, 1
        %v5838 = vsel %vm1721, %v5836, %v5837
        %v5887 = vunpack.c.l.b16 %v4863
        %v5888 = vunpack.c.l.b16 %v4864
        %v5889 = vunpack.c.l.b16 %v4865
        %v5890 = vunpack.c.l.b16 %v4866
        %v5891 = vunpack.c.l.b16 %v4867
        %v5892 = vunpack.c.l.b16 %v4868
        %v5893 = vunpack.c.l.b16 %v4869
        %v5894 = vunpack.c.l.b16 %v4870
        %v5895 = vunpack.c.l.b16 %v4871
        %v5896 = vunpack.c.l.b16 %v4872
        %v5897 = vunpack.c.l.b16 %v4873
        %v5898 = vunpack.c.l.b16 %v4874
        %v5899 = vunpack.c.l.b16 %v4875
        %v5900 = vunpack.c.l.b16 %v4876
        %v5901 = vunpack.c.l.b16 %v4877
        %v5902 = vunpack.c.l.b16 %v4878
        %v5903 = vunpack.c.l.b16 %v4879
        %v5904 = vunpack.c.l.b16 %v4880
        %v5905 = vunpack.c.l.b16 %v4881
        %v5906 = vunpack.c.l.b16 %v4882
        %v5907 = vunpack.c.l.b16 %v4883
        %v5908 = vunpack.c.l.b16 %v4884
        %v5909 = vunpack.c.l.b16 %v4885
        %v5910 = vunpack.c.l.b16 %v4886
        %v5911 = vunpack.c.l.b16 %v4887
        %v5912 = vunpack.c.l.b16 %v4888
        %v5913 = vunpack.c.l.b16 %v4889
        %v5914 = vunpack.c.l.b16 %v4890
        %v5915 = vunpack.c.l.b16 %v4891
        %v5916 = vunpack.c.l.b16 %v4892
        %v5917 = vunpack.c.l.b16 %v4893
        %v5918 = vunpack.c.l.b16 %v4894
        %v5919 = vpack.c.b16 %v5888, %v5887
        %v5920 = vpack.c.b16 %v5890, %v5889
        %v5921 = vpack.c.b16 %v5892, %v5891
        %v5922 = vpack.c.b16 %v5894, %v5893
        %v5923 = vpack.c.b16 %v5896, %v5895
        %v5924 = vpack.c.b16 %v5898, %v5897
        %v5925 = vpack.c.b16 %v5900, %v5899
        %v5926 = vpack.c.b16 %v5902, %v5901
        %v5927 = vpack.c.b16 %v5904, %v5903
        %v5928 = vpack.c.b16 %v5906, %v5905
        %v5929 = vpack.c.b16 %v5908, %v5907
        %v5930 = vpack.c.b16 %v5910, %v5909
        %v5931 = vpack.c.b16 %v5912, %v5911
        %v5932 = vpack.c.b16 %v5914, %v5913
        %v5933 = vpack.c.b16 %v5916, %v5915
        %v5934 = vpack.c.b16 %v5918, %v5917
        %v5967 = vunpack.c.l.b16 %v4895
        %v5968 = vunpack.c.l.b16 %v4896
        %v5969 = vunpack.c.l.b16 %v4897
        %v5970 = vunpack.c.l.b16 %v4898
        %v5971 = vunpack.c.l.b16 %v4899
        %v5972 = vunpack.c.l.b16 %v4900
        %v5973 = vunpack.c.l.b16 %v4901
        %v5974 = vunpack.c.l.b16 %v4902
        %v5975 = vunpack.c.l.b16 %v4903
        %v5976 = vunpack.c.l.b16 %v4904
        %v5977 = vunpack.c.l.b16 %v4905
        %v5978 = vunpack.c.l.b16 %v4906
        %v5979 = vunpack.c.l.b16 %v4907
        %v5980 = vunpack.c.l.b16 %v4908
        %v5981 = vunpack.c.l.b16 %v4909
        %v5982 = vunpack.c.l.b16 %v4910
        %v5983 = vpack.c.b16 %v5967, %v5967
        %v5984 = vpack.c.b16 %v5968, %v5968
        %v5985 = vpack.c.b16 %v5969, %v5969
        %v5986 = vpack.c.b16 %v5970, %v5970
        %v5987 = vpack.c.b16 %v5971, %v5971
        %v5988 = vpack.c.b16 %v5972, %v5972
        %v5989 = vpack.c.b16 %v5973, %v5973
        %v5990 = vpack.c.b16 %v5974, %v5974
        %v5991 = vpack.c.b16 %v5975, %v5975
        %v5992 = vpack.c.b16 %v5976, %v5976
        %v5993 = vpack.c.b16 %v5977, %v5977
        %v5994 = vpack.c.b16 %v5978, %v5978
        %v5995 = vpack.c.b16 %v5979, %v5979
        %v5996 = vpack.c.b16 %v5980, %v5980
        %v5997 = vpack.c.b16 %v5981, %v5981
        %v5998 = vpack.c.b16 %v5982, %v5982
        %v6000 = vshrl.u32 %v5919, 16
        %v6002 = vshll.u32 %v5919, 16
        %v6004 = vrot.slane %v6002, 1
        %v6005 = vor.u32 %v6000, %v6004
        %v6007 = vshll.u32 %v5983, 16
        %v6009 = vrot.slane %v6007, 1
        %v6010 = vsel %vm1464, %v6005, %v6009
        %v6012 = vshrl.u32 %v5920, 16
        %v6014 = vshll.u32 %v5920, 16
        %v6016 = vrot.slane %v6014, 1
        %v6017 = vor.u32 %v6012, %v6016
        %v6019 = vshll.u32 %v5984, 16
        %v6021 = vrot.slane %v6019, 1
        %v6022 = vsel %vm1464, %v6017, %v6021
        %v6024 = vshrl.u32 %v5921, 16
        %v6026 = vshll.u32 %v5921, 16
        %v6028 = vrot.slane %v6026, 1
        %v6029 = vor.u32 %v6024, %v6028
        %v6031 = vshll.u32 %v5985, 16
        %v6033 = vrot.slane %v6031, 1
        %v6034 = vsel %vm1464, %v6029, %v6033
        %v6036 = vshrl.u32 %v5922, 16
        %v6038 = vshll.u32 %v5922, 16
        %v6040 = vrot.slane %v6038, 1
        %v6041 = vor.u32 %v6036, %v6040
        %v6043 = vshll.u32 %v5986, 16
        %v6045 = vrot.slane %v6043, 1
        %v6046 = vsel %vm1464, %v6041, %v6045
        %v6048 = vshrl.u32 %v5923, 16
        %v6050 = vshll.u32 %v5923, 16
        %v6052 = vrot.slane %v6050, 1
        %v6053 = vor.u32 %v6048, %v6052
        %v6055 = vshll.u32 %v5987, 16
        %v6057 = vrot.slane %v6055, 1
        %v6058 = vsel %vm1464, %v6053, %v6057
        %v6060 = vshrl.u32 %v5924, 16
        %v6062 = vshll.u32 %v5924, 16
        %v6064 = vrot.slane %v6062, 1
        %v6065 = vor.u32 %v6060, %v6064
        %v6067 = vshll.u32 %v5988, 16
        %v6069 = vrot.slane %v6067, 1
        %v6070 = vsel %vm1464, %v6065, %v6069
        %v6072 = vshrl.u32 %v5925, 16
        %v6074 = vshll.u32 %v5925, 16
        %v6076 = vrot.slane %v6074, 1
        %v6077 = vor.u32 %v6072, %v6076
        %v6079 = vshll.u32 %v5989, 16
        %v6081 = vrot.slane %v6079, 1
        %v6082 = vsel %vm1464, %v6077, %v6081
        %v6084 = vshrl.u32 %v5926, 16
        %v6086 = vshll.u32 %v5926, 16
        %v6088 = vrot.slane %v6086, 1
        %v6089 = vor.u32 %v6084, %v6088
        %v6091 = vshll.u32 %v5990, 16
        %v6093 = vrot.slane %v6091, 1
        %v6094 = vsel %vm1464, %v6089, %v6093
        %v6096 = vshrl.u32 %v5927, 16
        %v6098 = vshll.u32 %v5927, 16
        %v6100 = vrot.slane %v6098, 1
        %v6101 = vor.u32 %v6096, %v6100
        %v6103 = vshll.u32 %v5991, 16
        %v6105 = vrot.slane %v6103, 1
        %v6106 = vsel %vm1464, %v6101, %v6105
        %v6108 = vshrl.u32 %v5928, 16
        %v6110 = vshll.u32 %v5928, 16
        %v6112 = vrot.slane %v6110, 1
        %v6113 = vor.u32 %v6108, %v6112
        %v6115 = vshll.u32 %v5992, 16
        %v6117 = vrot.slane %v6115, 1
        %v6118 = vsel %vm1464, %v6113, %v6117
        %v6120 = vshrl.u32 %v5929, 16
        %v6122 = vshll.u32 %v5929, 16
        %v6124 = vrot.slane %v6122, 1
        %v6125 = vor.u32 %v6120, %v6124
        %v6127 = vshll.u32 %v5993, 16
        %v6129 = vrot.slane %v6127, 1
        %v6130 = vsel %vm1464, %v6125, %v6129
        %v6132 = vshrl.u32 %v5930, 16
        %v6134 = vshll.u32 %v5930, 16
        %v6136 = vrot.slane %v6134, 1
        %v6137 = vor.u32 %v6132, %v6136
        %v6139 = vshll.u32 %v5994, 16
        %v6141 = vrot.slane %v6139, 1
        %v6142 = vsel %vm1464, %v6137, %v6141
        %v6144 = vshrl.u32 %v5931, 16
        %v6146 = vshll.u32 %v5931, 16
        %v6148 = vrot.slane %v6146, 1
        %v6149 = vor.u32 %v6144, %v6148
        %v6151 = vshll.u32 %v5995, 16
        %v6153 = vrot.slane %v6151, 1
        %v6154 = vsel %vm1464, %v6149, %v6153
        %v6156 = vshrl.u32 %v5932, 16
        %v6158 = vshll.u32 %v5932, 16
        %v6160 = vrot.slane %v6158, 1
        %v6161 = vor.u32 %v6156, %v6160
        %v6163 = vshll.u32 %v5996, 16
        %v6165 = vrot.slane %v6163, 1
        %v6166 = vsel %vm1464, %v6161, %v6165
        %v6168 = vshrl.u32 %v5933, 16
        %v6170 = vshll.u32 %v5933, 16
        %v6172 = vrot.slane %v6170, 1
        %v6173 = vor.u32 %v6168, %v6172
        %v6175 = vshll.u32 %v5997, 16
        %v6177 = vrot.slane %v6175, 1
        %v6178 = vsel %vm1464, %v6173, %v6177
        %v6180 = vshrl.u32 %v5934, 16
        %v6182 = vshll.u32 %v5934, 16
        %v6184 = vrot.slane %v6182, 1
        %v6185 = vor.u32 %v6180, %v6184
        %v6187 = vshll.u32 %v5998, 16
        %v6189 = vrot.slane %v6187, 1
        %v6190 = vsel %vm1464, %v6185, %v6189
        %v6223 = vunpack.c.l.b16 %v4911
        %v6224 = vunpack.c.l.b16 %v4912
        %v6225 = vunpack.c.l.b16 %v4913
        %v6226 = vunpack.c.l.b16 %v4914
        %v6227 = vunpack.c.l.b16 %v4915
        %v6228 = vunpack.c.l.b16 %v4916
        %v6229 = vunpack.c.l.b16 %v4917
        %v6230 = vunpack.c.l.b16 %v4918
        %v6231 = vunpack.c.l.b16 %v4919
        %v6232 = vunpack.c.l.b16 %v4920
        %v6233 = vunpack.c.l.b16 %v4921
        %v6234 = vunpack.c.l.b16 %v4922
        %v6235 = vunpack.c.l.b16 %v4923
        %v6236 = vunpack.c.l.b16 %v4924
        %v6237 = vunpack.c.l.b16 %v4925
        %v6238 = vunpack.c.l.b16 %v4926
        %v6239 = vpack.c.b16 %v5888, %v6223
        %v6240 = vpack.c.b16 %v5890, %v6224
        %v6241 = vpack.c.b16 %v5892, %v6225
        %v6242 = vpack.c.b16 %v5894, %v6226
        %v6243 = vpack.c.b16 %v5896, %v6227
        %v6244 = vpack.c.b16 %v5898, %v6228
        %v6245 = vpack.c.b16 %v5900, %v6229
        %v6246 = vpack.c.b16 %v5902, %v6230
        %v6247 = vpack.c.b16 %v5904, %v6231
        %v6248 = vpack.c.b16 %v5906, %v6232
        %v6249 = vpack.c.b16 %v5908, %v6233
        %v6250 = vpack.c.b16 %v5910, %v6234
        %v6251 = vpack.c.b16 %v5912, %v6235
        %v6252 = vpack.c.b16 %v5914, %v6236
        %v6253 = vpack.c.b16 %v5916, %v6237
        %v6254 = vpack.c.b16 %v5918, %v6238
        %v6255 = vrot.slane %v6239, 1
        %v6256 = vrot.slane %v5983, 1
        %v6257 = vsel %vm1721, %v6255, %v6256
        %v6258 = vrot.slane %v6240, 1
        %v6259 = vrot.slane %v5984, 1
        %v6260 = vsel %vm1721, %v6258, %v6259
        %v6261 = vrot.slane %v6241, 1
        %v6262 = vrot.slane %v5985, 1
        %v6263 = vsel %vm1721, %v6261, %v6262
        %v6264 = vrot.slane %v6242, 1
        %v6265 = vrot.slane %v5986, 1
        %v6266 = vsel %vm1721, %v6264, %v6265
        %v6267 = vrot.slane %v6243, 1
        %v6268 = vrot.slane %v5987, 1
        %v6269 = vsel %vm1721, %v6267, %v6268
        %v6270 = vrot.slane %v6244, 1
        %v6271 = vrot.slane %v5988, 1
        %v6272 = vsel %vm1721, %v6270, %v6271
        %v6273 = vrot.slane %v6245, 1
        %v6274 = vrot.slane %v5989, 1
        %v6275 = vsel %vm1721, %v6273, %v6274
        %v6276 = vrot.slane %v6246, 1
        %v6277 = vrot.slane %v5990, 1
        %v6278 = vsel %vm1721, %v6276, %v6277
        %v6279 = vrot.slane %v6247, 1
        %v6280 = vrot.slane %v5991, 1
        %v6281 = vsel %vm1721, %v6279, %v6280
        %v6282 = vrot.slane %v6248, 1
        %v6283 = vrot.slane %v5992, 1
        %v6284 = vsel %vm1721, %v6282, %v6283
        %v6285 = vrot.slane %v6249, 1
        %v6286 = vrot.slane %v5993, 1
        %v6287 = vsel %vm1721, %v6285, %v6286
        %v6288 = vrot.slane %v6250, 1
        %v6289 = vrot.slane %v5994, 1
        %v6290 = vsel %vm1721, %v6288, %v6289
        %v6291 = vrot.slane %v6251, 1
        %v6292 = vrot.slane %v5995, 1
        %v6293 = vsel %vm1721, %v6291, %v6292
        %v6294 = vrot.slane %v6252, 1
        %v6295 = vrot.slane %v5996, 1
        %v6296 = vsel %vm1721, %v6294, %v6295
        %v6297 = vrot.slane %v6253, 1
        %v6298 = vrot.slane %v5997, 1
        %v6299 = vsel %vm1721, %v6297, %v6298
        %v6300 = vrot.slane %v6254, 1
        %v6301 = vrot.slane %v5998, 1
        %v6302 = vsel %vm1721, %v6300, %v6301
        %v6319 = vld [vmem:[#allocation9] sm:$0xf]
        %v6320 = vld [vmem:[#allocation9 + $0x4] sm:$0xf]
        %v6321 = vld [vmem:[#allocation9 + $0x8] sm:$0xf]
        %v6322 = vld [vmem:[#allocation9 + $0xc] sm:$0xf]
        %v6323 = vld [vmem:[#allocation9 + $0x10] sm:$0xf]
        %v6324 = vld [vmem:[#allocation9 + $0x14] sm:$0xf]
        %v6325 = vld [vmem:[#allocation9 + $0x18] sm:$0xf]
        %v6326 = vld [vmem:[#allocation9 + $0x1c] sm:$0xf]
        %v6327 = vld [vmem:[#allocation9 + $0x20] sm:$0xf]
        %v6328 = vld [vmem:[#allocation9 + $0x24] sm:$0xf]
        %v6329 = vld [vmem:[#allocation9 + $0x28] sm:$0xf]
        %v6330 = vld [vmem:[#allocation9 + $0x2c] sm:$0xf]
        %v6331 = vld [vmem:[#allocation9 + $0x30] sm:$0xf]
        %v6332 = vld [vmem:[#allocation9 + $0x34] sm:$0xf]
        %v6333 = vld [vmem:[#allocation9 + $0x38] sm:$0xf]
        %v6334 = vld [vmem:[#allocation9 + $0x3c] sm:$0xf]
        %v6335 = vld [vmem:[#allocation9 + $0x40] sm:$0xf]
        %v6336 = vld [vmem:[#allocation9 + $0x44] sm:$0xf]
        %v6337 = vld [vmem:[#allocation9 + $0x48] sm:$0xf]
        %v6338 = vld [vmem:[#allocation9 + $0x4c] sm:$0xf]
        %v6339 = vld [vmem:[#allocation9 + $0x50] sm:$0xf]
        %v6340 = vld [vmem:[#allocation9 + $0x54] sm:$0xf]
        %v6341 = vld [vmem:[#allocation9 + $0x58] sm:$0xf]
        %v6342 = vld [vmem:[#allocation9 + $0x5c] sm:$0xf]
        %v6343 = vld [vmem:[#allocation9 + $0x60] sm:$0xf]
        %v6344 = vld [vmem:[#allocation9 + $0x64] sm:$0xf]
        %v6345 = vld [vmem:[#allocation9 + $0x68] sm:$0xf]
        %v6346 = vld [vmem:[#allocation9 + $0x6c] sm:$0xf]
        %v6347 = vld [vmem:[#allocation9 + $0x70] sm:$0xf]
        %v6348 = vld [vmem:[#allocation9 + $0x74] sm:$0xf]
        %v6349 = vld [vmem:[#allocation9 + $0x78] sm:$0xf]
        %v6350 = vld [vmem:[#allocation9 + $0x7c] sm:$0xf]
        %v6351 = vld [vmem:[#allocation9 + $0x80] sm:$0xf]
        %v6352 = vld [vmem:[#allocation9 + $0x84] sm:$0xf]
        %v6353 = vld [vmem:[#allocation9 + $0x88] sm:$0xf]
        %v6354 = vld [vmem:[#allocation9 + $0x8c] sm:$0xf]
        %v6355 = vld [vmem:[#allocation9 + $0x90] sm:$0xf]
        %v6356 = vld [vmem:[#allocation9 + $0x94] sm:$0xf]
        %v6357 = vld [vmem:[#allocation9 + $0x98] sm:$0xf]
        %v6358 = vld [vmem:[#allocation9 + $0x9c] sm:$0xf]
        %v6359 = vld [vmem:[#allocation9 + $0xa0] sm:$0xf]
        %v6360 = vld [vmem:[#allocation9 + $0xa4] sm:$0xf]
        %v6361 = vld [vmem:[#allocation9 + $0xa8] sm:$0xf]
        %v6362 = vld [vmem:[#allocation9 + $0xac] sm:$0xf]
        %v6363 = vld [vmem:[#allocation9 + $0xb0] sm:$0xf]
        %v6364 = vld [vmem:[#allocation9 + $0xb4] sm:$0xf]
        %v6365 = vld [vmem:[#allocation9 + $0xb8] sm:$0xf]
        %v6366 = vld [vmem:[#allocation9 + $0xbc] sm:$0xf]
        %v6367 = vld [vmem:[#allocation9 + $0xc0] sm:$0xf]
        %v6368 = vld [vmem:[#allocation9 + $0xc4] sm:$0xf]
        %v6369 = vld [vmem:[#allocation9 + $0xc8] sm:$0xf]
        %v6370 = vld [vmem:[#allocation9 + $0xcc] sm:$0xf]
        %v6371 = vld [vmem:[#allocation9 + $0xd0] sm:$0xf]
        %v6372 = vld [vmem:[#allocation9 + $0xd4] sm:$0xf]
        %v6373 = vld [vmem:[#allocation9 + $0xd8] sm:$0xf]
        %v6374 = vld [vmem:[#allocation9 + $0xdc] sm:$0xf]
        %v6375 = vld [vmem:[#allocation9 + $0xe0] sm:$0xf]
        %v6376 = vld [vmem:[#allocation9 + $0xe4] sm:$0xf]
        %v6377 = vld [vmem:[#allocation9 + $0xe8] sm:$0xf]
        %v6378 = vld [vmem:[#allocation9 + $0xec] sm:$0xf]
        %v6379 = vld [vmem:[#allocation9 + $0xf0] sm:$0xf]
        %v6380 = vld [vmem:[#allocation9 + $0xf4] sm:$0xf]
        %v6381 = vld [vmem:[#allocation9 + $0xf8] sm:$0xf]
        %v6382 = vld [vmem:[#allocation9 + $0xfc] sm:$0xf]
        %v6383 = vld [vmem:[#allocation9 + $0x100] sm:$0xf]
        %v6384 = vld [vmem:[#allocation9 + $0x104] sm:$0xf]
        %v6385 = vld [vmem:[#allocation9 + $0x108] sm:$0xf]
        %v6386 = vld [vmem:[#allocation9 + $0x10c] sm:$0xf]
        %v6387 = vld [vmem:[#allocation9 + $0x110] sm:$0xf]
        %v6388 = vld [vmem:[#allocation9 + $0x114] sm:$0xf]
        %v6389 = vld [vmem:[#allocation9 + $0x118] sm:$0xf]
        %v6390 = vld [vmem:[#allocation9 + $0x11c] sm:$0xf]
        %v6391 = vld [vmem:[#allocation9 + $0x120] sm:$0xf]
        %v6392 = vld [vmem:[#allocation9 + $0x124] sm:$0xf]
        %v6393 = vld [vmem:[#allocation9 + $0x128] sm:$0xf]
        %v6394 = vld [vmem:[#allocation9 + $0x12c] sm:$0xf]
        %v6395 = vld [vmem:[#allocation9 + $0x130] sm:$0xf]
        %v6396 = vld [vmem:[#allocation9 + $0x134] sm:$0xf]
        %v6397 = vld [vmem:[#allocation9 + $0x138] sm:$0xf]
        %v6398 = vld [vmem:[#allocation9 + $0x13c] sm:$0xf]
        %v6399 = vld [vmem:[#allocation9 + $0x140] sm:$0xf]
        %v6400 = vld [vmem:[#allocation9 + $0x144] sm:$0xf]
        %v6401 = vld [vmem:[#allocation9 + $0x148] sm:$0xf]
        %v6402 = vld [vmem:[#allocation9 + $0x14c] sm:$0xf]
        %v6403 = vld [vmem:[#allocation9 + $0x150] sm:$0xf]
        %v6404 = vld [vmem:[#allocation9 + $0x154] sm:$0xf]
        %v6405 = vld [vmem:[#allocation9 + $0x158] sm:$0xf]
        %v6406 = vld [vmem:[#allocation9 + $0x15c] sm:$0xf]
        %v6407 = vld [vmem:[#allocation9 + $0x160] sm:$0xf]
        %v6408 = vld [vmem:[#allocation9 + $0x164] sm:$0xf]
        %v6409 = vld [vmem:[#allocation9 + $0x168] sm:$0xf]
        %v6410 = vld [vmem:[#allocation9 + $0x16c] sm:$0xf]
        %v6411 = vld [vmem:[#allocation9 + $0x170] sm:$0xf]
        %v6412 = vld [vmem:[#allocation9 + $0x174] sm:$0xf]
        %v6413 = vld [vmem:[#allocation9 + $0x178] sm:$0xf]
        %v6414 = vld [vmem:[#allocation9 + $0x17c] sm:$0xf]
        %v6415 = vld [vmem:[#allocation9 + $0x180] sm:$0xf]
        %v6416 = vld [vmem:[#allocation9 + $0x184] sm:$0xf]
        %v6417 = vld [vmem:[#allocation9 + $0x188] sm:$0xf]
        %v6418 = vld [vmem:[#allocation9 + $0x18c] sm:$0xf]
        %v6419 = vld [vmem:[#allocation9 + $0x190] sm:$0xf]
        %v6420 = vld [vmem:[#allocation9 + $0x194] sm:$0xf]
        %v6421 = vld [vmem:[#allocation9 + $0x198] sm:$0xf]
        %v6422 = vld [vmem:[#allocation9 + $0x19c] sm:$0xf]
        %v6423 = vld [vmem:[#allocation9 + $0x1a0] sm:$0xf]
        %v6424 = vld [vmem:[#allocation9 + $0x1a4] sm:$0xf]
        %v6425 = vld [vmem:[#allocation9 + $0x1a8] sm:$0xf]
        %v6426 = vld [vmem:[#allocation9 + $0x1ac] sm:$0xf]
        %v6427 = vld [vmem:[#allocation9 + $0x1b0] sm:$0xf]
        %v6428 = vld [vmem:[#allocation9 + $0x1b4] sm:$0xf]
        %v6429 = vld [vmem:[#allocation9 + $0x1b8] sm:$0xf]
        %v6430 = vld [vmem:[#allocation9 + $0x1bc] sm:$0xf]
        %v6431 = vld [vmem:[#allocation9 + $0x1c0] sm:$0xf]
        %v6432 = vld [vmem:[#allocation9 + $0x1c4] sm:$0xf]
        %v6433 = vld [vmem:[#allocation9 + $0x1c8] sm:$0xf]
        %v6434 = vld [vmem:[#allocation9 + $0x1cc] sm:$0xf]
        %v6435 = vld [vmem:[#allocation9 + $0x1d0] sm:$0xf]
        %v6436 = vld [vmem:[#allocation9 + $0x1d4] sm:$0xf]
        %v6437 = vld [vmem:[#allocation9 + $0x1d8] sm:$0xf]
        %v6438 = vld [vmem:[#allocation9 + $0x1dc] sm:$0xf]
        %v6439 = vld [vmem:[#allocation9 + $0x1e0] sm:$0xf]
        %v6440 = vld [vmem:[#allocation9 + $0x1e4] sm:$0xf]
        %v6441 = vld [vmem:[#allocation9 + $0x1e8] sm:$0xf]
        %v6442 = vld [vmem:[#allocation9 + $0x1ec] sm:$0xf]
        %v6443 = vld [vmem:[#allocation9 + $0x1f0] sm:$0xf]
        %v6444 = vld [vmem:[#allocation9 + $0x1f4] sm:$0xf]
        %v6445 = vld [vmem:[#allocation9 + $0x1f8] sm:$0xf]
        %v6446 = vld [vmem:[#allocation9 + $0x1fc] sm:$0xf]
        %v6447 = vld [vmem:[#allocation9 + $0x200] sm:$0xf]
        %v6448 = vld [vmem:[#allocation9 + $0x204] sm:$0xf]
        %v6449 = vld [vmem:[#allocation9 + $0x208] sm:$0xf]
        %v6450 = vld [vmem:[#allocation9 + $0x20c] sm:$0xf]
        %v6451 = vld [vmem:[#allocation9 + $0x210] sm:$0xf]
        %v6452 = vld [vmem:[#allocation9 + $0x214] sm:$0xf]
        %v6453 = vld [vmem:[#allocation9 + $0x218] sm:$0xf]
        %v6454 = vld [vmem:[#allocation9 + $0x21c] sm:$0xf]
        %v6455 = vld [vmem:[#allocation9 + $0x220] sm:$0xf]
        %v6456 = vld [vmem:[#allocation9 + $0x224] sm:$0xf]
        %v6457 = vld [vmem:[#allocation9 + $0x228] sm:$0xf]
        %v6458 = vld [vmem:[#allocation9 + $0x22c] sm:$0xf]
        %v6459 = vld [vmem:[#allocation9 + $0x230] sm:$0xf]
        %v6460 = vld [vmem:[#allocation9 + $0x234] sm:$0xf]
        %v6461 = vld [vmem:[#allocation9 + $0x238] sm:$0xf]
        %v6462 = vld [vmem:[#allocation9 + $0x23c] sm:$0xf]
        %v6607 = vunpack.c.l.b16 %v6319
        %v6608 = vunpack.c.l.b16 %v6320
        %v6609 = vunpack.c.l.b16 %v6321
        %v6610 = vunpack.c.l.b16 %v6322
        %v6611 = vunpack.c.l.b16 %v6323
        %v6612 = vunpack.c.l.b16 %v6324
        %v6613 = vunpack.c.l.b16 %v6325
        %v6614 = vunpack.c.l.b16 %v6326
        %v6615 = vunpack.c.l.b16 %v6327
        %v6616 = vunpack.c.l.b16 %v6328
        %v6617 = vunpack.c.l.b16 %v6329
        %v6618 = vunpack.c.l.b16 %v6330
        %v6619 = vunpack.c.l.b16 %v6331
        %v6620 = vunpack.c.l.b16 %v6332
        %v6621 = vunpack.c.l.b16 %v6333
        %v6622 = vunpack.c.l.b16 %v6334
        %v6623 = vunpack.c.l.b16 %v6335
        %v6624 = vunpack.c.l.b16 %v6336
        %v6625 = vunpack.c.l.b16 %v6337
        %v6626 = vunpack.c.l.b16 %v6338
        %v6627 = vunpack.c.l.b16 %v6339
        %v6628 = vunpack.c.l.b16 %v6340
        %v6629 = vunpack.c.l.b16 %v6341
        %v6630 = vunpack.c.l.b16 %v6342
        %v6631 = vunpack.c.l.b16 %v6343
        %v6632 = vunpack.c.l.b16 %v6344
        %v6633 = vunpack.c.l.b16 %v6345
        %v6634 = vunpack.c.l.b16 %v6346
        %v6635 = vunpack.c.l.b16 %v6347
        %v6636 = vunpack.c.l.b16 %v6348
        %v6637 = vunpack.c.l.b16 %v6349
        %v6638 = vunpack.c.l.b16 %v6350
        %v6639 = vunpack.c.l.b16 %v6351
        %v6640 = vunpack.c.l.b16 %v6352
        %v6641 = vunpack.c.l.b16 %v6353
        %v6642 = vunpack.c.l.b16 %v6354
        %v6643 = vunpack.c.l.b16 %v6355
        %v6644 = vunpack.c.l.b16 %v6356
        %v6645 = vunpack.c.l.b16 %v6357
        %v6646 = vunpack.c.l.b16 %v6358
        %v6647 = vunpack.c.l.b16 %v6359
        %v6648 = vunpack.c.l.b16 %v6360
        %v6649 = vunpack.c.l.b16 %v6361
        %v6650 = vunpack.c.l.b16 %v6362
        %v6651 = vunpack.c.l.b16 %v6363
        %v6652 = vunpack.c.l.b16 %v6364
        %v6653 = vunpack.c.l.b16 %v6365
        %v6654 = vunpack.c.l.b16 %v6366
        %v6655 = vunpack.c.l.b16 %v6367
        %v6656 = vunpack.c.l.b16 %v6368
        %v6657 = vunpack.c.l.b16 %v6369
        %v6658 = vunpack.c.l.b16 %v6370
        %v6659 = vunpack.c.l.b16 %v6371
        %v6660 = vunpack.c.l.b16 %v6372
        %v6661 = vunpack.c.l.b16 %v6373
        %v6662 = vunpack.c.l.b16 %v6374
        %v6663 = vunpack.c.l.b16 %v6375
        %v6664 = vunpack.c.l.b16 %v6376
        %v6665 = vunpack.c.l.b16 %v6377
        %v6666 = vunpack.c.l.b16 %v6378
        %v6667 = vunpack.c.l.b16 %v6379
        %v6668 = vunpack.c.l.b16 %v6380
        %v6669 = vunpack.c.l.b16 %v6381
        %v6670 = vunpack.c.l.b16 %v6382
        %v6671 = vunpack.c.l.b16 %v6383
        %v6672 = vunpack.c.l.b16 %v6384
        %v6673 = vunpack.c.l.b16 %v6385
        %v6674 = vunpack.c.l.b16 %v6386
        %v6675 = vunpack.c.l.b16 %v6387
        %v6676 = vunpack.c.l.b16 %v6388
        %v6677 = vunpack.c.l.b16 %v6389
        %v6678 = vunpack.c.l.b16 %v6390
        %v6679 = vunpack.c.l.b16 %v6391
        %v6680 = vunpack.c.l.b16 %v6392
        %v6681 = vunpack.c.l.b16 %v6393
        %v6682 = vunpack.c.l.b16 %v6394
        %v6683 = vunpack.c.l.b16 %v6395
        %v6684 = vunpack.c.l.b16 %v6396
        %v6685 = vunpack.c.l.b16 %v6397
        %v6686 = vunpack.c.l.b16 %v6398
        %v6687 = vunpack.c.l.b16 %v6399
        %v6688 = vunpack.c.l.b16 %v6400
        %v6689 = vunpack.c.l.b16 %v6401
        %v6690 = vunpack.c.l.b16 %v6402
        %v6691 = vunpack.c.l.b16 %v6403
        %v6692 = vunpack.c.l.b16 %v6404
        %v6693 = vunpack.c.l.b16 %v6405
        %v6694 = vunpack.c.l.b16 %v6406
        %v6695 = vunpack.c.l.b16 %v6407
        %v6696 = vunpack.c.l.b16 %v6408
        %v6697 = vunpack.c.l.b16 %v6409
        %v6698 = vunpack.c.l.b16 %v6410
        %v6699 = vunpack.c.l.b16 %v6411
        %v6700 = vunpack.c.l.b16 %v6412
        %v6701 = vunpack.c.l.b16 %v6413
        %v6702 = vunpack.c.l.b16 %v6414
        %v6703 = vunpack.c.l.b16 %v6415
        %v6704 = vunpack.c.l.b16 %v6416
        %v6705 = vunpack.c.l.b16 %v6417
        %v6706 = vunpack.c.l.b16 %v6418
        %v6707 = vunpack.c.l.b16 %v6419
        %v6708 = vunpack.c.l.b16 %v6420
        %v6709 = vunpack.c.l.b16 %v6421
        %v6710 = vunpack.c.l.b16 %v6422
        %v6711 = vunpack.c.l.b16 %v6423
        %v6712 = vunpack.c.l.b16 %v6424
        %v6713 = vunpack.c.l.b16 %v6425
        %v6714 = vunpack.c.l.b16 %v6426
        %v6715 = vunpack.c.l.b16 %v6427
        %v6716 = vunpack.c.l.b16 %v6428
        %v6717 = vunpack.c.l.b16 %v6429
        %v6718 = vunpack.c.l.b16 %v6430
        %v6719 = vunpack.c.l.b16 %v6431
        %v6720 = vunpack.c.l.b16 %v6432
        %v6721 = vunpack.c.l.b16 %v6433
        %v6722 = vunpack.c.l.b16 %v6434
        %v6723 = vunpack.c.l.b16 %v6435
        %v6724 = vunpack.c.l.b16 %v6436
        %v6725 = vunpack.c.l.b16 %v6437
        %v6726 = vunpack.c.l.b16 %v6438
        %v6727 = vunpack.c.l.b16 %v6439
        %v6728 = vunpack.c.l.b16 %v6440
        %v6729 = vunpack.c.l.b16 %v6441
        %v6730 = vunpack.c.l.b16 %v6442
        %v6731 = vunpack.c.l.b16 %v6443
        %v6732 = vunpack.c.l.b16 %v6444
        %v6733 = vunpack.c.l.b16 %v6445
        %v6734 = vunpack.c.l.b16 %v6446
        %v6735 = vunpack.c.l.b16 %v6447
        %v6736 = vunpack.c.l.b16 %v6448
        %v6737 = vunpack.c.l.b16 %v6449
        %v6738 = vunpack.c.l.b16 %v6450
        %v6739 = vunpack.c.l.b16 %v6451
        %v6740 = vunpack.c.l.b16 %v6452
        %v6741 = vunpack.c.l.b16 %v6453
        %v6742 = vunpack.c.l.b16 %v6454
        %v6743 = vunpack.c.l.b16 %v6455
        %v6744 = vunpack.c.l.b16 %v6456
        %v6745 = vunpack.c.l.b16 %v6457
        %v6746 = vunpack.c.l.b16 %v6458
        %v6747 = vunpack.c.l.b16 %v6459
        %v6748 = vunpack.c.l.b16 %v6460
        %v6749 = vunpack.c.l.b16 %v6461
        %v6750 = vunpack.c.l.b16 %v6462
        %v6751 = vpack.c.b16 %v6608, %v6607
        %v6752 = vpack.c.b16 %v6610, %v6609
        %v6753 = vpack.c.b16 %v6612, %v6611
        %v6754 = vpack.c.b16 %v6614, %v6613
        %v6755 = vpack.c.b16 %v6616, %v6615
        %v6756 = vpack.c.b16 %v6618, %v6617
        %v6757 = vpack.c.b16 %v6620, %v6619
        %v6758 = vpack.c.b16 %v6622, %v6621
        %v6759 = vpack.c.b16 %v6624, %v6623
        %v6760 = vpack.c.b16 %v6626, %v6625
        %v6761 = vpack.c.b16 %v6628, %v6627
        %v6762 = vpack.c.b16 %v6630, %v6629
        %v6763 = vpack.c.b16 %v6632, %v6631
        %v6764 = vpack.c.b16 %v6634, %v6633
        %v6765 = vpack.c.b16 %v6636, %v6635
        %v6766 = vpack.c.b16 %v6638, %v6637
        %v6767 = vpack.c.b16 %v6640, %v6639
        %v6768 = vpack.c.b16 %v6642, %v6641
        %v6769 = vpack.c.b16 %v6644, %v6643
        %v6770 = vpack.c.b16 %v6646, %v6645
        %v6771 = vpack.c.b16 %v6648, %v6647
        %v6772 = vpack.c.b16 %v6650, %v6649
        %v6773 = vpack.c.b16 %v6652, %v6651
        %v6774 = vpack.c.b16 %v6654, %v6653
        %v6775 = vpack.c.b16 %v6656, %v6655
        %v6776 = vpack.c.b16 %v6658, %v6657
        %v6777 = vpack.c.b16 %v6660, %v6659
        %v6778 = vpack.c.b16 %v6662, %v6661
        %v6779 = vpack.c.b16 %v6664, %v6663
        %v6780 = vpack.c.b16 %v6666, %v6665
        %v6781 = vpack.c.b16 %v6668, %v6667
        %v6782 = vpack.c.b16 %v6670, %v6669
        %v6783 = vpack.c.b16 %v6672, %v6671
        %v6784 = vpack.c.b16 %v6674, %v6673
        %v6785 = vpack.c.b16 %v6676, %v6675
        %v6786 = vpack.c.b16 %v6678, %v6677
        %v6787 = vpack.c.b16 %v6680, %v6679
        %v6788 = vpack.c.b16 %v6682, %v6681
        %v6789 = vpack.c.b16 %v6684, %v6683
        %v6790 = vpack.c.b16 %v6686, %v6685
        %v6791 = vpack.c.b16 %v6688, %v6687
        %v6792 = vpack.c.b16 %v6690, %v6689
        %v6793 = vpack.c.b16 %v6692, %v6691
        %v6794 = vpack.c.b16 %v6694, %v6693
        %v6795 = vpack.c.b16 %v6696, %v6695
        %v6796 = vpack.c.b16 %v6698, %v6697
        %v6797 = vpack.c.b16 %v6700, %v6699
        %v6798 = vpack.c.b16 %v6702, %v6701
        %v6799 = vpack.c.b16 %v6704, %v6703
        %v6800 = vpack.c.b16 %v6706, %v6705
        %v6801 = vpack.c.b16 %v6708, %v6707
        %v6802 = vpack.c.b16 %v6710, %v6709
        %v6803 = vpack.c.b16 %v6712, %v6711
        %v6804 = vpack.c.b16 %v6714, %v6713
        %v6805 = vpack.c.b16 %v6716, %v6715
        %v6806 = vpack.c.b16 %v6718, %v6717
        %v6807 = vpack.c.b16 %v6720, %v6719
        %v6808 = vpack.c.b16 %v6722, %v6721
        %v6809 = vpack.c.b16 %v6724, %v6723
        %v6810 = vpack.c.b16 %v6726, %v6725
        %v6811 = vpack.c.b16 %v6728, %v6727
        %v6812 = vpack.c.b16 %v6730, %v6729
        %v6813 = vpack.c.b16 %v6732, %v6731
        %v6814 = vpack.c.b16 %v6734, %v6733
        %v6815 = vpack.c.b16 %v6736, %v6735
        %v6816 = vpack.c.b16 %v6738, %v6737
        %v6817 = vpack.c.b16 %v6740, %v6739
        %v6818 = vpack.c.b16 %v6742, %v6741
        %v6819 = vpack.c.b16 %v6744, %v6743
        %v6820 = vpack.c.b16 %v6746, %v6745
        %v6821 = vpack.c.b16 %v6748, %v6747
        %v6822 = vpack.c.b16 %v6750, %v6749
        %6895 = vmatprep.subr.bf16.mxu0 0
        %6896 = vmatpush1.bf16.msra.mxu0 %v6751
        %6897 = vmatprep.subr.bf16.mxu0 0
        %6898 = vmatpush1.bf16.msra.mxu0 %v6752
        %6899 = vmatprep.subr.bf16.mxu0 0
        %6900 = vmatpush1.bf16.msra.mxu0 %v6753
        %6901 = vmatprep.subr.bf16.mxu0 0
        %6902 = vmatpush1.bf16.msra.mxu0 %v6754
        %6903 = vmatprep.subr.bf16.mxu0 0
        %6904 = vmatpush1.bf16.msra.mxu0 %v6755
        %6905 = vmatprep.subr.bf16.mxu0 0
        %6906 = vmatpush1.bf16.msra.mxu0 %v6756
        %6907 = vmatprep.subr.bf16.mxu0 0
        %6908 = vmatpush1.bf16.msra.mxu0 %v6757
        %6909 = vmatprep.subr.bf16.mxu0 0
        %6910 = vmatpush1.bf16.msra.mxu0 %v6758
        %6911 = vmatprep.subr.bf16.mxu0 0
        %6912 = vmatpush1.bf16.msra.mxu0 %v6759
        %6913 = vmatprep.subr.bf16.mxu0 0
        %6914 = vmatpush1.bf16.msra.mxu0 %v6760
        %6915 = vmatprep.subr.bf16.mxu0 0
        %6916 = vmatpush1.bf16.msra.mxu0 %v6761
        %6917 = vmatprep.subr.bf16.mxu0 0
        %6918 = vmatpush1.bf16.msra.mxu0 %v6762
        %6919 = vmatprep.subr.bf16.mxu0 0
        %6920 = vmatpush1.bf16.msra.mxu0 %v6763
        %6921 = vmatprep.subr.bf16.mxu0 0
        %6922 = vmatpush1.bf16.msra.mxu0 %v6764
        %6923 = vmatprep.subr.bf16.mxu0 0
        %6924 = vmatpush1.bf16.msra.mxu0 %v6765
        %6925 = vmatprep.subr.bf16.mxu0 0
        %6926 = vmatpush1.bf16.msra.mxu0 %v6766
        %6927 = vmatprep.mubr.bf16.mxu0 %v5082
        %6928 = vmatmul.mubr.bf16.gmra.mrb[0].mxu0 %v4991
        %v6929 = vpop.f32.mrb[0].mxu0
        %v6930 = vadd.f32 0.0, %v6929
        %v6931 = vpop.f32.mrb[0].mxu0
        %v6932 = vpop.f32.mrb[0].mxu0
        %v6933 = vadd.f32 0.0, %v6932
        %v6934 = vpop.f32.mrb[0].mxu0
        %6935 = vmatprep.mubr.bf16.mxu0 %v5094
        %6936 = vmatmul.mubr.bf16.gmra.mrb[0].mxu0 %v4992
        %v6937 = vpop.f32.mrb[0].mxu0
        %v6938 = vadd.f32 0.0, %v6937
        %v6939 = vpop.f32.mrb[0].mxu0
        %v6940 = vpop.f32.mrb[0].mxu0
        %v6941 = vadd.f32 0.0, %v6940
        %v6942 = vpop.f32.mrb[0].mxu0
        %6943 = vmatprep.mubr.bf16.mxu0 %v5106
        %6944 = vmatmul.mubr.bf16.gmra.mrb[0].mxu0 %v4993
        %v6945 = vpop.f32.mrb[0].mxu0
        %v6946 = vadd.f32 0.0, %v6945
        %v6947 = vpop.f32.mrb[0].mxu0
        %v6948 = vpop.f32.mrb[0].mxu0
        %v6949 = vadd.f32 0.0, %v6948
        %v6950 = vpop.f32.mrb[0].mxu0
        %6951 = vmatprep.mubr.bf16.mxu0 %v5118
        %6952 = vmatmul.mubr.bf16.gmra.mrb[0].mxu0 %v4994
        %v6953 = vpop.f32.mrb[0].mxu0
        %v6954 = vadd.f32 0.0, %v6953
        %v6955 = vpop.f32.mrb[0].mxu0
        %v6956 = vpop.f32.mrb[0].mxu0
        %v6957 = vadd.f32 0.0, %v6956
        %v6958 = vpop.f32.mrb[0].mxu0
        %6959 = vmatprep.mubr.bf16.mxu0 %v5130
        %6960 = vmatmul.mubr.bf16.gmra.mrb[0].mxu0 %v4995
        %v6961 = vpop.f32.mrb[0].mxu0
        %v6962 = vadd.f32 0.0, %v6961
        %v6963 = vpop.f32.mrb[0].mxu0
        %v6964 = vpop.f32.mrb[0].mxu0
        %v6965 = vadd.f32 0.0, %v6964
        %v6966 = vpop.f32.mrb[0].mxu0
        %6967 = vmatprep.mubr.bf16.mxu0 %v5142
        %6968 = vmatmul.mubr.bf16.gmra.mrb[0].mxu0 %v4996
        %v6969 = vpop.f32.mrb[0].mxu0
        %v6970 = vadd.f32 0.0, %v6969
        %v6971 = vpop.f32.mrb[0].mxu0
        %v6972 = vpop.f32.mrb[0].mxu0
        %v6973 = vadd.f32 0.0, %v6972
        %v6974 = vpop.f32.mrb[0].mxu0
        %6975 = vmatprep.mubr.bf16.mxu0 %v5154
        %6976 = vmatmul.mubr.bf16.gmra.mrb[0].mxu0 %v4997
        %v6977 = vpop.f32.mrb[0].mxu0
        %v6978 = vadd.f32 0.0, %v6977
        %v6979 = vpop.f32.mrb[0].mxu0
        %v6980 = vpop.f32.mrb[0].mxu0
        %v6981 = vadd.f32 0.0, %v6980
        %v6982 = vpop.f32.mrb[0].mxu0
        %6983 = vmatprep.mubr.bf16.mxu0 %v5166
        %6984 = vmatmul.mubr.bf16.gmra.mrb[0].mxu0 %v4998
        %v6985 = vpop.f32.mrb[0].mxu0
        %v6986 = vadd.f32 0.0, %v6985
        %v6987 = vpop.f32.mrb[0].mxu0
        %v6988 = vpop.f32.mrb[0].mxu0
        %v6989 = vadd.f32 0.0, %v6988
        %v6990 = vpop.f32.mrb[0].mxu0
        %6991 = vmatprep.mubr.bf16.mxu0 %v5178
        %6992 = vmatmul.mubr.bf16.gmra.mrb[0].mxu0 %v4999
        %v6993 = vpop.f32.mrb[0].mxu0
        %v6994 = vadd.f32 0.0, %v6993
        %v6995 = vpop.f32.mrb[0].mxu0
        %v6996 = vpop.f32.mrb[0].mxu0
        %v6997 = vadd.f32 0.0, %v6996
        %v6998 = vpop.f32.mrb[0].mxu0
        %6999 = vmatprep.mubr.bf16.mxu0 %v5190
        %7000 = vmatmul.mubr.bf16.gmra.mrb[0].mxu0 %v5000
        %v7001 = vpop.f32.mrb[0].mxu0
        %v7002 = vadd.f32 0.0, %v7001
        %v7003 = vpop.f32.mrb[0].mxu0
        %v7004 = vpop.f32.mrb[0].mxu0
        %v7005 = vadd.f32 0.0, %v7004
        %v7006 = vpop.f32.mrb[0].mxu0
        %7007 = vmatprep.mubr.bf16.mxu0 %v5202
        %7008 = vmatmul.mubr.bf16.gmra.mrb[0].mxu0 %v5001
        %v7009 = vpop.f32.mrb[0].mxu0
        %v7010 = vadd.f32 0.0, %v7009
        %v7011 = vpop.f32.mrb[0].mxu0
        %v7012 = vpop.f32.mrb[0].mxu0
        %v7013 = vadd.f32 0.0, %v7012
        %v7014 = vpop.f32.mrb[0].mxu0
        %7015 = vmatprep.mubr.bf16.mxu0 %v5214
        %7016 = vmatmul.mubr.bf16.gmra.mrb[0].mxu0 %v5002
        %v7017 = vpop.f32.mrb[0].mxu0
        %v7018 = vadd.f32 0.0, %v7017
        %v7019 = vpop.f32.mrb[0].mxu0
        %v7020 = vpop.f32.mrb[0].mxu0
        %v7021 = vadd.f32 0.0, %v7020
        %v7022 = vpop.f32.mrb[0].mxu0
        %7023 = vmatprep.mubr.bf16.mxu0 %v5226
        %7024 = vmatmul.mubr.bf16.gmra.mrb[0].mxu0 %v5003
        %v7025 = vpop.f32.mrb[0].mxu0
        %v7026 = vadd.f32 0.0, %v7025
        %v7027 = vpop.f32.mrb[0].mxu0
        %v7028 = vpop.f32.mrb[0].mxu0
        %v7029 = vadd.f32 0.0, %v7028
        %v7030 = vpop.f32.mrb[0].mxu0
        %7031 = vmatprep.mubr.bf16.mxu0 %v5238
        %7032 = vmatmul.mubr.bf16.gmra.mrb[0].mxu0 %v5004
        %v7033 = vpop.f32.mrb[0].mxu0
        %v7034 = vadd.f32 0.0, %v7033
        %v7035 = vpop.f32.mrb[0].mxu0
        %v7036 = vpop.f32.mrb[0].mxu0
        %v7037 = vadd.f32 0.0, %v7036
        %v7038 = vpop.f32.mrb[0].mxu0
        %7039 = vmatprep.mubr.bf16.mxu0 %v5250
        %7040 = vmatmul.mubr.bf16.gmra.mrb[0].mxu0 %v5005
        %v7041 = vpop.f32.mrb[0].mxu0
        %v7042 = vadd.f32 0.0, %v7041
        %v7043 = vpop.f32.mrb[0].mxu0
        %v7044 = vpop.f32.mrb[0].mxu0
        %v7045 = vadd.f32 0.0, %v7044
        %v7046 = vpop.f32.mrb[0].mxu0
        %7047 = vmatprep.mubr.bf16.mxu0 %v5262
        %7048 = vmatmul.mubr.bf16.gmra.mrb[0].mxu0 %v5006
        %v7049 = vpop.f32.mrb[0].mxu0
        %v7050 = vadd.f32 0.0, %v7049
        %v7051 = vpop.f32.mrb[0].mxu0
        %v7052 = vpop.f32.mrb[0].mxu0
        %v7053 = vadd.f32 0.0, %v7052
        %v7054 = vpop.f32.mrb[0].mxu0
        %7055 = vdwg.mxu0
        %7056 = vmatprep.subr.bf16.mxu0 0
        %7057 = vmatpush1.bf16.msra.mxu0 %v6767
        %7058 = vmatprep.subr.bf16.mxu0 0
        %7059 = vmatpush1.bf16.msra.mxu0 %v6768
        %7060 = vmatprep.subr.bf16.mxu0 0
        %7061 = vmatpush1.bf16.msra.mxu0 %v6769
        %7062 = vmatprep.subr.bf16.mxu0 0
        %7063 = vmatpush1.bf16.msra.mxu0 %v6770
        %7064 = vmatprep.subr.bf16.mxu0 0
        %7065 = vmatpush1.bf16.msra.mxu0 %v6771
        %7066 = vmatprep.subr.bf16.mxu0 0
        %7067 = vmatpush1.bf16.msra.mxu0 %v6772
        %7068 = vmatprep.subr.bf16.mxu0 0
        %7069 = vmatpush1.bf16.msra.mxu0 %v6773
        %7070 = vmatprep.subr.bf16.mxu0 0
        %7071 = vmatpush1.bf16.msra.mxu0 %v6774
        %7072 = vmatprep.subr.bf16.mxu0 0
        %7073 = vmatpush1.bf16.msra.mxu0 %v6775
        %7074 = vmatprep.subr.bf16.mxu0 0
        %7075 = vmatpush1.bf16.msra.mxu0 %v6776
        %7076 = vmatprep.subr.bf16.mxu0 0
        %7077 = vmatpush1.bf16.msra.mxu0 %v6777
        %7078 = vmatprep.subr.bf16.mxu0 0
        %7079 = vmatpush1.bf16.msra.mxu0 %v6778
        %7080 = vmatprep.subr.bf16.mxu0 0
        %7081 = vmatpush1.bf16.msra.mxu0 %v6779
        %7082 = vmatprep.subr.bf16.mxu0 0
        %7083 = vmatpush1.bf16.msra.mxu0 %v6780
        %7084 = vmatprep.subr.bf16.mxu0 0
        %7085 = vmatpush1.bf16.msra.mxu0 %v6781
        %7086 = vmatprep.subr.bf16.mxu0 0
        %7087 = vmatpush1.bf16.msra.mxu0 %v6782
        %7088 = vmatprep.mubr.bf16.mxu0 %v5455
        %7089 = vmatmul.mubr.bf16.gmra.mrb[0].mxu0 %v5329
        %v7090 = vpop.f32.mrb[0].mxu0
        %v7091 = vadd.f32 %v6930, %v7090
        %v7092 = vpop.f32.mrb[0].mxu0
        %v7093 = vpop.f32.mrb[0].mxu0
        %v7094 = vadd.f32 %v6933, %v7093
        %v7095 = vpop.f32.mrb[0].mxu0
        %7096 = vmatprep.mubr.bf16.mxu0 %v5456
        %7097 = vmatmul.mubr.bf16.gmra.mrb[0].mxu0 %v5332
        %v7098 = vpop.f32.mrb[0].mxu0
        %v7099 = vadd.f32 %v6938, %v7098
        %v7100 = vpop.f32.mrb[0].mxu0
        %v7101 = vpop.f32.mrb[0].mxu0
        %v7102 = vadd.f32 %v6941, %v7101
        %v7103 = vpop.f32.mrb[0].mxu0
        %7104 = vmatprep.mubr.bf16.mxu0 %v5457
        %7105 = vmatmul.mubr.bf16.gmra.mrb[0].mxu0 %v5335
        %v7106 = vpop.f32.mrb[0].mxu0
        %v7107 = vadd.f32 %v6946, %v7106
        %v7108 = vpop.f32.mrb[0].mxu0
        %v7109 = vpop.f32.mrb[0].mxu0
        %v7110 = vadd.f32 %v6949, %v7109
        %v7111 = vpop.f32.mrb[0].mxu0
        %7112 = vmatprep.mubr.bf16.mxu0 %v5458
        %7113 = vmatmul.mubr.bf16.gmra.mrb[0].mxu0 %v5338
        %v7114 = vpop.f32.mrb[0].mxu0
        %v7115 = vadd.f32 %v6954, %v7114
        %v7116 = vpop.f32.mrb[0].mxu0
        %v7117 = vpop.f32.mrb[0].mxu0
        %v7118 = vadd.f32 %v6957, %v7117
        %v7119 = vpop.f32.mrb[0].mxu0
        %7120 = vmatprep.mubr.bf16.mxu0 %v5459
        %7121 = vmatmul.mubr.bf16.gmra.mrb[0].mxu0 %v5341
        %v7122 = vpop.f32.mrb[0].mxu0
        %v7123 = vadd.f32 %v6962, %v7122
        %v7124 = vpop.f32.mrb[0].mxu0
        %v7125 = vpop.f32.mrb[0].mxu0
        %v7126 = vadd.f32 %v6965, %v7125
        %v7127 = vpop.f32.mrb[0].mxu0
        %7128 = vmatprep.mubr.bf16.mxu0 %v5460
        %7129 = vmatmul.mubr.bf16.gmra.mrb[0].mxu0 %v5344
        %v7130 = vpop.f32.mrb[0].mxu0
        %v7131 = vadd.f32 %v6970, %v7130
        %v7132 = vpop.f32.mrb[0].mxu0
        %v7133 = vpop.f32.mrb[0].mxu0
        %v7134 = vadd.f32 %v6973, %v7133
        %v7135 = vpop.f32.mrb[0].mxu0
        %7136 = vmatprep.mubr.bf16.mxu0 %v5461
        %7137 = vmatmul.mubr.bf16.gmra.mrb[0].mxu0 %v5347
        %v7138 = vpop.f32.mrb[0].mxu0
        %v7139 = vadd.f32 %v6978, %v7138
        %v7140 = vpop.f32.mrb[0].mxu0
        %v7141 = vpop.f32.mrb[0].mxu0
        %v7142 = vadd.f32 %v6981, %v7141
        %v7143 = vpop.f32.mrb[0].mxu0
        %7144 = vmatprep.mubr.bf16.mxu0 %v5462
        %7145 = vmatmul.mubr.bf16.gmra.mrb[0].mxu0 %v5350
        %v7146 = vpop.f32.mrb[0].mxu0
        %v7147 = vadd.f32 %v6986, %v7146
        %v7148 = vpop.f32.mrb[0].mxu0
        %v7149 = vpop.f32.mrb[0].mxu0
        %v7150 = vadd.f32 %v6989, %v7149
        %v7151 = vpop.f32.mrb[0].mxu0
        %7152 = vmatprep.mubr.bf16.mxu0 %v5463
        %7153 = vmatmul.mubr.bf16.gmra.mrb[0].mxu0 %v5353
        %v7154 = vpop.f32.mrb[0].mxu0
        %v7155 = vadd.f32 %v6994, %v7154
        %v7156 = vpop.f32.mrb[0].mxu0
        %v7157 = vpop.f32.mrb[0].mxu0
        %v7158 = vadd.f32 %v6997, %v7157
        %v7159 = vpop.f32.mrb[0].mxu0
        %7160 = vmatprep.mubr.bf16.mxu0 %v5464
        %7161 = vmatmul.mubr.bf16.gmra.mrb[0].mxu0 %v5356
        %v7162 = vpop.f32.mrb[0].mxu0
        %v7163 = vadd.f32 %v7002, %v7162
        %v7164 = vpop.f32.mrb[0].mxu0
        %v7165 = vpop.f32.mrb[0].mxu0
        %v7166 = vadd.f32 %v7005, %v7165
        %v7167 = vpop.f32.mrb[0].mxu0
        %7168 = vmatprep.mubr.bf16.mxu0 %v5465
        %7169 = vmatmul.mubr.bf16.gmra.mrb[0].mxu0 %v5359
        %v7170 = vpop.f32.mrb[0].mxu0
        %v7171 = vadd.f32 %v7010, %v7170
        %v7172 = vpop.f32.mrb[0].mxu0
        %v7173 = vpop.f32.mrb[0].mxu0
        %v7174 = vadd.f32 %v7013, %v7173
        %v7175 = vpop.f32.mrb[0].mxu0
        %7176 = vmatprep.mubr.bf16.mxu0 %v5466
        %7177 = vmatmul.mubr.bf16.gmra.mrb[0].mxu0 %v5362
        %v7178 = vpop.f32.mrb[0].mxu0
        %v7179 = vadd.f32 %v7018, %v7178
        %v7180 = vpop.f32.mrb[0].mxu0
        %v7181 = vpop.f32.mrb[0].mxu0
        %v7182 = vadd.f32 %v7021, %v7181
        %v7183 = vpop.f32.mrb[0].mxu0
        %7184 = vmatprep.mubr.bf16.mxu0 %v5467
        %7185 = vmatmul.mubr.bf16.gmra.mrb[0].mxu0 %v5365
        %v7186 = vpop.f32.mrb[0].mxu0
        %v7187 = vadd.f32 %v7026, %v7186
        %v7188 = vpop.f32.mrb[0].mxu0
        %v7189 = vpop.f32.mrb[0].mxu0
        %v7190 = vadd.f32 %v7029, %v7189
        %v7191 = vpop.f32.mrb[0].mxu0
        %7192 = vmatprep.mubr.bf16.mxu0 %v5468
        %7193 = vmatmul.mubr.bf16.gmra.mrb[0].mxu0 %v5368
        %v7194 = vpop.f32.mrb[0].mxu0
        %v7195 = vadd.f32 %v7034, %v7194
        %v7196 = vpop.f32.mrb[0].mxu0
        %v7197 = vpop.f32.mrb[0].mxu0
        %v7198 = vadd.f32 %v7037, %v7197
        %v7199 = vpop.f32.mrb[0].mxu0
        %7200 = vmatprep.mubr.bf16.mxu0 %v5469
        %7201 = vmatmul.mubr.bf16.gmra.mrb[0].mxu0 %v5371
        %v7202 = vpop.f32.mrb[0].mxu0
        %v7203 = vadd.f32 %v7042, %v7202
        %v7204 = vpop.f32.mrb[0].mxu0
        %v7205 = vpop.f32.mrb[0].mxu0
        %v7206 = vadd.f32 %v7045, %v7205
        %v7207 = vpop.f32.mrb[0].mxu0
        %7208 = vmatprep.mubr.bf16.mxu0 %v5470
        %7209 = vmatmul.mubr.bf16.gmra.mrb[0].mxu0 %v5374
        %v7210 = vpop.f32.mrb[0].mxu0
        %v7211 = vadd.f32 %v7050, %v7210
        %v7212 = vpop.f32.mrb[0].mxu0
        %v7213 = vpop.f32.mrb[0].mxu0
        %v7214 = vadd.f32 %v7053, %v7213
        %v7215 = vpop.f32.mrb[0].mxu0
        %7216 = vdwg.mxu0
        %7217 = vmatprep.subr.bf16.mxu0 0
        %7218 = vmatpush1.bf16.msra.mxu0 %v6783
        %7219 = vmatprep.subr.bf16.mxu0 0
        %7220 = vmatpush1.bf16.msra.mxu0 %v6784
        %7221 = vmatprep.subr.bf16.mxu0 0
        %7222 = vmatpush1.bf16.msra.mxu0 %v6785
        %7223 = vmatprep.subr.bf16.mxu0 0
        %7224 = vmatpush1.bf16.msra.mxu0 %v6786
        %7225 = vmatprep.subr.bf16.mxu0 0
        %7226 = vmatpush1.bf16.msra.mxu0 %v6787
        %7227 = vmatprep.subr.bf16.mxu0 0
        %7228 = vmatpush1.bf16.msra.mxu0 %v6788
        %7229 = vmatprep.subr.bf16.mxu0 0
        %7230 = vmatpush1.bf16.msra.mxu0 %v6789
        %7231 = vmatprep.subr.bf16.mxu0 0
        %7232 = vmatpush1.bf16.msra.mxu0 %v6790
        %7233 = vmatprep.subr.bf16.mxu0 0
        %7234 = vmatpush1.bf16.msra.mxu0 %v6791
        %7235 = vmatprep.subr.bf16.mxu0 0
        %7236 = vmatpush1.bf16.msra.mxu0 %v6792
        %7237 = vmatprep.subr.bf16.mxu0 0
        %7238 = vmatpush1.bf16.msra.mxu0 %v6793
        %7239 = vmatprep.subr.bf16.mxu0 0
        %7240 = vmatpush1.bf16.msra.mxu0 %v6794
        %7241 = vmatprep.subr.bf16.mxu0 0
        %7242 = vmatpush1.bf16.msra.mxu0 %v6795
        %7243 = vmatprep.subr.bf16.mxu0 0
        %7244 = vmatpush1.bf16.msra.mxu0 %v6796
        %7245 = vmatprep.subr.bf16.mxu0 0
        %7246 = vmatpush1.bf16.msra.mxu0 %v6797
        %7247 = vmatprep.subr.bf16.mxu0 0
        %7248 = vmatpush1.bf16.msra.mxu0 %v6798
        %7249 = vmatprep.mubr.bf16.mxu0 %v5793
        %7250 = vmatmul.mubr.bf16.gmra.mrb[0].mxu0 %v5546
        %v7251 = vpop.f32.mrb[0].mxu0
        %v7252 = vadd.f32 %v7091, %v7251
        %v7253 = vpop.f32.mrb[0].mxu0
        %v7254 = vpop.f32.mrb[0].mxu0
        %v7255 = vadd.f32 %v7094, %v7254
        %v7256 = vpop.f32.mrb[0].mxu0
        %7257 = vmatprep.mubr.bf16.mxu0 %v5796
        %7258 = vmatmul.mubr.bf16.gmra.mrb[0].mxu0 %v5558
        %v7259 = vpop.f32.mrb[0].mxu0
        %v7260 = vadd.f32 %v7099, %v7259
        %v7261 = vpop.f32.mrb[0].mxu0
        %v7262 = vpop.f32.mrb[0].mxu0
        %v7263 = vadd.f32 %v7102, %v7262
        %v7264 = vpop.f32.mrb[0].mxu0
        %7265 = vmatprep.mubr.bf16.mxu0 %v5799
        %7266 = vmatmul.mubr.bf16.gmra.mrb[0].mxu0 %v5570
        %v7267 = vpop.f32.mrb[0].mxu0
        %v7268 = vadd.f32 %v7107, %v7267
        %v7269 = vpop.f32.mrb[0].mxu0
        %v7270 = vpop.f32.mrb[0].mxu0
        %v7271 = vadd.f32 %v7110, %v7270
        %v7272 = vpop.f32.mrb[0].mxu0
        %7273 = vmatprep.mubr.bf16.mxu0 %v5802
        %7274 = vmatmul.mubr.bf16.gmra.mrb[0].mxu0 %v5582
        %v7275 = vpop.f32.mrb[0].mxu0
        %v7276 = vadd.f32 %v7115, %v7275
        %v7277 = vpop.f32.mrb[0].mxu0
        %v7278 = vpop.f32.mrb[0].mxu0
        %v7279 = vadd.f32 %v7118, %v7278
        %v7280 = vpop.f32.mrb[0].mxu0
        %7281 = vmatprep.mubr.bf16.mxu0 %v5805
        %7282 = vmatmul.mubr.bf16.gmra.mrb[0].mxu0 %v5594
        %v7283 = vpop.f32.mrb[0].mxu0
        %v7284 = vadd.f32 %v7123, %v7283
        %v7285 = vpop.f32.mrb[0].mxu0
        %v7286 = vpop.f32.mrb[0].mxu0
        %v7287 = vadd.f32 %v7126, %v7286
        %v7288 = vpop.f32.mrb[0].mxu0
        %7289 = vmatprep.mubr.bf16.mxu0 %v5808
        %7290 = vmatmul.mubr.bf16.gmra.mrb[0].mxu0 %v5606
        %v7291 = vpop.f32.mrb[0].mxu0
        %v7292 = vadd.f32 %v7131, %v7291
        %v7293 = vpop.f32.mrb[0].mxu0
        %v7294 = vpop.f32.mrb[0].mxu0
        %v7295 = vadd.f32 %v7134, %v7294
        %v7296 = vpop.f32.mrb[0].mxu0
        %7297 = vmatprep.mubr.bf16.mxu0 %v5811
        %7298 = vmatmul.mubr.bf16.gmra.mrb[0].mxu0 %v5618
        %v7299 = vpop.f32.mrb[0].mxu0
        %v7300 = vadd.f32 %v7139, %v7299
        %v7301 = vpop.f32.mrb[0].mxu0
        %v7302 = vpop.f32.mrb[0].mxu0
        %v7303 = vadd.f32 %v7142, %v7302
        %v7304 = vpop.f32.mrb[0].mxu0
        %7305 = vmatprep.mubr.bf16.mxu0 %v5814
        %7306 = vmatmul.mubr.bf16.gmra.mrb[0].mxu0 %v5630
        %v7307 = vpop.f32.mrb[0].mxu0
        %v7308 = vadd.f32 %v7147, %v7307
        %v7309 = vpop.f32.mrb[0].mxu0
        %v7310 = vpop.f32.mrb[0].mxu0
        %v7311 = vadd.f32 %v7150, %v7310
        %v7312 = vpop.f32.mrb[0].mxu0
        %7313 = vmatprep.mubr.bf16.mxu0 %v5817
        %7314 = vmatmul.mubr.bf16.gmra.mrb[0].mxu0 %v5642
        %v7315 = vpop.f32.mrb[0].mxu0
        %v7316 = vadd.f32 %v7155, %v7315
        %v7317 = vpop.f32.mrb[0].mxu0
        %v7318 = vpop.f32.mrb[0].mxu0
        %v7319 = vadd.f32 %v7158, %v7318
        %v7320 = vpop.f32.mrb[0].mxu0
        %7321 = vmatprep.mubr.bf16.mxu0 %v5820
        %7322 = vmatmul.mubr.bf16.gmra.mrb[0].mxu0 %v5654
        %v7323 = vpop.f32.mrb[0].mxu0
        %v7324 = vadd.f32 %v7163, %v7323
        %v7325 = vpop.f32.mrb[0].mxu0
        %v7326 = vpop.f32.mrb[0].mxu0
        %v7327 = vadd.f32 %v7166, %v7326
        %v7328 = vpop.f32.mrb[0].mxu0
        %7329 = vmatprep.mubr.bf16.mxu0 %v5823
        %7330 = vmatmul.mubr.bf16.gmra.mrb[0].mxu0 %v5666
        %v7331 = vpop.f32.mrb[0].mxu0
        %v7332 = vadd.f32 %v7171, %v7331
        %v7333 = vpop.f32.mrb[0].mxu0
        %v7334 = vpop.f32.mrb[0].mxu0
        %v7335 = vadd.f32 %v7174, %v7334
        %v7336 = vpop.f32.mrb[0].mxu0
        %7337 = vmatprep.mubr.bf16.mxu0 %v5826
        %7338 = vmatmul.mubr.bf16.gmra.mrb[0].mxu0 %v5678
        %v7339 = vpop.f32.mrb[0].mxu0
        %v7340 = vadd.f32 %v7179, %v7339
        %v7341 = vpop.f32.mrb[0].mxu0
        %v7342 = vpop.f32.mrb[0].mxu0
        %v7343 = vadd.f32 %v7182, %v7342
        %v7344 = vpop.f32.mrb[0].mxu0
        %7345 = vmatprep.mubr.bf16.mxu0 %v5829
        %7346 = vmatmul.mubr.bf16.gmra.mrb[0].mxu0 %v5690
        %v7347 = vpop.f32.mrb[0].mxu0
        %v7348 = vadd.f32 %v7187, %v7347
        %v7349 = vpop.f32.mrb[0].mxu0
        %v7350 = vpop.f32.mrb[0].mxu0
        %v7351 = vadd.f32 %v7190, %v7350
        %v7352 = vpop.f32.mrb[0].mxu0
        %7353 = vmatprep.mubr.bf16.mxu0 %v5832
        %7354 = vmatmul.mubr.bf16.gmra.mrb[0].mxu0 %v5702
        %v7355 = vpop.f32.mrb[0].mxu0
        %v7356 = vadd.f32 %v7195, %v7355
        %v7357 = vpop.f32.mrb[0].mxu0
        %v7358 = vpop.f32.mrb[0].mxu0
        %v7359 = vadd.f32 %v7198, %v7358
        %v7360 = vpop.f32.mrb[0].mxu0
        %7361 = vmatprep.mubr.bf16.mxu0 %v5835
        %7362 = vmatmul.mubr.bf16.gmra.mrb[0].mxu0 %v5714
        %v7363 = vpop.f32.mrb[0].mxu0
        %v7364 = vadd.f32 %v7203, %v7363
        %v7365 = vpop.f32.mrb[0].mxu0
        %v7366 = vpop.f32.mrb[0].mxu0
        %v7367 = vadd.f32 %v7206, %v7366
        %v7368 = vpop.f32.mrb[0].mxu0
        %7369 = vmatprep.mubr.bf16.mxu0 %v5838
        %7370 = vmatmul.mubr.bf16.gmra.mrb[0].mxu0 %v5726
        %v7371 = vpop.f32.mrb[0].mxu0
        %v7372 = vadd.f32 %v7211, %v7371
        %v7373 = vpop.f32.mrb[0].mxu0
        %v7374 = vpop.f32.mrb[0].mxu0
        %v7375 = vadd.f32 %v7214, %v7374
        %v7376 = vpop.f32.mrb[0].mxu0
        %7377 = vdwg.mxu0
        %7378 = vmatprep.subr.bf16.mxu0 0
        %7379 = vmatpush1.bf16.msra.mxu0 %v6799
        %7380 = vmatprep.subr.bf16.mxu0 0
        %7381 = vmatpush1.bf16.msra.mxu0 %v6800
        %7382 = vmatprep.subr.bf16.mxu0 0
        %7383 = vmatpush1.bf16.msra.mxu0 %v6801
        %7384 = vmatprep.subr.bf16.mxu0 0
        %7385 = vmatpush1.bf16.msra.mxu0 %v6802
        %7386 = vmatprep.subr.bf16.mxu0 0
        %7387 = vmatpush1.bf16.msra.mxu0 %v6803
        %7388 = vmatprep.subr.bf16.mxu0 0
        %7389 = vmatpush1.bf16.msra.mxu0 %v6804
        %7390 = vmatprep.subr.bf16.mxu0 0
        %7391 = vmatpush1.bf16.msra.mxu0 %v6805
        %7392 = vmatprep.subr.bf16.mxu0 0
        %7393 = vmatpush1.bf16.msra.mxu0 %v6806
        %7394 = vmatprep.subr.bf16.mxu0 0
        %7395 = vmatpush1.bf16.msra.mxu0 %v6807
        %7396 = vmatprep.subr.bf16.mxu0 0
        %7397 = vmatpush1.bf16.msra.mxu0 %v6808
        %7398 = vmatprep.subr.bf16.mxu0 0
        %7399 = vmatpush1.bf16.msra.mxu0 %v6809
        %7400 = vmatprep.subr.bf16.mxu0 0
        %7401 = vmatpush1.bf16.msra.mxu0 %v6810
        %7402 = vmatprep.subr.bf16.mxu0 0
        %7403 = vmatpush1.bf16.msra.mxu0 %v6811
        %7404 = vmatprep.subr.bf16.mxu0 0
        %7405 = vmatpush1.bf16.msra.mxu0 %v6812
        %7406 = vmatprep.subr.bf16.mxu0 0
        %7407 = vmatpush1.bf16.msra.mxu0 %v6813
        %7408 = vmatprep.subr.bf16.mxu0 0
        %7409 = vmatpush1.bf16.msra.mxu0 %v6814
        %7410 = vmatprep.mubr.bf16.mxu0 %v6010
        %7411 = vmatmul.mubr.bf16.gmra.mrb[0].mxu0 %v5919
        %v7412 = vpop.f32.mrb[0].mxu0
        %v7413 = vadd.f32 %v7252, %v7412
        %v7414 = vpop.f32.mrb[0].mxu0
        %v7415 = vpop.f32.mrb[0].mxu0
        %v7416 = vadd.f32 %v7255, %v7415
        %v7417 = vpop.f32.mrb[0].mxu0
        %7418 = vmatprep.mubr.bf16.mxu0 %v6022
        %7419 = vmatmul.mubr.bf16.gmra.mrb[0].mxu0 %v5920
        %v7420 = vpop.f32.mrb[0].mxu0
        %v7421 = vadd.f32 %v7260, %v7420
        %v7422 = vpop.f32.mrb[0].mxu0
        %v7423 = vpop.f32.mrb[0].mxu0
        %v7424 = vadd.f32 %v7263, %v7423
        %v7425 = vpop.f32.mrb[0].mxu0
        %7426 = vmatprep.mubr.bf16.mxu0 %v6034
        %7427 = vmatmul.mubr.bf16.gmra.mrb[0].mxu0 %v5921
        %v7428 = vpop.f32.mrb[0].mxu0
        %v7429 = vadd.f32 %v7268, %v7428
        %v7430 = vpop.f32.mrb[0].mxu0
        %v7431 = vpop.f32.mrb[0].mxu0
        %v7432 = vadd.f32 %v7271, %v7431
        %v7433 = vpop.f32.mrb[0].mxu0
        %7434 = vmatprep.mubr.bf16.mxu0 %v6046
        %7435 = vmatmul.mubr.bf16.gmra.mrb[0].mxu0 %v5922
        %v7436 = vpop.f32.mrb[0].mxu0
        %v7437 = vadd.f32 %v7276, %v7436
        %v7438 = vpop.f32.mrb[0].mxu0
        %v7439 = vpop.f32.mrb[0].mxu0
        %v7440 = vadd.f32 %v7279, %v7439
        %v7441 = vpop.f32.mrb[0].mxu0
        %7442 = vmatprep.mubr.bf16.mxu0 %v6058
        %7443 = vmatmul.mubr.bf16.gmra.mrb[0].mxu0 %v5923
        %v7444 = vpop.f32.mrb[0].mxu0
        %v7445 = vadd.f32 %v7284, %v7444
        %v7446 = vpop.f32.mrb[0].mxu0
        %v7447 = vpop.f32.mrb[0].mxu0
        %v7448 = vadd.f32 %v7287, %v7447
        %v7449 = vpop.f32.mrb[0].mxu0
        %7450 = vmatprep.mubr.bf16.mxu0 %v6070
        %7451 = vmatmul.mubr.bf16.gmra.mrb[0].mxu0 %v5924
        %v7452 = vpop.f32.mrb[0].mxu0
        %v7453 = vadd.f32 %v7292, %v7452
        %v7454 = vpop.f32.mrb[0].mxu0
        %v7455 = vpop.f32.mrb[0].mxu0
        %v7456 = vadd.f32 %v7295, %v7455
        %v7457 = vpop.f32.mrb[0].mxu0
        %7458 = vmatprep.mubr.bf16.mxu0 %v6082
        %7459 = vmatmul.mubr.bf16.gmra.mrb[0].mxu0 %v5925
        %v7460 = vpop.f32.mrb[0].mxu0
        %v7461 = vadd.f32 %v7300, %v7460
        %v7462 = vpop.f32.mrb[0].mxu0
        %v7463 = vpop.f32.mrb[0].mxu0
        %v7464 = vadd.f32 %v7303, %v7463
        %v7465 = vpop.f32.mrb[0].mxu0
        %7466 = vmatprep.mubr.bf16.mxu0 %v6094
        %7467 = vmatmul.mubr.bf16.gmra.mrb[0].mxu0 %v5926
        %v7468 = vpop.f32.mrb[0].mxu0
        %v7469 = vadd.f32 %v7308, %v7468
        %v7470 = vpop.f32.mrb[0].mxu0
        %v7471 = vpop.f32.mrb[0].mxu0
        %v7472 = vadd.f32 %v7311, %v7471
        %v7473 = vpop.f32.mrb[0].mxu0
        %7474 = vmatprep.mubr.bf16.mxu0 %v6106
        %7475 = vmatmul.mubr.bf16.gmra.mrb[0].mxu0 %v5927
        %v7476 = vpop.f32.mrb[0].mxu0
        %v7477 = vadd.f32 %v7316, %v7476
        %v7478 = vpop.f32.mrb[0].mxu0
        %v7479 = vpop.f32.mrb[0].mxu0
        %v7480 = vadd.f32 %v7319, %v7479
        %v7481 = vpop.f32.mrb[0].mxu0
        %7482 = vmatprep.mubr.bf16.mxu0 %v6118
        %7483 = vmatmul.mubr.bf16.gmra.mrb[0].mxu0 %v5928
        %v7484 = vpop.f32.mrb[0].mxu0
        %v7485 = vadd.f32 %v7324, %v7484
        %v7486 = vpop.f32.mrb[0].mxu0
        %v7487 = vpop.f32.mrb[0].mxu0
        %v7488 = vadd.f32 %v7327, %v7487
        %v7489 = vpop.f32.mrb[0].mxu0
        %7490 = vmatprep.mubr.bf16.mxu0 %v6130
        %7491 = vmatmul.mubr.bf16.gmra.mrb[0].mxu0 %v5929
        %v7492 = vpop.f32.mrb[0].mxu0
        %v7493 = vadd.f32 %v7332, %v7492
        %v7494 = vpop.f32.mrb[0].mxu0
        %v7495 = vpop.f32.mrb[0].mxu0
        %v7496 = vadd.f32 %v7335, %v7495
        %v7497 = vpop.f32.mrb[0].mxu0
        %7498 = vmatprep.mubr.bf16.mxu0 %v6142
        %7499 = vmatmul.mubr.bf16.gmra.mrb[0].mxu0 %v5930
        %v7500 = vpop.f32.mrb[0].mxu0
        %v7501 = vadd.f32 %v7340, %v7500
        %v7502 = vpop.f32.mrb[0].mxu0
        %v7503 = vpop.f32.mrb[0].mxu0
        %v7504 = vadd.f32 %v7343, %v7503
        %v7505 = vpop.f32.mrb[0].mxu0
        %7506 = vmatprep.mubr.bf16.mxu0 %v6154
        %7507 = vmatmul.mubr.bf16.gmra.mrb[0].mxu0 %v5931
        %v7508 = vpop.f32.mrb[0].mxu0
        %v7509 = vadd.f32 %v7348, %v7508
        %v7510 = vpop.f32.mrb[0].mxu0
        %v7511 = vpop.f32.mrb[0].mxu0
        %v7512 = vadd.f32 %v7351, %v7511
        %v7513 = vpop.f32.mrb[0].mxu0
        %7514 = vmatprep.mubr.bf16.mxu0 %v6166
        %7515 = vmatmul.mubr.bf16.gmra.mrb[0].mxu0 %v5932
        %v7516 = vpop.f32.mrb[0].mxu0
        %v7517 = vadd.f32 %v7356, %v7516
        %v7518 = vpop.f32.mrb[0].mxu0
        %v7519 = vpop.f32.mrb[0].mxu0
        %v7520 = vadd.f32 %v7359, %v7519
        %v7521 = vpop.f32.mrb[0].mxu0
        %7522 = vmatprep.mubr.bf16.mxu0 %v6178
        %7523 = vmatmul.mubr.bf16.gmra.mrb[0].mxu0 %v5933
        %v7524 = vpop.f32.mrb[0].mxu0
        %v7525 = vadd.f32 %v7364, %v7524
        %v7526 = vpop.f32.mrb[0].mxu0
        %v7527 = vpop.f32.mrb[0].mxu0
        %v7528 = vadd.f32 %v7367, %v7527
        %v7529 = vpop.f32.mrb[0].mxu0
        %7530 = vmatprep.mubr.bf16.mxu0 %v6190
        %7531 = vmatmul.mubr.bf16.gmra.mrb[0].mxu0 %v5934
        %v7532 = vpop.f32.mrb[0].mxu0
        %v7533 = vadd.f32 %v7372, %v7532
        %v7534 = vpop.f32.mrb[0].mxu0
        %v7535 = vpop.f32.mrb[0].mxu0
        %v7536 = vadd.f32 %v7375, %v7535
        %v7537 = vpop.f32.mrb[0].mxu0
        %7538 = vdwg.mxu0
        %7539 = vmatprep.subr.bf16.mxu0 0
        %7540 = vmatpush1.bf16.msra.mxu0 %v6815
        %7541 = vmatprep.subr.bf16.mxu0 0
        %7542 = vmatpush1.bf16.msra.mxu0 %v6816
        %7543 = vmatprep.subr.bf16.mxu0 0
        %7544 = vmatpush1.bf16.msra.mxu0 %v6817
        %7545 = vmatprep.subr.bf16.mxu0 0
        %7546 = vmatpush1.bf16.msra.mxu0 %v6818
        %7547 = vmatprep.subr.bf16.mxu0 0
        %7548 = vmatpush1.bf16.msra.mxu0 %v6819
        %7549 = vmatprep.subr.bf16.mxu0 0
        %7550 = vmatpush1.bf16.msra.mxu0 %v6820
        %7551 = vmatprep.subr.bf16.mxu0 0
        %7552 = vmatpush1.bf16.msra.mxu0 %v6821
        %7553 = vmatprep.subr.bf16.mxu0 0
        %7554 = vmatpush1.bf16.msra.mxu0 %v6822
        %7555 = vmatprep.subr.bf16.mxu0 0
        %7556 = vmatpush1.bf16.msra.mxu0 0
        %7557 = vmatprep.subr.bf16.mxu0 0
        %7558 = vmatpush1.bf16.msra.mxu0 0
        %7559 = vmatprep.subr.bf16.mxu0 0
        %7560 = vmatpush1.bf16.msra.mxu0 0
        %7561 = vmatprep.subr.bf16.mxu0 0
        %7562 = vmatpush1.bf16.msra.mxu0 0
        %7563 = vmatprep.subr.bf16.mxu0 0
        %7564 = vmatpush1.bf16.msra.mxu0 0
        %7565 = vmatprep.subr.bf16.mxu0 0
        %7566 = vmatpush1.bf16.msra.mxu0 0
        %7567 = vmatprep.subr.bf16.mxu0 0
        %7568 = vmatpush1.bf16.msra.mxu0 0
        %7569 = vmatprep.subr.bf16.mxu0 0
        %7570 = vmatpush1.bf16.msra.mxu0 0
        %7571 = vmatprep.mubr.bf16.mxu0 0
        %7572 = vmatmul.mubr.bf16.gmra.mrb[0].mxu0 %v6257
        %v7573 = vpop.f32.mrb[0].mxu0
        %v7574 = vadd.f32 %v7413, %v7573
        %v7575 = vpop.f32.mrb[0].mxu0
        %v7576 = vpop.f32.mrb[0].mxu0
        %v7577 = vadd.f32 %v7416, %v7576
        %v7578 = vpop.f32.mrb[0].mxu0
        %7579 = vmatprep.mubr.bf16.mxu0 0
        %7580 = vmatmul.mubr.bf16.gmra.mrb[0].mxu0 %v6260
        %v7581 = vpop.f32.mrb[0].mxu0
        %v7582 = vadd.f32 %v7421, %v7581
        %v7583 = vpop.f32.mrb[0].mxu0
        %v7584 = vpop.f32.mrb[0].mxu0
        %v7585 = vadd.f32 %v7424, %v7584
        %v7586 = vpop.f32.mrb[0].mxu0
        %7587 = vmatprep.mubr.bf16.mxu0 0
        %7588 = vmatmul.mubr.bf16.gmra.mrb[0].mxu0 %v6263
        %v7589 = vpop.f32.mrb[0].mxu0
        %v7590 = vadd.f32 %v7429, %v7589
        %v7591 = vpop.f32.mrb[0].mxu0
        %v7592 = vpop.f32.mrb[0].mxu0
        %v7593 = vadd.f32 %v7432, %v7592
        %v7594 = vpop.f32.mrb[0].mxu0
        %7595 = vmatprep.mubr.bf16.mxu0 0
        %7596 = vmatmul.mubr.bf16.gmra.mrb[0].mxu0 %v6266
        %v7597 = vpop.f32.mrb[0].mxu0
        %v7598 = vadd.f32 %v7437, %v7597
        %v7599 = vpop.f32.mrb[0].mxu0
        %v7600 = vpop.f32.mrb[0].mxu0
        %v7601 = vadd.f32 %v7440, %v7600
        %v7602 = vpop.f32.mrb[0].mxu0
        %7603 = vmatprep.mubr.bf16.mxu0 0
        %7604 = vmatmul.mubr.bf16.gmra.mrb[0].mxu0 %v6269
        %v7605 = vpop.f32.mrb[0].mxu0
        %v7606 = vadd.f32 %v7445, %v7605
        %v7607 = vpop.f32.mrb[0].mxu0
        %v7608 = vpop.f32.mrb[0].mxu0
        %v7609 = vadd.f32 %v7448, %v7608
        %v7610 = vpop.f32.mrb[0].mxu0
        %7611 = vmatprep.mubr.bf16.mxu0 0
        %7612 = vmatmul.mubr.bf16.gmra.mrb[0].mxu0 %v6272
        %v7613 = vpop.f32.mrb[0].mxu0
        %v7614 = vadd.f32 %v7453, %v7613
        %v7615 = vpop.f32.mrb[0].mxu0
        %v7616 = vpop.f32.mrb[0].mxu0
        %v7617 = vadd.f32 %v7456, %v7616
        %v7618 = vpop.f32.mrb[0].mxu0
        %7619 = vmatprep.mubr.bf16.mxu0 0
        %7620 = vmatmul.mubr.bf16.gmra.mrb[0].mxu0 %v6275
        %v7621 = vpop.f32.mrb[0].mxu0
        %v7622 = vadd.f32 %v7461, %v7621
        %v7623 = vpop.f32.mrb[0].mxu0
        %v7624 = vpop.f32.mrb[0].mxu0
        %v7625 = vadd.f32 %v7464, %v7624
        %v7626 = vpop.f32.mrb[0].mxu0
        %7627 = vmatprep.mubr.bf16.mxu0 0
        %7628 = vmatmul.mubr.bf16.gmra.mrb[0].mxu0 %v6278
        %v7629 = vpop.f32.mrb[0].mxu0
        %v7630 = vadd.f32 %v7469, %v7629
        %v7631 = vpop.f32.mrb[0].mxu0
        %v7632 = vpop.f32.mrb[0].mxu0
        %v7633 = vadd.f32 %v7472, %v7632
        %v7634 = vpop.f32.mrb[0].mxu0
        %7635 = vmatprep.mubr.bf16.mxu0 0
        %7636 = vmatmul.mubr.bf16.gmra.mrb[0].mxu0 %v6281
        %v7637 = vpop.f32.mrb[0].mxu0
        %v7638 = vadd.f32 %v7477, %v7637
        %v7639 = vpop.f32.mrb[0].mxu0
        %v7640 = vpop.f32.mrb[0].mxu0
        %v7641 = vadd.f32 %v7480, %v7640
        %v7642 = vpop.f32.mrb[0].mxu0
        %7643 = vmatprep.mubr.bf16.mxu0 0
        %7644 = vmatmul.mubr.bf16.gmra.mrb[0].mxu0 %v6284
        %v7645 = vpop.f32.mrb[0].mxu0
        %v7646 = vadd.f32 %v7485, %v7645
        %v7647 = vpop.f32.mrb[0].mxu0
        %v7648 = vpop.f32.mrb[0].mxu0
        %v7649 = vadd.f32 %v7488, %v7648
        %v7650 = vpop.f32.mrb[0].mxu0
        %7651 = vmatprep.mubr.bf16.mxu0 0
        %7652 = vmatmul.mubr.bf16.gmra.mrb[0].mxu0 %v6287
        %v7653 = vpop.f32.mrb[0].mxu0
        %v7654 = vadd.f32 %v7493, %v7653
        %v7655 = vpop.f32.mrb[0].mxu0
        %v7656 = vpop.f32.mrb[0].mxu0
        %v7657 = vadd.f32 %v7496, %v7656
        %v7658 = vpop.f32.mrb[0].mxu0
        %7659 = vmatprep.mubr.bf16.mxu0 0
        %7660 = vmatmul.mubr.bf16.gmra.mrb[0].mxu0 %v6290
        %v7661 = vpop.f32.mrb[0].mxu0
        %v7662 = vadd.f32 %v7501, %v7661
        %v7663 = vpop.f32.mrb[0].mxu0
        %v7664 = vpop.f32.mrb[0].mxu0
        %v7665 = vadd.f32 %v7504, %v7664
        %v7666 = vpop.f32.mrb[0].mxu0
        %7667 = vmatprep.mubr.bf16.mxu0 0
        %7668 = vmatmul.mubr.bf16.gmra.mrb[0].mxu0 %v6293
        %v7669 = vpop.f32.mrb[0].mxu0
        %v7670 = vadd.f32 %v7509, %v7669
        %v7671 = vpop.f32.mrb[0].mxu0
        %v7672 = vpop.f32.mrb[0].mxu0
        %v7673 = vadd.f32 %v7512, %v7672
        %v7674 = vpop.f32.mrb[0].mxu0
        %7675 = vmatprep.mubr.bf16.mxu0 0
        %7676 = vmatmul.mubr.bf16.gmra.mrb[0].mxu0 %v6296
        %v7677 = vpop.f32.mrb[0].mxu0
        %v7678 = vadd.f32 %v7517, %v7677
        %v7679 = vpop.f32.mrb[0].mxu0
        %v7680 = vpop.f32.mrb[0].mxu0
        %v7681 = vadd.f32 %v7520, %v7680
        %v7682 = vpop.f32.mrb[0].mxu0
        %7683 = vmatprep.mubr.bf16.mxu0 0
        %7684 = vmatmul.mubr.bf16.gmra.mrb[0].mxu0 %v6299
        %v7685 = vpop.f32.mrb[0].mxu0
        %v7686 = vadd.f32 %v7525, %v7685
        %v7687 = vpop.f32.mrb[0].mxu0
        %v7688 = vpop.f32.mrb[0].mxu0
        %v7689 = vadd.f32 %v7528, %v7688
        %v7690 = vpop.f32.mrb[0].mxu0
        %7691 = vmatprep.mubr.bf16.mxu0 0
        %7692 = vmatmul.mubr.bf16.gmra.mrb[0].mxu0 %v6302
        %v7693 = vpop.f32.mrb[0].mxu0
        %v7694 = vadd.f32 %v7533, %v7693
        %v7695 = vpop.f32.mrb[0].mxu0
        %v7696 = vpop.f32.mrb[0].mxu0
        %v7697 = vadd.f32 %v7536, %v7696
        %v7698 = vpop.f32.mrb[0].mxu0
        %7699 = vdwg.mxu0
        %v7700 = vld [vmem:[%s5] sm:$0x1]
        %v7702 = vlaneseq
        %v7703 = vshrl.u32 %v7702, 7
        %v7704 = vsub.s32 0, %v7703
        %v7705 = vrot.slane %v7700, %v7704
        %v7707 = vmul.f32 %v7574, %v7705
        %v7708 = vmul.f32 %v7577, %v7705
        %v7709 = vmul.f32 %v7582, %v7705
        %v7710 = vmul.f32 %v7585, %v7705
        %v7711 = vmul.f32 %v7590, %v7705
        %v7712 = vmul.f32 %v7593, %v7705
        %v7713 = vmul.f32 %v7598, %v7705
        %v7714 = vmul.f32 %v7601, %v7705
        %v7715 = vmul.f32 %v7606, %v7705
        %v7716 = vmul.f32 %v7609, %v7705
        %v7717 = vmul.f32 %v7614, %v7705
        %v7718 = vmul.f32 %v7617, %v7705
        %v7719 = vmul.f32 %v7622, %v7705
        %v7720 = vmul.f32 %v7625, %v7705
        %v7721 = vmul.f32 %v7630, %v7705
        %v7722 = vmul.f32 %v7633, %v7705
        %v7723 = vmul.f32 %v7638, %v7705
        %v7724 = vmul.f32 %v7641, %v7705
        %v7725 = vmul.f32 %v7646, %v7705
        %v7726 = vmul.f32 %v7649, %v7705
        %v7727 = vmul.f32 %v7654, %v7705
        %v7728 = vmul.f32 %v7657, %v7705
        %v7729 = vmul.f32 %v7662, %v7705
        %v7730 = vmul.f32 %v7665, %v7705
        %v7731 = vmul.f32 %v7670, %v7705
        %v7732 = vmul.f32 %v7673, %v7705
        %v7733 = vmul.f32 %v7678, %v7705
        %v7734 = vmul.f32 %v7681, %v7705
        %v7735 = vmul.f32 %v7686, %v7705
        %v7736 = vmul.f32 %v7689, %v7705
        %v7737 = vmul.f32 %v7694, %v7705
        %v7738 = vmul.f32 %v7697, %v7705
        %v7739 = vld [vmem:[%s6] sm:$0x1]
        %v7741 = vlaneseq
        %v7742 = vshrl.u32 %v7741, 7
        %v7743 = vsub.s32 0, %v7742
        %v7744 = vrot.slane %v7739, %v7743
        %v7746 = vadd.f32 %v7707, %v7744
        %v7747 = vadd.f32 %v7708, %v7744
        %v7748 = vadd.f32 %v7709, %v7744
        %v7749 = vadd.f32 %v7710, %v7744
        %v7750 = vadd.f32 %v7711, %v7744
        %v7751 = vadd.f32 %v7712, %v7744
        %v7752 = vadd.f32 %v7713, %v7744
        %v7753 = vadd.f32 %v7714, %v7744
        %v7754 = vadd.f32 %v7715, %v7744
        %v7755 = vadd.f32 %v7716, %v7744
        %v7756 = vadd.f32 %v7717, %v7744
        %v7757 = vadd.f32 %v7718, %v7744
        %v7758 = vadd.f32 %v7719, %v7744
        %v7759 = vadd.f32 %v7720, %v7744
        %v7760 = vadd.f32 %v7721, %v7744
        %v7761 = vadd.f32 %v7722, %v7744
        %v7762 = vadd.f32 %v7723, %v7744
        %v7763 = vadd.f32 %v7724, %v7744
        %v7764 = vadd.f32 %v7725, %v7744
        %v7765 = vadd.f32 %v7726, %v7744
        %v7766 = vadd.f32 %v7727, %v7744
        %v7767 = vadd.f32 %v7728, %v7744
        %v7768 = vadd.f32 %v7729, %v7744
        %v7769 = vadd.f32 %v7730, %v7744
        %v7770 = vadd.f32 %v7731, %v7744
        %v7771 = vadd.f32 %v7732, %v7744
        %v7772 = vadd.f32 %v7733, %v7744
        %v7773 = vadd.f32 %v7734, %v7744
        %v7774 = vadd.f32 %v7735, %v7744
        %v7775 = vadd.f32 %v7736, %v7744
        %v7776 = vadd.f32 %v7737, %v7744
        %v7777 = vadd.f32 %v7738, %v7744
        %v7778 = vadd.f32 %v7746, %v562
        %v7779 = vadd.f32 %v7747, %v563
        %v7780 = vadd.f32 %v7748, %v564
        %v7781 = vadd.f32 %v7749, %v565
        %v7782 = vadd.f32 %v7750, %v566
        %v7783 = vadd.f32 %v7751, %v567
        %v7784 = vadd.f32 %v7752, %v568
        %v7785 = vadd.f32 %v7753, %v569
        %v7786 = vadd.f32 %v7754, %v570
        %v7787 = vadd.f32 %v7755, %v571
        %v7788 = vadd.f32 %v7756, %v572
        %v7789 = vadd.f32 %v7757, %v573
        %v7790 = vadd.f32 %v7758, %v574
        %v7791 = vadd.f32 %v7759, %v575
        %v7792 = vadd.f32 %v7760, %v576
        %v7793 = vadd.f32 %v7761, %v577
        %v7794 = vadd.f32 %v7762, %v578
        %v7795 = vadd.f32 %v7763, %v579
        %v7796 = vadd.f32 %v7764, %v580
        %v7797 = vadd.f32 %v7765, %v581
        %v7798 = vadd.f32 %v7766, %v582
        %v7799 = vadd.f32 %v7767, %v583
        %v7800 = vadd.f32 %v7768, %v584
        %v7801 = vadd.f32 %v7769, %v585
        %v7802 = vadd.f32 %v7770, %v586
        %v7803 = vadd.f32 %v7771, %v587
        %v7804 = vadd.f32 %v7772, %v588
        %v7805 = vadd.f32 %v7773, %v589
        %v7806 = vadd.f32 %v7774, %v590
        %v7807 = vadd.f32 %v7775, %v591
        %v7808 = vadd.f32 %v7776, %v592
        %v7809 = vadd.f32 %v7777, %v593
        %v7810 = vmax.f32 %v7778, 0.0
        %v7811 = vmax.f32 %v7779, 0.0
        %v7812 = vmax.f32 %v7780, 0.0
        %v7813 = vmax.f32 %v7781, 0.0
        %v7814 = vmax.f32 %v7782, 0.0
        %v7815 = vmax.f32 %v7783, 0.0
        %v7816 = vmax.f32 %v7784, 0.0
        %v7817 = vmax.f32 %v7785, 0.0
        %v7818 = vmax.f32 %v7786, 0.0
        %v7819 = vmax.f32 %v7787, 0.0
        %v7820 = vmax.f32 %v7788, 0.0
        %v7821 = vmax.f32 %v7789, 0.0
        %v7822 = vmax.f32 %v7790, 0.0
        %v7823 = vmax.f32 %v7791, 0.0
        %v7824 = vmax.f32 %v7792, 0.0
        %v7825 = vmax.f32 %v7793, 0.0
        %v7826 = vmax.f32 %v7794, 0.0
        %v7827 = vmax.f32 %v7795, 0.0
        %v7828 = vmax.f32 %v7796, 0.0
        %v7829 = vmax.f32 %v7797, 0.0
        %v7830 = vmax.f32 %v7798, 0.0
        %v7831 = vmax.f32 %v7799, 0.0
        %v7832 = vmax.f32 %v7800, 0.0
        %v7833 = vmax.f32 %v7801, 0.0
        %v7834 = vmax.f32 %v7802, 0.0
        %v7835 = vmax.f32 %v7803, 0.0
        %v7836 = vmax.f32 %v7804, 0.0
        %v7837 = vmax.f32 %v7805, 0.0
        %v7838 = vmax.f32 %v7806, 0.0
        %v7839 = vmax.f32 %v7807, 0.0
        %v7840 = vmax.f32 %v7808, 0.0
        %v7841 = vmax.f32 %v7809, 0.0
        %7842 = vst [vmem:[%s325] sm:$0xff] %v7810
        %7843 = vst [vmem:[%s325 + $0x8] sm:$0xff] %v7811
        %7844 = vst [vmem:[%s325 + $0x10] sm:$0xff] %v7812
        %7845 = vst [vmem:[%s325 + $0x18] sm:$0xff] %v7813
        %7846 = vst [vmem:[%s325 + $0x20] sm:$0xff] %v7814
        %7847 = vst [vmem:[%s325 + $0x28] sm:$0xff] %v7815
        %7848 = vst [vmem:[%s325 + $0x30] sm:$0xff] %v7816
        %7849 = vst [vmem:[%s325 + $0x38] sm:$0xff] %v7817
        %7850 = vst [vmem:[%s325 + $0x40] sm:$0xff] %v7818
        %7851 = vst [vmem:[%s325 + $0x48] sm:$0xff] %v7819
        %7852 = vst [vmem:[%s325 + $0x50] sm:$0xff] %v7820
        %7853 = vst [vmem:[%s325 + $0x58] sm:$0xff] %v7821
        %7854 = vst [vmem:[%s325 + $0x60] sm:$0xff] %v7822
        %7855 = vst [vmem:[%s325 + $0x68] sm:$0xff] %v7823
        %7856 = vst [vmem:[%s325 + $0x70] sm:$0xff] %v7824
        %7857 = vst [vmem:[%s325 + $0x78] sm:$0xff] %v7825
        %7858 = vst [vmem:[%s325 + $0x80] sm:$0xff] %v7826
        %7859 = vst [vmem:[%s325 + $0x88] sm:$0xff] %v7827
        %7860 = vst [vmem:[%s325 + $0x90] sm:$0xff] %v7828
        %7861 = vst [vmem:[%s325 + $0x98] sm:$0xff] %v7829
        %7862 = vst [vmem:[%s325 + $0xa0] sm:$0xff] %v7830
        %7863 = vst [vmem:[%s325 + $0xa8] sm:$0xff] %v7831
        %7864 = vst [vmem:[%s325 + $0xb0] sm:$0xff] %v7832
        %7865 = vst [vmem:[%s325 + $0xb8] sm:$0xff] %v7833
        %7866 = vst [vmem:[%s325 + $0xc0] sm:$0xff] %v7834
        %7867 = vst [vmem:[%s325 + $0xc8] sm:$0xff] %v7835
        %7868 = vst [vmem:[%s325 + $0xd0] sm:$0xff] %v7836
        %7869 = vst [vmem:[%s325 + $0xd8] sm:$0xff] %v7837
        %7870 = vst [vmem:[%s325 + $0xe0] sm:$0xff] %v7838
        %7871 = vst [vmem:[%s325 + $0xe8] sm:$0xff] %v7839
        %7872 = vst [vmem:[%s325 + $0xf0] sm:$0xff] %v7840
        %7873 = vst [vmem:[%s325 + $0xf8] sm:$0xff] %v7841
        %s7874 = sand.u32 %s185, 1
        %s7875 = scalar_lea.sflag [#allocation6], %s7874
        %s7876 = sand.u32 %s185, 1
        %s7877 = smul.addr %s7876, 256
        %s7878 = scalar_lea.vmem [#allocation10], %s7877
        // Predicated region
        $region61: #{tpu_custom_call.1} parent=47 // pred_check
          %p7879 = pneg %p195
        $region62: #{tpu_custom_call.1} parent=47 // pred_check_branch
          %7881 = sbr.rel (%p7879) target = $region64
        $region63: #{tpu_custom_call.1} parent=47 // pred_region
          %s7883 = ssub.s32 4096, 4096
          %7884 = vsyncadd %s7875, %s7883
          %s7885 = smul.addr %s25, 32
          %s7886 = smul.addr %s7885, 128
          %s7887 = scalar_lea.hbm %s7, %s7886
          %s7888 = sshll.u32 %s7878, 4
          %s7889 = int_to_ptr.vmem [resolvable:$true] %s7888
          %7894 = dma.vmem_to_hbm [thread:$0]  %s7889, 4096, %s7887, %s7875, 128, 128, 8
        $region64: #{tpu_custom_call.1} parent=47 // pred_fallthru
          _
      $region48: #{tpu_custom_call.1} parent=5 // pred_fallthru
        _
      %p7895 = scmp.le.s32.totalorder 2, %s20
      // Predicated region
      $region65: #{tpu_custom_call.1} parent=5 // pred_check
        %p7896 = pneg %p7895
      $region66: #{tpu_custom_call.1} parent=5 // pred_check_branch
        %7898 = sbr.rel (%p7896) target = $region68
      $region67: #{tpu_custom_call.1} parent=5 // pred_region
        %s7899 = ssub.s32 %s20, 2
        // Predicated region
        $region69: #{tpu_custom_call.1} parent=67 // pred_check
          %p7900 = pneg %p201
        $region70: #{tpu_custom_call.1} parent=67 // pred_check_branch
          %7902 = sbr.rel (%p7900) target = $region72
        $region71: #{tpu_custom_call.1} parent=67 // pred_region
          %s7903 = sand.u32 %s186, 1
          %s7904 = scalar_lea.sflag [#allocation6], %s7903
          %s7905 = sand.u32 %s186, 1
          %s7906 = smul.addr %s7905, 256
          %s7907 = scalar_lea.vmem [#allocation10], %s7906
          %7908 = dma.done %s7904, 4096
        $region72: #{tpu_custom_call.1} parent=67 // pred_fallthru
          _
      $region68: #{tpu_custom_call.1} parent=5 // pred_fallthru
        _
    $region6: #{tpu_custom_call.1} parent=1 // loop_footer
      %s24 = sadd.s32 1, %s20
    $region7: #{tpu_custom_call.1} parent=1 // loop_footer_branch
      %19 = sbr.rel target = $region3
    $region8: #{tpu_custom_call.1} parent=1 // loop_exit
      _
    %7909 = vsyncpa [#allocation5], 1
    %s7910 = scalar_lea.sflag [#allocation5], 1
    %7911 = vsyncpa %s7910, 1
    %7912 = vsyncpa [#allocation8], 1
    %7913 = vsyncpa [#allocation6], 1
    %s7914 = scalar_lea.sflag [#allocation6], 1
    %7915 = vsyncpa %s7914, 1

</llo_original>
